<compile_context>
chip_gen: v6e
topology: v6e:2x2x1
jax: 0.10.0
libtpu: 0.0.40
codegen_flags: <defaults>
</compile_context>

<pallas_src>
import functools
import math

import numpy as np
import jax
import jax.numpy as jnp
from jax.experimental import pallas as pl
from jax.experimental.pallas import tpu as pltpu


# ----------------------------- packed-parameter layout -----------------------

_N_GLOBAL_ROWS = 5          # enc_emb.b, enc_norm.g, enc_norm.b, proj.b1, proj.b2
_ENC_ROWS = 8               # per encoder layer
_DEC_ROWS = 13              # per decoder layer
_R_ENC_EMB_B, _R_ENC_NORM_G, _R_ENC_NORM_B, _R_PROJ_B1, _R_PROJ_B2 = range(5)


def _enc_row(l):
    return _N_GLOBAL_ROWS + _ENC_ROWS * l


def _dec_row(n_layers, l):
    return _N_GLOBAL_ROWS + _ENC_ROWS * n_layers + _DEC_ROWS * l


def _pe_row(n_layers):
    return _N_GLOBAL_ROWS + (_ENC_ROWS + _DEC_ROWS) * n_layers


def _positional_embedding_np(max_len, d_model):
    pos = np.arange(max_len, dtype=np.float32)[:, None]
    div = np.exp(np.arange(0, d_model, 2, dtype=np.float32)
                 * (-math.log(10000.0) / d_model))
    pe = np.zeros((max_len, d_model), np.float32)
    pe[:, 0::2] = np.sin(pos * div)
    pe[:, 1::2] = np.cos(pos * div)
    return pe


def pack_params(params, cfg):
    """Pack the natural nested parameter dict into 8 kernel operands."""
    E, F, L = cfg["d_model"], cfg["d_ff"], cfg["e_layers"]
    H2 = 2 * E
    dec_len = cfg["label_len"] + cfg["pred_len"]
    bf = jnp.bfloat16
    enc, dec = params["enc_layers"], params["dec_layers"]

    w_qkv = jnp.stack([enc[l]["attn"]["wqkv"] for l in range(L)]
                      + [dec[l]["self_attn"]["wqkv"] for l in range(L)]).astype(bf)
    w_ee = jnp.stack([enc[l]["attn"]["wo"] for l in range(L)]
                     + [dec[l]["self_attn"]["wo"] for l in range(L)]
                     + [dec[l]["cross_attn"]["wq"] for l in range(L)]
                     + [dec[l]["cross_attn"]["wo"] for l in range(L)]).astype(bf)
    w_e2 = jnp.stack([dec[l]["cross_attn"]["wkv"] for l in range(L)]
                     + [dec[l]["w1"] for l in range(L)]
                     + [params["proj_w1"]]).astype(bf)
    w_ef = jnp.stack([enc[l]["w1"] for l in range(L)]).astype(bf)
    w_fe = jnp.stack([enc[l]["w2"] for l in range(L)]).astype(bf)

    c_out = params["proj_w2"].shape[1]
    proj_w2_pad = jnp.zeros((H2, E), jnp.float32).at[:, :c_out].set(params["proj_w2"])
    w_2e = jnp.stack([dec[l]["w2"] for l in range(L)] + [proj_w2_pad]).astype(bf)

    w_emb = jnp.concatenate([params["enc_emb"]["w"],
                             params["dec_emb"]["conv_w"],
                             params["dec_emb"]["temp_w"]], axis=0).astype(bf)

    width = max(3 * E, F, H2)

    def pad(v):
        v = jnp.asarray(v, jnp.float32).reshape(-1)
        return jnp.pad(v, (0, width - v.shape[0]))

    rows = [pad(params["enc_emb"]["b"]), pad(params["enc_norm_g"]),
            pad(params["enc_norm_b"]), pad(params["proj_b1"]), pad(params["proj_b2"])]
    for l in range(L):
        lp = enc[l]
        rows += [pad(lp["attn"]["bqkv"]), pad(lp["attn"]["bo"]),
                 pad(lp["b1"]), pad(lp["b2"]),
                 pad(lp["ln1_g"]), pad(lp["ln1_b"]),
                 pad(lp["ln2_g"]), pad(lp["ln2_b"])]
    for l in range(L):
        lp = dec[l]
        rows += [pad(lp["self_attn"]["bqkv"]), pad(lp["self_attn"]["bo"]),
                 pad(lp["cross_attn"]["bq"]), pad(lp["cross_attn"]["bkv"]),
                 pad(lp["cross_attn"]["bo"]),
                 pad(lp["b1"]), pad(lp["b2"]),
                 pad(lp["ln1_g"]), pad(lp["ln1_b"]),
                 pad(lp["ln2_g"]), pad(lp["ln2_b"]),
                 pad(lp["ln3_g"]), pad(lp["ln3_b"])]
    # Positional embedding = per-position decoder bias; rides in the same slab.
    pe = _positional_embedding_np(dec_len, E)
    rows += [pad(pe[t]) for t in range(dec_len)]
    vecs = jnp.stack(rows)

    return dict(w_qkv=w_qkv, w_ee=w_ee, w_e2=w_e2, w_ef=w_ef, w_fe=w_fe,
                w_2e=w_2e, w_emb=w_emb, vecs=vecs)


# ----------------------------- fused forward kernel -------------------------

def _forward_kernel(x_inv_ref, x_dec_ref,
                    w_qkv_ref, w_ee_ref, w_e2_ref, w_ef_ref, w_fe_ref, w_2e_ref,
                    w_emb_ref, vecs_ref, o_ref, attn_buf,
                    *, n_heads, n_vars, pred_len, e_layers,
                    d_model, d_ff, seq_len, dec_len):
    f32, bf16 = jnp.float32, jnp.bfloat16
    E, F, L = d_model, d_ff, e_layers
    H2 = 2 * E
    hd = E // n_heads
    scale = 1.0 / math.sqrt(hd)

    # ---------- helpers (weights loaded lazily, right at their point of use) ----------
    def vec(row, width):
        return vecs_ref[row:row + 1, :width]                      # (1, width) f32

    def linear(x, w, b=None, act=None):
        lead = x.shape[:-1]
        y = jnp.dot(x.reshape(-1, x.shape[-1]).astype(bf16), w,
                    preferred_element_type=f32).reshape(*lead, w.shape[-1])
        if b is not None:
            y = y + b
        if act == "relu":
            y = jnp.maximum(y, 0.0)
        return y

    def layernorm(x, g, b, eps=1e-5):
        mu = jnp.mean(x, axis=-1, keepdims=True)
        xc = x - mu
        var = jnp.mean(xc * xc, axis=-1, keepdims=True)
        return xc * jax.lax.rsqrt(var + eps) * g + b

    def attn_core(q, k, v, wo, bo):
        # Per-head softmax (bf16 MXU inputs, f32 stats); heads re-assembled in a VMEM
        # scratch so the output projection is a single K=E matmul.
        Lq = q.shape[1]
        qb, kb, vb = q.astype(bf16), k.astype(bf16), v.astype(bf16)
        for h in range(n_heads):
            sl = slice(h * hd, (h + 1) * hd)
            s = jnp.einsum("bqd,bkd->bqk", qb[..., sl], kb[..., sl],
                           preferred_element_type=f32) * scale
            s = s - jnp.max(s, axis=-1, keepdims=True)
            p = jnp.exp(s)
            p = p * pl.reciprocal(jnp.sum(p, axis=-1, keepdims=True), approx=True)
            attn_buf[:, :Lq, sl] = jnp.einsum("bqk,bkd->bqd", p.astype(bf16),
                                              vb[..., sl], preferred_element_type=f32)
        return linear(attn_buf[:, :Lq, :], wo, bo)

    def self_attn(x, wqkv, bqkv, wo, bo):
        qkv = linear(x, wqkv, bqkv)                               # fused QKV matmul
        return attn_core(qkv[..., :E], qkv[..., E:2 * E], qkv[..., 2 * E:], wo, bo)

    def cross_attn(x, mem, wq, bq, wkv, bkv, wo, bo):
        q = linear(x, wq, bq)
        kv = linear(mem, wkv, bkv)                                # fused K|V matmul
        return attn_core(q, kv[..., :E], kv[..., E:], wo, bo)

    # ---------- series normalization (use_norm, unbiased=False); stats reused for de-norm
    x_inv = x_inv_ref[...]                                        # (B, N+M, seq_len)
    mu_t = jnp.mean(x_inv, axis=-1, keepdims=True)
    xc_t = x_inv - mu_t
    std_t = jnp.sqrt(jnp.mean(xc_t * xc_t, axis=-1, keepdims=True) + 1e-5)
    row_id = jax.lax.broadcasted_iota(jnp.int32, x_inv.shape, 1)
    x_tok = jnp.where(row_id < n_vars, xc_t / std_t, x_inv)       # normalize variate rows only
    means = jnp.swapaxes(mu_t[:, :n_vars, :], 1, 2)               # (B, 1, N)
    stdev = jnp.swapaxes(std_t[:, :n_vars, :], 1, 2)              # (B, 1, N)

    # ---------- inverted encoder ----------
    enc = linear(x_tok, w_emb_ref[0:seq_len, :], vec(_R_ENC_EMB_B, E))
    for l in range(L):
        r = _enc_row(l)
        a = self_attn(enc, w_qkv_ref[l], vec(r + 0, 3 * E), w_ee_ref[l], vec(r + 1, E))
        enc = layernorm(enc + a, vec(r + 4, E), vec(r + 5, E))
        y = linear(enc, w_ef_ref[l], vec(r + 2, F), act="relu")   # conv1 (k=1) == Linear
        y = linear(y, w_fe_ref[l], vec(r + 3, E))                 # conv2 (k=1) == Linear
        enc = layernorm(enc + y, vec(r + 6, E), vec(r + 7, E))
    enc = layernorm(enc, vec(_R_ENC_NORM_G, E), vec(_R_ENC_NORM_B, E))

    # ---------- decoder embedding: [circular-conv im2col | time feats] @ [conv_w ; temp_w]
    pe = vecs_ref[_pe_row(L):_pe_row(L) + dec_len, :E]            # (dec_len, E) f32
    x = linear(x_dec_ref[...], w_emb_ref[seq_len:, :]) + pe[None]

    # ---------- vanilla post-norm transformer decoder (tgt_mask=None, as in the reference)
    for l in range(L):
        r = _dec_row(L, l)
        sa = self_attn(x, w_qkv_ref[L + l], vec(r + 0, 3 * E),
                       w_ee_ref[L + l], vec(r + 1, E))
        x = layernorm(x + sa, vec(r + 7, E), vec(r + 8, E))
        ca = cross_attn(x, enc,
                        w_ee_ref[2 * L + l], vec(r + 2, E),
                        w_e2_ref[l], vec(r + 3, 2 * E),
                        w_ee_ref[3 * L + l], vec(r + 4, E))
        x = layernorm(x + ca, vec(r + 9, E), vec(r + 10, E))
        ff = linear(linear(x, w_e2_ref[L + l], vec(r + 5, H2), act="relu"),
                    w_2e_ref[l], vec(r + 6, E))
        x = layernorm(x + ff, vec(r + 11, E), vec(r + 12, E))

    # ---------- projector on last pred_len steps + de-normalization ----------
    x = x[:, x.shape[1] - pred_len:, :]
    y = linear(x, w_e2_ref[2 * L], vec(_R_PROJ_B1, H2), act="relu")
    y = linear(y, w_2e_ref[L], vec(_R_PROJ_B2, E))                # proj_w2 col-padded to E
    o_ref[...] = y[:, :, :n_vars] * stdev + means


# ----------------------------- wrapper ---------------------------------------

def build_forward(cfg):
    d_model, n_heads = cfg["d_model"], cfg["n_heads"]
    d_ff, e_layers = cfg["d_ff"], cfg["e_layers"]
    seq_len, pred_len = cfg["seq_len"], cfg["pred_len"]

    @jax.jit
    def forward(packed, x_enc, x_mark_enc, x_dec, x_mark_dec):
        B, _, N = x_enc.shape
        M = x_mark_enc.shape[2]
        Ld = x_dec.shape[1]

        # layout-only prep, fused by XLA around the single Pallas call
        x_inv = jnp.concatenate([jnp.swapaxes(x_enc, 1, 2),
                                 jnp.swapaxes(x_mark_enc, 1, 2)], axis=1)   # (B, N+M, L)
        x_pad = jnp.concatenate([x_dec[:, -1:, :], x_dec, x_dec[:, :1, :]], axis=1)
        x_dec_cat = jnp.concatenate([x_pad[:, 0:Ld], x_pad[:, 1:Ld + 1],
                                     x_pad[:, 2:Ld + 2], x_mark_dec], axis=-1)

        kernel = functools.partial(
            _forward_kernel, n_heads=n_heads, n_vars=N, pred_len=pred_len,
            e_layers=e_layers, d_model=d_model, d_ff=d_ff, seq_len=seq_len,
            dec_len=Ld)

        ops = [x_inv, x_dec_cat,
               packed["w_qkv"], packed["w_ee"], packed["w_e2"], packed["w_ef"],
               packed["w_fe"], packed["w_2e"], packed["w_emb"], packed["vecs"]]
        l_max = max(N + M, Ld)

        # Gridless: whole model (<1 MiB) lives in VMEM for one TensorCore invocation.
        # (On v7x a grid=(B,) "parallel" axis would engage the 2nd core; skipped at B=2.)
        return pl.pallas_call(
            kernel,
            out_shape=jax.ShapeDtypeStruct((B, pred_len, N), jnp.float32),
            in_specs=[pl.BlockSpec(memory_space=pltpu.MemorySpace.VMEM)] * len(ops),
            out_specs=pl.BlockSpec(memory_space=pltpu.MemorySpace.VMEM),
            scratch_shapes=[pltpu.VMEM((B, l_max, d_model), jnp.float32)],
            compiler_params=pltpu.CompilerParams(vmem_limit_bytes=32 * 1024 * 1024),
        )(*ops)

    return forward


# ----------------------------- parameter init --------------------------------

def init_params(key, cfg):
    d_model, d_ff, e_layers = cfg["d_model"], cfg["d_ff"], cfg["e_layers"]
    seq_len, dec_in = cfg["seq_len"], cfg["dec_in"]
    c_out, mark = cfg["c_out"], cfg["mark_dim"]

    keys = iter(jax.random.split(key, 4096))

    def w(*shape, scale=0.05):
        return (scale * jax.random.normal(next(keys), shape)).astype(jnp.float32)

    zeros = lambda *s: jnp.zeros(s, jnp.float32)
    ones = lambda *s: jnp.ones(s, jnp.float32)

    def self_attn_p():
        return dict(wqkv=w(d_model, 3 * d_model), bqkv=zeros(3 * d_model),
                    wo=w(d_model, d_model), bo=zeros(d_model))

    def cross_attn_p():
        return dict(wq=w(d_model, d_model), bq=zeros(d_model),
                    wkv=w(d_model, 2 * d_model), bkv=zeros(2 * d_model),
                    wo=w(d_model, d_model), bo=zeros(d_model))

    enc_layers = [dict(attn=self_attn_p(),
                       w1=w(d_model, d_ff), b1=zeros(d_ff),
                       w2=w(d_ff, d_model), b2=zeros(d_model),
                       ln1_g=ones(d_model), ln1_b=zeros(d_model),
                       ln2_g=ones(d_model), ln2_b=zeros(d_model))
                  for _ in range(e_layers)]

    dec_ff = d_model * 2
    dec_layers = [dict(self_attn=self_attn_p(),
                       cross_attn=cross_attn_p(),
                       w1=w(d_model, dec_ff), b1=zeros(dec_ff),
                       w2=w(dec_ff, d_model), b2=zeros(d_model),
                       ln1_g=ones(d_model), ln1_b=zeros(d_model),
                       ln2_g=ones(d_model), ln2_b=zeros(d_model),
                       ln3_g=ones(d_model), ln3_b=zeros(d_model))
                  for _ in range(e_layers)]

    return dict(
        enc_emb=dict(w=w(seq_len, d_model), b=zeros(d_model)),
        enc_layers=enc_layers,
        enc_norm_g=ones(d_model), enc_norm_b=zeros(d_model),
        dec_emb=dict(conv_w=w(3 * dec_in, d_model), temp_w=w(mark, d_model)),
        dec_layers=dec_layers,
        proj_w1=w(d_model, d_model * 2), proj_b1=zeros(d_model * 2),
        proj_w2=w(d_model * 2, c_out), proj_b2=zeros(c_out))


# ----------------------------- main -------------------------------------------

if __name__ == "__main__":
    cfg = dict(seq_len=16, pred_len=8, label_len=8,
               d_model=32, n_heads=4, d_ff=64, e_layers=2,
               enc_in=4, dec_in=4, c_out=4, mark_dim=4)   # freq='h' -> 4 time features

    key = jax.random.PRNGKey(0)
    kp, k1, k2, k3, k4 = jax.random.split(key, 5)
    params = init_params(kp, cfg)
    packed = pack_params(params, cfg)           # one-time operand packing (8 slabs)

    B = 2
    L_dec = cfg["label_len"] + cfg["pred_len"]
    x_enc = jax.random.normal(k1, (B, cfg["seq_len"], cfg["enc_in"]), jnp.float32)
    x_mark_enc = jax.random.normal(k2, (B, cfg["seq_len"], cfg["mark_dim"]), jnp.float32)
    x_dec = jax.random.normal(k3, (B, L_dec, cfg["dec_in"]), jnp.float32)
    x_mark_dec = jax.random.normal(k4, (B, L_dec, cfg["mark_dim"]), jnp.float32)

    # TODO(synk): dropout layers are evaluated in inference mode (identity).
    forward = build_forward(cfg)
    out = forward(packed, x_enc, x_mark_enc, x_dec, x_mark_dec)
    out = jax.block_until_ready(out)
    assert out.shape == (B, cfg["pred_len"], cfg["enc_in"]), out.shape
    assert bool(jnp.all(jnp.isfinite(out)))
    print("KERNEL_OK")
</pallas_src>

<mosaic_0001>
module attributes {stable_mosaic.version = 11 : i64} {
  func.func @_forward_kernel(%arg0: memref<2x8x16xf32, #tpu.memory_space<vmem>>, %arg1: memref<2x16x16xf32, #tpu.memory_space<vmem>>, %arg2: memref<4x32x96xbf16, #tpu.memory_space<vmem>>, %arg3: memref<8x32x32xbf16, #tpu.memory_space<vmem>>, %arg4: memref<5x32x64xbf16, #tpu.memory_space<vmem>>, %arg5: memref<2x32x64xbf16, #tpu.memory_space<vmem>>, %arg6: memref<2x64x32xbf16, #tpu.memory_space<vmem>>, %arg7: memref<3x64x32xbf16, #tpu.memory_space<vmem>>, %arg8: memref<32x32xbf16, #tpu.memory_space<vmem>>, %arg9: memref<63x96xf32, #tpu.memory_space<vmem>>, %arg10: memref<2x8x4xf32, #tpu.memory_space<vmem>>, %arg11: memref<2x16x32xf32, #tpu.memory_space<vmem>>) attributes {dimension_semantics = [], scalar_prefetch = 0 : i64, scratch_operands = 1 : i64, tpu.core_type = #tpu.core_type<tc>} {
    %c0 = arith.constant 0 : index
    %c0_0 = arith.constant 0 : index
    %c0_1 = arith.constant 0 : index
    %0 = vector.load %arg0[%c0, %c0_0, %c0_1] : memref<2x8x16xf32, #tpu.memory_space<vmem>>, vector<2x8x16xf32>
    %cst = arith.constant dense<0.000000e+00> : vector<2x8xf32>
    %1 = vector.multi_reduction <add>, %0, %cst [2] : vector<2x8x16xf32> to vector<2x8xf32>
    %2 = vector.shape_cast %1 : vector<2x8xf32> to vector<2x8x1xf32>
    %cst_2 = arith.constant 1.600000e+01 : f32
    %3 = vector.broadcast %cst_2 : f32 to vector<2x8x1xf32>
    %4 = arith.divf %2, %3 : vector<2x8x1xf32>
    %5 = vector.broadcast %4 : vector<2x8x1xf32> to vector<2x8x16xf32>
    %6 = arith.subf %0, %5 : vector<2x8x16xf32>
    %7 = arith.mulf %6, %6 : vector<2x8x16xf32>
    %cst_3 = arith.constant dense<0.000000e+00> : vector<2x8xf32>
    %8 = vector.multi_reduction <add>, %7, %cst_3 [2] : vector<2x8x16xf32> to vector<2x8xf32>
    %9 = vector.shape_cast %8 : vector<2x8xf32> to vector<2x8x1xf32>
    %cst_4 = arith.constant 1.600000e+01 : f32
    %10 = vector.broadcast %cst_4 : f32 to vector<2x8x1xf32>
    %11 = arith.divf %9, %10 : vector<2x8x1xf32>
    %cst_5 = arith.constant 9.99999974E-6 : f32
    %12 = vector.broadcast %cst_5 : f32 to vector<2x8x1xf32>
    %13 = arith.addf %11, %12 : vector<2x8x1xf32>
    %14 = math.sqrt %13 : vector<2x8x1xf32>
    %15 = tpu.iota {dimensions = array<i32: 1>} : vector<2x8x16xi32>
    %c4_i32 = arith.constant 4 : i32
    %16 = vector.broadcast %c4_i32 : i32 to vector<2x8x16xi32>
    %17 = arith.cmpi slt, %15, %16 : vector<2x8x16xi32>
    %18 = vector.broadcast %14 : vector<2x8x1xf32> to vector<2x8x16xf32>
    %19 = arith.divf %6, %18 : vector<2x8x16xf32>
    %20 = arith.select %17, %19, %0 : vector<2x8x16xi1>, vector<2x8x16xf32>
    %21 = vector.extract_strided_slice %4 {offsets = [0, 0, 0], sizes = [2, 4, 1], strides = [1, 1, 1]} : vector<2x8x1xf32> to vector<2x4x1xf32>
    %22 = tpu.transpose %21, [0, 2, 1] : vector<2x4x1xf32> -> vector<2x1x4xf32>
    %23 = vector.extract_strided_slice %14 {offsets = [0, 0, 0], sizes = [2, 4, 1], strides = [1, 1, 1]} : vector<2x8x1xf32> to vector<2x4x1xf32>
    %24 = tpu.transpose %23, [0, 2, 1] : vector<2x4x1xf32> -> vector<2x1x4xf32>
    %c0_6 = arith.constant 0 : index
    %c0_7 = arith.constant 0 : index
    %25 = vector.load %arg8[%c0_6, %c0_7] : memref<32x32xbf16, #tpu.memory_space<vmem>>, vector<16x32xbf16>
    %c0_8 = arith.constant 0 : index
    %c0_9 = arith.constant 0 : index
    %26 = vector.load %arg9[%c0_8, %c0_9] : memref<63x96xf32, #tpu.memory_space<vmem>>, vector<1x32xf32>
    %27 = vector.shape_cast %20 : vector<2x8x16xf32> to vector<16x16xf32>
    %28 = arith.truncf %27 : vector<16x16xf32> to vector<16x16xbf16>
    %cst_10 = arith.constant dense<0.000000e+00> : vector<16x32xf32>
    %29 = tpu.matmul %28, %25, %cst_10 {dimension_numbers = #tpu.dot_dimension_numbers<[1], [0], [0], [1], [0, 0, 1, 1], [], []>} : vector<16x16xbf16>, vector<16x32xbf16>, vector<16x32xf32> -> vector<16x32xf32>
    %30 = vector.shape_cast %29 : vector<16x32xf32> to vector<2x8x32xf32>
    %31 = vector.shape_cast %26 : vector<1x32xf32> to vector<1x1x32xf32>
    %32 = vector.broadcast %31 : vector<1x1x32xf32> to vector<2x8x32xf32>
    %33 = arith.addf %30, %32 : vector<2x8x32xf32>
    %c0_11 = arith.constant 0 : index
    %c0_12 = arith.constant 0 : index
    %c0_13 = arith.constant 0 : index
    %34 = vector.load %arg2[%c0_11, %c0_12, %c0_13] : memref<4x32x96xbf16, #tpu.memory_space<vmem>>, vector<1x32x96xbf16>
    %35 = vector.shape_cast %34 : vector<1x32x96xbf16> to vector<32x96xbf16>
    %c5 = arith.constant 5 : index
    %c0_14 = arith.constant 0 : index
    %36 = vector.load %arg9[%c5, %c0_14] : memref<63x96xf32, #tpu.memory_space<vmem>>, vector<1x96xf32>
    %c0_15 = arith.constant 0 : index
    %c0_16 = arith.constant 0 : index
    %c0_17 = arith.constant 0 : index
    %37 = vector.load %arg3[%c0_15, %c0_16, %c0_17] : memref<8x32x32xbf16, #tpu.memory_space<vmem>>, vector<1x32x32xbf16>
    %38 = vector.shape_cast %37 : vector<1x32x32xbf16> to vector<32x32xbf16>
    %c6 = arith.constant 6 : index
    %c0_18 = arith.constant 0 : index
    %39 = vector.load %arg9[%c6, %c0_18] : memref<63x96xf32, #tpu.memory_space<vmem>>, vector<1x32xf32>
    %40 = vector.shape_cast %33 : vector<2x8x32xf32> to vector<16x32xf32>
    %41 = arith.truncf %40 : vector<16x32xf32> to vector<16x32xbf16>
    %cst_19 = arith.constant dense<0.000000e+00> : vector<16x96xf32>
    %42 = tpu.matmul %41, %35, %cst_19 {dimension_numbers = #tpu.dot_dimension_numbers<[1], [0], [0], [1], [0, 0, 1, 1], [], []>} : vector<16x32xbf16>, vector<32x96xbf16>, vector<16x96xf32> -> vector<16x96xf32>
    %43 = vector.shape_cast %42 : vector<16x96xf32> to vector<2x8x96xf32>
    %44 = vector.shape_cast %36 : vector<1x96xf32> to vector<1x1x96xf32>
    %45 = vector.broadcast %44 : vector<1x1x96xf32> to vector<2x8x96xf32>
    %46 = arith.addf %43, %45 : vector<2x8x96xf32>
    %47 = vector.extract_strided_slice %46 {offsets = [0, 0, 0], sizes = [2, 8, 32], strides = [1, 1, 1]} : vector<2x8x96xf32> to vector<2x8x32xf32>
    %48 = vector.extract_strided_slice %46 {offsets = [0, 0, 32], sizes = [2, 8, 32], strides = [1, 1, 1]} : vector<2x8x96xf32> to vector<2x8x32xf32>
    %49 = vector.extract_strided_slice %46 {offsets = [0, 0, 64], sizes = [2, 8, 32], strides = [1, 1, 1]} : vector<2x8x96xf32> to vector<2x8x32xf32>
    %50 = arith.truncf %47 : vector<2x8x32xf32> to vector<2x8x32xbf16>
    %51 = arith.truncf %48 : vector<2x8x32xf32> to vector<2x8x32xbf16>
    %52 = arith.truncf %49 : vector<2x8x32xf32> to vector<2x8x32xbf16>
    %53 = vector.extract_strided_slice %50 {offsets = [0, 0, 0], sizes = [2, 8, 8], strides = [1, 1, 1]} : vector<2x8x32xbf16> to vector<2x8x8xbf16>
    %54 = vector.extract_strided_slice %51 {offsets = [0, 0, 0], sizes = [2, 8, 8], strides = [1, 1, 1]} : vector<2x8x32xbf16> to vector<2x8x8xbf16>
    "tpu.trace_start"() <{level = 10 : i32, message = "bqd,bkd->bqk"}> : () -> ()
    %cst_20 = arith.constant dense<0.000000e+00> : vector<2x8x8xf32>
    %55 = tpu.matmul %53, %54, %cst_20 {dimension_numbers = #tpu.dot_dimension_numbers<[2], [2], [1], [1], [0, 0, 0, 1, 1, 1], [0], [0]>} : vector<2x8x8xbf16>, vector<2x8x8xbf16>, vector<2x8x8xf32> -> vector<2x8x8xf32>
    "tpu.trace_stop"() : () -> ()
    %cst_21 = arith.constant 0.353553385 : f32
    %56 = vector.broadcast %cst_21 : f32 to vector<2x8x8xf32>
    %57 = arith.mulf %55, %56 : vector<2x8x8xf32>
    %cst_22 = arith.constant dense<0xFF800000> : vector<2x8xf32>
    %58 = vector.multi_reduction <maximumf>, %57, %cst_22 [2] : vector<2x8x8xf32> to vector<2x8xf32>
    %59 = vector.shape_cast %58 : vector<2x8xf32> to vector<2x8x1xf32>
    %60 = vector.broadcast %59 : vector<2x8x1xf32> to vector<2x8x8xf32>
    %61 = arith.subf %57, %60 : vector<2x8x8xf32>
    %62 = math.exp %61 : vector<2x8x8xf32>
    %cst_23 = arith.constant dense<0.000000e+00> : vector<2x8xf32>
    %63 = vector.multi_reduction <add>, %62, %cst_23 [2] : vector<2x8x8xf32> to vector<2x8xf32>
    %64 = vector.shape_cast %63 : vector<2x8xf32> to vector<2x8x1xf32>
    %65 = tpu.reciprocal %64 {approx = true} : vector<2x8x1xf32> -> vector<2x8x1xf32>
    %66 = vector.broadcast %65 : vector<2x8x1xf32> to vector<2x8x8xf32>
    %67 = arith.mulf %62, %66 : vector<2x8x8xf32>
    %68 = arith.truncf %67 : vector<2x8x8xf32> to vector<2x8x8xbf16>
    %69 = vector.extract_strided_slice %52 {offsets = [0, 0, 0], sizes = [2, 8, 8], strides = [1, 1, 1]} : vector<2x8x32xbf16> to vector<2x8x8xbf16>
    "tpu.trace_start"() <{level = 10 : i32, message = "bqk,bkd->bqd"}> : () -> ()
    %cst_24 = arith.constant dense<0.000000e+00> : vector<2x8x8xf32>
    %70 = tpu.matmul %68, %69, %cst_24 {dimension_numbers = #tpu.dot_dimension_numbers<[2], [1], [1], [2], [0, 0, 0, 1, 1, 2], [0], [0]>} : vector<2x8x8xbf16>, vector<2x8x8xbf16>, vector<2x8x8xf32> -> vector<2x8x8xf32>
    "tpu.trace_stop"() : () -> ()
    %c0_25 = arith.constant 0 : index
    %c0_26 = arith.constant 0 : index
    %c0_27 = arith.constant 0 : index
    %71 = vector.load %arg11[%c0_25, %c0_26, %c0_27] : memref<2x16x32xf32, #tpu.memory_space<vmem>>, vector<2x8x8xf32>
    tpu.vector_store %arg11[%c0_25, %c0_26, %c0_27], %70 {strides = array<i32>} : memref<2x16x32xf32, #tpu.memory_space<vmem>>, vector<2x8x8xf32>,
    %72 = vector.extract_strided_slice %50 {offsets = [0, 0, 8], sizes = [2, 8, 8], strides = [1, 1, 1]} : vector<2x8x32xbf16> to vector<2x8x8xbf16>
    %73 = vector.extract_strided_slice %51 {offsets = [0, 0, 8], sizes = [2, 8, 8], strides = [1, 1, 1]} : vector<2x8x32xbf16> to vector<2x8x8xbf16>
    "tpu.trace_start"() <{level = 10 : i32, message = "bqd,bkd->bqk"}> : () -> ()
    %cst_28 = arith.constant dense<0.000000e+00> : vector<2x8x8xf32>
    %74 = tpu.matmul %72, %73, %cst_28 {dimension_numbers = #tpu.dot_dimension_numbers<[2], [2], [1], [1], [0, 0, 0, 1, 1, 1], [0], [0]>} : vector<2x8x8xbf16>, vector<2x8x8xbf16>, vector<2x8x8xf32> -> vector<2x8x8xf32>
    "tpu.trace_stop"() : () -> ()
    %cst_29 = arith.constant 0.353553385 : f32
    %75 = vector.broadcast %cst_29 : f32 to vector<2x8x8xf32>
    %76 = arith.mulf %74, %75 : vector<2x8x8xf32>
    %cst_30 = arith.constant dense<0xFF800000> : vector<2x8xf32>
    %77 = vector.multi_reduction <maximumf>, %76, %cst_30 [2] : vector<2x8x8xf32> to vector<2x8xf32>
    %78 = vector.shape_cast %77 : vector<2x8xf32> to vector<2x8x1xf32>
    %79 = vector.broadcast %78 : vector<2x8x1xf32> to vector<2x8x8xf32>
    %80 = arith.subf %76, %79 : vector<2x8x8xf32>
    %81 = math.exp %80 : vector<2x8x8xf32>
    %cst_31 = arith.constant dense<0.000000e+00> : vector<2x8xf32>
    %82 = vector.multi_reduction <add>, %81, %cst_31 [2] : vector<2x8x8xf32> to vector<2x8xf32>
    %83 = vector.shape_cast %82 : vector<2x8xf32> to vector<2x8x1xf32>
    %84 = tpu.reciprocal %83 {approx = true} : vector<2x8x1xf32> -> vector<2x8x1xf32>
    %85 = vector.broadcast %84 : vector<2x8x1xf32> to vector<2x8x8xf32>
    %86 = arith.mulf %81, %85 : vector<2x8x8xf32>
    %87 = arith.truncf %86 : vector<2x8x8xf32> to vector<2x8x8xbf16>
    %88 = vector.extract_strided_slice %52 {offsets = [0, 0, 8], sizes = [2, 8, 8], strides = [1, 1, 1]} : vector<2x8x32xbf16> to vector<2x8x8xbf16>
    "tpu.trace_start"() <{level = 10 : i32, message = "bqk,bkd->bqd"}> : () -> ()
    %cst_32 = arith.constant dense<0.000000e+00> : vector<2x8x8xf32>
    %89 = tpu.matmul %87, %88, %cst_32 {dimension_numbers = #tpu.dot_dimension_numbers<[2], [1], [1], [2], [0, 0, 0, 1, 1, 2], [0], [0]>} : vector<2x8x8xbf16>, vector<2x8x8xbf16>, vector<2x8x8xf32> -> vector<2x8x8xf32>
    "tpu.trace_stop"() : () -> ()
    %c0_33 = arith.constant 0 : index
    %c0_34 = arith.constant 0 : index
    %c8 = arith.constant 8 : index
    %90 = vector.load %arg11[%c0_33, %c0_34, %c8] : memref<2x16x32xf32, #tpu.memory_space<vmem>>, vector<2x8x8xf32>
    tpu.vector_store %arg11[%c0_33, %c0_34, %c8], %89 {strides = array<i32>} : memref<2x16x32xf32, #tpu.memory_space<vmem>>, vector<2x8x8xf32>,
    %91 = vector.extract_strided_slice %50 {offsets = [0, 0, 16], sizes = [2, 8, 8], strides = [1, 1, 1]} : vector<2x8x32xbf16> to vector<2x8x8xbf16>
    %92 = vector.extract_strided_slice %51 {offsets = [0, 0, 16], sizes = [2, 8, 8], strides = [1, 1, 1]} : vector<2x8x32xbf16> to vector<2x8x8xbf16>
    "tpu.trace_start"() <{level = 10 : i32, message = "bqd,bkd->bqk"}> : () -> ()
    %cst_35 = arith.constant dense<0.000000e+00> : vector<2x8x8xf32>
    %93 = tpu.matmul %91, %92, %cst_35 {dimension_numbers = #tpu.dot_dimension_numbers<[2], [2], [1], [1], [0, 0, 0, 1, 1, 1], [0], [0]>} : vector<2x8x8xbf16>, vector<2x8x8xbf16>, vector<2x8x8xf32> -> vector<2x8x8xf32>
    "tpu.trace_stop"() : () -> ()
    %cst_36 = arith.constant 0.353553385 : f32
    %94 = vector.broadcast %cst_36 : f32 to vector<2x8x8xf32>
    %95 = arith.mulf %93, %94 : vector<2x8x8xf32>
    %cst_37 = arith.constant dense<0xFF800000> : vector<2x8xf32>
    %96 = vector.multi_reduction <maximumf>, %95, %cst_37 [2] : vector<2x8x8xf32> to vector<2x8xf32>
    %97 = vector.shape_cast %96 : vector<2x8xf32> to vector<2x8x1xf32>
    %98 = vector.broadcast %97 : vector<2x8x1xf32> to vector<2x8x8xf32>
    %99 = arith.subf %95, %98 : vector<2x8x8xf32>
    %100 = math.exp %99 : vector<2x8x8xf32>
    %cst_38 = arith.constant dense<0.000000e+00> : vector<2x8xf32>
    %101 = vector.multi_reduction <add>, %100, %cst_38 [2] : vector<2x8x8xf32> to vector<2x8xf32>
    %102 = vector.shape_cast %101 : vector<2x8xf32> to vector<2x8x1xf32>
    %103 = tpu.reciprocal %102 {approx = true} : vector<2x8x1xf32> -> vector<2x8x1xf32>
    %104 = vector.broadcast %103 : vector<2x8x1xf32> to vector<2x8x8xf32>
    %105 = arith.mulf %100, %104 : vector<2x8x8xf32>
    %106 = arith.truncf %105 : vector<2x8x8xf32> to vector<2x8x8xbf16>
    %107 = vector.extract_strided_slice %52 {offsets = [0, 0, 16], sizes = [2, 8, 8], strides = [1, 1, 1]} : vector<2x8x32xbf16> to vector<2x8x8xbf16>
    "tpu.trace_start"() <{level = 10 : i32, message = "bqk,bkd->bqd"}> : () -> ()
    %cst_39 = arith.constant dense<0.000000e+00> : vector<2x8x8xf32>
    %108 = tpu.matmul %106, %107, %cst_39 {dimension_numbers = #tpu.dot_dimension_numbers<[2], [1], [1], [2], [0, 0, 0, 1, 1, 2], [0], [0]>} : vector<2x8x8xbf16>, vector<2x8x8xbf16>, vector<2x8x8xf32> -> vector<2x8x8xf32>
    "tpu.trace_stop"() : () -> ()
    %c0_40 = arith.constant 0 : index
    %c0_41 = arith.constant 0 : index
    %c16 = arith.constant 16 : index
    %109 = vector.load %arg11[%c0_40, %c0_41, %c16] : memref<2x16x32xf32, #tpu.memory_space<vmem>>, vector<2x8x8xf32>
    tpu.vector_store %arg11[%c0_40, %c0_41, %c16], %108 {strides = array<i32>} : memref<2x16x32xf32, #tpu.memory_space<vmem>>, vector<2x8x8xf32>,
    %110 = vector.extract_strided_slice %50 {offsets = [0, 0, 24], sizes = [2, 8, 8], strides = [1, 1, 1]} : vector<2x8x32xbf16> to vector<2x8x8xbf16>
    %111 = vector.extract_strided_slice %51 {offsets = [0, 0, 24], sizes = [2, 8, 8], strides = [1, 1, 1]} : vector<2x8x32xbf16> to vector<2x8x8xbf16>
    "tpu.trace_start"() <{level = 10 : i32, message = "bqd,bkd->bqk"}> : () -> ()
    %cst_42 = arith.constant dense<0.000000e+00> : vector<2x8x8xf32>
    %112 = tpu.matmul %110, %111, %cst_42 {dimension_numbers = #tpu.dot_dimension_numbers<[2], [2], [1], [1], [0, 0, 0, 1, 1, 1], [0], [0]>} : vector<2x8x8xbf16>, vector<2x8x8xbf16>, vector<2x8x8xf32> -> vector<2x8x8xf32>
    "tpu.trace_stop"() : () -> ()
    %cst_43 = arith.constant 0.353553385 : f32
    %113 = vector.broadcast %cst_43 : f32 to vector<2x8x8xf32>
    %114 = arith.mulf %112, %113 : vector<2x8x8xf32>
    %cst_44 = arith.constant dense<0xFF800000> : vector<2x8xf32>
    %115 = vector.multi_reduction <maximumf>, %114, %cst_44 [2] : vector<2x8x8xf32> to vector<2x8xf32>
    %116 = vector.shape_cast %115 : vector<2x8xf32> to vector<2x8x1xf32>
    %117 = vector.broadcast %116 : vector<2x8x1xf32> to vector<2x8x8xf32>
    %118 = arith.subf %114, %117 : vector<2x8x8xf32>
    %119 = math.exp %118 : vector<2x8x8xf32>
    %cst_45 = arith.constant dense<0.000000e+00> : vector<2x8xf32>
    %120 = vector.multi_reduction <add>, %119, %cst_45 [2] : vector<2x8x8xf32> to vector<2x8xf32>
    %121 = vector.shape_cast %120 : vector<2x8xf32> to vector<2x8x1xf32>
    %122 = tpu.reciprocal %121 {approx = true} : vector<2x8x1xf32> -> vector<2x8x1xf32>
    %123 = vector.broadcast %122 : vector<2x8x1xf32> to vector<2x8x8xf32>
    %124 = arith.mulf %119, %123 : vector<2x8x8xf32>
    %125 = arith.truncf %124 : vector<2x8x8xf32> to vector<2x8x8xbf16>
    %126 = vector.extract_strided_slice %52 {offsets = [0, 0, 24], sizes = [2, 8, 8], strides = [1, 1, 1]} : vector<2x8x32xbf16> to vector<2x8x8xbf16>
    "tpu.trace_start"() <{level = 10 : i32, message = "bqk,bkd->bqd"}> : () -> ()
    %cst_46 = arith.constant dense<0.000000e+00> : vector<2x8x8xf32>
    %127 = tpu.matmul %125, %126, %cst_46 {dimension_numbers = #tpu.dot_dimension_numbers<[2], [1], [1], [2], [0, 0, 0, 1, 1, 2], [0], [0]>} : vector<2x8x8xbf16>, vector<2x8x8xbf16>, vector<2x8x8xf32> -> vector<2x8x8xf32>
    "tpu.trace_stop"() : () -> ()
    %c0_47 = arith.constant 0 : index
    %c0_48 = arith.constant 0 : index
    %c24 = arith.constant 24 : index
    %128 = vector.load %arg11[%c0_47, %c0_48, %c24] : memref<2x16x32xf32, #tpu.memory_space<vmem>>, vector<2x8x8xf32>
    tpu.vector_store %arg11[%c0_47, %c0_48, %c24], %127 {strides = array<i32>} : memref<2x16x32xf32, #tpu.memory_space<vmem>>, vector<2x8x8xf32>,
    %c0_49 = arith.constant 0 : index
    %c0_50 = arith.constant 0 : index
    %c0_51 = arith.constant 0 : index
    %129 = vector.load %arg11[%c0_49, %c0_50, %c0_51] : memref<2x16x32xf32, #tpu.memory_space<vmem>>, vector<2x8x32xf32>
    %130 = vector.shape_cast %129 : vector<2x8x32xf32> to vector<16x32xf32>
    %131 = arith.truncf %130 : vector<16x32xf32> to vector<16x32xbf16>
    %cst_52 = arith.constant dense<0.000000e+00> : vector<16x32xf32>
    %132 = tpu.matmul %131, %38, %cst_52 {dimension_numbers = #tpu.dot_dimension_numbers<[1], [0], [0], [1], [0, 0, 1, 1], [], []>} : vector<16x32xbf16>, vector<32x32xbf16>, vector<16x32xf32> -> vector<16x32xf32>
    %133 = vector.shape_cast %132 : vector<16x32xf32> to vector<2x8x32xf32>
    %134 = vector.shape_cast %39 : vector<1x32xf32> to vector<1x1x32xf32>
    %135 = vector.broadcast %134 : vector<1x1x32xf32> to vector<2x8x32xf32>
    %136 = arith.addf %133, %135 : vector<2x8x32xf32>
    %137 = arith.addf %33, %136 : vector<2x8x32xf32>
    %c9 = arith.constant 9 : index
    %c0_53 = arith.constant 0 : index
    %138 = vector.load %arg9[%c9, %c0_53] : memref<63x96xf32, #tpu.memory_space<vmem>>, vector<1x32xf32>
    %c10 = arith.constant 10 : index
    %c0_54 = arith.constant 0 : index
    %139 = vector.load %arg9[%c10, %c0_54] : memref<63x96xf32, #tpu.memory_space<vmem>>, vector<1x32xf32>
    %cst_55 = arith.constant dense<0.000000e+00> : vector<2x8xf32>
    %140 = vector.multi_reduction <add>, %137, %cst_55 [2] : vector<2x8x32xf32> to vector<2x8xf32>
    %141 = vector.shape_cast %140 : vector<2x8xf32> to vector<2x8x1xf32>
    %cst_56 = arith.constant 3.200000e+01 : f32
    %142 = vector.broadcast %cst_56 : f32 to vector<2x8x1xf32>
    %143 = arith.divf %141, %142 : vector<2x8x1xf32>
    %144 = vector.broadcast %143 : vector<2x8x1xf32> to vector<2x8x32xf32>
    %145 = arith.subf %137, %144 : vector<2x8x32xf32>
    %146 = arith.mulf %145, %145 : vector<2x8x32xf32>
    %cst_57 = arith.constant dense<0.000000e+00> : vector<2x8xf32>
    %147 = vector.multi_reduction <add>, %146, %cst_57 [2] : vector<2x8x32xf32> to vector<2x8xf32>
    %148 = vector.shape_cast %147 : vector<2x8xf32> to vector<2x8x1xf32>
    %cst_58 = arith.constant 3.200000e+01 : f32
    %149 = vector.broadcast %cst_58 : f32 to vector<2x8x1xf32>
    %150 = arith.divf %148, %149 : vector<2x8x1xf32>
    %cst_59 = arith.constant 9.99999974E-6 : f32
    %151 = vector.broadcast %cst_59 : f32 to vector<2x8x1xf32>
    %152 = arith.addf %150, %151 : vector<2x8x1xf32>
    %153 = math.rsqrt %152 : vector<2x8x1xf32>
    %154 = vector.broadcast %153 : vector<2x8x1xf32> to vector<2x8x32xf32>
    %155 = arith.mulf %145, %154 : vector<2x8x32xf32>
    %156 = vector.shape_cast %138 : vector<1x32xf32> to vector<1x1x32xf32>
    %157 = vector.broadcast %156 : vector<1x1x32xf32> to vector<2x8x32xf32>
    %158 = arith.mulf %155, %157 : vector<2x8x32xf32>
    %159 = vector.shape_cast %139 : vector<1x32xf32> to vector<1x1x32xf32>
    %160 = vector.broadcast %159 : vector<1x1x32xf32> to vector<2x8x32xf32>
    %161 = arith.addf %158, %160 : vector<2x8x32xf32>
    %c0_60 = arith.constant 0 : index
    %c0_61 = arith.constant 0 : index
    %c0_62 = arith.constant 0 : index
    %162 = vector.load %arg5[%c0_60, %c0_61, %c0_62] : memref<2x32x64xbf16, #tpu.memory_space<vmem>>, vector<1x32x64xbf16>
    %163 = vector.shape_cast %162 : vector<1x32x64xbf16> to vector<32x64xbf16>
    %c7 = arith.constant 7 : index
    %c0_63 = arith.constant 0 : index
    %164 = vector.load %arg9[%c7, %c0_63] : memref<63x96xf32, #tpu.memory_space<vmem>>, vector<1x64xf32>
    %165 = vector.shape_cast %161 : vector<2x8x32xf32> to vector<16x32xf32>
    %166 = arith.truncf %165 : vector<16x32xf32> to vector<16x32xbf16>
    %cst_64 = arith.constant dense<0.000000e+00> : vector<16x64xf32>
    %167 = tpu.matmul %166, %163, %cst_64 {dimension_numbers = #tpu.dot_dimension_numbers<[1], [0], [0], [1], [0, 0, 1, 1], [], []>} : vector<16x32xbf16>, vector<32x64xbf16>, vector<16x64xf32> -> vector<16x64xf32>
    %168 = vector.shape_cast %167 : vector<16x64xf32> to vector<2x8x64xf32>
    %169 = vector.shape_cast %164 : vector<1x64xf32> to vector<1x1x64xf32>
    %170 = vector.broadcast %169 : vector<1x1x64xf32> to vector<2x8x64xf32>
    %171 = arith.addf %168, %170 : vector<2x8x64xf32>
    %cst_65 = arith.constant 0.000000e+00 : f32
    %172 = vector.broadcast %cst_65 : f32 to vector<2x8x64xf32>
    %173 = arith.maximumf %171, %172 : vector<2x8x64xf32>
    %c0_66 = arith.constant 0 : index
    %c0_67 = arith.constant 0 : index
    %c0_68 = arith.constant 0 : index
    %174 = vector.load %arg6[%c0_66, %c0_67, %c0_68] : memref<2x64x32xbf16, #tpu.memory_space<vmem>>, vector<1x64x32xbf16>
    %175 = vector.shape_cast %174 : vector<1x64x32xbf16> to vector<64x32xbf16>
    %c8_69 = arith.constant 8 : index
    %c0_70 = arith.constant 0 : index
    %176 = vector.load %arg9[%c8_69, %c0_70] : memref<63x96xf32, #tpu.memory_space<vmem>>, vector<1x32xf32>
    %177 = vector.shape_cast %173 : vector<2x8x64xf32> to vector<16x64xf32>
    %178 = arith.truncf %177 : vector<16x64xf32> to vector<16x64xbf16>
    %cst_71 = arith.constant dense<0.000000e+00> : vector<16x32xf32>
    %179 = tpu.matmul %178, %175, %cst_71 {dimension_numbers = #tpu.dot_dimension_numbers<[1], [0], [0], [1], [0, 0, 1, 1], [], []>} : vector<16x64xbf16>, vector<64x32xbf16>, vector<16x32xf32> -> vector<16x32xf32>
    %180 = vector.shape_cast %179 : vector<16x32xf32> to vector<2x8x32xf32>
    %181 = vector.shape_cast %176 : vector<1x32xf32> to vector<1x1x32xf32>
    %182 = vector.broadcast %181 : vector<1x1x32xf32> to vector<2x8x32xf32>
    %183 = arith.addf %180, %182 : vector<2x8x32xf32>
    %184 = arith.addf %161, %183 : vector<2x8x32xf32>
    %c11 = arith.constant 11 : index
    %c0_72 = arith.constant 0 : index
    %185 = vector.load %arg9[%c11, %c0_72] : memref<63x96xf32, #tpu.memory_space<vmem>>, vector<1x32xf32>
    %c12 = arith.constant 12 : index
    %c0_73 = arith.constant 0 : index
    %186 = vector.load %arg9[%c12, %c0_73] : memref<63x96xf32, #tpu.memory_space<vmem>>, vector<1x32xf32>
    %cst_74 = arith.constant dense<0.000000e+00> : vector<2x8xf32>
    %187 = vector.multi_reduction <add>, %184, %cst_74 [2] : vector<2x8x32xf32> to vector<2x8xf32>
    %188 = vector.shape_cast %187 : vector<2x8xf32> to vector<2x8x1xf32>
    %cst_75 = arith.constant 3.200000e+01 : f32
    %189 = vector.broadcast %cst_75 : f32 to vector<2x8x1xf32>
    %190 = arith.divf %188, %189 : vector<2x8x1xf32>
    %191 = vector.broadcast %190 : vector<2x8x1xf32> to vector<2x8x32xf32>
    %192 = arith.subf %184, %191 : vector<2x8x32xf32>
    %193 = arith.mulf %192, %192 : vector<2x8x32xf32>
    %cst_76 = arith.constant dense<0.000000e+00> : vector<2x8xf32>
    %194 = vector.multi_reduction <add>, %193, %cst_76 [2] : vector<2x8x32xf32> to vector<2x8xf32>
    %195 = vector.shape_cast %194 : vector<2x8xf32> to vector<2x8x1xf32>
    %cst_77 = arith.constant 3.200000e+01 : f32
    %196 = vector.broadcast %cst_77 : f32 to vector<2x8x1xf32>
    %197 = arith.divf %195, %196 : vector<2x8x1xf32>
    %cst_78 = arith.constant 9.99999974E-6 : f32
    %198 = vector.broadcast %cst_78 : f32 to vector<2x8x1xf32>
    %199 = arith.addf %197, %198 : vector<2x8x1xf32>
    %200 = math.rsqrt %199 : vector<2x8x1xf32>
    %201 = vector.broadcast %200 : vector<2x8x1xf32> to vector<2x8x32xf32>
    %202 = arith.mulf %192, %201 : vector<2x8x32xf32>
    %203 = vector.shape_cast %185 : vector<1x32xf32> to vector<1x1x32xf32>
    %204 = vector.broadcast %203 : vector<1x1x32xf32> to vector<2x8x32xf32>
    %205 = arith.mulf %202, %204 : vector<2x8x32xf32>
    %206 = vector.shape_cast %186 : vector<1x32xf32> to vector<1x1x32xf32>
    %207 = vector.broadcast %206 : vector<1x1x32xf32> to vector<2x8x32xf32>
    %208 = arith.addf %205, %207 : vector<2x8x32xf32>
    %c1 = arith.constant 1 : index
    %c0_79 = arith.constant 0 : index
    %c0_80 = arith.constant 0 : index
    %209 = vector.load %arg2[%c1, %c0_79, %c0_80] : memref<4x32x96xbf16, #tpu.memory_space<vmem>>, vector<1x32x96xbf16>
    %210 = vector.shape_cast %209 : vector<1x32x96xbf16> to vector<32x96xbf16>
    %c13 = arith.constant 13 : index
    %c0_81 = arith.constant 0 : index
    %211 = vector.load %arg9[%c13, %c0_81] : memref<63x96xf32, #tpu.memory_space<vmem>>, vector<1x96xf32>
    %c1_82 = arith.constant 1 : index
    %c0_83 = arith.constant 0 : index
    %c0_84 = arith.constant 0 : index
    %212 = vector.load %arg3[%c1_82, %c0_83, %c0_84] : memref<8x32x32xbf16, #tpu.memory_space<vmem>>, vector<1x32x32xbf16>
    %213 = vector.shape_cast %212 : vector<1x32x32xbf16> to vector<32x32xbf16>
    %c14 = arith.constant 14 : index
    %c0_85 = arith.constant 0 : index
    %214 = vector.load %arg9[%c14, %c0_85] : memref<63x96xf32, #tpu.memory_space<vmem>>, vector<1x32xf32>
    %215 = vector.shape_cast %208 : vector<2x8x32xf32> to vector<16x32xf32>
    %216 = arith.truncf %215 : vector<16x32xf32> to vector<16x32xbf16>
    %cst_86 = arith.constant dense<0.000000e+00> : vector<16x96xf32>
    %217 = tpu.matmul %216, %210, %cst_86 {dimension_numbers = #tpu.dot_dimension_numbers<[1], [0], [0], [1], [0, 0, 1, 1], [], []>} : vector<16x32xbf16>, vector<32x96xbf16>, vector<16x96xf32> -> vector<16x96xf32>
    %218 = vector.shape_cast %217 : vector<16x96xf32> to vector<2x8x96xf32>
    %219 = vector.shape_cast %211 : vector<1x96xf32> to vector<1x1x96xf32>
    %220 = vector.broadcast %219 : vector<1x1x96xf32> to vector<2x8x96xf32>
    %221 = arith.addf %218, %220 : vector<2x8x96xf32>
    %222 = vector.extract_strided_slice %221 {offsets = [0, 0, 0], sizes = [2, 8, 32], strides = [1, 1, 1]} : vector<2x8x96xf32> to vector<2x8x32xf32>
    %223 = vector.extract_strided_slice %221 {offsets = [0, 0, 32], sizes = [2, 8, 32], strides = [1, 1, 1]} : vector<2x8x96xf32> to vector<2x8x32xf32>
    %224 = vector.extract_strided_slice %221 {offsets = [0, 0, 64], sizes = [2, 8, 32], strides = [1, 1, 1]} : vector<2x8x96xf32> to vector<2x8x32xf32>
    %225 = arith.truncf %222 : vector<2x8x32xf32> to vector<2x8x32xbf16>
    %226 = arith.truncf %223 : vector<2x8x32xf32> to vector<2x8x32xbf16>
    %227 = arith.truncf %224 : vector<2x8x32xf32> to vector<2x8x32xbf16>
    %228 = vector.extract_strided_slice %225 {offsets = [0, 0, 0], sizes = [2, 8, 8], strides = [1, 1, 1]} : vector<2x8x32xbf16> to vector<2x8x8xbf16>
    %229 = vector.extract_strided_slice %226 {offsets = [0, 0, 0], sizes = [2, 8, 8], strides = [1, 1, 1]} : vector<2x8x32xbf16> to vector<2x8x8xbf16>
    "tpu.trace_start"() <{level = 10 : i32, message = "bqd,bkd->bqk"}> : () -> ()
    %cst_87 = arith.constant dense<0.000000e+00> : vector<2x8x8xf32>
    %230 = tpu.matmul %228, %229, %cst_87 {dimension_numbers = #tpu.dot_dimension_numbers<[2], [2], [1], [1], [0, 0, 0, 1, 1, 1], [0], [0]>} : vector<2x8x8xbf16>, vector<2x8x8xbf16>, vector<2x8x8xf32> -> vector<2x8x8xf32>
    "tpu.trace_stop"() : () -> ()
    %cst_88 = arith.constant 0.353553385 : f32
    %231 = vector.broadcast %cst_88 : f32 to vector<2x8x8xf32>
    %232 = arith.mulf %230, %231 : vector<2x8x8xf32>
    %cst_89 = arith.constant dense<0xFF800000> : vector<2x8xf32>
    %233 = vector.multi_reduction <maximumf>, %232, %cst_89 [2] : vector<2x8x8xf32> to vector<2x8xf32>
    %234 = vector.shape_cast %233 : vector<2x8xf32> to vector<2x8x1xf32>
    %235 = vector.broadcast %234 : vector<2x8x1xf32> to vector<2x8x8xf32>
    %236 = arith.subf %232, %235 : vector<2x8x8xf32>
    %237 = math.exp %236 : vector<2x8x8xf32>
    %cst_90 = arith.constant dense<0.000000e+00> : vector<2x8xf32>
    %238 = vector.multi_reduction <add>, %237, %cst_90 [2] : vector<2x8x8xf32> to vector<2x8xf32>
    %239 = vector.shape_cast %238 : vector<2x8xf32> to vector<2x8x1xf32>
    %240 = tpu.reciprocal %239 {approx = true} : vector<2x8x1xf32> -> vector<2x8x1xf32>
    %241 = vector.broadcast %240 : vector<2x8x1xf32> to vector<2x8x8xf32>
    %242 = arith.mulf %237, %241 : vector<2x8x8xf32>
    %243 = arith.truncf %242 : vector<2x8x8xf32> to vector<2x8x8xbf16>
    %244 = vector.extract_strided_slice %227 {offsets = [0, 0, 0], sizes = [2, 8, 8], strides = [1, 1, 1]} : vector<2x8x32xbf16> to vector<2x8x8xbf16>
    "tpu.trace_start"() <{level = 10 : i32, message = "bqk,bkd->bqd"}> : () -> ()
    %cst_91 = arith.constant dense<0.000000e+00> : vector<2x8x8xf32>
    %245 = tpu.matmul %243, %244, %cst_91 {dimension_numbers = #tpu.dot_dimension_numbers<[2], [1], [1], [2], [0, 0, 0, 1, 1, 2], [0], [0]>} : vector<2x8x8xbf16>, vector<2x8x8xbf16>, vector<2x8x8xf32> -> vector<2x8x8xf32>
    "tpu.trace_stop"() : () -> ()
    %c0_92 = arith.constant 0 : index
    %c0_93 = arith.constant 0 : index
    %c0_94 = arith.constant 0 : index
    %246 = vector.load %arg11[%c0_92, %c0_93, %c0_94] : memref<2x16x32xf32, #tpu.memory_space<vmem>>, vector<2x8x8xf32>
    tpu.vector_store %arg11[%c0_92, %c0_93, %c0_94], %245 {strides = array<i32>} : memref<2x16x32xf32, #tpu.memory_space<vmem>>, vector<2x8x8xf32>,
    %247 = vector.extract_strided_slice %225 {offsets = [0, 0, 8], sizes = [2, 8, 8], strides = [1, 1, 1]} : vector<2x8x32xbf16> to vector<2x8x8xbf16>
    %248 = vector.extract_strided_slice %226 {offsets = [0, 0, 8], sizes = [2, 8, 8], strides = [1, 1, 1]} : vector<2x8x32xbf16> to vector<2x8x8xbf16>
    "tpu.trace_start"() <{level = 10 : i32, message = "bqd,bkd->bqk"}> : () -> ()
    %cst_95 = arith.constant dense<0.000000e+00> : vector<2x8x8xf32>
    %249 = tpu.matmul %247, %248, %cst_95 {dimension_numbers = #tpu.dot_dimension_numbers<[2], [2], [1], [1], [0, 0, 0, 1, 1, 1], [0], [0]>} : vector<2x8x8xbf16>, vector<2x8x8xbf16>, vector<2x8x8xf32> -> vector<2x8x8xf32>
    "tpu.trace_stop"() : () -> ()
    %cst_96 = arith.constant 0.353553385 : f32
    %250 = vector.broadcast %cst_96 : f32 to vector<2x8x8xf32>
    %251 = arith.mulf %249, %250 : vector<2x8x8xf32>
    %cst_97 = arith.constant dense<0xFF800000> : vector<2x8xf32>
    %252 = vector.multi_reduction <maximumf>, %251, %cst_97 [2] : vector<2x8x8xf32> to vector<2x8xf32>
    %253 = vector.shape_cast %252 : vector<2x8xf32> to vector<2x8x1xf32>
    %254 = vector.broadcast %253 : vector<2x8x1xf32> to vector<2x8x8xf32>
    %255 = arith.subf %251, %254 : vector<2x8x8xf32>
    %256 = math.exp %255 : vector<2x8x8xf32>
    %cst_98 = arith.constant dense<0.000000e+00> : vector<2x8xf32>
    %257 = vector.multi_reduction <add>, %256, %cst_98 [2] : vector<2x8x8xf32> to vector<2x8xf32>
    %258 = vector.shape_cast %257 : vector<2x8xf32> to vector<2x8x1xf32>
    %259 = tpu.reciprocal %258 {approx = true} : vector<2x8x1xf32> -> vector<2x8x1xf32>
    %260 = vector.broadcast %259 : vector<2x8x1xf32> to vector<2x8x8xf32>
    %261 = arith.mulf %256, %260 : vector<2x8x8xf32>
    %262 = arith.truncf %261 : vector<2x8x8xf32> to vector<2x8x8xbf16>
    %263 = vector.extract_strided_slice %227 {offsets = [0, 0, 8], sizes = [2, 8, 8], strides = [1, 1, 1]} : vector<2x8x32xbf16> to vector<2x8x8xbf16>
    "tpu.trace_start"() <{level = 10 : i32, message = "bqk,bkd->bqd"}> : () -> ()
    %cst_99 = arith.constant dense<0.000000e+00> : vector<2x8x8xf32>
    %264 = tpu.matmul %262, %263, %cst_99 {dimension_numbers = #tpu.dot_dimension_numbers<[2], [1], [1], [2], [0, 0, 0, 1, 1, 2], [0], [0]>} : vector<2x8x8xbf16>, vector<2x8x8xbf16>, vector<2x8x8xf32> -> vector<2x8x8xf32>
    "tpu.trace_stop"() : () -> ()
    %c0_100 = arith.constant 0 : index
    %c0_101 = arith.constant 0 : index
    %c8_102 = arith.constant 8 : index
    %265 = vector.load %arg11[%c0_100, %c0_101, %c8_102] : memref<2x16x32xf32, #tpu.memory_space<vmem>>, vector<2x8x8xf32>
    tpu.vector_store %arg11[%c0_100, %c0_101, %c8_102], %264 {strides = array<i32>} : memref<2x16x32xf32, #tpu.memory_space<vmem>>, vector<2x8x8xf32>,
    %266 = vector.extract_strided_slice %225 {offsets = [0, 0, 16], sizes = [2, 8, 8], strides = [1, 1, 1]} : vector<2x8x32xbf16> to vector<2x8x8xbf16>
    %267 = vector.extract_strided_slice %226 {offsets = [0, 0, 16], sizes = [2, 8, 8], strides = [1, 1, 1]} : vector<2x8x32xbf16> to vector<2x8x8xbf16>
    "tpu.trace_start"() <{level = 10 : i32, message = "bqd,bkd->bqk"}> : () -> ()
    %cst_103 = arith.constant dense<0.000000e+00> : vector<2x8x8xf32>
    %268 = tpu.matmul %266, %267, %cst_103 {dimension_numbers = #tpu.dot_dimension_numbers<[2], [2], [1], [1], [0, 0, 0, 1, 1, 1], [0], [0]>} : vector<2x8x8xbf16>, vector<2x8x8xbf16>, vector<2x8x8xf32> -> vector<2x8x8xf32>
    "tpu.trace_stop"() : () -> ()
    %cst_104 = arith.constant 0.353553385 : f32
    %269 = vector.broadcast %cst_104 : f32 to vector<2x8x8xf32>
    %270 = arith.mulf %268, %269 : vector<2x8x8xf32>
    %cst_105 = arith.constant dense<0xFF800000> : vector<2x8xf32>
    %271 = vector.multi_reduction <maximumf>, %270, %cst_105 [2] : vector<2x8x8xf32> to vector<2x8xf32>
    %272 = vector.shape_cast %271 : vector<2x8xf32> to vector<2x8x1xf32>
    %273 = vector.broadcast %272 : vector<2x8x1xf32> to vector<2x8x8xf32>
    %274 = arith.subf %270, %273 : vector<2x8x8xf32>
    %275 = math.exp %274 : vector<2x8x8xf32>
    %cst_106 = arith.constant dense<0.000000e+00> : vector<2x8xf32>
    %276 = vector.multi_reduction <add>, %275, %cst_106 [2] : vector<2x8x8xf32> to vector<2x8xf32>
    %277 = vector.shape_cast %276 : vector<2x8xf32> to vector<2x8x1xf32>
    %278 = tpu.reciprocal %277 {approx = true} : vector<2x8x1xf32> -> vector<2x8x1xf32>
    %279 = vector.broadcast %278 : vector<2x8x1xf32> to vector<2x8x8xf32>
    %280 = arith.mulf %275, %279 : vector<2x8x8xf32>
    %281 = arith.truncf %280 : vector<2x8x8xf32> to vector<2x8x8xbf16>
    %282 = vector.extract_strided_slice %227 {offsets = [0, 0, 16], sizes = [2, 8, 8], strides = [1, 1, 1]} : vector<2x8x32xbf16> to vector<2x8x8xbf16>
    "tpu.trace_start"() <{level = 10 : i32, message = "bqk,bkd->bqd"}> : () -> ()
    %cst_107 = arith.constant dense<0.000000e+00> : vector<2x8x8xf32>
    %283 = tpu.matmul %281, %282, %cst_107 {dimension_numbers = #tpu.dot_dimension_numbers<[2], [1], [1], [2], [0, 0, 0, 1, 1, 2], [0], [0]>} : vector<2x8x8xbf16>, vector<2x8x8xbf16>, vector<2x8x8xf32> -> vector<2x8x8xf32>
    "tpu.trace_stop"() : () -> ()
    %c0_108 = arith.constant 0 : index
    %c0_109 = arith.constant 0 : index
    %c16_110 = arith.constant 16 : index
    %284 = vector.load %arg11[%c0_108, %c0_109, %c16_110] : memref<2x16x32xf32, #tpu.memory_space<vmem>>, vector<2x8x8xf32>
    tpu.vector_store %arg11[%c0_108, %c0_109, %c16_110], %283 {strides = array<i32>} : memref<2x16x32xf32, #tpu.memory_space<vmem>>, vector<2x8x8xf32>,
    %285 = vector.extract_strided_slice %225 {offsets = [0, 0, 24], sizes = [2, 8, 8], strides = [1, 1, 1]} : vector<2x8x32xbf16> to vector<2x8x8xbf16>
    %286 = vector.extract_strided_slice %226 {offsets = [0, 0, 24], sizes = [2, 8, 8], strides = [1, 1, 1]} : vector<2x8x32xbf16> to vector<2x8x8xbf16>
    "tpu.trace_start"() <{level = 10 : i32, message = "bqd,bkd->bqk"}> : () -> ()
    %cst_111 = arith.constant dense<0.000000e+00> : vector<2x8x8xf32>
    %287 = tpu.matmul %285, %286, %cst_111 {dimension_numbers = #tpu.dot_dimension_numbers<[2], [2], [1], [1], [0, 0, 0, 1, 1, 1], [0], [0]>} : vector<2x8x8xbf16>, vector<2x8x8xbf16>, vector<2x8x8xf32> -> vector<2x8x8xf32>
    "tpu.trace_stop"() : () -> ()
    %cst_112 = arith.constant 0.353553385 : f32
    %288 = vector.broadcast %cst_112 : f32 to vector<2x8x8xf32>
    %289 = arith.mulf %287, %288 : vector<2x8x8xf32>
    %cst_113 = arith.constant dense<0xFF800000> : vector<2x8xf32>
    %290 = vector.multi_reduction <maximumf>, %289, %cst_113 [2] : vector<2x8x8xf32> to vector<2x8xf32>
    %291 = vector.shape_cast %290 : vector<2x8xf32> to vector<2x8x1xf32>
    %292 = vector.broadcast %291 : vector<2x8x1xf32> to vector<2x8x8xf32>
    %293 = arith.subf %289, %292 : vector<2x8x8xf32>
    %294 = math.exp %293 : vector<2x8x8xf32>
    %cst_114 = arith.constant dense<0.000000e+00> : vector<2x8xf32>
    %295 = vector.multi_reduction <add>, %294, %cst_114 [2] : vector<2x8x8xf32> to vector<2x8xf32>
    %296 = vector.shape_cast %295 : vector<2x8xf32> to vector<2x8x1xf32>
    %297 = tpu.reciprocal %296 {approx = true} : vector<2x8x1xf32> -> vector<2x8x1xf32>
    %298 = vector.broadcast %297 : vector<2x8x1xf32> to vector<2x8x8xf32>
    %299 = arith.mulf %294, %298 : vector<2x8x8xf32>
    %300 = arith.truncf %299 : vector<2x8x8xf32> to vector<2x8x8xbf16>
    %301 = vector.extract_strided_slice %227 {offsets = [0, 0, 24], sizes = [2, 8, 8], strides = [1, 1, 1]} : vector<2x8x32xbf16> to vector<2x8x8xbf16>
    "tpu.trace_start"() <{level = 10 : i32, message = "bqk,bkd->bqd"}> : () -> ()
    %cst_115 = arith.constant dense<0.000000e+00> : vector<2x8x8xf32>
    %302 = tpu.matmul %300, %301, %cst_115 {dimension_numbers = #tpu.dot_dimension_numbers<[2], [1], [1], [2], [0, 0, 0, 1, 1, 2], [0], [0]>} : vector<2x8x8xbf16>, vector<2x8x8xbf16>, vector<2x8x8xf32> -> vector<2x8x8xf32>
    "tpu.trace_stop"() : () -> ()
    %c0_116 = arith.constant 0 : index
    %c0_117 = arith.constant 0 : index
    %c24_118 = arith.constant 24 : index
    %303 = vector.load %arg11[%c0_116, %c0_117, %c24_118] : memref<2x16x32xf32, #tpu.memory_space<vmem>>, vector<2x8x8xf32>
    tpu.vector_store %arg11[%c0_116, %c0_117, %c24_118], %302 {strides = array<i32>} : memref<2x16x32xf32, #tpu.memory_space<vmem>>, vector<2x8x8xf32>,
    %c0_119 = arith.constant 0 : index
    %c0_120 = arith.constant 0 : index
    %c0_121 = arith.constant 0 : index
    %304 = vector.load %arg11[%c0_119, %c0_120, %c0_121] : memref<2x16x32xf32, #tpu.memory_space<vmem>>, vector<2x8x32xf32>
    %305 = vector.shape_cast %304 : vector<2x8x32xf32> to vector<16x32xf32>
    %306 = arith.truncf %305 : vector<16x32xf32> to vector<16x32xbf16>
    %cst_122 = arith.constant dense<0.000000e+00> : vector<16x32xf32>
    %307 = tpu.matmul %306, %213, %cst_122 {dimension_numbers = #tpu.dot_dimension_numbers<[1], [0], [0], [1], [0, 0, 1, 1], [], []>} : vector<16x32xbf16>, vector<32x32xbf16>, vector<16x32xf32> -> vector<16x32xf32>
    %308 = vector.shape_cast %307 : vector<16x32xf32> to vector<2x8x32xf32>
    %309 = vector.shape_cast %214 : vector<1x32xf32> to vector<1x1x32xf32>
    %310 = vector.broadcast %309 : vector<1x1x32xf32> to vector<2x8x32xf32>
    %311 = arith.addf %308, %310 : vector<2x8x32xf32>
    %312 = arith.addf %208, %311 : vector<2x8x32xf32>
    %c17 = arith.constant 17 : index
    %c0_123 = arith.constant 0 : index
    %313 = vector.load %arg9[%c17, %c0_123] : memref<63x96xf32, #tpu.memory_space<vmem>>, vector<1x32xf32>
    %c18 = arith.constant 18 : index
    %c0_124 = arith.constant 0 : index
    %314 = vector.load %arg9[%c18, %c0_124] : memref<63x96xf32, #tpu.memory_space<vmem>>, vector<1x32xf32>
    %cst_125 = arith.constant dense<0.000000e+00> : vector<2x8xf32>
    %315 = vector.multi_reduction <add>, %312, %cst_125 [2] : vector<2x8x32xf32> to vector<2x8xf32>
    %316 = vector.shape_cast %315 : vector<2x8xf32> to vector<2x8x1xf32>
    %cst_126 = arith.constant 3.200000e+01 : f32
    %317 = vector.broadcast %cst_126 : f32 to vector<2x8x1xf32>
    %318 = arith.divf %316, %317 : vector<2x8x1xf32>
    %319 = vector.broadcast %318 : vector<2x8x1xf32> to vector<2x8x32xf32>
    %320 = arith.subf %312, %319 : vector<2x8x32xf32>
    %321 = arith.mulf %320, %320 : vector<2x8x32xf32>
    %cst_127 = arith.constant dense<0.000000e+00> : vector<2x8xf32>
    %322 = vector.multi_reduction <add>, %321, %cst_127 [2] : vector<2x8x32xf32> to vector<2x8xf32>
    %323 = vector.shape_cast %322 : vector<2x8xf32> to vector<2x8x1xf32>
    %cst_128 = arith.constant 3.200000e+01 : f32
    %324 = vector.broadcast %cst_128 : f32 to vector<2x8x1xf32>
    %325 = arith.divf %323, %324 : vector<2x8x1xf32>
    %cst_129 = arith.constant 9.99999974E-6 : f32
    %326 = vector.broadcast %cst_129 : f32 to vector<2x8x1xf32>
    %327 = arith.addf %325, %326 : vector<2x8x1xf32>
    %328 = math.rsqrt %327 : vector<2x8x1xf32>
    %329 = vector.broadcast %328 : vector<2x8x1xf32> to vector<2x8x32xf32>
    %330 = arith.mulf %320, %329 : vector<2x8x32xf32>
    %331 = vector.shape_cast %313 : vector<1x32xf32> to vector<1x1x32xf32>
    %332 = vector.broadcast %331 : vector<1x1x32xf32> to vector<2x8x32xf32>
    %333 = arith.mulf %330, %332 : vector<2x8x32xf32>
    %334 = vector.shape_cast %314 : vector<1x32xf32> to vector<1x1x32xf32>
    %335 = vector.broadcast %334 : vector<1x1x32xf32> to vector<2x8x32xf32>
    %336 = arith.addf %333, %335 : vector<2x8x32xf32>
    %c1_130 = arith.constant 1 : index
    %c0_131 = arith.constant 0 : index
    %c0_132 = arith.constant 0 : index
    %337 = vector.load %arg5[%c1_130, %c0_131, %c0_132] : memref<2x32x64xbf16, #tpu.memory_space<vmem>>, vector<1x32x64xbf16>
    %338 = vector.shape_cast %337 : vector<1x32x64xbf16> to vector<32x64xbf16>
    %c15 = arith.constant 15 : index
    %c0_133 = arith.constant 0 : index
    %339 = vector.load %arg9[%c15, %c0_133] : memref<63x96xf32, #tpu.memory_space<vmem>>, vector<1x64xf32>
    %340 = vector.shape_cast %336 : vector<2x8x32xf32> to vector<16x32xf32>
    %341 = arith.truncf %340 : vector<16x32xf32> to vector<16x32xbf16>
    %cst_134 = arith.constant dense<0.000000e+00> : vector<16x64xf32>
    %342 = tpu.matmul %341, %338, %cst_134 {dimension_numbers = #tpu.dot_dimension_numbers<[1], [0], [0], [1], [0, 0, 1, 1], [], []>} : vector<16x32xbf16>, vector<32x64xbf16>, vector<16x64xf32> -> vector<16x64xf32>
    %343 = vector.shape_cast %342 : vector<16x64xf32> to vector<2x8x64xf32>
    %344 = vector.shape_cast %339 : vector<1x64xf32> to vector<1x1x64xf32>
    %345 = vector.broadcast %344 : vector<1x1x64xf32> to vector<2x8x64xf32>
    %346 = arith.addf %343, %345 : vector<2x8x64xf32>
    %cst_135 = arith.constant 0.000000e+00 : f32
    %347 = vector.broadcast %cst_135 : f32 to vector<2x8x64xf32>
    %348 = arith.maximumf %346, %347 : vector<2x8x64xf32>
    %c1_136 = arith.constant 1 : index
    %c0_137 = arith.constant 0 : index
    %c0_138 = arith.constant 0 : index
    %349 = vector.load %arg6[%c1_136, %c0_137, %c0_138] : memref<2x64x32xbf16, #tpu.memory_space<vmem>>, vector<1x64x32xbf16>
    %350 = vector.shape_cast %349 : vector<1x64x32xbf16> to vector<64x32xbf16>
    %c16_139 = arith.constant 16 : index
    %c0_140 = arith.constant 0 : index
    %351 = vector.load %arg9[%c16_139, %c0_140] : memref<63x96xf32, #tpu.memory_space<vmem>>, vector<1x32xf32>
    %352 = vector.shape_cast %348 : vector<2x8x64xf32> to vector<16x64xf32>
    %353 = arith.truncf %352 : vector<16x64xf32> to vector<16x64xbf16>
    %cst_141 = arith.constant dense<0.000000e+00> : vector<16x32xf32>
    %354 = tpu.matmul %353, %350, %cst_141 {dimension_numbers = #tpu.dot_dimension_numbers<[1], [0], [0], [1], [0, 0, 1, 1], [], []>} : vector<16x64xbf16>, vector<64x32xbf16>, vector<16x32xf32> -> vector<16x32xf32>
    %355 = vector.shape_cast %354 : vector<16x32xf32> to vector<2x8x32xf32>
    %356 = vector.shape_cast %351 : vector<1x32xf32> to vector<1x1x32xf32>
    %357 = vector.broadcast %356 : vector<1x1x32xf32> to vector<2x8x32xf32>
    %358 = arith.addf %355, %357 : vector<2x8x32xf32>
    %359 = arith.addf %336, %358 : vector<2x8x32xf32>
    %c19 = arith.constant 19 : index
    %c0_142 = arith.constant 0 : index
    %360 = vector.load %arg9[%c19, %c0_142] : memref<63x96xf32, #tpu.memory_space<vmem>>, vector<1x32xf32>
    %c20 = arith.constant 20 : index
    %c0_143 = arith.constant 0 : index
    %361 = vector.load %arg9[%c20, %c0_143] : memref<63x96xf32, #tpu.memory_space<vmem>>, vector<1x32xf32>
    %cst_144 = arith.constant dense<0.000000e+00> : vector<2x8xf32>
    %362 = vector.multi_reduction <add>, %359, %cst_144 [2] : vector<2x8x32xf32> to vector<2x8xf32>
    %363 = vector.shape_cast %362 : vector<2x8xf32> to vector<2x8x1xf32>
    %cst_145 = arith.constant 3.200000e+01 : f32
    %364 = vector.broadcast %cst_145 : f32 to vector<2x8x1xf32>
    %365 = arith.divf %363, %364 : vector<2x8x1xf32>
    %366 = vector.broadcast %365 : vector<2x8x1xf32> to vector<2x8x32xf32>
    %367 = arith.subf %359, %366 : vector<2x8x32xf32>
    %368 = arith.mulf %367, %367 : vector<2x8x32xf32>
    %cst_146 = arith.constant dense<0.000000e+00> : vector<2x8xf32>
    %369 = vector.multi_reduction <add>, %368, %cst_146 [2] : vector<2x8x32xf32> to vector<2x8xf32>
    %370 = vector.shape_cast %369 : vector<2x8xf32> to vector<2x8x1xf32>
    %cst_147 = arith.constant 3.200000e+01 : f32
    %371 = vector.broadcast %cst_147 : f32 to vector<2x8x1xf32>
    %372 = arith.divf %370, %371 : vector<2x8x1xf32>
    %cst_148 = arith.constant 9.99999974E-6 : f32
    %373 = vector.broadcast %cst_148 : f32 to vector<2x8x1xf32>
    %374 = arith.addf %372, %373 : vector<2x8x1xf32>
    %375 = math.rsqrt %374 : vector<2x8x1xf32>
    %376 = vector.broadcast %375 : vector<2x8x1xf32> to vector<2x8x32xf32>
    %377 = arith.mulf %367, %376 : vector<2x8x32xf32>
    %378 = vector.shape_cast %360 : vector<1x32xf32> to vector<1x1x32xf32>
    %379 = vector.broadcast %378 : vector<1x1x32xf32> to vector<2x8x32xf32>
    %380 = arith.mulf %377, %379 : vector<2x8x32xf32>
    %381 = vector.shape_cast %361 : vector<1x32xf32> to vector<1x1x32xf32>
    %382 = vector.broadcast %381 : vector<1x1x32xf32> to vector<2x8x32xf32>
    %383 = arith.addf %380, %382 : vector<2x8x32xf32>
    %c1_149 = arith.constant 1 : index
    %c0_150 = arith.constant 0 : index
    %384 = vector.load %arg9[%c1_149, %c0_150] : memref<63x96xf32, #tpu.memory_space<vmem>>, vector<1x32xf32>
    %c2 = arith.constant 2 : index
    %c0_151 = arith.constant 0 : index
    %385 = vector.load %arg9[%c2, %c0_151] : memref<63x96xf32, #tpu.memory_space<vmem>>, vector<1x32xf32>
    %cst_152 = arith.constant dense<0.000000e+00> : vector<2x8xf32>
    %386 = vector.multi_reduction <add>, %383, %cst_152 [2] : vector<2x8x32xf32> to vector<2x8xf32>
    %387 = vector.shape_cast %386 : vector<2x8xf32> to vector<2x8x1xf32>
    %cst_153 = arith.constant 3.200000e+01 : f32
    %388 = vector.broadcast %cst_153 : f32 to vector<2x8x1xf32>
    %389 = arith.divf %387, %388 : vector<2x8x1xf32>
    %390 = vector.broadcast %389 : vector<2x8x1xf32> to vector<2x8x32xf32>
    %391 = arith.subf %383, %390 : vector<2x8x32xf32>
    %392 = arith.mulf %391, %391 : vector<2x8x32xf32>
    %cst_154 = arith.constant dense<0.000000e+00> : vector<2x8xf32>
    %393 = vector.multi_reduction <add>, %392, %cst_154 [2] : vector<2x8x32xf32> to vector<2x8xf32>
    %394 = vector.shape_cast %393 : vector<2x8xf32> to vector<2x8x1xf32>
    %cst_155 = arith.constant 3.200000e+01 : f32
    %395 = vector.broadcast %cst_155 : f32 to vector<2x8x1xf32>
    %396 = arith.divf %394, %395 : vector<2x8x1xf32>
    %cst_156 = arith.constant 9.99999974E-6 : f32
    %397 = vector.broadcast %cst_156 : f32 to vector<2x8x1xf32>
    %398 = arith.addf %396, %397 : vector<2x8x1xf32>
    %399 = math.rsqrt %398 : vector<2x8x1xf32>
    %400 = vector.broadcast %399 : vector<2x8x1xf32> to vector<2x8x32xf32>
    %401 = arith.mulf %391, %400 : vector<2x8x32xf32>
    %402 = vector.shape_cast %384 : vector<1x32xf32> to vector<1x1x32xf32>
    %403 = vector.broadcast %402 : vector<1x1x32xf32> to vector<2x8x32xf32>
    %404 = arith.mulf %401, %403 : vector<2x8x32xf32>
    %405 = vector.shape_cast %385 : vector<1x32xf32> to vector<1x1x32xf32>
    %406 = vector.broadcast %405 : vector<1x1x32xf32> to vector<2x8x32xf32>
    %407 = arith.addf %404, %406 : vector<2x8x32xf32>
    %c47 = arith.constant 47 : index
    %c0_157 = arith.constant 0 : index
    %408 = vector.load %arg9[%c47, %c0_157] : memref<63x96xf32, #tpu.memory_space<vmem>>, vector<16x32xf32>
    %c0_158 = arith.constant 0 : index
    %c0_159 = arith.constant 0 : index
    %c0_160 = arith.constant 0 : index
    %409 = vector.load %arg1[%c0_158, %c0_159, %c0_160] : memref<2x16x16xf32, #tpu.memory_space<vmem>>, vector<2x16x16xf32>
    %c16_161 = arith.constant 16 : index
    %c0_162 = arith.constant 0 : index
    %410 = vector.load %arg8[%c16_161, %c0_162] : memref<32x32xbf16, #tpu.memory_space<vmem>>, vector<16x32xbf16>
    %411 = vector.shape_cast %409 : vector<2x16x16xf32> to vector<32x16xf32>
    %412 = arith.truncf %411 : vector<32x16xf32> to vector<32x16xbf16>
    %cst_163 = arith.constant dense<0.000000e+00> : vector<32x32xf32>
    %413 = tpu.matmul %412, %410, %cst_163 {dimension_numbers = #tpu.dot_dimension_numbers<[1], [0], [0], [1], [0, 0, 1, 1], [], []>} : vector<32x16xbf16>, vector<16x32xbf16>, vector<32x32xf32> -> vector<32x32xf32>
    %414 = vector.shape_cast %413 : vector<32x32xf32> to vector<2x16x32xf32>
    %415 = vector.shape_cast %408 : vector<16x32xf32> to vector<1x16x32xf32>
    %416 = vector.broadcast %415 : vector<1x16x32xf32> to vector<2x16x32xf32>
    %417 = arith.addf %414, %416 : vector<2x16x32xf32>
    %c2_164 = arith.constant 2 : index
    %c0_165 = arith.constant 0 : index
    %c0_166 = arith.constant 0 : index
    %418 = vector.load %arg2[%c2_164, %c0_165, %c0_166] : memref<4x32x96xbf16, #tpu.memory_space<vmem>>, vector<1x32x96xbf16>
    %419 = vector.shape_cast %418 : vector<1x32x96xbf16> to vector<32x96xbf16>
    %c21 = arith.constant 21 : index
    %c0_167 = arith.constant 0 : index
    %420 = vector.load %arg9[%c21, %c0_167] : memref<63x96xf32, #tpu.memory_space<vmem>>, vector<1x96xf32>
    %c2_168 = arith.constant 2 : index
    %c0_169 = arith.constant 0 : index
    %c0_170 = arith.constant 0 : index
    %421 = vector.load %arg3[%c2_168, %c0_169, %c0_170] : memref<8x32x32xbf16, #tpu.memory_space<vmem>>, vector<1x32x32xbf16>
    %422 = vector.shape_cast %421 : vector<1x32x32xbf16> to vector<32x32xbf16>
    %c22 = arith.constant 22 : index
    %c0_171 = arith.constant 0 : index
    %423 = vector.load %arg9[%c22, %c0_171] : memref<63x96xf32, #tpu.memory_space<vmem>>, vector<1x32xf32>
    %424 = vector.shape_cast %417 : vector<2x16x32xf32> to vector<32x32xf32>
    %425 = arith.truncf %424 : vector<32x32xf32> to vector<32x32xbf16>
    %cst_172 = arith.constant dense<0.000000e+00> : vector<32x96xf32>
    %426 = tpu.matmul %425, %419, %cst_172 {dimension_numbers = #tpu.dot_dimension_numbers<[1], [0], [0], [1], [0, 0, 1, 1], [], []>} : vector<32x32xbf16>, vector<32x96xbf16>, vector<32x96xf32> -> vector<32x96xf32>
    %427 = vector.shape_cast %426 : vector<32x96xf32> to vector<2x16x96xf32>
    %428 = vector.shape_cast %420 : vector<1x96xf32> to vector<1x1x96xf32>
    %429 = vector.broadcast %428 : vector<1x1x96xf32> to vector<2x16x96xf32>
    %430 = arith.addf %427, %429 : vector<2x16x96xf32>
    %431 = vector.extract_strided_slice %430 {offsets = [0, 0, 0], sizes = [2, 16, 32], strides = [1, 1, 1]} : vector<2x16x96xf32> to vector<2x16x32xf32>
    %432 = vector.extract_strided_slice %430 {offsets = [0, 0, 32], sizes = [2, 16, 32], strides = [1, 1, 1]} : vector<2x16x96xf32> to vector<2x16x32xf32>
    %433 = vector.extract_strided_slice %430 {offsets = [0, 0, 64], sizes = [2, 16, 32], strides = [1, 1, 1]} : vector<2x16x96xf32> to vector<2x16x32xf32>
    %434 = arith.truncf %431 : vector<2x16x32xf32> to vector<2x16x32xbf16>
    %435 = arith.truncf %432 : vector<2x16x32xf32> to vector<2x16x32xbf16>
    %436 = arith.truncf %433 : vector<2x16x32xf32> to vector<2x16x32xbf16>
    %437 = vector.extract_strided_slice %434 {offsets = [0, 0, 0], sizes = [2, 16, 8], strides = [1, 1, 1]} : vector<2x16x32xbf16> to vector<2x16x8xbf16>
    %438 = vector.extract_strided_slice %435 {offsets = [0, 0, 0], sizes = [2, 16, 8], strides = [1, 1, 1]} : vector<2x16x32xbf16> to vector<2x16x8xbf16>
    "tpu.trace_start"() <{level = 10 : i32, message = "bqd,bkd->bqk"}> : () -> ()
    %cst_173 = arith.constant dense<0.000000e+00> : vector<2x16x16xf32>
    %439 = tpu.matmul %437, %438, %cst_173 {dimension_numbers = #tpu.dot_dimension_numbers<[2], [2], [1], [1], [0, 0, 0, 1, 1, 1], [0], [0]>} : vector<2x16x8xbf16>, vector<2x16x8xbf16>, vector<2x16x16xf32> -> vector<2x16x16xf32>
    "tpu.trace_stop"() : () -> ()
    %cst_174 = arith.constant 0.353553385 : f32
    %440 = vector.broadcast %cst_174 : f32 to vector<2x16x16xf32>
    %441 = arith.mulf %439, %440 : vector<2x16x16xf32>
    %cst_175 = arith.constant dense<0xFF800000> : vector<2x16xf32>
    %442 = vector.multi_reduction <maximumf>, %441, %cst_175 [2] : vector<2x16x16xf32> to vector<2x16xf32>
    %443 = vector.shape_cast %442 : vector<2x16xf32> to vector<2x16x1xf32>
    %444 = vector.broadcast %443 : vector<2x16x1xf32> to vector<2x16x16xf32>
    %445 = arith.subf %441, %444 : vector<2x16x16xf32>
    %446 = math.exp %445 : vector<2x16x16xf32>
    %cst_176 = arith.constant dense<0.000000e+00> : vector<2x16xf32>
    %447 = vector.multi_reduction <add>, %446, %cst_176 [2] : vector<2x16x16xf32> to vector<2x16xf32>
    %448 = vector.shape_cast %447 : vector<2x16xf32> to vector<2x16x1xf32>
    %449 = tpu.reciprocal %448 {approx = true} : vector<2x16x1xf32> -> vector<2x16x1xf32>
    %450 = vector.broadcast %449 : vector<2x16x1xf32> to vector<2x16x16xf32>
    %451 = arith.mulf %446, %450 : vector<2x16x16xf32>
    %452 = arith.truncf %451 : vector<2x16x16xf32> to vector<2x16x16xbf16>
    %453 = vector.extract_strided_slice %436 {offsets = [0, 0, 0], sizes = [2, 16, 8], strides = [1, 1, 1]} : vector<2x16x32xbf16> to vector<2x16x8xbf16>
    "tpu.trace_start"() <{level = 10 : i32, message = "bqk,bkd->bqd"}> : () -> ()
    %cst_177 = arith.constant dense<0.000000e+00> : vector<2x16x8xf32>
    %454 = tpu.matmul %452, %453, %cst_177 {dimension_numbers = #tpu.dot_dimension_numbers<[2], [1], [1], [2], [0, 0, 0, 1, 1, 2], [0], [0]>} : vector<2x16x16xbf16>, vector<2x16x8xbf16>, vector<2x16x8xf32> -> vector<2x16x8xf32>
    "tpu.trace_stop"() : () -> ()
    %c0_178 = arith.constant 0 : index
    %c0_179 = arith.constant 0 : index
    %c0_180 = arith.constant 0 : index
    %455 = vector.load %arg11[%c0_178, %c0_179, %c0_180] : memref<2x16x32xf32, #tpu.memory_space<vmem>>, vector<2x16x8xf32>
    tpu.vector_store %arg11[%c0_178, %c0_179, %c0_180], %454 {strides = array<i32>} : memref<2x16x32xf32, #tpu.memory_space<vmem>>, vector<2x16x8xf32>,
    %456 = vector.extract_strided_slice %434 {offsets = [0, 0, 8], sizes = [2, 16, 8], strides = [1, 1, 1]} : vector<2x16x32xbf16> to vector<2x16x8xbf16>
    %457 = vector.extract_strided_slice %435 {offsets = [0, 0, 8], sizes = [2, 16, 8], strides = [1, 1, 1]} : vector<2x16x32xbf16> to vector<2x16x8xbf16>
    "tpu.trace_start"() <{level = 10 : i32, message = "bqd,bkd->bqk"}> : () -> ()
    %cst_181 = arith.constant dense<0.000000e+00> : vector<2x16x16xf32>
    %458 = tpu.matmul %456, %457, %cst_181 {dimension_numbers = #tpu.dot_dimension_numbers<[2], [2], [1], [1], [0, 0, 0, 1, 1, 1], [0], [0]>} : vector<2x16x8xbf16>, vector<2x16x8xbf16>, vector<2x16x16xf32> -> vector<2x16x16xf32>
    "tpu.trace_stop"() : () -> ()
    %cst_182 = arith.constant 0.353553385 : f32
    %459 = vector.broadcast %cst_182 : f32 to vector<2x16x16xf32>
    %460 = arith.mulf %458, %459 : vector<2x16x16xf32>
    %cst_183 = arith.constant dense<0xFF800000> : vector<2x16xf32>
    %461 = vector.multi_reduction <maximumf>, %460, %cst_183 [2] : vector<2x16x16xf32> to vector<2x16xf32>
    %462 = vector.shape_cast %461 : vector<2x16xf32> to vector<2x16x1xf32>
    %463 = vector.broadcast %462 : vector<2x16x1xf32> to vector<2x16x16xf32>
    %464 = arith.subf %460, %463 : vector<2x16x16xf32>
    %465 = math.exp %464 : vector<2x16x16xf32>
    %cst_184 = arith.constant dense<0.000000e+00> : vector<2x16xf32>
    %466 = vector.multi_reduction <add>, %465, %cst_184 [2] : vector<2x16x16xf32> to vector<2x16xf32>
    %467 = vector.shape_cast %466 : vector<2x16xf32> to vector<2x16x1xf32>
    %468 = tpu.reciprocal %467 {approx = true} : vector<2x16x1xf32> -> vector<2x16x1xf32>
    %469 = vector.broadcast %468 : vector<2x16x1xf32> to vector<2x16x16xf32>
    %470 = arith.mulf %465, %469 : vector<2x16x16xf32>
    %471 = arith.truncf %470 : vector<2x16x16xf32> to vector<2x16x16xbf16>
    %472 = vector.extract_strided_slice %436 {offsets = [0, 0, 8], sizes = [2, 16, 8], strides = [1, 1, 1]} : vector<2x16x32xbf16> to vector<2x16x8xbf16>
    "tpu.trace_start"() <{level = 10 : i32, message = "bqk,bkd->bqd"}> : () -> ()
    %cst_185 = arith.constant dense<0.000000e+00> : vector<2x16x8xf32>
    %473 = tpu.matmul %471, %472, %cst_185 {dimension_numbers = #tpu.dot_dimension_numbers<[2], [1], [1], [2], [0, 0, 0, 1, 1, 2], [0], [0]>} : vector<2x16x16xbf16>, vector<2x16x8xbf16>, vector<2x16x8xf32> -> vector<2x16x8xf32>
    "tpu.trace_stop"() : () -> ()
    %c0_186 = arith.constant 0 : index
    %c0_187 = arith.constant 0 : index
    %c8_188 = arith.constant 8 : index
    %474 = vector.load %arg11[%c0_186, %c0_187, %c8_188] : memref<2x16x32xf32, #tpu.memory_space<vmem>>, vector<2x16x8xf32>
    tpu.vector_store %arg11[%c0_186, %c0_187, %c8_188], %473 {strides = array<i32>} : memref<2x16x32xf32, #tpu.memory_space<vmem>>, vector<2x16x8xf32>,
    %475 = vector.extract_strided_slice %434 {offsets = [0, 0, 16], sizes = [2, 16, 8], strides = [1, 1, 1]} : vector<2x16x32xbf16> to vector<2x16x8xbf16>
    %476 = vector.extract_strided_slice %435 {offsets = [0, 0, 16], sizes = [2, 16, 8], strides = [1, 1, 1]} : vector<2x16x32xbf16> to vector<2x16x8xbf16>
    "tpu.trace_start"() <{level = 10 : i32, message = "bqd,bkd->bqk"}> : () -> ()
    %cst_189 = arith.constant dense<0.000000e+00> : vector<2x16x16xf32>
    %477 = tpu.matmul %475, %476, %cst_189 {dimension_numbers = #tpu.dot_dimension_numbers<[2], [2], [1], [1], [0, 0, 0, 1, 1, 1], [0], [0]>} : vector<2x16x8xbf16>, vector<2x16x8xbf16>, vector<2x16x16xf32> -> vector<2x16x16xf32>
    "tpu.trace_stop"() : () -> ()
    %cst_190 = arith.constant 0.353553385 : f32
    %478 = vector.broadcast %cst_190 : f32 to vector<2x16x16xf32>
    %479 = arith.mulf %477, %478 : vector<2x16x16xf32>
    %cst_191 = arith.constant dense<0xFF800000> : vector<2x16xf32>
    %480 = vector.multi_reduction <maximumf>, %479, %cst_191 [2] : vector<2x16x16xf32> to vector<2x16xf32>
    %481 = vector.shape_cast %480 : vector<2x16xf32> to vector<2x16x1xf32>
    %482 = vector.broadcast %481 : vector<2x16x1xf32> to vector<2x16x16xf32>
    %483 = arith.subf %479, %482 : vector<2x16x16xf32>
    %484 = math.exp %483 : vector<2x16x16xf32>
    %cst_192 = arith.constant dense<0.000000e+00> : vector<2x16xf32>
    %485 = vector.multi_reduction <add>, %484, %cst_192 [2] : vector<2x16x16xf32> to vector<2x16xf32>
    %486 = vector.shape_cast %485 : vector<2x16xf32> to vector<2x16x1xf32>
    %487 = tpu.reciprocal %486 {approx = true} : vector<2x16x1xf32> -> vector<2x16x1xf32>
    %488 = vector.broadcast %487 : vector<2x16x1xf32> to vector<2x16x16xf32>
    %489 = arith.mulf %484, %488 : vector<2x16x16xf32>
    %490 = arith.truncf %489 : vector<2x16x16xf32> to vector<2x16x16xbf16>
    %491 = vector.extract_strided_slice %436 {offsets = [0, 0, 16], sizes = [2, 16, 8], strides = [1, 1, 1]} : vector<2x16x32xbf16> to vector<2x16x8xbf16>
    "tpu.trace_start"() <{level = 10 : i32, message = "bqk,bkd->bqd"}> : () -> ()
    %cst_193 = arith.constant dense<0.000000e+00> : vector<2x16x8xf32>
    %492 = tpu.matmul %490, %491, %cst_193 {dimension_numbers = #tpu.dot_dimension_numbers<[2], [1], [1], [2], [0, 0, 0, 1, 1, 2], [0], [0]>} : vector<2x16x16xbf16>, vector<2x16x8xbf16>, vector<2x16x8xf32> -> vector<2x16x8xf32>
    "tpu.trace_stop"() : () -> ()
    %c0_194 = arith.constant 0 : index
    %c0_195 = arith.constant 0 : index
    %c16_196 = arith.constant 16 : index
    %493 = vector.load %arg11[%c0_194, %c0_195, %c16_196] : memref<2x16x32xf32, #tpu.memory_space<vmem>>, vector<2x16x8xf32>
    tpu.vector_store %arg11[%c0_194, %c0_195, %c16_196], %492 {strides = array<i32>} : memref<2x16x32xf32, #tpu.memory_space<vmem>>, vector<2x16x8xf32>,
    %494 = vector.extract_strided_slice %434 {offsets = [0, 0, 24], sizes = [2, 16, 8], strides = [1, 1, 1]} : vector<2x16x32xbf16> to vector<2x16x8xbf16>
    %495 = vector.extract_strided_slice %435 {offsets = [0, 0, 24], sizes = [2, 16, 8], strides = [1, 1, 1]} : vector<2x16x32xbf16> to vector<2x16x8xbf16>
    "tpu.trace_start"() <{level = 10 : i32, message = "bqd,bkd->bqk"}> : () -> ()
    %cst_197 = arith.constant dense<0.000000e+00> : vector<2x16x16xf32>
    %496 = tpu.matmul %494, %495, %cst_197 {dimension_numbers = #tpu.dot_dimension_numbers<[2], [2], [1], [1], [0, 0, 0, 1, 1, 1], [0], [0]>} : vector<2x16x8xbf16>, vector<2x16x8xbf16>, vector<2x16x16xf32> -> vector<2x16x16xf32>
    "tpu.trace_stop"() : () -> ()
    %cst_198 = arith.constant 0.353553385 : f32
    %497 = vector.broadcast %cst_198 : f32 to vector<2x16x16xf32>
    %498 = arith.mulf %496, %497 : vector<2x16x16xf32>
    %cst_199 = arith.constant dense<0xFF800000> : vector<2x16xf32>
    %499 = vector.multi_reduction <maximumf>, %498, %cst_199 [2] : vector<2x16x16xf32> to vector<2x16xf32>
    %500 = vector.shape_cast %499 : vector<2x16xf32> to vector<2x16x1xf32>
    %501 = vector.broadcast %500 : vector<2x16x1xf32> to vector<2x16x16xf32>
    %502 = arith.subf %498, %501 : vector<2x16x16xf32>
    %503 = math.exp %502 : vector<2x16x16xf32>
    %cst_200 = arith.constant dense<0.000000e+00> : vector<2x16xf32>
    %504 = vector.multi_reduction <add>, %503, %cst_200 [2] : vector<2x16x16xf32> to vector<2x16xf32>
    %505 = vector.shape_cast %504 : vector<2x16xf32> to vector<2x16x1xf32>
    %506 = tpu.reciprocal %505 {approx = true} : vector<2x16x1xf32> -> vector<2x16x1xf32>
    %507 = vector.broadcast %506 : vector<2x16x1xf32> to vector<2x16x16xf32>
    %508 = arith.mulf %503, %507 : vector<2x16x16xf32>
    %509 = arith.truncf %508 : vector<2x16x16xf32> to vector<2x16x16xbf16>
    %510 = vector.extract_strided_slice %436 {offsets = [0, 0, 24], sizes = [2, 16, 8], strides = [1, 1, 1]} : vector<2x16x32xbf16> to vector<2x16x8xbf16>
    "tpu.trace_start"() <{level = 10 : i32, message = "bqk,bkd->bqd"}> : () -> ()
    %cst_201 = arith.constant dense<0.000000e+00> : vector<2x16x8xf32>
    %511 = tpu.matmul %509, %510, %cst_201 {dimension_numbers = #tpu.dot_dimension_numbers<[2], [1], [1], [2], [0, 0, 0, 1, 1, 2], [0], [0]>} : vector<2x16x16xbf16>, vector<2x16x8xbf16>, vector<2x16x8xf32> -> vector<2x16x8xf32>
    "tpu.trace_stop"() : () -> ()
    %c0_202 = arith.constant 0 : index
    %c0_203 = arith.constant 0 : index
    %c24_204 = arith.constant 24 : index
    %512 = vector.load %arg11[%c0_202, %c0_203, %c24_204] : memref<2x16x32xf32, #tpu.memory_space<vmem>>, vector<2x16x8xf32>
    tpu.vector_store %arg11[%c0_202, %c0_203, %c24_204], %511 {strides = array<i32>} : memref<2x16x32xf32, #tpu.memory_space<vmem>>, vector<2x16x8xf32>,
    %c0_205 = arith.constant 0 : index
    %c0_206 = arith.constant 0 : index
    %c0_207 = arith.constant 0 : index
    %513 = vector.load %arg11[%c0_205, %c0_206, %c0_207] : memref<2x16x32xf32, #tpu.memory_space<vmem>>, vector<2x16x32xf32>
    %514 = vector.shape_cast %513 : vector<2x16x32xf32> to vector<32x32xf32>
    %515 = arith.truncf %514 : vector<32x32xf32> to vector<32x32xbf16>
    %cst_208 = arith.constant dense<0.000000e+00> : vector<32x32xf32>
    %516 = tpu.matmul %515, %422, %cst_208 {dimension_numbers = #tpu.dot_dimension_numbers<[1], [0], [0], [1], [0, 0, 1, 1], [], []>} : vector<32x32xbf16>, vector<32x32xbf16>, vector<32x32xf32> -> vector<32x32xf32>
    %517 = vector.shape_cast %516 : vector<32x32xf32> to vector<2x16x32xf32>
    %518 = vector.shape_cast %423 : vector<1x32xf32> to vector<1x1x32xf32>
    %519 = vector.broadcast %518 : vector<1x1x32xf32> to vector<2x16x32xf32>
    %520 = arith.addf %517, %519 : vector<2x16x32xf32>
    %521 = arith.addf %417, %520 : vector<2x16x32xf32>
    %c28 = arith.constant 28 : index
    %c0_209 = arith.constant 0 : index
    %522 = vector.load %arg9[%c28, %c0_209] : memref<63x96xf32, #tpu.memory_space<vmem>>, vector<1x32xf32>
    %c29 = arith.constant 29 : index
    %c0_210 = arith.constant 0 : index
    %523 = vector.load %arg9[%c29, %c0_210] : memref<63x96xf32, #tpu.memory_space<vmem>>, vector<1x32xf32>
    %cst_211 = arith.constant dense<0.000000e+00> : vector<2x16xf32>
    %524 = vector.multi_reduction <add>, %521, %cst_211 [2] : vector<2x16x32xf32> to vector<2x16xf32>
    %525 = vector.shape_cast %524 : vector<2x16xf32> to vector<2x16x1xf32>
    %cst_212 = arith.constant 3.200000e+01 : f32
    %526 = vector.broadcast %cst_212 : f32 to vector<2x16x1xf32>
    %527 = arith.divf %525, %526 : vector<2x16x1xf32>
    %528 = vector.broadcast %527 : vector<2x16x1xf32> to vector<2x16x32xf32>
    %529 = arith.subf %521, %528 : vector<2x16x32xf32>
    %530 = arith.mulf %529, %529 : vector<2x16x32xf32>
    %cst_213 = arith.constant dense<0.000000e+00> : vector<2x16xf32>
    %531 = vector.multi_reduction <add>, %530, %cst_213 [2] : vector<2x16x32xf32> to vector<2x16xf32>
    %532 = vector.shape_cast %531 : vector<2x16xf32> to vector<2x16x1xf32>
    %cst_214 = arith.constant 3.200000e+01 : f32
    %533 = vector.broadcast %cst_214 : f32 to vector<2x16x1xf32>
    %534 = arith.divf %532, %533 : vector<2x16x1xf32>
    %cst_215 = arith.constant 9.99999974E-6 : f32
    %535 = vector.broadcast %cst_215 : f32 to vector<2x16x1xf32>
    %536 = arith.addf %534, %535 : vector<2x16x1xf32>
    %537 = math.rsqrt %536 : vector<2x16x1xf32>
    %538 = vector.broadcast %537 : vector<2x16x1xf32> to vector<2x16x32xf32>
    %539 = arith.mulf %529, %538 : vector<2x16x32xf32>
    %540 = vector.shape_cast %522 : vector<1x32xf32> to vector<1x1x32xf32>
    %541 = vector.broadcast %540 : vector<1x1x32xf32> to vector<2x16x32xf32>
    %542 = arith.mulf %539, %541 : vector<2x16x32xf32>
    %543 = vector.shape_cast %523 : vector<1x32xf32> to vector<1x1x32xf32>
    %544 = vector.broadcast %543 : vector<1x1x32xf32> to vector<2x16x32xf32>
    %545 = arith.addf %542, %544 : vector<2x16x32xf32>
    %c4 = arith.constant 4 : index
    %c0_216 = arith.constant 0 : index
    %c0_217 = arith.constant 0 : index
    %546 = vector.load %arg3[%c4, %c0_216, %c0_217] : memref<8x32x32xbf16, #tpu.memory_space<vmem>>, vector<1x32x32xbf16>
    %547 = vector.shape_cast %546 : vector<1x32x32xbf16> to vector<32x32xbf16>
    %c23 = arith.constant 23 : index
    %c0_218 = arith.constant 0 : index
    %548 = vector.load %arg9[%c23, %c0_218] : memref<63x96xf32, #tpu.memory_space<vmem>>, vector<1x32xf32>
    %c0_219 = arith.constant 0 : index
    %c0_220 = arith.constant 0 : index
    %c0_221 = arith.constant 0 : index
    %549 = vector.load %arg4[%c0_219, %c0_220, %c0_221] : memref<5x32x64xbf16, #tpu.memory_space<vmem>>, vector<1x32x64xbf16>
    %550 = vector.shape_cast %549 : vector<1x32x64xbf16> to vector<32x64xbf16>
    %c24_222 = arith.constant 24 : index
    %c0_223 = arith.constant 0 : index
    %551 = vector.load %arg9[%c24_222, %c0_223] : memref<63x96xf32, #tpu.memory_space<vmem>>, vector<1x64xf32>
    %c6_224 = arith.constant 6 : index
    %c0_225 = arith.constant 0 : index
    %c0_226 = arith.constant 0 : index
    %552 = vector.load %arg3[%c6_224, %c0_225, %c0_226] : memref<8x32x32xbf16, #tpu.memory_space<vmem>>, vector<1x32x32xbf16>
    %553 = vector.shape_cast %552 : vector<1x32x32xbf16> to vector<32x32xbf16>
    %c25 = arith.constant 25 : index
    %c0_227 = arith.constant 0 : index
    %554 = vector.load %arg9[%c25, %c0_227] : memref<63x96xf32, #tpu.memory_space<vmem>>, vector<1x32xf32>
    %555 = vector.shape_cast %545 : vector<2x16x32xf32> to vector<32x32xf32>
    %556 = arith.truncf %555 : vector<32x32xf32> to vector<32x32xbf16>
    %cst_228 = arith.constant dense<0.000000e+00> : vector<32x32xf32>
    %557 = tpu.matmul %556, %547, %cst_228 {dimension_numbers = #tpu.dot_dimension_numbers<[1], [0], [0], [1], [0, 0, 1, 1], [], []>} : vector<32x32xbf16>, vector<32x32xbf16>, vector<32x32xf32> -> vector<32x32xf32>
    %558 = vector.shape_cast %557 : vector<32x32xf32> to vector<2x16x32xf32>
    %559 = vector.shape_cast %548 : vector<1x32xf32> to vector<1x1x32xf32>
    %560 = vector.broadcast %559 : vector<1x1x32xf32> to vector<2x16x32xf32>
    %561 = arith.addf %558, %560 : vector<2x16x32xf32>
    %562 = vector.shape_cast %407 : vector<2x8x32xf32> to vector<16x32xf32>
    %563 = arith.truncf %562 : vector<16x32xf32> to vector<16x32xbf16>
    %cst_229 = arith.constant dense<0.000000e+00> : vector<16x64xf32>
    %564 = tpu.matmul %563, %550, %cst_229 {dimension_numbers = #tpu.dot_dimension_numbers<[1], [0], [0], [1], [0, 0, 1, 1], [], []>} : vector<16x32xbf16>, vector<32x64xbf16>, vector<16x64xf32> -> vector<16x64xf32>
    %565 = vector.shape_cast %564 : vector<16x64xf32> to vector<2x8x64xf32>
    %566 = vector.shape_cast %551 : vector<1x64xf32> to vector<1x1x64xf32>
    %567 = vector.broadcast %566 : vector<1x1x64xf32> to vector<2x8x64xf32>
    %568 = arith.addf %565, %567 : vector<2x8x64xf32>
    %569 = vector.extract_strided_slice %568 {offsets = [0, 0, 0], sizes = [2, 8, 32], strides = [1, 1, 1]} : vector<2x8x64xf32> to vector<2x8x32xf32>
    %570 = vector.extract_strided_slice %568 {offsets = [0, 0, 32], sizes = [2, 8, 32], strides = [1, 1, 1]} : vector<2x8x64xf32> to vector<2x8x32xf32>
    %571 = arith.truncf %561 : vector<2x16x32xf32> to vector<2x16x32xbf16>
    %572 = arith.truncf %569 : vector<2x8x32xf32> to vector<2x8x32xbf16>
    %573 = arith.truncf %570 : vector<2x8x32xf32> to vector<2x8x32xbf16>
    %574 = vector.extract_strided_slice %571 {offsets = [0, 0, 0], sizes = [2, 16, 8], strides = [1, 1, 1]} : vector<2x16x32xbf16> to vector<2x16x8xbf16>
    %575 = vector.extract_strided_slice %572 {offsets = [0, 0, 0], sizes = [2, 8, 8], strides = [1, 1, 1]} : vector<2x8x32xbf16> to vector<2x8x8xbf16>
    "tpu.trace_start"() <{level = 10 : i32, message = "bqd,bkd->bqk"}> : () -> ()
    %cst_230 = arith.constant dense<0.000000e+00> : vector<2x16x8xf32>
    %576 = tpu.matmul %574, %575, %cst_230 {dimension_numbers = #tpu.dot_dimension_numbers<[2], [2], [1], [1], [0, 0, 0, 1, 1, 1], [0], [0]>} : vector<2x16x8xbf16>, vector<2x8x8xbf16>, vector<2x16x8xf32> -> vector<2x16x8xf32>
    "tpu.trace_stop"() : () -> ()
    %cst_231 = arith.constant 0.353553385 : f32
    %577 = vector.broadcast %cst_231 : f32 to vector<2x16x8xf32>
    %578 = arith.mulf %576, %577 : vector<2x16x8xf32>
    %cst_232 = arith.constant dense<0xFF800000> : vector<2x16xf32>
    %579 = vector.multi_reduction <maximumf>, %578, %cst_232 [2] : vector<2x16x8xf32> to vector<2x16xf32>
    %580 = vector.shape_cast %579 : vector<2x16xf32> to vector<2x16x1xf32>
    %581 = vector.broadcast %580 : vector<2x16x1xf32> to vector<2x16x8xf32>
    %582 = arith.subf %578, %581 : vector<2x16x8xf32>
    %583 = math.exp %582 : vector<2x16x8xf32>
    %cst_233 = arith.constant dense<0.000000e+00> : vector<2x16xf32>
    %584 = vector.multi_reduction <add>, %583, %cst_233 [2] : vector<2x16x8xf32> to vector<2x16xf32>
    %585 = vector.shape_cast %584 : vector<2x16xf32> to vector<2x16x1xf32>
    %586 = tpu.reciprocal %585 {approx = true} : vector<2x16x1xf32> -> vector<2x16x1xf32>
    %587 = vector.broadcast %586 : vector<2x16x1xf32> to vector<2x16x8xf32>
    %588 = arith.mulf %583, %587 : vector<2x16x8xf32>
    %589 = arith.truncf %588 : vector<2x16x8xf32> to vector<2x16x8xbf16>
    %590 = vector.extract_strided_slice %573 {offsets = [0, 0, 0], sizes = [2, 8, 8], strides = [1, 1, 1]} : vector<2x8x32xbf16> to vector<2x8x8xbf16>
    "tpu.trace_start"() <{level = 10 : i32, message = "bqk,bkd->bqd"}> : () -> ()
    %cst_234 = arith.constant dense<0.000000e+00> : vector<2x16x8xf32>
    %591 = tpu.matmul %589, %590, %cst_234 {dimension_numbers = #tpu.dot_dimension_numbers<[2], [1], [1], [2], [0, 0, 0, 1, 1, 2], [0], [0]>} : vector<2x16x8xbf16>, vector<2x8x8xbf16>, vector<2x16x8xf32> -> vector<2x16x8xf32>
    "tpu.trace_stop"() : () -> ()
    %c0_235 = arith.constant 0 : index
    %c0_236 = arith.constant 0 : index
    %c0_237 = arith.constant 0 : index
    %592 = vector.load %arg11[%c0_235, %c0_236, %c0_237] : memref<2x16x32xf32, #tpu.memory_space<vmem>>, vector<2x16x8xf32>
    tpu.vector_store %arg11[%c0_235, %c0_236, %c0_237], %591 {strides = array<i32>} : memref<2x16x32xf32, #tpu.memory_space<vmem>>, vector<2x16x8xf32>,
    %593 = vector.extract_strided_slice %571 {offsets = [0, 0, 8], sizes = [2, 16, 8], strides = [1, 1, 1]} : vector<2x16x32xbf16> to vector<2x16x8xbf16>
    %594 = vector.extract_strided_slice %572 {offsets = [0, 0, 8], sizes = [2, 8, 8], strides = [1, 1, 1]} : vector<2x8x32xbf16> to vector<2x8x8xbf16>
    "tpu.trace_start"() <{level = 10 : i32, message = "bqd,bkd->bqk"}> : () -> ()
    %cst_238 = arith.constant dense<0.000000e+00> : vector<2x16x8xf32>
    %595 = tpu.matmul %593, %594, %cst_238 {dimension_numbers = #tpu.dot_dimension_numbers<[2], [2], [1], [1], [0, 0, 0, 1, 1, 1], [0], [0]>} : vector<2x16x8xbf16>, vector<2x8x8xbf16>, vector<2x16x8xf32> -> vector<2x16x8xf32>
    "tpu.trace_stop"() : () -> ()
    %cst_239 = arith.constant 0.353553385 : f32
    %596 = vector.broadcast %cst_239 : f32 to vector<2x16x8xf32>
    %597 = arith.mulf %595, %596 : vector<2x16x8xf32>
    %cst_240 = arith.constant dense<0xFF800000> : vector<2x16xf32>
    %598 = vector.multi_reduction <maximumf>, %597, %cst_240 [2] : vector<2x16x8xf32> to vector<2x16xf32>
    %599 = vector.shape_cast %598 : vector<2x16xf32> to vector<2x16x1xf32>
    %600 = vector.broadcast %599 : vector<2x16x1xf32> to vector<2x16x8xf32>
    %601 = arith.subf %597, %600 : vector<2x16x8xf32>
    %602 = math.exp %601 : vector<2x16x8xf32>
    %cst_241 = arith.constant dense<0.000000e+00> : vector<2x16xf32>
    %603 = vector.multi_reduction <add>, %602, %cst_241 [2] : vector<2x16x8xf32> to vector<2x16xf32>
    %604 = vector.shape_cast %603 : vector<2x16xf32> to vector<2x16x1xf32>
    %605 = tpu.reciprocal %604 {approx = true} : vector<2x16x1xf32> -> vector<2x16x1xf32>
    %606 = vector.broadcast %605 : vector<2x16x1xf32> to vector<2x16x8xf32>
    %607 = arith.mulf %602, %606 : vector<2x16x8xf32>
    %608 = arith.truncf %607 : vector<2x16x8xf32> to vector<2x16x8xbf16>
    %609 = vector.extract_strided_slice %573 {offsets = [0, 0, 8], sizes = [2, 8, 8], strides = [1, 1, 1]} : vector<2x8x32xbf16> to vector<2x8x8xbf16>
    "tpu.trace_start"() <{level = 10 : i32, message = "bqk,bkd->bqd"}> : () -> ()
    %cst_242 = arith.constant dense<0.000000e+00> : vector<2x16x8xf32>
    %610 = tpu.matmul %608, %609, %cst_242 {dimension_numbers = #tpu.dot_dimension_numbers<[2], [1], [1], [2], [0, 0, 0, 1, 1, 2], [0], [0]>} : vector<2x16x8xbf16>, vector<2x8x8xbf16>, vector<2x16x8xf32> -> vector<2x16x8xf32>
    "tpu.trace_stop"() : () -> ()
    %c0_243 = arith.constant 0 : index
    %c0_244 = arith.constant 0 : index
    %c8_245 = arith.constant 8 : index
    %611 = vector.load %arg11[%c0_243, %c0_244, %c8_245] : memref<2x16x32xf32, #tpu.memory_space<vmem>>, vector<2x16x8xf32>
    tpu.vector_store %arg11[%c0_243, %c0_244, %c8_245], %610 {strides = array<i32>} : memref<2x16x32xf32, #tpu.memory_space<vmem>>, vector<2x16x8xf32>,
    %612 = vector.extract_strided_slice %571 {offsets = [0, 0, 16], sizes = [2, 16, 8], strides = [1, 1, 1]} : vector<2x16x32xbf16> to vector<2x16x8xbf16>
    %613 = vector.extract_strided_slice %572 {offsets = [0, 0, 16], sizes = [2, 8, 8], strides = [1, 1, 1]} : vector<2x8x32xbf16> to vector<2x8x8xbf16>
    "tpu.trace_start"() <{level = 10 : i32, message = "bqd,bkd->bqk"}> : () -> ()
    %cst_246 = arith.constant dense<0.000000e+00> : vector<2x16x8xf32>
    %614 = tpu.matmul %612, %613, %cst_246 {dimension_numbers = #tpu.dot_dimension_numbers<[2], [2], [1], [1], [0, 0, 0, 1, 1, 1], [0], [0]>} : vector<2x16x8xbf16>, vector<2x8x8xbf16>, vector<2x16x8xf32> -> vector<2x16x8xf32>
    "tpu.trace_stop"() : () -> ()
    %cst_247 = arith.constant 0.353553385 : f32
    %615 = vector.broadcast %cst_247 : f32 to vector<2x16x8xf32>
    %616 = arith.mulf %614, %615 : vector<2x16x8xf32>
    %cst_248 = arith.constant dense<0xFF800000> : vector<2x16xf32>
    %617 = vector.multi_reduction <maximumf>, %616, %cst_248 [2] : vector<2x16x8xf32> to vector<2x16xf32>
    %618 = vector.shape_cast %617 : vector<2x16xf32> to vector<2x16x1xf32>
    %619 = vector.broadcast %618 : vector<2x16x1xf32> to vector<2x16x8xf32>
    %620 = arith.subf %616, %619 : vector<2x16x8xf32>
    %621 = math.exp %620 : vector<2x16x8xf32>
    %cst_249 = arith.constant dense<0.000000e+00> : vector<2x16xf32>
    %622 = vector.multi_reduction <add>, %621, %cst_249 [2] : vector<2x16x8xf32> to vector<2x16xf32>
    %623 = vector.shape_cast %622 : vector<2x16xf32> to vector<2x16x1xf32>
    %624 = tpu.reciprocal %623 {approx = true} : vector<2x16x1xf32> -> vector<2x16x1xf32>
    %625 = vector.broadcast %624 : vector<2x16x1xf32> to vector<2x16x8xf32>
    %626 = arith.mulf %621, %625 : vector<2x16x8xf32>
    %627 = arith.truncf %626 : vector<2x16x8xf32> to vector<2x16x8xbf16>
    %628 = vector.extract_strided_slice %573 {offsets = [0, 0, 16], sizes = [2, 8, 8], strides = [1, 1, 1]} : vector<2x8x32xbf16> to vector<2x8x8xbf16>
    "tpu.trace_start"() <{level = 10 : i32, message = "bqk,bkd->bqd"}> : () -> ()
    %cst_250 = arith.constant dense<0.000000e+00> : vector<2x16x8xf32>
    %629 = tpu.matmul %627, %628, %cst_250 {dimension_numbers = #tpu.dot_dimension_numbers<[2], [1], [1], [2], [0, 0, 0, 1, 1, 2], [0], [0]>} : vector<2x16x8xbf16>, vector<2x8x8xbf16>, vector<2x16x8xf32> -> vector<2x16x8xf32>
    "tpu.trace_stop"() : () -> ()
    %c0_251 = arith.constant 0 : index
    %c0_252 = arith.constant 0 : index
    %c16_253 = arith.constant 16 : index
    %630 = vector.load %arg11[%c0_251, %c0_252, %c16_253] : memref<2x16x32xf32, #tpu.memory_space<vmem>>, vector<2x16x8xf32>
    tpu.vector_store %arg11[%c0_251, %c0_252, %c16_253], %629 {strides = array<i32>} : memref<2x16x32xf32, #tpu.memory_space<vmem>>, vector<2x16x8xf32>,
    %631 = vector.extract_strided_slice %571 {offsets = [0, 0, 24], sizes = [2, 16, 8], strides = [1, 1, 1]} : vector<2x16x32xbf16> to vector<2x16x8xbf16>
    %632 = vector.extract_strided_slice %572 {offsets = [0, 0, 24], sizes = [2, 8, 8], strides = [1, 1, 1]} : vector<2x8x32xbf16> to vector<2x8x8xbf16>
    "tpu.trace_start"() <{level = 10 : i32, message = "bqd,bkd->bqk"}> : () -> ()
    %cst_254 = arith.constant dense<0.000000e+00> : vector<2x16x8xf32>
    %633 = tpu.matmul %631, %632, %cst_254 {dimension_numbers = #tpu.dot_dimension_numbers<[2], [2], [1], [1], [0, 0, 0, 1, 1, 1], [0], [0]>} : vector<2x16x8xbf16>, vector<2x8x8xbf16>, vector<2x16x8xf32> -> vector<2x16x8xf32>
    "tpu.trace_stop"() : () -> ()
    %cst_255 = arith.constant 0.353553385 : f32
    %634 = vector.broadcast %cst_255 : f32 to vector<2x16x8xf32>
    %635 = arith.mulf %633, %634 : vector<2x16x8xf32>
    %cst_256 = arith.constant dense<0xFF800000> : vector<2x16xf32>
    %636 = vector.multi_reduction <maximumf>, %635, %cst_256 [2] : vector<2x16x8xf32> to vector<2x16xf32>
    %637 = vector.shape_cast %636 : vector<2x16xf32> to vector<2x16x1xf32>
    %638 = vector.broadcast %637 : vector<2x16x1xf32> to vector<2x16x8xf32>
    %639 = arith.subf %635, %638 : vector<2x16x8xf32>
    %640 = math.exp %639 : vector<2x16x8xf32>
    %cst_257 = arith.constant dense<0.000000e+00> : vector<2x16xf32>
    %641 = vector.multi_reduction <add>, %640, %cst_257 [2] : vector<2x16x8xf32> to vector<2x16xf32>
    %642 = vector.shape_cast %641 : vector<2x16xf32> to vector<2x16x1xf32>
    %643 = tpu.reciprocal %642 {approx = true} : vector<2x16x1xf32> -> vector<2x16x1xf32>
    %644 = vector.broadcast %643 : vector<2x16x1xf32> to vector<2x16x8xf32>
    %645 = arith.mulf %640, %644 : vector<2x16x8xf32>
    %646 = arith.truncf %645 : vector<2x16x8xf32> to vector<2x16x8xbf16>
    %647 = vector.extract_strided_slice %573 {offsets = [0, 0, 24], sizes = [2, 8, 8], strides = [1, 1, 1]} : vector<2x8x32xbf16> to vector<2x8x8xbf16>
    "tpu.trace_start"() <{level = 10 : i32, message = "bqk,bkd->bqd"}> : () -> ()
    %cst_258 = arith.constant dense<0.000000e+00> : vector<2x16x8xf32>
    %648 = tpu.matmul %646, %647, %cst_258 {dimension_numbers = #tpu.dot_dimension_numbers<[2], [1], [1], [2], [0, 0, 0, 1, 1, 2], [0], [0]>} : vector<2x16x8xbf16>, vector<2x8x8xbf16>, vector<2x16x8xf32> -> vector<2x16x8xf32>
    "tpu.trace_stop"() : () -> ()
    %c0_259 = arith.constant 0 : index
    %c0_260 = arith.constant 0 : index
    %c24_261 = arith.constant 24 : index
    %649 = vector.load %arg11[%c0_259, %c0_260, %c24_261] : memref<2x16x32xf32, #tpu.memory_space<vmem>>, vector<2x16x8xf32>
    tpu.vector_store %arg11[%c0_259, %c0_260, %c24_261], %648 {strides = array<i32>} : memref<2x16x32xf32, #tpu.memory_space<vmem>>, vector<2x16x8xf32>,
    %c0_262 = arith.constant 0 : index
    %c0_263 = arith.constant 0 : index
    %c0_264 = arith.constant 0 : index
    %650 = vector.load %arg11[%c0_262, %c0_263, %c0_264] : memref<2x16x32xf32, #tpu.memory_space<vmem>>, vector<2x16x32xf32>
    %651 = vector.shape_cast %650 : vector<2x16x32xf32> to vector<32x32xf32>
    %652 = arith.truncf %651 : vector<32x32xf32> to vector<32x32xbf16>
    %cst_265 = arith.constant dense<0.000000e+00> : vector<32x32xf32>
    %653 = tpu.matmul %652, %553, %cst_265 {dimension_numbers = #tpu.dot_dimension_numbers<[1], [0], [0], [1], [0, 0, 1, 1], [], []>} : vector<32x32xbf16>, vector<32x32xbf16>, vector<32x32xf32> -> vector<32x32xf32>
    %654 = vector.shape_cast %653 : vector<32x32xf32> to vector<2x16x32xf32>
    %655 = vector.shape_cast %554 : vector<1x32xf32> to vector<1x1x32xf32>
    %656 = vector.broadcast %655 : vector<1x1x32xf32> to vector<2x16x32xf32>
    %657 = arith.addf %654, %656 : vector<2x16x32xf32>
    %658 = arith.addf %545, %657 : vector<2x16x32xf32>
    %c30 = arith.constant 30 : index
    %c0_266 = arith.constant 0 : index
    %659 = vector.load %arg9[%c30, %c0_266] : memref<63x96xf32, #tpu.memory_space<vmem>>, vector<1x32xf32>
    %c31 = arith.constant 31 : index
    %c0_267 = arith.constant 0 : index
    %660 = vector.load %arg9[%c31, %c0_267] : memref<63x96xf32, #tpu.memory_space<vmem>>, vector<1x32xf32>
    %cst_268 = arith.constant dense<0.000000e+00> : vector<2x16xf32>
    %661 = vector.multi_reduction <add>, %658, %cst_268 [2] : vector<2x16x32xf32> to vector<2x16xf32>
    %662 = vector.shape_cast %661 : vector<2x16xf32> to vector<2x16x1xf32>
    %cst_269 = arith.constant 3.200000e+01 : f32
    %663 = vector.broadcast %cst_269 : f32 to vector<2x16x1xf32>
    %664 = arith.divf %662, %663 : vector<2x16x1xf32>
    %665 = vector.broadcast %664 : vector<2x16x1xf32> to vector<2x16x32xf32>
    %666 = arith.subf %658, %665 : vector<2x16x32xf32>
    %667 = arith.mulf %666, %666 : vector<2x16x32xf32>
    %cst_270 = arith.constant dense<0.000000e+00> : vector<2x16xf32>
    %668 = vector.multi_reduction <add>, %667, %cst_270 [2] : vector<2x16x32xf32> to vector<2x16xf32>
    %669 = vector.shape_cast %668 : vector<2x16xf32> to vector<2x16x1xf32>
    %cst_271 = arith.constant 3.200000e+01 : f32
    %670 = vector.broadcast %cst_271 : f32 to vector<2x16x1xf32>
    %671 = arith.divf %669, %670 : vector<2x16x1xf32>
    %cst_272 = arith.constant 9.99999974E-6 : f32
    %672 = vector.broadcast %cst_272 : f32 to vector<2x16x1xf32>
    %673 = arith.addf %671, %672 : vector<2x16x1xf32>
    %674 = math.rsqrt %673 : vector<2x16x1xf32>
    %675 = vector.broadcast %674 : vector<2x16x1xf32> to vector<2x16x32xf32>
    %676 = arith.mulf %666, %675 : vector<2x16x32xf32>
    %677 = vector.shape_cast %659 : vector<1x32xf32> to vector<1x1x32xf32>
    %678 = vector.broadcast %677 : vector<1x1x32xf32> to vector<2x16x32xf32>
    %679 = arith.mulf %676, %678 : vector<2x16x32xf32>
    %680 = vector.shape_cast %660 : vector<1x32xf32> to vector<1x1x32xf32>
    %681 = vector.broadcast %680 : vector<1x1x32xf32> to vector<2x16x32xf32>
    %682 = arith.addf %679, %681 : vector<2x16x32xf32>
    %c2_273 = arith.constant 2 : index
    %c0_274 = arith.constant 0 : index
    %c0_275 = arith.constant 0 : index
    %683 = vector.load %arg4[%c2_273, %c0_274, %c0_275] : memref<5x32x64xbf16, #tpu.memory_space<vmem>>, vector<1x32x64xbf16>
    %684 = vector.shape_cast %683 : vector<1x32x64xbf16> to vector<32x64xbf16>
    %c26 = arith.constant 26 : index
    %c0_276 = arith.constant 0 : index
    %685 = vector.load %arg9[%c26, %c0_276] : memref<63x96xf32, #tpu.memory_space<vmem>>, vector<1x64xf32>
    %686 = vector.shape_cast %682 : vector<2x16x32xf32> to vector<32x32xf32>
    %687 = arith.truncf %686 : vector<32x32xf32> to vector<32x32xbf16>
    %cst_277 = arith.constant dense<0.000000e+00> : vector<32x64xf32>
    %688 = tpu.matmul %687, %684, %cst_277 {dimension_numbers = #tpu.dot_dimension_numbers<[1], [0], [0], [1], [0, 0, 1, 1], [], []>} : vector<32x32xbf16>, vector<32x64xbf16>, vector<32x64xf32> -> vector<32x64xf32>
    %689 = vector.shape_cast %688 : vector<32x64xf32> to vector<2x16x64xf32>
    %690 = vector.shape_cast %685 : vector<1x64xf32> to vector<1x1x64xf32>
    %691 = vector.broadcast %690 : vector<1x1x64xf32> to vector<2x16x64xf32>
    %692 = arith.addf %689, %691 : vector<2x16x64xf32>
    %cst_278 = arith.constant 0.000000e+00 : f32
    %693 = vector.broadcast %cst_278 : f32 to vector<2x16x64xf32>
    %694 = arith.maximumf %692, %693 : vector<2x16x64xf32>
    %c0_279 = arith.constant 0 : index
    %c0_280 = arith.constant 0 : index
    %c0_281 = arith.constant 0 : index
    %695 = vector.load %arg7[%c0_279, %c0_280, %c0_281] : memref<3x64x32xbf16, #tpu.memory_space<vmem>>, vector<1x64x32xbf16>
    %696 = vector.shape_cast %695 : vector<1x64x32xbf16> to vector<64x32xbf16>
    %c27 = arith.constant 27 : index
    %c0_282 = arith.constant 0 : index
    %697 = vector.load %arg9[%c27, %c0_282] : memref<63x96xf32, #tpu.memory_space<vmem>>, vector<1x32xf32>
    %698 = vector.shape_cast %694 : vector<2x16x64xf32> to vector<32x64xf32>
    %699 = arith.truncf %698 : vector<32x64xf32> to vector<32x64xbf16>
    %cst_283 = arith.constant dense<0.000000e+00> : vector<32x32xf32>
    %700 = tpu.matmul %699, %696, %cst_283 {dimension_numbers = #tpu.dot_dimension_numbers<[1], [0], [0], [1], [0, 0, 1, 1], [], []>} : vector<32x64xbf16>, vector<64x32xbf16>, vector<32x32xf32> -> vector<32x32xf32>
    %701 = vector.shape_cast %700 : vector<32x32xf32> to vector<2x16x32xf32>
    %702 = vector.shape_cast %697 : vector<1x32xf32> to vector<1x1x32xf32>
    %703 = vector.broadcast %702 : vector<1x1x32xf32> to vector<2x16x32xf32>
    %704 = arith.addf %701, %703 : vector<2x16x32xf32>
    %705 = arith.addf %682, %704 : vector<2x16x32xf32>
    %c32 = arith.constant 32 : index
    %c0_284 = arith.constant 0 : index
    %706 = vector.load %arg9[%c32, %c0_284] : memref<63x96xf32, #tpu.memory_space<vmem>>, vector<1x32xf32>
    %c33 = arith.constant 33 : index
    %c0_285 = arith.constant 0 : index
    %707 = vector.load %arg9[%c33, %c0_285] : memref<63x96xf32, #tpu.memory_space<vmem>>, vector<1x32xf32>
    %cst_286 = arith.constant dense<0.000000e+00> : vector<2x16xf32>
    %708 = vector.multi_reduction <add>, %705, %cst_286 [2] : vector<2x16x32xf32> to vector<2x16xf32>
    %709 = vector.shape_cast %708 : vector<2x16xf32> to vector<2x16x1xf32>
    %cst_287 = arith.constant 3.200000e+01 : f32
    %710 = vector.broadcast %cst_287 : f32 to vector<2x16x1xf32>
    %711 = arith.divf %709, %710 : vector<2x16x1xf32>
    %712 = vector.broadcast %711 : vector<2x16x1xf32> to vector<2x16x32xf32>
    %713 = arith.subf %705, %712 : vector<2x16x32xf32>
    %714 = arith.mulf %713, %713 : vector<2x16x32xf32>
    %cst_288 = arith.constant dense<0.000000e+00> : vector<2x16xf32>
    %715 = vector.multi_reduction <add>, %714, %cst_288 [2] : vector<2x16x32xf32> to vector<2x16xf32>
    %716 = vector.shape_cast %715 : vector<2x16xf32> to vector<2x16x1xf32>
    %cst_289 = arith.constant 3.200000e+01 : f32
    %717 = vector.broadcast %cst_289 : f32 to vector<2x16x1xf32>
    %718 = arith.divf %716, %717 : vector<2x16x1xf32>
    %cst_290 = arith.constant 9.99999974E-6 : f32
    %719 = vector.broadcast %cst_290 : f32 to vector<2x16x1xf32>
    %720 = arith.addf %718, %719 : vector<2x16x1xf32>
    %721 = math.rsqrt %720 : vector<2x16x1xf32>
    %722 = vector.broadcast %721 : vector<2x16x1xf32> to vector<2x16x32xf32>
    %723 = arith.mulf %713, %722 : vector<2x16x32xf32>
    %724 = vector.shape_cast %706 : vector<1x32xf32> to vector<1x1x32xf32>
    %725 = vector.broadcast %724 : vector<1x1x32xf32> to vector<2x16x32xf32>
    %726 = arith.mulf %723, %725 : vector<2x16x32xf32>
    %727 = vector.shape_cast %707 : vector<1x32xf32> to vector<1x1x32xf32>
    %728 = vector.broadcast %727 : vector<1x1x32xf32> to vector<2x16x32xf32>
    %729 = arith.addf %726, %728 : vector<2x16x32xf32>
    %c3 = arith.constant 3 : index
    %c0_291 = arith.constant 0 : index
    %c0_292 = arith.constant 0 : index
    %730 = vector.load %arg2[%c3, %c0_291, %c0_292] : memref<4x32x96xbf16, #tpu.memory_space<vmem>>, vector<1x32x96xbf16>
    %731 = vector.shape_cast %730 : vector<1x32x96xbf16> to vector<32x96xbf16>
    %c34 = arith.constant 34 : index
    %c0_293 = arith.constant 0 : index
    %732 = vector.load %arg9[%c34, %c0_293] : memref<63x96xf32, #tpu.memory_space<vmem>>, vector<1x96xf32>
    %c3_294 = arith.constant 3 : index
    %c0_295 = arith.constant 0 : index
    %c0_296 = arith.constant 0 : index
    %733 = vector.load %arg3[%c3_294, %c0_295, %c0_296] : memref<8x32x32xbf16, #tpu.memory_space<vmem>>, vector<1x32x32xbf16>
    %734 = vector.shape_cast %733 : vector<1x32x32xbf16> to vector<32x32xbf16>
    %c35 = arith.constant 35 : index
    %c0_297 = arith.constant 0 : index
    %735 = vector.load %arg9[%c35, %c0_297] : memref<63x96xf32, #tpu.memory_space<vmem>>, vector<1x32xf32>
    %736 = vector.shape_cast %729 : vector<2x16x32xf32> to vector<32x32xf32>
    %737 = arith.truncf %736 : vector<32x32xf32> to vector<32x32xbf16>
    %cst_298 = arith.constant dense<0.000000e+00> : vector<32x96xf32>
    %738 = tpu.matmul %737, %731, %cst_298 {dimension_numbers = #tpu.dot_dimension_numbers<[1], [0], [0], [1], [0, 0, 1, 1], [], []>} : vector<32x32xbf16>, vector<32x96xbf16>, vector<32x96xf32> -> vector<32x96xf32>
    %739 = vector.shape_cast %738 : vector<32x96xf32> to vector<2x16x96xf32>
    %740 = vector.shape_cast %732 : vector<1x96xf32> to vector<1x1x96xf32>
    %741 = vector.broadcast %740 : vector<1x1x96xf32> to vector<2x16x96xf32>
    %742 = arith.addf %739, %741 : vector<2x16x96xf32>
    %743 = vector.extract_strided_slice %742 {offsets = [0, 0, 0], sizes = [2, 16, 32], strides = [1, 1, 1]} : vector<2x16x96xf32> to vector<2x16x32xf32>
    %744 = vector.extract_strided_slice %742 {offsets = [0, 0, 32], sizes = [2, 16, 32], strides = [1, 1, 1]} : vector<2x16x96xf32> to vector<2x16x32xf32>
    %745 = vector.extract_strided_slice %742 {offsets = [0, 0, 64], sizes = [2, 16, 32], strides = [1, 1, 1]} : vector<2x16x96xf32> to vector<2x16x32xf32>
    %746 = arith.truncf %743 : vector<2x16x32xf32> to vector<2x16x32xbf16>
    %747 = arith.truncf %744 : vector<2x16x32xf32> to vector<2x16x32xbf16>
    %748 = arith.truncf %745 : vector<2x16x32xf32> to vector<2x16x32xbf16>
    %749 = vector.extract_strided_slice %746 {offsets = [0, 0, 0], sizes = [2, 16, 8], strides = [1, 1, 1]} : vector<2x16x32xbf16> to vector<2x16x8xbf16>
    %750 = vector.extract_strided_slice %747 {offsets = [0, 0, 0], sizes = [2, 16, 8], strides = [1, 1, 1]} : vector<2x16x32xbf16> to vector<2x16x8xbf16>
    "tpu.trace_start"() <{level = 10 : i32, message = "bqd,bkd->bqk"}> : () -> ()
    %cst_299 = arith.constant dense<0.000000e+00> : vector<2x16x16xf32>
    %751 = tpu.matmul %749, %750, %cst_299 {dimension_numbers = #tpu.dot_dimension_numbers<[2], [2], [1], [1], [0, 0, 0, 1, 1, 1], [0], [0]>} : vector<2x16x8xbf16>, vector<2x16x8xbf16>, vector<2x16x16xf32> -> vector<2x16x16xf32>
    "tpu.trace_stop"() : () -> ()
    %cst_300 = arith.constant 0.353553385 : f32
    %752 = vector.broadcast %cst_300 : f32 to vector<2x16x16xf32>
    %753 = arith.mulf %751, %752 : vector<2x16x16xf32>
    %cst_301 = arith.constant dense<0xFF800000> : vector<2x16xf32>
    %754 = vector.multi_reduction <maximumf>, %753, %cst_301 [2] : vector<2x16x16xf32> to vector<2x16xf32>
    %755 = vector.shape_cast %754 : vector<2x16xf32> to vector<2x16x1xf32>
    %756 = vector.broadcast %755 : vector<2x16x1xf32> to vector<2x16x16xf32>
    %757 = arith.subf %753, %756 : vector<2x16x16xf32>
    %758 = math.exp %757 : vector<2x16x16xf32>
    %cst_302 = arith.constant dense<0.000000e+00> : vector<2x16xf32>
    %759 = vector.multi_reduction <add>, %758, %cst_302 [2] : vector<2x16x16xf32> to vector<2x16xf32>
    %760 = vector.shape_cast %759 : vector<2x16xf32> to vector<2x16x1xf32>
    %761 = tpu.reciprocal %760 {approx = true} : vector<2x16x1xf32> -> vector<2x16x1xf32>
    %762 = vector.broadcast %761 : vector<2x16x1xf32> to vector<2x16x16xf32>
    %763 = arith.mulf %758, %762 : vector<2x16x16xf32>
    %764 = arith.truncf %763 : vector<2x16x16xf32> to vector<2x16x16xbf16>
    %765 = vector.extract_strided_slice %748 {offsets = [0, 0, 0], sizes = [2, 16, 8], strides = [1, 1, 1]} : vector<2x16x32xbf16> to vector<2x16x8xbf16>
    "tpu.trace_start"() <{level = 10 : i32, message = "bqk,bkd->bqd"}> : () -> ()
    %cst_303 = arith.constant dense<0.000000e+00> : vector<2x16x8xf32>
    %766 = tpu.matmul %764, %765, %cst_303 {dimension_numbers = #tpu.dot_dimension_numbers<[2], [1], [1], [2], [0, 0, 0, 1, 1, 2], [0], [0]>} : vector<2x16x16xbf16>, vector<2x16x8xbf16>, vector<2x16x8xf32> -> vector<2x16x8xf32>
    "tpu.trace_stop"() : () -> ()
    %c0_304 = arith.constant 0 : index
    %c0_305 = arith.constant 0 : index
    %c0_306 = arith.constant 0 : index
    %767 = vector.load %arg11[%c0_304, %c0_305, %c0_306] : memref<2x16x32xf32, #tpu.memory_space<vmem>>, vector<2x16x8xf32>
    tpu.vector_store %arg11[%c0_304, %c0_305, %c0_306], %766 {strides = array<i32>} : memref<2x16x32xf32, #tpu.memory_space<vmem>>, vector<2x16x8xf32>,
    %768 = vector.extract_strided_slice %746 {offsets = [0, 0, 8], sizes = [2, 16, 8], strides = [1, 1, 1]} : vector<2x16x32xbf16> to vector<2x16x8xbf16>
    %769 = vector.extract_strided_slice %747 {offsets = [0, 0, 8], sizes = [2, 16, 8], strides = [1, 1, 1]} : vector<2x16x32xbf16> to vector<2x16x8xbf16>
    "tpu.trace_start"() <{level = 10 : i32, message = "bqd,bkd->bqk"}> : () -> ()
    %cst_307 = arith.constant dense<0.000000e+00> : vector<2x16x16xf32>
    %770 = tpu.matmul %768, %769, %cst_307 {dimension_numbers = #tpu.dot_dimension_numbers<[2], [2], [1], [1], [0, 0, 0, 1, 1, 1], [0], [0]>} : vector<2x16x8xbf16>, vector<2x16x8xbf16>, vector<2x16x16xf32> -> vector<2x16x16xf32>
    "tpu.trace_stop"() : () -> ()
    %cst_308 = arith.constant 0.353553385 : f32
    %771 = vector.broadcast %cst_308 : f32 to vector<2x16x16xf32>
    %772 = arith.mulf %770, %771 : vector<2x16x16xf32>
    %cst_309 = arith.constant dense<0xFF800000> : vector<2x16xf32>
    %773 = vector.multi_reduction <maximumf>, %772, %cst_309 [2] : vector<2x16x16xf32> to vector<2x16xf32>
    %774 = vector.shape_cast %773 : vector<2x16xf32> to vector<2x16x1xf32>
    %775 = vector.broadcast %774 : vector<2x16x1xf32> to vector<2x16x16xf32>
    %776 = arith.subf %772, %775 : vector<2x16x16xf32>
    %777 = math.exp %776 : vector<2x16x16xf32>
    %cst_310 = arith.constant dense<0.000000e+00> : vector<2x16xf32>
    %778 = vector.multi_reduction <add>, %777, %cst_310 [2] : vector<2x16x16xf32> to vector<2x16xf32>
    %779 = vector.shape_cast %778 : vector<2x16xf32> to vector<2x16x1xf32>
    %780 = tpu.reciprocal %779 {approx = true} : vector<2x16x1xf32> -> vector<2x16x1xf32>
    %781 = vector.broadcast %780 : vector<2x16x1xf32> to vector<2x16x16xf32>
    %782 = arith.mulf %777, %781 : vector<2x16x16xf32>
    %783 = arith.truncf %782 : vector<2x16x16xf32> to vector<2x16x16xbf16>
    %784 = vector.extract_strided_slice %748 {offsets = [0, 0, 8], sizes = [2, 16, 8], strides = [1, 1, 1]} : vector<2x16x32xbf16> to vector<2x16x8xbf16>
    "tpu.trace_start"() <{level = 10 : i32, message = "bqk,bkd->bqd"}> : () -> ()
    %cst_311 = arith.constant dense<0.000000e+00> : vector<2x16x8xf32>
    %785 = tpu.matmul %783, %784, %cst_311 {dimension_numbers = #tpu.dot_dimension_numbers<[2], [1], [1], [2], [0, 0, 0, 1, 1, 2], [0], [0]>} : vector<2x16x16xbf16>, vector<2x16x8xbf16>, vector<2x16x8xf32> -> vector<2x16x8xf32>
    "tpu.trace_stop"() : () -> ()
    %c0_312 = arith.constant 0 : index
    %c0_313 = arith.constant 0 : index
    %c8_314 = arith.constant 8 : index
    %786 = vector.load %arg11[%c0_312, %c0_313, %c8_314] : memref<2x16x32xf32, #tpu.memory_space<vmem>>, vector<2x16x8xf32>
    tpu.vector_store %arg11[%c0_312, %c0_313, %c8_314], %785 {strides = array<i32>} : memref<2x16x32xf32, #tpu.memory_space<vmem>>, vector<2x16x8xf32>,
    %787 = vector.extract_strided_slice %746 {offsets = [0, 0, 16], sizes = [2, 16, 8], strides = [1, 1, 1]} : vector<2x16x32xbf16> to vector<2x16x8xbf16>
    %788 = vector.extract_strided_slice %747 {offsets = [0, 0, 16], sizes = [2, 16, 8], strides = [1, 1, 1]} : vector<2x16x32xbf16> to vector<2x16x8xbf16>
    "tpu.trace_start"() <{level = 10 : i32, message = "bqd,bkd->bqk"}> : () -> ()
    %cst_315 = arith.constant dense<0.000000e+00> : vector<2x16x16xf32>
    %789 = tpu.matmul %787, %788, %cst_315 {dimension_numbers = #tpu.dot_dimension_numbers<[2], [2], [1], [1], [0, 0, 0, 1, 1, 1], [0], [0]>} : vector<2x16x8xbf16>, vector<2x16x8xbf16>, vector<2x16x16xf32> -> vector<2x16x16xf32>
    "tpu.trace_stop"() : () -> ()
    %cst_316 = arith.constant 0.353553385 : f32
    %790 = vector.broadcast %cst_316 : f32 to vector<2x16x16xf32>
    %791 = arith.mulf %789, %790 : vector<2x16x16xf32>
    %cst_317 = arith.constant dense<0xFF800000> : vector<2x16xf32>
    %792 = vector.multi_reduction <maximumf>, %791, %cst_317 [2] : vector<2x16x16xf32> to vector<2x16xf32>
    %793 = vector.shape_cast %792 : vector<2x16xf32> to vector<2x16x1xf32>
    %794 = vector.broadcast %793 : vector<2x16x1xf32> to vector<2x16x16xf32>
    %795 = arith.subf %791, %794 : vector<2x16x16xf32>
    %796 = math.exp %795 : vector<2x16x16xf32>
    %cst_318 = arith.constant dense<0.000000e+00> : vector<2x16xf32>
    %797 = vector.multi_reduction <add>, %796, %cst_318 [2] : vector<2x16x16xf32> to vector<2x16xf32>
    %798 = vector.shape_cast %797 : vector<2x16xf32> to vector<2x16x1xf32>
    %799 = tpu.reciprocal %798 {approx = true} : vector<2x16x1xf32> -> vector<2x16x1xf32>
    %800 = vector.broadcast %799 : vector<2x16x1xf32> to vector<2x16x16xf32>
    %801 = arith.mulf %796, %800 : vector<2x16x16xf32>
    %802 = arith.truncf %801 : vector<2x16x16xf32> to vector<2x16x16xbf16>
    %803 = vector.extract_strided_slice %748 {offsets = [0, 0, 16], sizes = [2, 16, 8], strides = [1, 1, 1]} : vector<2x16x32xbf16> to vector<2x16x8xbf16>
    "tpu.trace_start"() <{level = 10 : i32, message = "bqk,bkd->bqd"}> : () -> ()
    %cst_319 = arith.constant dense<0.000000e+00> : vector<2x16x8xf32>
    %804 = tpu.matmul %802, %803, %cst_319 {dimension_numbers = #tpu.dot_dimension_numbers<[2], [1], [1], [2], [0, 0, 0, 1, 1, 2], [0], [0]>} : vector<2x16x16xbf16>, vector<2x16x8xbf16>, vector<2x16x8xf32> -> vector<2x16x8xf32>
    "tpu.trace_stop"() : () -> ()
    %c0_320 = arith.constant 0 : index
    %c0_321 = arith.constant 0 : index
    %c16_322 = arith.constant 16 : index
    %805 = vector.load %arg11[%c0_320, %c0_321, %c16_322] : memref<2x16x32xf32, #tpu.memory_space<vmem>>, vector<2x16x8xf32>
    tpu.vector_store %arg11[%c0_320, %c0_321, %c16_322], %804 {strides = array<i32>} : memref<2x16x32xf32, #tpu.memory_space<vmem>>, vector<2x16x8xf32>,
    %806 = vector.extract_strided_slice %746 {offsets = [0, 0, 24], sizes = [2, 16, 8], strides = [1, 1, 1]} : vector<2x16x32xbf16> to vector<2x16x8xbf16>
    %807 = vector.extract_strided_slice %747 {offsets = [0, 0, 24], sizes = [2, 16, 8], strides = [1, 1, 1]} : vector<2x16x32xbf16> to vector<2x16x8xbf16>
    "tpu.trace_start"() <{level = 10 : i32, message = "bqd,bkd->bqk"}> : () -> ()
    %cst_323 = arith.constant dense<0.000000e+00> : vector<2x16x16xf32>
    %808 = tpu.matmul %806, %807, %cst_323 {dimension_numbers = #tpu.dot_dimension_numbers<[2], [2], [1], [1], [0, 0, 0, 1, 1, 1], [0], [0]>} : vector<2x16x8xbf16>, vector<2x16x8xbf16>, vector<2x16x16xf32> -> vector<2x16x16xf32>
    "tpu.trace_stop"() : () -> ()
    %cst_324 = arith.constant 0.353553385 : f32
    %809 = vector.broadcast %cst_324 : f32 to vector<2x16x16xf32>
    %810 = arith.mulf %808, %809 : vector<2x16x16xf32>
    %cst_325 = arith.constant dense<0xFF800000> : vector<2x16xf32>
    %811 = vector.multi_reduction <maximumf>, %810, %cst_325 [2] : vector<2x16x16xf32> to vector<2x16xf32>
    %812 = vector.shape_cast %811 : vector<2x16xf32> to vector<2x16x1xf32>
    %813 = vector.broadcast %812 : vector<2x16x1xf32> to vector<2x16x16xf32>
    %814 = arith.subf %810, %813 : vector<2x16x16xf32>
    %815 = math.exp %814 : vector<2x16x16xf32>
    %cst_326 = arith.constant dense<0.000000e+00> : vector<2x16xf32>
    %816 = vector.multi_reduction <add>, %815, %cst_326 [2] : vector<2x16x16xf32> to vector<2x16xf32>
    %817 = vector.shape_cast %816 : vector<2x16xf32> to vector<2x16x1xf32>
    %818 = tpu.reciprocal %817 {approx = true} : vector<2x16x1xf32> -> vector<2x16x1xf32>
    %819 = vector.broadcast %818 : vector<2x16x1xf32> to vector<2x16x16xf32>
    %820 = arith.mulf %815, %819 : vector<2x16x16xf32>
    %821 = arith.truncf %820 : vector<2x16x16xf32> to vector<2x16x16xbf16>
    %822 = vector.extract_strided_slice %748 {offsets = [0, 0, 24], sizes = [2, 16, 8], strides = [1, 1, 1]} : vector<2x16x32xbf16> to vector<2x16x8xbf16>
    "tpu.trace_start"() <{level = 10 : i32, message = "bqk,bkd->bqd"}> : () -> ()
    %cst_327 = arith.constant dense<0.000000e+00> : vector<2x16x8xf32>
    %823 = tpu.matmul %821, %822, %cst_327 {dimension_numbers = #tpu.dot_dimension_numbers<[2], [1], [1], [2], [0, 0, 0, 1, 1, 2], [0], [0]>} : vector<2x16x16xbf16>, vector<2x16x8xbf16>, vector<2x16x8xf32> -> vector<2x16x8xf32>
    "tpu.trace_stop"() : () -> ()
    %c0_328 = arith.constant 0 : index
    %c0_329 = arith.constant 0 : index
    %c24_330 = arith.constant 24 : index
    %824 = vector.load %arg11[%c0_328, %c0_329, %c24_330] : memref<2x16x32xf32, #tpu.memory_space<vmem>>, vector<2x16x8xf32>
    tpu.vector_store %arg11[%c0_328, %c0_329, %c24_330], %823 {strides = array<i32>} : memref<2x16x32xf32, #tpu.memory_space<vmem>>, vector<2x16x8xf32>,
    %c0_331 = arith.constant 0 : index
    %c0_332 = arith.constant 0 : index
    %c0_333 = arith.constant 0 : index
    %825 = vector.load %arg11[%c0_331, %c0_332, %c0_333] : memref<2x16x32xf32, #tpu.memory_space<vmem>>, vector<2x16x32xf32>
    %826 = vector.shape_cast %825 : vector<2x16x32xf32> to vector<32x32xf32>
    %827 = arith.truncf %826 : vector<32x32xf32> to vector<32x32xbf16>
    %cst_334 = arith.constant dense<0.000000e+00> : vector<32x32xf32>
    %828 = tpu.matmul %827, %734, %cst_334 {dimension_numbers = #tpu.dot_dimension_numbers<[1], [0], [0], [1], [0, 0, 1, 1], [], []>} : vector<32x32xbf16>, vector<32x32xbf16>, vector<32x32xf32> -> vector<32x32xf32>
    %829 = vector.shape_cast %828 : vector<32x32xf32> to vector<2x16x32xf32>
    %830 = vector.shape_cast %735 : vector<1x32xf32> to vector<1x1x32xf32>
    %831 = vector.broadcast %830 : vector<1x1x32xf32> to vector<2x16x32xf32>
    %832 = arith.addf %829, %831 : vector<2x16x32xf32>
    %833 = arith.addf %729, %832 : vector<2x16x32xf32>
    %c41 = arith.constant 41 : index
    %c0_335 = arith.constant 0 : index
    %834 = vector.load %arg9[%c41, %c0_335] : memref<63x96xf32, #tpu.memory_space<vmem>>, vector<1x32xf32>
    %c42 = arith.constant 42 : index
    %c0_336 = arith.constant 0 : index
    %835 = vector.load %arg9[%c42, %c0_336] : memref<63x96xf32, #tpu.memory_space<vmem>>, vector<1x32xf32>
    %cst_337 = arith.constant dense<0.000000e+00> : vector<2x16xf32>
    %836 = vector.multi_reduction <add>, %833, %cst_337 [2] : vector<2x16x32xf32> to vector<2x16xf32>
    %837 = vector.shape_cast %836 : vector<2x16xf32> to vector<2x16x1xf32>
    %cst_338 = arith.constant 3.200000e+01 : f32
    %838 = vector.broadcast %cst_338 : f32 to vector<2x16x1xf32>
    %839 = arith.divf %837, %838 : vector<2x16x1xf32>
    %840 = vector.broadcast %839 : vector<2x16x1xf32> to vector<2x16x32xf32>
    %841 = arith.subf %833, %840 : vector<2x16x32xf32>
    %842 = arith.mulf %841, %841 : vector<2x16x32xf32>
    %cst_339 = arith.constant dense<0.000000e+00> : vector<2x16xf32>
    %843 = vector.multi_reduction <add>, %842, %cst_339 [2] : vector<2x16x32xf32> to vector<2x16xf32>
    %844 = vector.shape_cast %843 : vector<2x16xf32> to vector<2x16x1xf32>
    %cst_340 = arith.constant 3.200000e+01 : f32
    %845 = vector.broadcast %cst_340 : f32 to vector<2x16x1xf32>
    %846 = arith.divf %844, %845 : vector<2x16x1xf32>
    %cst_341 = arith.constant 9.99999974E-6 : f32
    %847 = vector.broadcast %cst_341 : f32 to vector<2x16x1xf32>
    %848 = arith.addf %846, %847 : vector<2x16x1xf32>
    %849 = math.rsqrt %848 : vector<2x16x1xf32>
    %850 = vector.broadcast %849 : vector<2x16x1xf32> to vector<2x16x32xf32>
    %851 = arith.mulf %841, %850 : vector<2x16x32xf32>
    %852 = vector.shape_cast %834 : vector<1x32xf32> to vector<1x1x32xf32>
    %853 = vector.broadcast %852 : vector<1x1x32xf32> to vector<2x16x32xf32>
    %854 = arith.mulf %851, %853 : vector<2x16x32xf32>
    %855 = vector.shape_cast %835 : vector<1x32xf32> to vector<1x1x32xf32>
    %856 = vector.broadcast %855 : vector<1x1x32xf32> to vector<2x16x32xf32>
    %857 = arith.addf %854, %856 : vector<2x16x32xf32>
    %c5_342 = arith.constant 5 : index
    %c0_343 = arith.constant 0 : index
    %c0_344 = arith.constant 0 : index
    %858 = vector.load %arg3[%c5_342, %c0_343, %c0_344] : memref<8x32x32xbf16, #tpu.memory_space<vmem>>, vector<1x32x32xbf16>
    %859 = vector.shape_cast %858 : vector<1x32x32xbf16> to vector<32x32xbf16>
    %c36 = arith.constant 36 : index
    %c0_345 = arith.constant 0 : index
    %860 = vector.load %arg9[%c36, %c0_345] : memref<63x96xf32, #tpu.memory_space<vmem>>, vector<1x32xf32>
    %c1_346 = arith.constant 1 : index
    %c0_347 = arith.constant 0 : index
    %c0_348 = arith.constant 0 : index
    %861 = vector.load %arg4[%c1_346, %c0_347, %c0_348] : memref<5x32x64xbf16, #tpu.memory_space<vmem>>, vector<1x32x64xbf16>
    %862 = vector.shape_cast %861 : vector<1x32x64xbf16> to vector<32x64xbf16>
    %c37 = arith.constant 37 : index
    %c0_349 = arith.constant 0 : index
    %863 = vector.load %arg9[%c37, %c0_349] : memref<63x96xf32, #tpu.memory_space<vmem>>, vector<1x64xf32>
    %c7_350 = arith.constant 7 : index
    %c0_351 = arith.constant 0 : index
    %c0_352 = arith.constant 0 : index
    %864 = vector.load %arg3[%c7_350, %c0_351, %c0_352] : memref<8x32x32xbf16, #tpu.memory_space<vmem>>, vector<1x32x32xbf16>
    %865 = vector.shape_cast %864 : vector<1x32x32xbf16> to vector<32x32xbf16>
    %c38 = arith.constant 38 : index
    %c0_353 = arith.constant 0 : index
    %866 = vector.load %arg9[%c38, %c0_353] : memref<63x96xf32, #tpu.memory_space<vmem>>, vector<1x32xf32>
    %867 = vector.shape_cast %857 : vector<2x16x32xf32> to vector<32x32xf32>
    %868 = arith.truncf %867 : vector<32x32xf32> to vector<32x32xbf16>
    %cst_354 = arith.constant dense<0.000000e+00> : vector<32x32xf32>
    %869 = tpu.matmul %868, %859, %cst_354 {dimension_numbers = #tpu.dot_dimension_numbers<[1], [0], [0], [1], [0, 0, 1, 1], [], []>} : vector<32x32xbf16>, vector<32x32xbf16>, vector<32x32xf32> -> vector<32x32xf32>
    %870 = vector.shape_cast %869 : vector<32x32xf32> to vector<2x16x32xf32>
    %871 = vector.shape_cast %860 : vector<1x32xf32> to vector<1x1x32xf32>
    %872 = vector.broadcast %871 : vector<1x1x32xf32> to vector<2x16x32xf32>
    %873 = arith.addf %870, %872 : vector<2x16x32xf32>
    %874 = vector.shape_cast %407 : vector<2x8x32xf32> to vector<16x32xf32>
    %875 = arith.truncf %874 : vector<16x32xf32> to vector<16x32xbf16>
    %cst_355 = arith.constant dense<0.000000e+00> : vector<16x64xf32>
    %876 = tpu.matmul %875, %862, %cst_355 {dimension_numbers = #tpu.dot_dimension_numbers<[1], [0], [0], [1], [0, 0, 1, 1], [], []>} : vector<16x32xbf16>, vector<32x64xbf16>, vector<16x64xf32> -> vector<16x64xf32>
    %877 = vector.shape_cast %876 : vector<16x64xf32> to vector<2x8x64xf32>
    %878 = vector.shape_cast %863 : vector<1x64xf32> to vector<1x1x64xf32>
    %879 = vector.broadcast %878 : vector<1x1x64xf32> to vector<2x8x64xf32>
    %880 = arith.addf %877, %879 : vector<2x8x64xf32>
    %881 = vector.extract_strided_slice %880 {offsets = [0, 0, 0], sizes = [2, 8, 32], strides = [1, 1, 1]} : vector<2x8x64xf32> to vector<2x8x32xf32>
    %882 = vector.extract_strided_slice %880 {offsets = [0, 0, 32], sizes = [2, 8, 32], strides = [1, 1, 1]} : vector<2x8x64xf32> to vector<2x8x32xf32>
    %883 = arith.truncf %873 : vector<2x16x32xf32> to vector<2x16x32xbf16>
    %884 = arith.truncf %881 : vector<2x8x32xf32> to vector<2x8x32xbf16>
    %885 = arith.truncf %882 : vector<2x8x32xf32> to vector<2x8x32xbf16>
    %886 = vector.extract_strided_slice %883 {offsets = [0, 0, 0], sizes = [2, 16, 8], strides = [1, 1, 1]} : vector<2x16x32xbf16> to vector<2x16x8xbf16>
    %887 = vector.extract_strided_slice %884 {offsets = [0, 0, 0], sizes = [2, 8, 8], strides = [1, 1, 1]} : vector<2x8x32xbf16> to vector<2x8x8xbf16>
    "tpu.trace_start"() <{level = 10 : i32, message = "bqd,bkd->bqk"}> : () -> ()
    %cst_356 = arith.constant dense<0.000000e+00> : vector<2x16x8xf32>
    %888 = tpu.matmul %886, %887, %cst_356 {dimension_numbers = #tpu.dot_dimension_numbers<[2], [2], [1], [1], [0, 0, 0, 1, 1, 1], [0], [0]>} : vector<2x16x8xbf16>, vector<2x8x8xbf16>, vector<2x16x8xf32> -> vector<2x16x8xf32>
    "tpu.trace_stop"() : () -> ()
    %cst_357 = arith.constant 0.353553385 : f32
    %889 = vector.broadcast %cst_357 : f32 to vector<2x16x8xf32>
    %890 = arith.mulf %888, %889 : vector<2x16x8xf32>
    %cst_358 = arith.constant dense<0xFF800000> : vector<2x16xf32>
    %891 = vector.multi_reduction <maximumf>, %890, %cst_358 [2] : vector<2x16x8xf32> to vector<2x16xf32>
    %892 = vector.shape_cast %891 : vector<2x16xf32> to vector<2x16x1xf32>
    %893 = vector.broadcast %892 : vector<2x16x1xf32> to vector<2x16x8xf32>
    %894 = arith.subf %890, %893 : vector<2x16x8xf32>
    %895 = math.exp %894 : vector<2x16x8xf32>
    %cst_359 = arith.constant dense<0.000000e+00> : vector<2x16xf32>
    %896 = vector.multi_reduction <add>, %895, %cst_359 [2] : vector<2x16x8xf32> to vector<2x16xf32>
    %897 = vector.shape_cast %896 : vector<2x16xf32> to vector<2x16x1xf32>
    %898 = tpu.reciprocal %897 {approx = true} : vector<2x16x1xf32> -> vector<2x16x1xf32>
    %899 = vector.broadcast %898 : vector<2x16x1xf32> to vector<2x16x8xf32>
    %900 = arith.mulf %895, %899 : vector<2x16x8xf32>
    %901 = arith.truncf %900 : vector<2x16x8xf32> to vector<2x16x8xbf16>
    %902 = vector.extract_strided_slice %885 {offsets = [0, 0, 0], sizes = [2, 8, 8], strides = [1, 1, 1]} : vector<2x8x32xbf16> to vector<2x8x8xbf16>
    "tpu.trace_start"() <{level = 10 : i32, message = "bqk,bkd->bqd"}> : () -> ()
    %cst_360 = arith.constant dense<0.000000e+00> : vector<2x16x8xf32>
    %903 = tpu.matmul %901, %902, %cst_360 {dimension_numbers = #tpu.dot_dimension_numbers<[2], [1], [1], [2], [0, 0, 0, 1, 1, 2], [0], [0]>} : vector<2x16x8xbf16>, vector<2x8x8xbf16>, vector<2x16x8xf32> -> vector<2x16x8xf32>
    "tpu.trace_stop"() : () -> ()
    %c0_361 = arith.constant 0 : index
    %c0_362 = arith.constant 0 : index
    %c0_363 = arith.constant 0 : index
    %904 = vector.load %arg11[%c0_361, %c0_362, %c0_363] : memref<2x16x32xf32, #tpu.memory_space<vmem>>, vector<2x16x8xf32>
    tpu.vector_store %arg11[%c0_361, %c0_362, %c0_363], %903 {strides = array<i32>} : memref<2x16x32xf32, #tpu.memory_space<vmem>>, vector<2x16x8xf32>,
    %905 = vector.extract_strided_slice %883 {offsets = [0, 0, 8], sizes = [2, 16, 8], strides = [1, 1, 1]} : vector<2x16x32xbf16> to vector<2x16x8xbf16>
    %906 = vector.extract_strided_slice %884 {offsets = [0, 0, 8], sizes = [2, 8, 8], strides = [1, 1, 1]} : vector<2x8x32xbf16> to vector<2x8x8xbf16>
    "tpu.trace_start"() <{level = 10 : i32, message = "bqd,bkd->bqk"}> : () -> ()
    %cst_364 = arith.constant dense<0.000000e+00> : vector<2x16x8xf32>
    %907 = tpu.matmul %905, %906, %cst_364 {dimension_numbers = #tpu.dot_dimension_numbers<[2], [2], [1], [1], [0, 0, 0, 1, 1, 1], [0], [0]>} : vector<2x16x8xbf16>, vector<2x8x8xbf16>, vector<2x16x8xf32> -> vector<2x16x8xf32>
    "tpu.trace_stop"() : () -> ()
    %cst_365 = arith.constant 0.353553385 : f32
    %908 = vector.broadcast %cst_365 : f32 to vector<2x16x8xf32>
    %909 = arith.mulf %907, %908 : vector<2x16x8xf32>
    %cst_366 = arith.constant dense<0xFF800000> : vector<2x16xf32>
    %910 = vector.multi_reduction <maximumf>, %909, %cst_366 [2] : vector<2x16x8xf32> to vector<2x16xf32>
    %911 = vector.shape_cast %910 : vector<2x16xf32> to vector<2x16x1xf32>
    %912 = vector.broadcast %911 : vector<2x16x1xf32> to vector<2x16x8xf32>
    %913 = arith.subf %909, %912 : vector<2x16x8xf32>
    %914 = math.exp %913 : vector<2x16x8xf32>
    %cst_367 = arith.constant dense<0.000000e+00> : vector<2x16xf32>
    %915 = vector.multi_reduction <add>, %914, %cst_367 [2] : vector<2x16x8xf32> to vector<2x16xf32>
    %916 = vector.shape_cast %915 : vector<2x16xf32> to vector<2x16x1xf32>
    %917 = tpu.reciprocal %916 {approx = true} : vector<2x16x1xf32> -> vector<2x16x1xf32>
    %918 = vector.broadcast %917 : vector<2x16x1xf32> to vector<2x16x8xf32>
    %919 = arith.mulf %914, %918 : vector<2x16x8xf32>
    %920 = arith.truncf %919 : vector<2x16x8xf32> to vector<2x16x8xbf16>
    %921 = vector.extract_strided_slice %885 {offsets = [0, 0, 8], sizes = [2, 8, 8], strides = [1, 1, 1]} : vector<2x8x32xbf16> to vector<2x8x8xbf16>
    "tpu.trace_start"() <{level = 10 : i32, message = "bqk,bkd->bqd"}> : () -> ()
    %cst_368 = arith.constant dense<0.000000e+00> : vector<2x16x8xf32>
    %922 = tpu.matmul %920, %921, %cst_368 {dimension_numbers = #tpu.dot_dimension_numbers<[2], [1], [1], [2], [0, 0, 0, 1, 1, 2], [0], [0]>} : vector<2x16x8xbf16>, vector<2x8x8xbf16>, vector<2x16x8xf32> -> vector<2x16x8xf32>
    "tpu.trace_stop"() : () -> ()
    %c0_369 = arith.constant 0 : index
    %c0_370 = arith.constant 0 : index
    %c8_371 = arith.constant 8 : index
    %923 = vector.load %arg11[%c0_369, %c0_370, %c8_371] : memref<2x16x32xf32, #tpu.memory_space<vmem>>, vector<2x16x8xf32>
    tpu.vector_store %arg11[%c0_369, %c0_370, %c8_371], %922 {strides = array<i32>} : memref<2x16x32xf32, #tpu.memory_space<vmem>>, vector<2x16x8xf32>,
    %924 = vector.extract_strided_slice %883 {offsets = [0, 0, 16], sizes = [2, 16, 8], strides = [1, 1, 1]} : vector<2x16x32xbf16> to vector<2x16x8xbf16>
    %925 = vector.extract_strided_slice %884 {offsets = [0, 0, 16], sizes = [2, 8, 8], strides = [1, 1, 1]} : vector<2x8x32xbf16> to vector<2x8x8xbf16>
    "tpu.trace_start"() <{level = 10 : i32, message = "bqd,bkd->bqk"}> : () -> ()
    %cst_372 = arith.constant dense<0.000000e+00> : vector<2x16x8xf32>
    %926 = tpu.matmul %924, %925, %cst_372 {dimension_numbers = #tpu.dot_dimension_numbers<[2], [2], [1], [1], [0, 0, 0, 1, 1, 1], [0], [0]>} : vector<2x16x8xbf16>, vector<2x8x8xbf16>, vector<2x16x8xf32> -> vector<2x16x8xf32>
    "tpu.trace_stop"() : () -> ()
    %cst_373 = arith.constant 0.353553385 : f32
    %927 = vector.broadcast %cst_373 : f32 to vector<2x16x8xf32>
    %928 = arith.mulf %926, %927 : vector<2x16x8xf32>
    %cst_374 = arith.constant dense<0xFF800000> : vector<2x16xf32>
    %929 = vector.multi_reduction <maximumf>, %928, %cst_374 [2] : vector<2x16x8xf32> to vector<2x16xf32>
    %930 = vector.shape_cast %929 : vector<2x16xf32> to vector<2x16x1xf32>
    %931 = vector.broadcast %930 : vector<2x16x1xf32> to vector<2x16x8xf32>
    %932 = arith.subf %928, %931 : vector<2x16x8xf32>
    %933 = math.exp %932 : vector<2x16x8xf32>
    %cst_375 = arith.constant dense<0.000000e+00> : vector<2x16xf32>
    %934 = vector.multi_reduction <add>, %933, %cst_375 [2] : vector<2x16x8xf32> to vector<2x16xf32>
    %935 = vector.shape_cast %934 : vector<2x16xf32> to vector<2x16x1xf32>
    %936 = tpu.reciprocal %935 {approx = true} : vector<2x16x1xf32> -> vector<2x16x1xf32>
    %937 = vector.broadcast %936 : vector<2x16x1xf32> to vector<2x16x8xf32>
    %938 = arith.mulf %933, %937 : vector<2x16x8xf32>
    %939 = arith.truncf %938 : vector<2x16x8xf32> to vector<2x16x8xbf16>
    %940 = vector.extract_strided_slice %885 {offsets = [0, 0, 16], sizes = [2, 8, 8], strides = [1, 1, 1]} : vector<2x8x32xbf16> to vector<2x8x8xbf16>
    "tpu.trace_start"() <{level = 10 : i32, message = "bqk,bkd->bqd"}> : () -> ()
    %cst_376 = arith.constant dense<0.000000e+00> : vector<2x16x8xf32>
    %941 = tpu.matmul %939, %940, %cst_376 {dimension_numbers = #tpu.dot_dimension_numbers<[2], [1], [1], [2], [0, 0, 0, 1, 1, 2], [0], [0]>} : vector<2x16x8xbf16>, vector<2x8x8xbf16>, vector<2x16x8xf32> -> vector<2x16x8xf32>
    "tpu.trace_stop"() : () -> ()
    %c0_377 = arith.constant 0 : index
    %c0_378 = arith.constant 0 : index
    %c16_379 = arith.constant 16 : index
    %942 = vector.load %arg11[%c0_377, %c0_378, %c16_379] : memref<2x16x32xf32, #tpu.memory_space<vmem>>, vector<2x16x8xf32>
    tpu.vector_store %arg11[%c0_377, %c0_378, %c16_379], %941 {strides = array<i32>} : memref<2x16x32xf32, #tpu.memory_space<vmem>>, vector<2x16x8xf32>,
    %943 = vector.extract_strided_slice %883 {offsets = [0, 0, 24], sizes = [2, 16, 8], strides = [1, 1, 1]} : vector<2x16x32xbf16> to vector<2x16x8xbf16>
    %944 = vector.extract_strided_slice %884 {offsets = [0, 0, 24], sizes = [2, 8, 8], strides = [1, 1, 1]} : vector<2x8x32xbf16> to vector<2x8x8xbf16>
    "tpu.trace_start"() <{level = 10 : i32, message = "bqd,bkd->bqk"}> : () -> ()
    %cst_380 = arith.constant dense<0.000000e+00> : vector<2x16x8xf32>
    %945 = tpu.matmul %943, %944, %cst_380 {dimension_numbers = #tpu.dot_dimension_numbers<[2], [2], [1], [1], [0, 0, 0, 1, 1, 1], [0], [0]>} : vector<2x16x8xbf16>, vector<2x8x8xbf16>, vector<2x16x8xf32> -> vector<2x16x8xf32>
    "tpu.trace_stop"() : () -> ()
    %cst_381 = arith.constant 0.353553385 : f32
    %946 = vector.broadcast %cst_381 : f32 to vector<2x16x8xf32>
    %947 = arith.mulf %945, %946 : vector<2x16x8xf32>
    %cst_382 = arith.constant dense<0xFF800000> : vector<2x16xf32>
    %948 = vector.multi_reduction <maximumf>, %947, %cst_382 [2] : vector<2x16x8xf32> to vector<2x16xf32>
    %949 = vector.shape_cast %948 : vector<2x16xf32> to vector<2x16x1xf32>
    %950 = vector.broadcast %949 : vector<2x16x1xf32> to vector<2x16x8xf32>
    %951 = arith.subf %947, %950 : vector<2x16x8xf32>
    %952 = math.exp %951 : vector<2x16x8xf32>
    %cst_383 = arith.constant dense<0.000000e+00> : vector<2x16xf32>
    %953 = vector.multi_reduction <add>, %952, %cst_383 [2] : vector<2x16x8xf32> to vector<2x16xf32>
    %954 = vector.shape_cast %953 : vector<2x16xf32> to vector<2x16x1xf32>
    %955 = tpu.reciprocal %954 {approx = true} : vector<2x16x1xf32> -> vector<2x16x1xf32>
    %956 = vector.broadcast %955 : vector<2x16x1xf32> to vector<2x16x8xf32>
    %957 = arith.mulf %952, %956 : vector<2x16x8xf32>
    %958 = arith.truncf %957 : vector<2x16x8xf32> to vector<2x16x8xbf16>
    %959 = vector.extract_strided_slice %885 {offsets = [0, 0, 24], sizes = [2, 8, 8], strides = [1, 1, 1]} : vector<2x8x32xbf16> to vector<2x8x8xbf16>
    "tpu.trace_start"() <{level = 10 : i32, message = "bqk,bkd->bqd"}> : () -> ()
    %cst_384 = arith.constant dense<0.000000e+00> : vector<2x16x8xf32>
    %960 = tpu.matmul %958, %959, %cst_384 {dimension_numbers = #tpu.dot_dimension_numbers<[2], [1], [1], [2], [0, 0, 0, 1, 1, 2], [0], [0]>} : vector<2x16x8xbf16>, vector<2x8x8xbf16>, vector<2x16x8xf32> -> vector<2x16x8xf32>
    "tpu.trace_stop"() : () -> ()
    %c0_385 = arith.constant 0 : index
    %c0_386 = arith.constant 0 : index
    %c24_387 = arith.constant 24 : index
    %961 = vector.load %arg11[%c0_385, %c0_386, %c24_387] : memref<2x16x32xf32, #tpu.memory_space<vmem>>, vector<2x16x8xf32>
    tpu.vector_store %arg11[%c0_385, %c0_386, %c24_387], %960 {strides = array<i32>} : memref<2x16x32xf32, #tpu.memory_space<vmem>>, vector<2x16x8xf32>,
    %c0_388 = arith.constant 0 : index
    %c0_389 = arith.constant 0 : index
    %c0_390 = arith.constant 0 : index
    %962 = vector.load %arg11[%c0_388, %c0_389, %c0_390] : memref<2x16x32xf32, #tpu.memory_space<vmem>>, vector<2x16x32xf32>
    %963 = vector.shape_cast %962 : vector<2x16x32xf32> to vector<32x32xf32>
    %964 = arith.truncf %963 : vector<32x32xf32> to vector<32x32xbf16>
    %cst_391 = arith.constant dense<0.000000e+00> : vector<32x32xf32>
    %965 = tpu.matmul %964, %865, %cst_391 {dimension_numbers = #tpu.dot_dimension_numbers<[1], [0], [0], [1], [0, 0, 1, 1], [], []>} : vector<32x32xbf16>, vector<32x32xbf16>, vector<32x32xf32> -> vector<32x32xf32>
    %966 = vector.shape_cast %965 : vector<32x32xf32> to vector<2x16x32xf32>
    %967 = vector.shape_cast %866 : vector<1x32xf32> to vector<1x1x32xf32>
    %968 = vector.broadcast %967 : vector<1x1x32xf32> to vector<2x16x32xf32>
    %969 = arith.addf %966, %968 : vector<2x16x32xf32>
    %970 = arith.addf %857, %969 : vector<2x16x32xf32>
    %c43 = arith.constant 43 : index
    %c0_392 = arith.constant 0 : index
    %971 = vector.load %arg9[%c43, %c0_392] : memref<63x96xf32, #tpu.memory_space<vmem>>, vector<1x32xf32>
    %c44 = arith.constant 44 : index
    %c0_393 = arith.constant 0 : index
    %972 = vector.load %arg9[%c44, %c0_393] : memref<63x96xf32, #tpu.memory_space<vmem>>, vector<1x32xf32>
    %cst_394 = arith.constant dense<0.000000e+00> : vector<2x16xf32>
    %973 = vector.multi_reduction <add>, %970, %cst_394 [2] : vector<2x16x32xf32> to vector<2x16xf32>
    %974 = vector.shape_cast %973 : vector<2x16xf32> to vector<2x16x1xf32>
    %cst_395 = arith.constant 3.200000e+01 : f32
    %975 = vector.broadcast %cst_395 : f32 to vector<2x16x1xf32>
    %976 = arith.divf %974, %975 : vector<2x16x1xf32>
    %977 = vector.broadcast %976 : vector<2x16x1xf32> to vector<2x16x32xf32>
    %978 = arith.subf %970, %977 : vector<2x16x32xf32>
    %979 = arith.mulf %978, %978 : vector<2x16x32xf32>
    %cst_396 = arith.constant dense<0.000000e+00> : vector<2x16xf32>
    %980 = vector.multi_reduction <add>, %979, %cst_396 [2] : vector<2x16x32xf32> to vector<2x16xf32>
    %981 = vector.shape_cast %980 : vector<2x16xf32> to vector<2x16x1xf32>
    %cst_397 = arith.constant 3.200000e+01 : f32
    %982 = vector.broadcast %cst_397 : f32 to vector<2x16x1xf32>
    %983 = arith.divf %981, %982 : vector<2x16x1xf32>
    %cst_398 = arith.constant 9.99999974E-6 : f32
    %984 = vector.broadcast %cst_398 : f32 to vector<2x16x1xf32>
    %985 = arith.addf %983, %984 : vector<2x16x1xf32>
    %986 = math.rsqrt %985 : vector<2x16x1xf32>
    %987 = vector.broadcast %986 : vector<2x16x1xf32> to vector<2x16x32xf32>
    %988 = arith.mulf %978, %987 : vector<2x16x32xf32>
    %989 = vector.shape_cast %971 : vector<1x32xf32> to vector<1x1x32xf32>
    %990 = vector.broadcast %989 : vector<1x1x32xf32> to vector<2x16x32xf32>
    %991 = arith.mulf %988, %990 : vector<2x16x32xf32>
    %992 = vector.shape_cast %972 : vector<1x32xf32> to vector<1x1x32xf32>
    %993 = vector.broadcast %992 : vector<1x1x32xf32> to vector<2x16x32xf32>
    %994 = arith.addf %991, %993 : vector<2x16x32xf32>
    %c3_399 = arith.constant 3 : index
    %c0_400 = arith.constant 0 : index
    %c0_401 = arith.constant 0 : index
    %995 = vector.load %arg4[%c3_399, %c0_400, %c0_401] : memref<5x32x64xbf16, #tpu.memory_space<vmem>>, vector<1x32x64xbf16>
    %996 = vector.shape_cast %995 : vector<1x32x64xbf16> to vector<32x64xbf16>
    %c39 = arith.constant 39 : index
    %c0_402 = arith.constant 0 : index
    %997 = vector.load %arg9[%c39, %c0_402] : memref<63x96xf32, #tpu.memory_space<vmem>>, vector<1x64xf32>
    %998 = vector.shape_cast %994 : vector<2x16x32xf32> to vector<32x32xf32>
    %999 = arith.truncf %998 : vector<32x32xf32> to vector<32x32xbf16>
    %cst_403 = arith.constant dense<0.000000e+00> : vector<32x64xf32>
    %1000 = tpu.matmul %999, %996, %cst_403 {dimension_numbers = #tpu.dot_dimension_numbers<[1], [0], [0], [1], [0, 0, 1, 1], [], []>} : vector<32x32xbf16>, vector<32x64xbf16>, vector<32x64xf32> -> vector<32x64xf32>
    %1001 = vector.shape_cast %1000 : vector<32x64xf32> to vector<2x16x64xf32>
    %1002 = vector.shape_cast %997 : vector<1x64xf32> to vector<1x1x64xf32>
    %1003 = vector.broadcast %1002 : vector<1x1x64xf32> to vector<2x16x64xf32>
    %1004 = arith.addf %1001, %1003 : vector<2x16x64xf32>
    %cst_404 = arith.constant 0.000000e+00 : f32
    %1005 = vector.broadcast %cst_404 : f32 to vector<2x16x64xf32>
    %1006 = arith.maximumf %1004, %1005 : vector<2x16x64xf32>
    %c1_405 = arith.constant 1 : index
    %c0_406 = arith.constant 0 : index
    %c0_407 = arith.constant 0 : index
    %1007 = vector.load %arg7[%c1_405, %c0_406, %c0_407] : memref<3x64x32xbf16, #tpu.memory_space<vmem>>, vector<1x64x32xbf16>
    %1008 = vector.shape_cast %1007 : vector<1x64x32xbf16> to vector<64x32xbf16>
    %c40 = arith.constant 40 : index
    %c0_408 = arith.constant 0 : index
    %1009 = vector.load %arg9[%c40, %c0_408] : memref<63x96xf32, #tpu.memory_space<vmem>>, vector<1x32xf32>
    %1010 = vector.shape_cast %1006 : vector<2x16x64xf32> to vector<32x64xf32>
    %1011 = arith.truncf %1010 : vector<32x64xf32> to vector<32x64xbf16>
    %cst_409 = arith.constant dense<0.000000e+00> : vector<32x32xf32>
    %1012 = tpu.matmul %1011, %1008, %cst_409 {dimension_numbers = #tpu.dot_dimension_numbers<[1], [0], [0], [1], [0, 0, 1, 1], [], []>} : vector<32x64xbf16>, vector<64x32xbf16>, vector<32x32xf32> -> vector<32x32xf32>
    %1013 = vector.shape_cast %1012 : vector<32x32xf32> to vector<2x16x32xf32>
    %1014 = vector.shape_cast %1009 : vector<1x32xf32> to vector<1x1x32xf32>
    %1015 = vector.broadcast %1014 : vector<1x1x32xf32> to vector<2x16x32xf32>
    %1016 = arith.addf %1013, %1015 : vector<2x16x32xf32>
    %1017 = arith.addf %994, %1016 : vector<2x16x32xf32>
    %c45 = arith.constant 45 : index
    %c0_410 = arith.constant 0 : index
    %1018 = vector.load %arg9[%c45, %c0_410] : memref<63x96xf32, #tpu.memory_space<vmem>>, vector<1x32xf32>
    %c46 = arith.constant 46 : index
    %c0_411 = arith.constant 0 : index
    %1019 = vector.load %arg9[%c46, %c0_411] : memref<63x96xf32, #tpu.memory_space<vmem>>, vector<1x32xf32>
    %cst_412 = arith.constant dense<0.000000e+00> : vector<2x16xf32>
    %1020 = vector.multi_reduction <add>, %1017, %cst_412 [2] : vector<2x16x32xf32> to vector<2x16xf32>
    %1021 = vector.shape_cast %1020 : vector<2x16xf32> to vector<2x16x1xf32>
    %cst_413 = arith.constant 3.200000e+01 : f32
    %1022 = vector.broadcast %cst_413 : f32 to vector<2x16x1xf32>
    %1023 = arith.divf %1021, %1022 : vector<2x16x1xf32>
    %1024 = vector.broadcast %1023 : vector<2x16x1xf32> to vector<2x16x32xf32>
    %1025 = arith.subf %1017, %1024 : vector<2x16x32xf32>
    %1026 = arith.mulf %1025, %1025 : vector<2x16x32xf32>
    %cst_414 = arith.constant dense<0.000000e+00> : vector<2x16xf32>
    %1027 = vector.multi_reduction <add>, %1026, %cst_414 [2] : vector<2x16x32xf32> to vector<2x16xf32>
    %1028 = vector.shape_cast %1027 : vector<2x16xf32> to vector<2x16x1xf32>
    %cst_415 = arith.constant 3.200000e+01 : f32
    %1029 = vector.broadcast %cst_415 : f32 to vector<2x16x1xf32>
    %1030 = arith.divf %1028, %1029 : vector<2x16x1xf32>
    %cst_416 = arith.constant 9.99999974E-6 : f32
    %1031 = vector.broadcast %cst_416 : f32 to vector<2x16x1xf32>
    %1032 = arith.addf %1030, %1031 : vector<2x16x1xf32>
    %1033 = math.rsqrt %1032 : vector<2x16x1xf32>
    %1034 = vector.broadcast %1033 : vector<2x16x1xf32> to vector<2x16x32xf32>
    %1035 = arith.mulf %1025, %1034 : vector<2x16x32xf32>
    %1036 = vector.shape_cast %1018 : vector<1x32xf32> to vector<1x1x32xf32>
    %1037 = vector.broadcast %1036 : vector<1x1x32xf32> to vector<2x16x32xf32>
    %1038 = arith.mulf %1035, %1037 : vector<2x16x32xf32>
    %1039 = vector.shape_cast %1019 : vector<1x32xf32> to vector<1x1x32xf32>
    %1040 = vector.broadcast %1039 : vector<1x1x32xf32> to vector<2x16x32xf32>
    %1041 = arith.addf %1038, %1040 : vector<2x16x32xf32>
    %1042 = vector.extract_strided_slice %1041 {offsets = [0, 8, 0], sizes = [2, 8, 32], strides = [1, 1, 1]} : vector<2x16x32xf32> to vector<2x8x32xf32>
    %c4_417 = arith.constant 4 : index
    %c0_418 = arith.constant 0 : index
    %c0_419 = arith.constant 0 : index
    %1043 = vector.load %arg4[%c4_417, %c0_418, %c0_419] : memref<5x32x64xbf16, #tpu.memory_space<vmem>>, vector<1x32x64xbf16>
    %1044 = vector.shape_cast %1043 : vector<1x32x64xbf16> to vector<32x64xbf16>
    %c3_420 = arith.constant 3 : index
    %c0_421 = arith.constant 0 : index
    %1045 = vector.load %arg9[%c3_420, %c0_421] : memref<63x96xf32, #tpu.memory_space<vmem>>, vector<1x64xf32>
    %1046 = vector.shape_cast %1042 : vector<2x8x32xf32> to vector<16x32xf32>
    %1047 = arith.truncf %1046 : vector<16x32xf32> to vector<16x32xbf16>
    %cst_422 = arith.constant dense<0.000000e+00> : vector<16x64xf32>
    %1048 = tpu.matmul %1047, %1044, %cst_422 {dimension_numbers = #tpu.dot_dimension_numbers<[1], [0], [0], [1], [0, 0, 1, 1], [], []>} : vector<16x32xbf16>, vector<32x64xbf16>, vector<16x64xf32> -> vector<16x64xf32>
    %1049 = vector.shape_cast %1048 : vector<16x64xf32> to vector<2x8x64xf32>
    %1050 = vector.shape_cast %1045 : vector<1x64xf32> to vector<1x1x64xf32>
    %1051 = vector.broadcast %1050 : vector<1x1x64xf32> to vector<2x8x64xf32>
    %1052 = arith.addf %1049, %1051 : vector<2x8x64xf32>
    %cst_423 = arith.constant 0.000000e+00 : f32
    %1053 = vector.broadcast %cst_423 : f32 to vector<2x8x64xf32>
    %1054 = arith.maximumf %1052, %1053 : vector<2x8x64xf32>
    %c2_424 = arith.constant 2 : index
    %c0_425 = arith.constant 0 : index
    %c0_426 = arith.constant 0 : index
    %1055 = vector.load %arg7[%c2_424, %c0_425, %c0_426] : memref<3x64x32xbf16, #tpu.memory_space<vmem>>, vector<1x64x32xbf16>
    %1056 = vector.shape_cast %1055 : vector<1x64x32xbf16> to vector<64x32xbf16>
    %c4_427 = arith.constant 4 : index
    %c0_428 = arith.constant 0 : index
    %1057 = vector.load %arg9[%c4_427, %c0_428] : memref<63x96xf32, #tpu.memory_space<vmem>>, vector<1x32xf32>
    %1058 = vector.shape_cast %1054 : vector<2x8x64xf32> to vector<16x64xf32>
    %1059 = arith.truncf %1058 : vector<16x64xf32> to vector<16x64xbf16>
    %cst_429 = arith.constant dense<0.000000e+00> : vector<16x32xf32>
    %1060 = tpu.matmul %1059, %1056, %cst_429 {dimension_numbers = #tpu.dot_dimension_numbers<[1], [0], [0], [1], [0, 0, 1, 1], [], []>} : vector<16x64xbf16>, vector<64x32xbf16>, vector<16x32xf32> -> vector<16x32xf32>
    %1061 = vector.shape_cast %1060 : vector<16x32xf32> to vector<2x8x32xf32>
    %1062 = vector.shape_cast %1057 : vector<1x32xf32> to vector<1x1x32xf32>
    %1063 = vector.broadcast %1062 : vector<1x1x32xf32> to vector<2x8x32xf32>
    %1064 = arith.addf %1061, %1063 : vector<2x8x32xf32>
    %1065 = vector.extract_strided_slice %1064 {offsets = [0, 0, 0], sizes = [2, 8, 4], strides = [1, 1, 1]} : vector<2x8x32xf32> to vector<2x8x4xf32>
    %1066 = vector.broadcast %24 : vector<2x1x4xf32> to vector<2x8x4xf32>
    %1067 = arith.mulf %1065, %1066 : vector<2x8x4xf32>
    %1068 = vector.broadcast %22 : vector<2x1x4xf32> to vector<2x8x4xf32>
    %1069 = arith.addf %1067, %1068 : vector<2x8x4xf32>
    %c0_430 = arith.constant 0 : index
    %c0_431 = arith.constant 0 : index
    %c0_432 = arith.constant 0 : index
    %1070 = vector.load %arg10[%c0_430, %c0_431, %c0_432] : memref<2x8x4xf32, #tpu.memory_space<vmem>>, vector<2x8x4xf32>
    tpu.vector_store %arg10[%c0_430, %c0_431, %c0_432], %1069 {strides = array<i32>} : memref<2x8x4xf32, #tpu.memory_space<vmem>>, vector<2x8x4xf32>,
    return
  }
}

</mosaic_0001>

<llo_original>
// kernel: forward.1
$region0: #{forward.1}
  #allocation0 [shape = 'u32[]', space=smem, size = 0x4, offset = 0x4, fixed_abs, tag = 'smem constant byte address 0x4 - core index']
  #allocation1 [shape = 'u32[144,128]{1,0:T(1,128)}', space=vmem, size = 0x12000, scoped, tag = 'internal scratch']
  #allocation2 [shape = 'f32[2,16,32]{2,1,0:T(8,128)}', space=vmem, size = 0x4000, scoped, tag = 'scratch operand']
  %s0 = inlined_call_operand.vmem [shape: f32[2,8,16], index: 0, kind: input, shape index: {}]
  %s1 = inlined_call_operand.vmem [shape: f32[2,16,16], index: 1, kind: input, shape index: {}]
  %s2 = inlined_call_operand.vmem [shape: bf16[4,32,96], index: 2, kind: input, shape index: {}]
  %s3 = inlined_call_operand.vmem [shape: bf16[8,32,32], index: 3, kind: input, shape index: {}]
  %s4 = inlined_call_operand.vmem [shape: bf16[5,32,64], index: 4, kind: input, shape index: {}]
  %s5 = inlined_call_operand.vmem [shape: bf16[2,32,64], index: 5, kind: input, shape index: {}]
  %s6 = inlined_call_operand.vmem [shape: bf16[2,64,32], index: 6, kind: input, shape index: {}]
  %s7 = inlined_call_operand.vmem [shape: bf16[3,64,32], index: 7, kind: input, shape index: {}]
  %s8 = inlined_call_operand.vmem [shape: bf16[32,32], index: 8, kind: input, shape index: {}]
  %s9 = inlined_call_operand.vmem [shape: f32[63,96], index: 9, kind: input, shape index: {}]
  %s10 = inlined_call_operand.vmem [shape: f32[2,8,4], index: 10, kind: output, shape index: {}]
  %s11 = sld [smem:[#allocation0]]
  $region50: #{forward.1} parent=0
    _
  %s13 = ssub.s32 1, %s11
  %s14 = scalar_select 0, %s13, %s11
  // Predicated region
  $region2: #{forward.1} parent=0 // pred_check
    _
  $region3: #{forward.1} parent=0 // pred_check_branch
    %16 = sbr.rel (0) target = $region5
  $region4: #{forward.1} parent=0 // pred_region
    _
  $region5: #{forward.1} parent=0 // pred_fallthru
    _
  // Predicated region
  $region6: #{forward.1} parent=0 // pred_check
    _
  $region7: #{forward.1} parent=0 // pred_check_branch
    %18 = sbr.rel (0) target = $region9
  $region8: #{forward.1} parent=0 // pred_region
    _
  $region9: #{forward.1} parent=0 // pred_fallthru
    _
  // Predicated region
  $region10: #{forward.1} parent=0 // pred_check
    _
  $region11: #{forward.1} parent=0 // pred_check_branch
    %20 = sbr.rel (0) target = $region13
  $region12: #{forward.1} parent=0 // pred_region
    _
  $region13: #{forward.1} parent=0 // pred_fallthru
    _
  // Predicated region
  $region14: #{forward.1} parent=0 // pred_check
    _
  $region15: #{forward.1} parent=0 // pred_check_branch
    %22 = sbr.rel (0) target = $region17
  $region16: #{forward.1} parent=0 // pred_region
    _
  $region17: #{forward.1} parent=0 // pred_fallthru
    _
  // Predicated region
  $region18: #{forward.1} parent=0 // pred_check
    _
  $region19: #{forward.1} parent=0 // pred_check_branch
    %24 = sbr.rel (0) target = $region21
  $region20: #{forward.1} parent=0 // pred_region
    _
  $region21: #{forward.1} parent=0 // pred_fallthru
    _
  // Predicated region
  $region22: #{forward.1} parent=0 // pred_check
    _
  $region23: #{forward.1} parent=0 // pred_check_branch
    %26 = sbr.rel (0) target = $region25
  $region24: #{forward.1} parent=0 // pred_region
    _
  $region25: #{forward.1} parent=0 // pred_fallthru
    _
  // Predicated region
  $region26: #{forward.1} parent=0 // pred_check
    _
  $region27: #{forward.1} parent=0 // pred_check_branch
    %28 = sbr.rel (0) target = $region29
  $region28: #{forward.1} parent=0 // pred_region
    _
  $region29: #{forward.1} parent=0 // pred_fallthru
    _
  // Predicated region
  $region30: #{forward.1} parent=0 // pred_check
    _
  $region31: #{forward.1} parent=0 // pred_check_branch
    %30 = sbr.rel (0) target = $region33
  $region32: #{forward.1} parent=0 // pred_region
    _
  $region33: #{forward.1} parent=0 // pred_fallthru
    _
  // Predicated region
  $region34: #{forward.1} parent=0 // pred_check
    _
  $region35: #{forward.1} parent=0 // pred_check_branch
    %32 = sbr.rel (0) target = $region37
  $region36: #{forward.1} parent=0 // pred_region
    _
  $region37: #{forward.1} parent=0 // pred_fallthru
    _
  // Predicated region
  $region38: #{forward.1} parent=0 // pred_check
    _
  $region39: #{forward.1} parent=0 // pred_check_branch
    %34 = sbr.rel (0) target = $region41
  $region40: #{forward.1} parent=0 // pred_region
    _
  $region41: #{forward.1} parent=0 // pred_fallthru
    _
  %v36 = vld [vmem:[%s0] sm:$0xff]
  %v37 = vld [vmem:[%s0 + $0x8] sm:$0xff]
  %vm38 = vcmask 130048
  %v39 = vsel %vm38, %v36, 0.0
  %40 = vadd.xlane.f32.xlu0 %v39
  %v41 = vpop.xlane.xlu0 %40
  %v42 = vsel %vm38, %v37, 0.0
  %43 = vadd.xlane.f32.xlu0 %v42
  %v44 = vpop.xlane.xlu0 %43
  %v45 = vrcp.pop 16.0
  %v46 = vmul.f32 %v41, %v45
  %v47 = vmul.f32 %v44, %v45
  %v48 = vsub.f32 %v36, %v46
  %v49 = vsub.f32 %v37, %v47
  %v50 = vmul.f32 %v48, %v48
  %v51 = vmul.f32 %v49, %v49
  %v52 = vsel %vm38, %v50, 0.0
  %53 = vadd.xlane.f32.xlu0 %v52
  %v54 = vpop.xlane.xlu0 %53
  %v55 = vsel %vm38, %v51, 0.0
  %56 = vadd.xlane.f32.xlu0 %v55
  %v57 = vpop.xlane.xlu0 %56
  %v58 = vmul.f32 %v54, %v45
  %v59 = vmul.f32 %v57, %v45
  %v60 = vadd.f32 %v58, 1e-05
  %v61 = vadd.f32 %v59, 1e-05
  %v62 = vrsqrt.pop %v60
  %v63 = vmul.f32 %v60, %v62
  %vm64 = vcmp.eq.f32.partialorder %v60, inf
  %v65 = vsel %vm64, %v60, %v63
  %vm66 = vcmp.eq.f32.partialorder %v60, 0.0
  %v67 = vand.u32 %v60, 2147483648
  %v68 = vsel %vm66, %v67, %v65
  %v69 = vrsqrt.pop %v61
  %v70 = vmul.f32 %v61, %v69
  %vm71 = vcmp.eq.f32.partialorder %v61, inf
  %v72 = vsel %vm71, %v61, %v70
  %vm73 = vcmp.eq.f32.partialorder %v61, 0.0
  %v74 = vand.u32 %v61, 2147483648
  %v75 = vsel %vm73, %v74, %v72
  %v76 = vlaneseq
  %v77 = vshrl.u32 %v76, 7
  %vm78 = vcmp.lt.s32.totalorder %v77, 4
  %v79 = vrcp.pop %v68
  %v80 = vmul.f32 %v48, %v79
  %v81 = vrcp.pop %v75
  %v82 = vmul.f32 %v49, %v81
  %v83 = vsel %vm78, %v80, %v36
  %v84 = vsel %vm78, %v82, %v37
  %85 = vxpose.xlu0.b32.start [1/16] %v46, 128
  %86 = vxpose.xlu0.b32.cont [2/16] 0.0, 128
  %87 = vxpose.xlu0.b32.cont [3/16] 0.0, 128
  %88 = vxpose.xlu0.b32.cont [4/16] 0.0, 128
  %89 = vxpose.xlu0.b32.cont [5/16] 0.0, 128
  %90 = vxpose.xlu0.b32.cont [6/16] 0.0, 128
  %91 = vxpose.xlu0.b32.cont [7/16] 0.0, 128
  %92 = vxpose.xlu0.b32.cont [8/16] 0.0, 128
  %93 = vxpose.xlu0.b32.cont [9/16] 0.0, 128
  %94 = vxpose.xlu0.b32.cont [10/16] 0.0, 128
  %95 = vxpose.xlu0.b32.cont [11/16] 0.0, 128
  %96 = vxpose.xlu0.b32.cont [12/16] 0.0, 128
  %97 = vxpose.xlu0.b32.cont [13/16] 0.0, 128
  %98 = vxpose.xlu0.b32.cont [14/16] 0.0, 128
  %99 = vxpose.xlu0.b32.cont [15/16] 0.0, 128
  %100 = vxpose.xlu0.b32.end [16/16] 0.0, 128
  %v101 = vpop.trf.xlu0
  %v102 = vpop.trf.xlu0
  %v103 = vpop.trf.xlu0
  %v104 = vpop.trf.xlu0
  %v105 = vpop.trf.xlu0
  %v106 = vpop.trf.xlu0
  %v107 = vpop.trf.xlu0
  %v108 = vpop.trf.xlu0
  %v109 = vpop.trf.xlu0
  %v110 = vpop.trf.xlu0
  %v111 = vpop.trf.xlu0
  %v112 = vpop.trf.xlu0
  %v113 = vpop.trf.xlu0
  %v114 = vpop.trf.xlu0
  %v115 = vpop.trf.xlu0
  %v116 = vpop.trf.xlu0
  %117 = vxpose.xlu0.b32.start [1/16] %v47, 128
  %118 = vxpose.xlu0.b32.cont [2/16] 0.0, 128
  %119 = vxpose.xlu0.b32.cont [3/16] 0.0, 128
  %120 = vxpose.xlu0.b32.cont [4/16] 0.0, 128
  %121 = vxpose.xlu0.b32.cont [5/16] 0.0, 128
  %122 = vxpose.xlu0.b32.cont [6/16] 0.0, 128
  %123 = vxpose.xlu0.b32.cont [7/16] 0.0, 128
  %124 = vxpose.xlu0.b32.cont [8/16] 0.0, 128
  %125 = vxpose.xlu0.b32.cont [9/16] 0.0, 128
  %126 = vxpose.xlu0.b32.cont [10/16] 0.0, 128
  %127 = vxpose.xlu0.b32.cont [11/16] 0.0, 128
  %128 = vxpose.xlu0.b32.cont [12/16] 0.0, 128
  %129 = vxpose.xlu0.b32.cont [13/16] 0.0, 128
  %130 = vxpose.xlu0.b32.cont [14/16] 0.0, 128
  %131 = vxpose.xlu0.b32.cont [15/16] 0.0, 128
  %132 = vxpose.xlu0.b32.end [16/16] 0.0, 128
  %v133 = vpop.trf.xlu0
  %v134 = vpop.trf.xlu0
  %v135 = vpop.trf.xlu0
  %v136 = vpop.trf.xlu0
  %v137 = vpop.trf.xlu0
  %v138 = vpop.trf.xlu0
  %v139 = vpop.trf.xlu0
  %v140 = vpop.trf.xlu0
  %v141 = vpop.trf.xlu0
  %v142 = vpop.trf.xlu0
  %v143 = vpop.trf.xlu0
  %v144 = vpop.trf.xlu0
  %v145 = vpop.trf.xlu0
  %v146 = vpop.trf.xlu0
  %v147 = vpop.trf.xlu0
  %v148 = vpop.trf.xlu0
  %149 = vxpose.xlu0.b32.start [1/16] %v68, 128
  %150 = vxpose.xlu0.b32.cont [2/16] 0.0, 128
  %151 = vxpose.xlu0.b32.cont [3/16] 0.0, 128
  %152 = vxpose.xlu0.b32.cont [4/16] 0.0, 128
  %153 = vxpose.xlu0.b32.cont [5/16] 0.0, 128
  %154 = vxpose.xlu0.b32.cont [6/16] 0.0, 128
  %155 = vxpose.xlu0.b32.cont [7/16] 0.0, 128
  %156 = vxpose.xlu0.b32.cont [8/16] 0.0, 128
  %157 = vxpose.xlu0.b32.cont [9/16] 0.0, 128
  %158 = vxpose.xlu0.b32.cont [10/16] 0.0, 128
  %159 = vxpose.xlu0.b32.cont [11/16] 0.0, 128
  %160 = vxpose.xlu0.b32.cont [12/16] 0.0, 128
  %161 = vxpose.xlu0.b32.cont [13/16] 0.0, 128
  %162 = vxpose.xlu0.b32.cont [14/16] 0.0, 128
  %163 = vxpose.xlu0.b32.cont [15/16] 0.0, 128
  %164 = vxpose.xlu0.b32.end [16/16] 0.0, 128
  %v165 = vpop.trf.xlu0
  %v166 = vpop.trf.xlu0
  %v167 = vpop.trf.xlu0
  %v168 = vpop.trf.xlu0
  %v169 = vpop.trf.xlu0
  %v170 = vpop.trf.xlu0
  %v171 = vpop.trf.xlu0
  %v172 = vpop.trf.xlu0
  %v173 = vpop.trf.xlu0
  %v174 = vpop.trf.xlu0
  %v175 = vpop.trf.xlu0
  %v176 = vpop.trf.xlu0
  %v177 = vpop.trf.xlu0
  %v178 = vpop.trf.xlu0
  %v179 = vpop.trf.xlu0
  %v180 = vpop.trf.xlu0
  %181 = vxpose.xlu0.b32.start [1/16] %v75, 128
  %182 = vxpose.xlu0.b32.cont [2/16] 0.0, 128
  %183 = vxpose.xlu0.b32.cont [3/16] 0.0, 128
  %184 = vxpose.xlu0.b32.cont [4/16] 0.0, 128
  %185 = vxpose.xlu0.b32.cont [5/16] 0.0, 128
  %186 = vxpose.xlu0.b32.cont [6/16] 0.0, 128
  %187 = vxpose.xlu0.b32.cont [7/16] 0.0, 128
  %188 = vxpose.xlu0.b32.cont [8/16] 0.0, 128
  %189 = vxpose.xlu0.b32.cont [9/16] 0.0, 128
  %190 = vxpose.xlu0.b32.cont [10/16] 0.0, 128
  %191 = vxpose.xlu0.b32.cont [11/16] 0.0, 128
  %192 = vxpose.xlu0.b32.cont [12/16] 0.0, 128
  %193 = vxpose.xlu0.b32.cont [13/16] 0.0, 128
  %194 = vxpose.xlu0.b32.cont [14/16] 0.0, 128
  %195 = vxpose.xlu0.b32.cont [15/16] 0.0, 128
  %196 = vxpose.xlu0.b32.end [16/16] 0.0, 128
  %v197 = vpop.trf.xlu0
  %v198 = vpop.trf.xlu0
  %v199 = vpop.trf.xlu0
  %v200 = vpop.trf.xlu0
  %v201 = vpop.trf.xlu0
  %v202 = vpop.trf.xlu0
  %v203 = vpop.trf.xlu0
  %v204 = vpop.trf.xlu0
  %v205 = vpop.trf.xlu0
  %v206 = vpop.trf.xlu0
  %v207 = vpop.trf.xlu0
  %v208 = vpop.trf.xlu0
  %v209 = vpop.trf.xlu0
  %v210 = vpop.trf.xlu0
  %v211 = vpop.trf.xlu0
  %v212 = vpop.trf.xlu0
  %v213 = vld [vmem:[%s8] sm:$0xf]
  %v214 = vld [vmem:[%s8 + $0x4] sm:$0xf]
  %v215 = vld [vmem:[%s9] sm:$0x1]
  %v216 = vpack.c.bf16 %v84, %v83
  %v219 = vunpack.c.l.b16 %v213
  %v220 = vunpack.c.l.b16 %v214
  %v221 = vpack.c.b16 %v220, %v219
  %v224 = vsel %vm38, %v216, 0
  %226 = vmatprep.subr.bf16.mxu0 0
  %227 = vmatpush1.bf16.msra.mxu0 0
  %228 = vmatprep.subr.bf16.mxu0 0
  %229 = vmatpush1.bf16.msra.mxu0 0
  %230 = vmatprep.subr.bf16.mxu0 0
  %231 = vmatpush1.bf16.msra.mxu0 0
  %232 = vmatprep.subr.bf16.mxu0 0
  %233 = vmatpush1.bf16.msra.mxu0 0
  %234 = vmatprep.subr.bf16.mxu0 0
  %235 = vmatpush1.bf16.msra.mxu0 0
  %236 = vmatprep.subr.bf16.mxu0 0
  %237 = vmatpush1.bf16.msra.mxu0 0
  %238 = vmatprep.subr.bf16.mxu0 0
  %239 = vmatpush1.bf16.msra.mxu0 0
  %240 = vmatprep.subr.bf16.mxu0 0
  %241 = vmatpush1.bf16.msra.mxu0 %v221
  %242 = vmatprep.subr.bf16.mxu0 0
  %243 = vmatpush2.bf16.msra.mxu0 0
  %244 = vmatprep.subr.bf16.mxu0 0
  %245 = vmatpush2.bf16.msra.mxu0 0
  %246 = vmatprep.subr.bf16.mxu0 0
  %247 = vmatpush2.bf16.msra.mxu0 0
  %248 = vmatprep.subr.bf16.mxu0 0
  %249 = vmatpush2.bf16.msra.mxu0 0
  %250 = vmatprep.subr.bf16.mxu0 0
  %251 = vmatpush2.bf16.msra.mxu0 0
  %252 = vmatprep.subr.bf16.mxu0 0
  %253 = vmatpush2.bf16.msra.mxu0 0
  %254 = vmatprep.subr.bf16.mxu0 0
  %255 = vmatpush2.bf16.msra.mxu0 0
  %256 = vmatprep.subr.bf16.mxu0 0
  %257 = vmatpush2.bf16.msra.mxu0 0
  %258 = vmatprep.mubr.bf16.mxu0 0
  %259 = vmatmul.mubr.bf16.gmra.mxu0 %v224
  %v260 = vpop.f32.mrf.mxu0
  %v261 = vadd.f32 0.0, %v260
  %v262 = vpop.f32.mrf.mxu0
  %v263 = vpop.f32.mrf.mxu0
  %v264 = vadd.f32 0.0, %v263
  %v265 = vpop.f32.mrf.mxu0
  %266 = vdwg.mxu0
  %v267 = vlaneseq
  %v268 = vshrl.u32 %v267, 7
  %v269 = vsub.s32 0, %v268
  %v270 = vrot.slane %v215, %v269
  %v271 = vadd.f32 %v261, %v270
  %v272 = vadd.f32 %v264, %v270
  %v273 = vld [vmem:[%s2] sm:$0xf]
  %v274 = vld [vmem:[%s2 + $0x4] sm:$0xf]
  %v275 = vld [vmem:[%s2 + $0x8] sm:$0xf]
  %v276 = vld [vmem:[%s2 + $0xc] sm:$0xf]
  %v277 = vld [vmem:[%s9 + $0x5] sm:$0x1]
  %v278 = vld [vmem:[%s3] sm:$0xf]
  %v279 = vld [vmem:[%s3 + $0x4] sm:$0xf]
  %v280 = vld [vmem:[%s3 + $0x8] sm:$0xf]
  %v281 = vld [vmem:[%s3 + $0xc] sm:$0xf]
  %v282 = vld [vmem:[%s9 + $0x6] sm:$0x1]
  %v283 = vpack.c.bf16 %v272, %v271
  %v288 = vunpack.c.l.b16 %v273
  %v289 = vunpack.c.l.b16 %v274
  %v290 = vunpack.c.l.b16 %v275
  %v291 = vunpack.c.l.b16 %v276
  %v292 = vpack.c.b16 %v289, %v288
  %v293 = vpack.c.b16 %v291, %v290
  %vm296 = vcmask 261120
  %v298 = vsel %vm296, %v283, 0
  %300 = vmatprep.subr.bf16.mxu0 0
  %301 = vmatpush1.bf16.msra.mxu0 0
  %302 = vmatprep.subr.bf16.mxu0 0
  %303 = vmatpush1.bf16.msra.mxu0 0
  %304 = vmatprep.subr.bf16.mxu0 0
  %305 = vmatpush1.bf16.msra.mxu0 0
  %306 = vmatprep.subr.bf16.mxu0 0
  %307 = vmatpush1.bf16.msra.mxu0 0
  %308 = vmatprep.subr.bf16.mxu0 0
  %309 = vmatpush1.bf16.msra.mxu0 0
  %310 = vmatprep.subr.bf16.mxu0 0
  %311 = vmatpush1.bf16.msra.mxu0 0
  %312 = vmatprep.subr.bf16.mxu0 0
  %313 = vmatpush1.bf16.msra.mxu0 %v293
  %314 = vmatprep.subr.bf16.mxu0 0
  %315 = vmatpush1.bf16.msra.mxu0 %v292
  %316 = vmatprep.subr.bf16.mxu0 0
  %317 = vmatpush2.bf16.msra.mxu0 0
  %318 = vmatprep.subr.bf16.mxu0 0
  %319 = vmatpush2.bf16.msra.mxu0 0
  %320 = vmatprep.subr.bf16.mxu0 0
  %321 = vmatpush2.bf16.msra.mxu0 0
  %322 = vmatprep.subr.bf16.mxu0 0
  %323 = vmatpush2.bf16.msra.mxu0 0
  %324 = vmatprep.subr.bf16.mxu0 0
  %325 = vmatpush2.bf16.msra.mxu0 0
  %326 = vmatprep.subr.bf16.mxu0 0
  %327 = vmatpush2.bf16.msra.mxu0 0
  %328 = vmatprep.subr.bf16.mxu0 0
  %329 = vmatpush2.bf16.msra.mxu0 0
  %330 = vmatprep.subr.bf16.mxu0 0
  %331 = vmatpush2.bf16.msra.mxu0 0
  %332 = vmatprep.mubr.bf16.mxu0 0
  %333 = vmatmul.mubr.bf16.gmra.mxu0 %v298
  %v334 = vpop.f32.mrf.mxu0
  %v335 = vadd.f32 0.0, %v334
  %v336 = vpop.f32.mrf.mxu0
  %v337 = vpop.f32.mrf.mxu0
  %v338 = vadd.f32 0.0, %v337
  %v339 = vpop.f32.mrf.mxu0
  %340 = vdwg.mxu0
  %v341 = vlaneseq
  %v342 = vshrl.u32 %v341, 7
  %v343 = vsub.s32 0, %v342
  %v344 = vrot.slane %v277, %v343
  %v345 = vadd.f32 %v335, %v344
  %v346 = vadd.f32 %v338, %v344
  %v347 = vpack.c.bf16 %v345, %v345
  %v348 = vpack.c.bf16 %v346, %v346
  %350 = vrot.lane.b32.xlu0 %v347, 96
  %v351 = vpop.permute.xlu0 %350
  %vm352 = vcmask 64512
  %v354 = vsel %vm352, %v347, 0
  %v357 = vsel %vm352, %v351, 0
  %359 = vmatprep.subr.bf16.mxu0 0
  %360 = vmatpush1.bf16.xpose.msra.mxu0 0
  %361 = vmatprep.subr.bf16.mxu0 0
  %362 = vmatpush1.bf16.xpose.msra.mxu0 0
  %363 = vmatprep.subr.bf16.mxu0 0
  %364 = vmatpush1.bf16.xpose.msra.mxu0 0
  %365 = vmatprep.subr.bf16.mxu0 0
  %366 = vmatpush1.bf16.xpose.msra.mxu0 0
  %367 = vmatprep.subr.bf16.mxu0 0
  %368 = vmatpush1.bf16.xpose.msra.mxu0 0
  %369 = vmatprep.subr.bf16.mxu0 0
  %370 = vmatpush1.bf16.xpose.msra.mxu0 0
  %371 = vmatprep.subr.bf16.mxu0 0
  %372 = vmatpush1.bf16.xpose.msra.mxu0 0
  %373 = vmatprep.subr.bf16.mxu0 0
  %374 = vmatpush1.bf16.xpose.msra.mxu0 %v357
  %375 = vmatprep.subr.bf16.mxu0 0
  %376 = vmatpush2.bf16.xpose.msra.mxu0 0
  %377 = vmatprep.subr.bf16.mxu0 0
  %378 = vmatpush2.bf16.xpose.msra.mxu0 0
  %379 = vmatprep.subr.bf16.mxu0 0
  %380 = vmatpush2.bf16.xpose.msra.mxu0 0
  %381 = vmatprep.subr.bf16.mxu0 0
  %382 = vmatpush2.bf16.xpose.msra.mxu0 0
  %383 = vmatprep.subr.bf16.mxu0 0
  %384 = vmatpush2.bf16.xpose.msra.mxu0 0
  %385 = vmatprep.subr.bf16.mxu0 0
  %386 = vmatpush2.bf16.xpose.msra.mxu0 0
  %387 = vmatprep.subr.bf16.mxu0 0
  %388 = vmatpush2.bf16.xpose.msra.mxu0 0
  %389 = vmatprep.subr.bf16.mxu0 0
  %390 = vmatpush2.bf16.xpose.msra.mxu0 0
  %391 = vmatprep.mubr.bf16.mxu0 0
  %392 = vmatmul.mubr.bf16.gmra.mxu0 %v354
  %v393 = vpop.f32.mrf.mxu0
  %v394 = vadd.f32 0.0, %v393
  %v395 = vpop.f32.mrf.mxu0
  %v396 = vpop.f32.mrf.mxu0
  %v397 = vpop.f32.mrf.mxu0
  %398 = vdwg.mxu0
  %400 = vrot.lane.b32.xlu0 %v348, 96
  %v401 = vpop.permute.xlu0 %400
  %v403 = vsel %vm352, %v348, 0
  %v406 = vsel %vm352, %v401, 0
  %408 = vmatprep.subr.bf16.mxu0 0
  %409 = vmatpush1.bf16.xpose.msra.mxu0 0
  %410 = vmatprep.subr.bf16.mxu0 0
  %411 = vmatpush1.bf16.xpose.msra.mxu0 0
  %412 = vmatprep.subr.bf16.mxu0 0
  %413 = vmatpush1.bf16.xpose.msra.mxu0 0
  %414 = vmatprep.subr.bf16.mxu0 0
  %415 = vmatpush1.bf16.xpose.msra.mxu0 0
  %416 = vmatprep.subr.bf16.mxu0 0
  %417 = vmatpush1.bf16.xpose.msra.mxu0 0
  %418 = vmatprep.subr.bf16.mxu0 0
  %419 = vmatpush1.bf16.xpose.msra.mxu0 0
  %420 = vmatprep.subr.bf16.mxu0 0
  %421 = vmatpush1.bf16.xpose.msra.mxu0 0
  %422 = vmatprep.subr.bf16.mxu0 0
  %423 = vmatpush1.bf16.xpose.msra.mxu0 %v406
  %424 = vmatprep.subr.bf16.mxu0 0
  %425 = vmatpush2.bf16.xpose.msra.mxu0 0
  %426 = vmatprep.subr.bf16.mxu0 0
  %427 = vmatpush2.bf16.xpose.msra.mxu0 0
  %428 = vmatprep.subr.bf16.mxu0 0
  %429 = vmatpush2.bf16.xpose.msra.mxu0 0
  %430 = vmatprep.subr.bf16.mxu0 0
  %431 = vmatpush2.bf16.xpose.msra.mxu0 0
  %432 = vmatprep.subr.bf16.mxu0 0
  %433 = vmatpush2.bf16.xpose.msra.mxu0 0
  %434 = vmatprep.subr.bf16.mxu0 0
  %435 = vmatpush2.bf16.xpose.msra.mxu0 0
  %436 = vmatprep.subr.bf16.mxu0 0
  %437 = vmatpush2.bf16.xpose.msra.mxu0 0
  %438 = vmatprep.subr.bf16.mxu0 0
  %439 = vmatpush2.bf16.xpose.msra.mxu0 0
  %440 = vmatprep.mubr.bf16.mxu0 0
  %441 = vmatmul.mubr.bf16.gmra.mxu0 %v403
  %v442 = vpop.f32.mrf.mxu0
  %v443 = vadd.f32 0.0, %v442
  %v444 = vpop.f32.mrf.mxu0
  %v445 = vpop.f32.mrf.mxu0
  %v446 = vpop.f32.mrf.mxu0
  %447 = vdwg.mxu0
  %v448 = vmul.f32 %v394, 0.35355338
  %v449 = vmul.f32 %v443, 0.35355338
  %v450 = vsel %vm352, %v448, -inf
  %451 = vmax.xlane.f32.xlu0 %v450
  %v452 = vpop.xlane.xlu0 %451
  %v453 = vsel %vm352, %v449, -inf
  %454 = vmax.xlane.f32.xlu0 %v453
  %v455 = vpop.xlane.xlu0 %454
  %v456 = vsub.f32 %v448, %v452
  %v457 = vsub.f32 %v449, %v455
  %v458 = vmul.f32 %v456, 1.442695
  %v459 = vpow.pop %v458
  %v460 = vmul.f32 %v457, 1.442695
  %v461 = vpow.pop %v460
  %v462 = vsel %vm352, %v459, 0.0
  %463 = vadd.xlane.f32.xlu0 %v462
  %v464 = vpop.xlane.xlu0 %463
  %v465 = vsel %vm352, %v461, 0.0
  %466 = vadd.xlane.f32.xlu0 %v465
  %v467 = vpop.xlane.xlu0 %466
  %v468 = vrcp.pop %v464
  %v469 = vrcp.pop %v467
  %v470 = vmul.f32 %v459, %v468
  %v471 = vmul.f32 %v461, %v469
  %v472 = vpack.c.bf16 %v470, %v470
  %v473 = vpack.c.bf16 %v471, %v471
  %474 = vrot.lane.b32.xlu0 %v347, 64
  %v475 = vpop.permute.xlu0 %474
  %v477 = vsel %vm352, %v472, 0
  %vm479 = vcmask 1043456
  %v481 = vsel %vm479, %v475, 0
  %483 = vmatprep.subr.bf16.mxu0 0
  %484 = vmatpush1.bf16.msra.mxu0 0
  %485 = vmatprep.subr.bf16.mxu0 0
  %486 = vmatpush1.bf16.msra.mxu0 0
  %487 = vmatprep.subr.bf16.mxu0 0
  %488 = vmatpush1.bf16.msra.mxu0 0
  %489 = vmatprep.subr.bf16.mxu0 0
  %490 = vmatpush1.bf16.msra.mxu0 0
  %491 = vmatprep.subr.bf16.mxu0 0
  %492 = vmatpush1.bf16.msra.mxu0 0
  %493 = vmatprep.subr.bf16.mxu0 0
  %494 = vmatpush1.bf16.msra.mxu0 0
  %495 = vmatprep.subr.bf16.mxu0 0
  %496 = vmatpush1.bf16.msra.mxu0 0
  %497 = vmatprep.subr.bf16.mxu0 0
  %498 = vmatpush1.bf16.msra.mxu0 %v481
  %499 = vmatprep.subr.bf16.mxu0 0
  %500 = vmatpush2.bf16.msra.mxu0 0
  %501 = vmatprep.subr.bf16.mxu0 0
  %502 = vmatpush2.bf16.msra.mxu0 0
  %503 = vmatprep.subr.bf16.mxu0 0
  %504 = vmatpush2.bf16.msra.mxu0 0
  %505 = vmatprep.subr.bf16.mxu0 0
  %506 = vmatpush2.bf16.msra.mxu0 0
  %507 = vmatprep.subr.bf16.mxu0 0
  %508 = vmatpush2.bf16.msra.mxu0 0
  %509 = vmatprep.subr.bf16.mxu0 0
  %510 = vmatpush2.bf16.msra.mxu0 0
  %511 = vmatprep.subr.bf16.mxu0 0
  %512 = vmatpush2.bf16.msra.mxu0 0
  %513 = vmatprep.subr.bf16.mxu0 0
  %514 = vmatpush2.bf16.msra.mxu0 0
  %515 = vmatprep.mubr.bf16.mxu0 0
  %516 = vmatmul.mubr.bf16.gmra.mxu0 %v477
  %v517 = vpop.f32.mrf.mxu0
  %v518 = vadd.f32 0.0, %v517
  %v519 = vpop.f32.mrf.mxu0
  %v520 = vpop.f32.mrf.mxu0
  %v521 = vpop.f32.mrf.mxu0
  %522 = vdwg.mxu0
  %523 = vrot.lane.b32.xlu0 %v348, 64
  %v524 = vpop.permute.xlu0 %523
  %v526 = vsel %vm352, %v473, 0
  %v529 = vsel %vm479, %v524, 0
  %531 = vmatprep.subr.bf16.mxu0 0
  %532 = vmatpush1.bf16.msra.mxu0 0
  %533 = vmatprep.subr.bf16.mxu0 0
  %534 = vmatpush1.bf16.msra.mxu0 0
  %535 = vmatprep.subr.bf16.mxu0 0
  %536 = vmatpush1.bf16.msra.mxu0 0
  %537 = vmatprep.subr.bf16.mxu0 0
  %538 = vmatpush1.bf16.msra.mxu0 0
  %539 = vmatprep.subr.bf16.mxu0 0
  %540 = vmatpush1.bf16.msra.mxu0 0
  %541 = vmatprep.subr.bf16.mxu0 0
  %542 = vmatpush1.bf16.msra.mxu0 0
  %543 = vmatprep.subr.bf16.mxu0 0
  %544 = vmatpush1.bf16.msra.mxu0 0
  %545 = vmatprep.subr.bf16.mxu0 0
  %546 = vmatpush1.bf16.msra.mxu0 %v529
  %547 = vmatprep.subr.bf16.mxu0 0
  %548 = vmatpush2.bf16.msra.mxu0 0
  %549 = vmatprep.subr.bf16.mxu0 0
  %550 = vmatpush2.bf16.msra.mxu0 0
  %551 = vmatprep.subr.bf16.mxu0 0
  %552 = vmatpush2.bf16.msra.mxu0 0
  %553 = vmatprep.subr.bf16.mxu0 0
  %554 = vmatpush2.bf16.msra.mxu0 0
  %555 = vmatprep.subr.bf16.mxu0 0
  %556 = vmatpush2.bf16.msra.mxu0 0
  %557 = vmatprep.subr.bf16.mxu0 0
  %558 = vmatpush2.bf16.msra.mxu0 0
  %559 = vmatprep.subr.bf16.mxu0 0
  %560 = vmatpush2.bf16.msra.mxu0 0
  %561 = vmatprep.subr.bf16.mxu0 0
  %562 = vmatpush2.bf16.msra.mxu0 0
  %563 = vmatprep.mubr.bf16.mxu0 0
  %564 = vmatmul.mubr.bf16.gmra.mxu0 %v526
  %v565 = vpop.f32.mrf.mxu0
  %v566 = vadd.f32 0.0, %v565
  %v567 = vpop.f32.mrf.mxu0
  %v568 = vpop.f32.mrf.mxu0
  %v569 = vpop.f32.mrf.mxu0
  %570 = vdwg.mxu0
  %571 = vst.msk [vmem:[#allocation2] sm:$0xff] %vm352, %v518
  %572 = vst.msk [vmem:[#allocation2 + $0x10] sm:$0xff] %vm352, %v566
  %573 = vrot.lane.b32.xlu0 %v347, 120
  %v574 = vpop.permute.xlu0 %573
  %575 = vrot.lane.b32.xlu0 %v347, 88
  %v576 = vpop.permute.xlu0 %575
  %v578 = vsel %vm352, %v574, 0
  %v581 = vsel %vm352, %v576, 0
  %583 = vmatprep.subr.bf16.mxu0 0
  %584 = vmatpush1.bf16.xpose.msra.mxu0 0
  %585 = vmatprep.subr.bf16.mxu0 0
  %586 = vmatpush1.bf16.xpose.msra.mxu0 0
  %587 = vmatprep.subr.bf16.mxu0 0
  %588 = vmatpush1.bf16.xpose.msra.mxu0 0
  %589 = vmatprep.subr.bf16.mxu0 0
  %590 = vmatpush1.bf16.xpose.msra.mxu0 0
  %591 = vmatprep.subr.bf16.mxu0 0
  %592 = vmatpush1.bf16.xpose.msra.mxu0 0
  %593 = vmatprep.subr.bf16.mxu0 0
  %594 = vmatpush1.bf16.xpose.msra.mxu0 0
  %595 = vmatprep.subr.bf16.mxu0 0
  %596 = vmatpush1.bf16.xpose.msra.mxu0 0
  %597 = vmatprep.subr.bf16.mxu0 0
  %598 = vmatpush1.bf16.xpose.msra.mxu0 %v581
  %599 = vmatprep.subr.bf16.mxu0 0
  %600 = vmatpush2.bf16.xpose.msra.mxu0 0
  %601 = vmatprep.subr.bf16.mxu0 0
  %602 = vmatpush2.bf16.xpose.msra.mxu0 0
  %603 = vmatprep.subr.bf16.mxu0 0
  %604 = vmatpush2.bf16.xpose.msra.mxu0 0
  %605 = vmatprep.subr.bf16.mxu0 0
  %606 = vmatpush2.bf16.xpose.msra.mxu0 0
  %607 = vmatprep.subr.bf16.mxu0 0
  %608 = vmatpush2.bf16.xpose.msra.mxu0 0
  %609 = vmatprep.subr.bf16.mxu0 0
  %610 = vmatpush2.bf16.xpose.msra.mxu0 0
  %611 = vmatprep.subr.bf16.mxu0 0
  %612 = vmatpush2.bf16.xpose.msra.mxu0 0
  %613 = vmatprep.subr.bf16.mxu0 0
  %614 = vmatpush2.bf16.xpose.msra.mxu0 0
  %615 = vmatprep.mubr.bf16.mxu0 0
  %616 = vmatmul.mubr.bf16.gmra.mxu0 %v578
  %v617 = vpop.f32.mrf.mxu0
  %v618 = vadd.f32 0.0, %v617
  %v619 = vpop.f32.mrf.mxu0
  %v620 = vpop.f32.mrf.mxu0
  %v621 = vpop.f32.mrf.mxu0
  %622 = vdwg.mxu0
  %623 = vrot.lane.b32.xlu0 %v348, 120
  %v624 = vpop.permute.xlu0 %623
  %625 = vrot.lane.b32.xlu0 %v348, 88
  %v626 = vpop.permute.xlu0 %625
  %v628 = vsel %vm352, %v624, 0
  %v631 = vsel %vm352, %v626, 0
  %633 = vmatprep.subr.bf16.mxu0 0
  %634 = vmatpush1.bf16.xpose.msra.mxu0 0
  %635 = vmatprep.subr.bf16.mxu0 0
  %636 = vmatpush1.bf16.xpose.msra.mxu0 0
  %637 = vmatprep.subr.bf16.mxu0 0
  %638 = vmatpush1.bf16.xpose.msra.mxu0 0
  %639 = vmatprep.subr.bf16.mxu0 0
  %640 = vmatpush1.bf16.xpose.msra.mxu0 0
  %641 = vmatprep.subr.bf16.mxu0 0
  %642 = vmatpush1.bf16.xpose.msra.mxu0 0
  %643 = vmatprep.subr.bf16.mxu0 0
  %644 = vmatpush1.bf16.xpose.msra.mxu0 0
  %645 = vmatprep.subr.bf16.mxu0 0
  %646 = vmatpush1.bf16.xpose.msra.mxu0 0
  %647 = vmatprep.subr.bf16.mxu0 0
  %648 = vmatpush1.bf16.xpose.msra.mxu0 %v631
  %649 = vmatprep.subr.bf16.mxu0 0
  %650 = vmatpush2.bf16.xpose.msra.mxu0 0
  %651 = vmatprep.subr.bf16.mxu0 0
  %652 = vmatpush2.bf16.xpose.msra.mxu0 0
  %653 = vmatprep.subr.bf16.mxu0 0
  %654 = vmatpush2.bf16.xpose.msra.mxu0 0
  %655 = vmatprep.subr.bf16.mxu0 0
  %656 = vmatpush2.bf16.xpose.msra.mxu0 0
  %657 = vmatprep.subr.bf16.mxu0 0
  %658 = vmatpush2.bf16.xpose.msra.mxu0 0
  %659 = vmatprep.subr.bf16.mxu0 0
  %660 = vmatpush2.bf16.xpose.msra.mxu0 0
  %661 = vmatprep.subr.bf16.mxu0 0
  %662 = vmatpush2.bf16.xpose.msra.mxu0 0
  %663 = vmatprep.subr.bf16.mxu0 0
  %664 = vmatpush2.bf16.xpose.msra.mxu0 0
  %665 = vmatprep.mubr.bf16.mxu0 0
  %666 = vmatmul.mubr.bf16.gmra.mxu0 %v628
  %v667 = vpop.f32.mrf.mxu0
  %v668 = vadd.f32 0.0, %v667
  %v669 = vpop.f32.mrf.mxu0
  %v670 = vpop.f32.mrf.mxu0
  %v671 = vpop.f32.mrf.mxu0
  %672 = vdwg.mxu0
  %v673 = vmul.f32 %v618, 0.35355338
  %v674 = vmul.f32 %v668, 0.35355338
  %v675 = vsel %vm352, %v673, -inf
  %676 = vmax.xlane.f32.xlu0 %v675
  %v677 = vpop.xlane.xlu0 %676
  %v678 = vsel %vm352, %v674, -inf
  %679 = vmax.xlane.f32.xlu0 %v678
  %v680 = vpop.xlane.xlu0 %679
  %v681 = vsub.f32 %v673, %v677
  %v682 = vsub.f32 %v674, %v680
  %v683 = vmul.f32 %v681, 1.442695
  %v684 = vpow.pop %v683
  %v685 = vmul.f32 %v682, 1.442695
  %v686 = vpow.pop %v685
  %v687 = vsel %vm352, %v684, 0.0
  %688 = vadd.xlane.f32.xlu0 %v687
  %v689 = vpop.xlane.xlu0 %688
  %v690 = vsel %vm352, %v686, 0.0
  %691 = vadd.xlane.f32.xlu0 %v690
  %v692 = vpop.xlane.xlu0 %691
  %v693 = vrcp.pop %v689
  %v694 = vrcp.pop %v692
  %v695 = vmul.f32 %v684, %v693
  %v696 = vmul.f32 %v686, %v694
  %v697 = vpack.c.bf16 %v695, %v695
  %v698 = vpack.c.bf16 %v696, %v696
  %699 = vrot.lane.b32.xlu0 %v347, 56
  %v700 = vpop.permute.xlu0 %699
  %v702 = vsel %vm352, %v697, 0
  %v705 = vsel %vm479, %v700, 0
  %707 = vmatprep.subr.bf16.mxu0 0
  %708 = vmatpush1.bf16.msra.mxu0 0
  %709 = vmatprep.subr.bf16.mxu0 0
  %710 = vmatpush1.bf16.msra.mxu0 0
  %711 = vmatprep.subr.bf16.mxu0 0
  %712 = vmatpush1.bf16.msra.mxu0 0
  %713 = vmatprep.subr.bf16.mxu0 0
  %714 = vmatpush1.bf16.msra.mxu0 0
  %715 = vmatprep.subr.bf16.mxu0 0
  %716 = vmatpush1.bf16.msra.mxu0 0
  %717 = vmatprep.subr.bf16.mxu0 0
  %718 = vmatpush1.bf16.msra.mxu0 0
  %719 = vmatprep.subr.bf16.mxu0 0
  %720 = vmatpush1.bf16.msra.mxu0 0
  %721 = vmatprep.subr.bf16.mxu0 0
  %722 = vmatpush1.bf16.msra.mxu0 %v705
  %723 = vmatprep.subr.bf16.mxu0 0
  %724 = vmatpush2.bf16.msra.mxu0 0
  %725 = vmatprep.subr.bf16.mxu0 0
  %726 = vmatpush2.bf16.msra.mxu0 0
  %727 = vmatprep.subr.bf16.mxu0 0
  %728 = vmatpush2.bf16.msra.mxu0 0
  %729 = vmatprep.subr.bf16.mxu0 0
  %730 = vmatpush2.bf16.msra.mxu0 0
  %731 = vmatprep.subr.bf16.mxu0 0
  %732 = vmatpush2.bf16.msra.mxu0 0
  %733 = vmatprep.subr.bf16.mxu0 0
  %734 = vmatpush2.bf16.msra.mxu0 0
  %735 = vmatprep.subr.bf16.mxu0 0
  %736 = vmatpush2.bf16.msra.mxu0 0
  %737 = vmatprep.subr.bf16.mxu0 0
  %738 = vmatpush2.bf16.msra.mxu0 0
  %739 = vmatprep.mubr.bf16.mxu0 0
  %740 = vmatmul.mubr.bf16.gmra.mxu0 %v702
  %v741 = vpop.f32.mrf.mxu0
  %v742 = vadd.f32 0.0, %v741
  %v743 = vpop.f32.mrf.mxu0
  %v744 = vpop.f32.mrf.mxu0
  %v745 = vpop.f32.mrf.mxu0
  %746 = vdwg.mxu0
  %747 = vrot.lane.b32.xlu0 %v348, 56
  %v748 = vpop.permute.xlu0 %747
  %v750 = vsel %vm352, %v698, 0
  %v753 = vsel %vm479, %v748, 0
  %755 = vmatprep.subr.bf16.mxu0 0
  %756 = vmatpush1.bf16.msra.mxu0 0
  %757 = vmatprep.subr.bf16.mxu0 0
  %758 = vmatpush1.bf16.msra.mxu0 0
  %759 = vmatprep.subr.bf16.mxu0 0
  %760 = vmatpush1.bf16.msra.mxu0 0
  %761 = vmatprep.subr.bf16.mxu0 0
  %762 = vmatpush1.bf16.msra.mxu0 0
  %763 = vmatprep.subr.bf16.mxu0 0
  %764 = vmatpush1.bf16.msra.mxu0 0
  %765 = vmatprep.subr.bf16.mxu0 0
  %766 = vmatpush1.bf16.msra.mxu0 0
  %767 = vmatprep.subr.bf16.mxu0 0
  %768 = vmatpush1.bf16.msra.mxu0 0
  %769 = vmatprep.subr.bf16.mxu0 0
  %770 = vmatpush1.bf16.msra.mxu0 %v753
  %771 = vmatprep.subr.bf16.mxu0 0
  %772 = vmatpush2.bf16.msra.mxu0 0
  %773 = vmatprep.subr.bf16.mxu0 0
  %774 = vmatpush2.bf16.msra.mxu0 0
  %775 = vmatprep.subr.bf16.mxu0 0
  %776 = vmatpush2.bf16.msra.mxu0 0
  %777 = vmatprep.subr.bf16.mxu0 0
  %778 = vmatpush2.bf16.msra.mxu0 0
  %779 = vmatprep.subr.bf16.mxu0 0
  %780 = vmatpush2.bf16.msra.mxu0 0
  %781 = vmatprep.subr.bf16.mxu0 0
  %782 = vmatpush2.bf16.msra.mxu0 0
  %783 = vmatprep.subr.bf16.mxu0 0
  %784 = vmatpush2.bf16.msra.mxu0 0
  %785 = vmatprep.subr.bf16.mxu0 0
  %786 = vmatpush2.bf16.msra.mxu0 0
  %787 = vmatprep.mubr.bf16.mxu0 0
  %788 = vmatmul.mubr.bf16.gmra.mxu0 %v750
  %v789 = vpop.f32.mrf.mxu0
  %v790 = vadd.f32 0.0, %v789
  %v791 = vpop.f32.mrf.mxu0
  %v792 = vpop.f32.mrf.mxu0
  %v793 = vpop.f32.mrf.mxu0
  %794 = vdwg.mxu0
  %797 = vrot.lane.b32.xlu0 %v742, 8
  %v798 = vpop.permute.xlu0 %797
  %799 = vrot.lane.b32.xlu0 %v790, 8
  %v800 = vpop.permute.xlu0 %799
  %vm803 = vcmask 130112
  %804 = vst.msk [vmem:[#allocation2] sm:$0xff] %vm803, %v798
  %805 = vst.msk [vmem:[#allocation2 + $0x10] sm:$0xff] %vm803, %v800
  %806 = vrot.lane.b32.xlu0 %v347, 112
  %v807 = vpop.permute.xlu0 %806
  %808 = vrot.lane.b32.xlu0 %v347, 80
  %v809 = vpop.permute.xlu0 %808
  %v811 = vsel %vm352, %v807, 0
  %v814 = vsel %vm352, %v809, 0
  %816 = vmatprep.subr.bf16.mxu0 0
  %817 = vmatpush1.bf16.xpose.msra.mxu0 0
  %818 = vmatprep.subr.bf16.mxu0 0
  %819 = vmatpush1.bf16.xpose.msra.mxu0 0
  %820 = vmatprep.subr.bf16.mxu0 0
  %821 = vmatpush1.bf16.xpose.msra.mxu0 0
  %822 = vmatprep.subr.bf16.mxu0 0
  %823 = vmatpush1.bf16.xpose.msra.mxu0 0
  %824 = vmatprep.subr.bf16.mxu0 0
  %825 = vmatpush1.bf16.xpose.msra.mxu0 0
  %826 = vmatprep.subr.bf16.mxu0 0
  %827 = vmatpush1.bf16.xpose.msra.mxu0 0
  %828 = vmatprep.subr.bf16.mxu0 0
  %829 = vmatpush1.bf16.xpose.msra.mxu0 0
  %830 = vmatprep.subr.bf16.mxu0 0
  %831 = vmatpush1.bf16.xpose.msra.mxu0 %v814
  %832 = vmatprep.subr.bf16.mxu0 0
  %833 = vmatpush2.bf16.xpose.msra.mxu0 0
  %834 = vmatprep.subr.bf16.mxu0 0
  %835 = vmatpush2.bf16.xpose.msra.mxu0 0
  %836 = vmatprep.subr.bf16.mxu0 0
  %837 = vmatpush2.bf16.xpose.msra.mxu0 0
  %838 = vmatprep.subr.bf16.mxu0 0
  %839 = vmatpush2.bf16.xpose.msra.mxu0 0
  %840 = vmatprep.subr.bf16.mxu0 0
  %841 = vmatpush2.bf16.xpose.msra.mxu0 0
  %842 = vmatprep.subr.bf16.mxu0 0
  %843 = vmatpush2.bf16.xpose.msra.mxu0 0
  %844 = vmatprep.subr.bf16.mxu0 0
  %845 = vmatpush2.bf16.xpose.msra.mxu0 0
  %846 = vmatprep.subr.bf16.mxu0 0
  %847 = vmatpush2.bf16.xpose.msra.mxu0 0
  %848 = vmatprep.mubr.bf16.mxu0 0
  %849 = vmatmul.mubr.bf16.gmra.mxu0 %v811
  %v850 = vpop.f32.mrf.mxu0
  %v851 = vadd.f32 0.0, %v850
  %v852 = vpop.f32.mrf.mxu0
  %v853 = vpop.f32.mrf.mxu0
  %v854 = vpop.f32.mrf.mxu0
  %855 = vdwg.mxu0
  %856 = vrot.lane.b32.xlu0 %v348, 112
  %v857 = vpop.permute.xlu0 %856
  %858 = vrot.lane.b32.xlu0 %v348, 80
  %v859 = vpop.permute.xlu0 %858
  %v861 = vsel %vm352, %v857, 0
  %v864 = vsel %vm352, %v859, 0
  %866 = vmatprep.subr.bf16.mxu0 0
  %867 = vmatpush1.bf16.xpose.msra.mxu0 0
  %868 = vmatprep.subr.bf16.mxu0 0
  %869 = vmatpush1.bf16.xpose.msra.mxu0 0
  %870 = vmatprep.subr.bf16.mxu0 0
  %871 = vmatpush1.bf16.xpose.msra.mxu0 0
  %872 = vmatprep.subr.bf16.mxu0 0
  %873 = vmatpush1.bf16.xpose.msra.mxu0 0
  %874 = vmatprep.subr.bf16.mxu0 0
  %875 = vmatpush1.bf16.xpose.msra.mxu0 0
  %876 = vmatprep.subr.bf16.mxu0 0
  %877 = vmatpush1.bf16.xpose.msra.mxu0 0
  %878 = vmatprep.subr.bf16.mxu0 0
  %879 = vmatpush1.bf16.xpose.msra.mxu0 0
  %880 = vmatprep.subr.bf16.mxu0 0
  %881 = vmatpush1.bf16.xpose.msra.mxu0 %v864
  %882 = vmatprep.subr.bf16.mxu0 0
  %883 = vmatpush2.bf16.xpose.msra.mxu0 0
  %884 = vmatprep.subr.bf16.mxu0 0
  %885 = vmatpush2.bf16.xpose.msra.mxu0 0
  %886 = vmatprep.subr.bf16.mxu0 0
  %887 = vmatpush2.bf16.xpose.msra.mxu0 0
  %888 = vmatprep.subr.bf16.mxu0 0
  %889 = vmatpush2.bf16.xpose.msra.mxu0 0
  %890 = vmatprep.subr.bf16.mxu0 0
  %891 = vmatpush2.bf16.xpose.msra.mxu0 0
  %892 = vmatprep.subr.bf16.mxu0 0
  %893 = vmatpush2.bf16.xpose.msra.mxu0 0
  %894 = vmatprep.subr.bf16.mxu0 0
  %895 = vmatpush2.bf16.xpose.msra.mxu0 0
  %896 = vmatprep.subr.bf16.mxu0 0
  %897 = vmatpush2.bf16.xpose.msra.mxu0 0
  %898 = vmatprep.mubr.bf16.mxu0 0
  %899 = vmatmul.mubr.bf16.gmra.mxu0 %v861
  %v900 = vpop.f32.mrf.mxu0
  %v901 = vadd.f32 0.0, %v900
  %v902 = vpop.f32.mrf.mxu0
  %v903 = vpop.f32.mrf.mxu0
  %v904 = vpop.f32.mrf.mxu0
  %905 = vdwg.mxu0
  %v906 = vmul.f32 %v851, 0.35355338
  %v907 = vmul.f32 %v901, 0.35355338
  %v908 = vsel %vm352, %v906, -inf
  %909 = vmax.xlane.f32.xlu0 %v908
  %v910 = vpop.xlane.xlu0 %909
  %v911 = vsel %vm352, %v907, -inf
  %912 = vmax.xlane.f32.xlu0 %v911
  %v913 = vpop.xlane.xlu0 %912
  %v914 = vsub.f32 %v906, %v910
  %v915 = vsub.f32 %v907, %v913
  %v916 = vmul.f32 %v914, 1.442695
  %v917 = vpow.pop %v916
  %v918 = vmul.f32 %v915, 1.442695
  %v919 = vpow.pop %v918
  %v920 = vsel %vm352, %v917, 0.0
  %921 = vadd.xlane.f32.xlu0 %v920
  %v922 = vpop.xlane.xlu0 %921
  %v923 = vsel %vm352, %v919, 0.0
  %924 = vadd.xlane.f32.xlu0 %v923
  %v925 = vpop.xlane.xlu0 %924
  %v926 = vrcp.pop %v922
  %v927 = vrcp.pop %v925
  %v928 = vmul.f32 %v917, %v926
  %v929 = vmul.f32 %v919, %v927
  %v930 = vpack.c.bf16 %v928, %v928
  %v931 = vpack.c.bf16 %v929, %v929
  %932 = vrot.lane.b32.xlu0 %v347, 48
  %v933 = vpop.permute.xlu0 %932
  %v935 = vsel %vm352, %v930, 0
  %v938 = vsel %vm479, %v933, 0
  %940 = vmatprep.subr.bf16.mxu0 0
  %941 = vmatpush1.bf16.msra.mxu0 0
  %942 = vmatprep.subr.bf16.mxu0 0
  %943 = vmatpush1.bf16.msra.mxu0 0
  %944 = vmatprep.subr.bf16.mxu0 0
  %945 = vmatpush1.bf16.msra.mxu0 0
  %946 = vmatprep.subr.bf16.mxu0 0
  %947 = vmatpush1.bf16.msra.mxu0 0
  %948 = vmatprep.subr.bf16.mxu0 0
  %949 = vmatpush1.bf16.msra.mxu0 0
  %950 = vmatprep.subr.bf16.mxu0 0
  %951 = vmatpush1.bf16.msra.mxu0 0
  %952 = vmatprep.subr.bf16.mxu0 0
  %953 = vmatpush1.bf16.msra.mxu0 0
  %954 = vmatprep.subr.bf16.mxu0 0
  %955 = vmatpush1.bf16.msra.mxu0 %v938
  %956 = vmatprep.subr.bf16.mxu0 0
  %957 = vmatpush2.bf16.msra.mxu0 0
  %958 = vmatprep.subr.bf16.mxu0 0
  %959 = vmatpush2.bf16.msra.mxu0 0
  %960 = vmatprep.subr.bf16.mxu0 0
  %961 = vmatpush2.bf16.msra.mxu0 0
  %962 = vmatprep.subr.bf16.mxu0 0
  %963 = vmatpush2.bf16.msra.mxu0 0
  %964 = vmatprep.subr.bf16.mxu0 0
  %965 = vmatpush2.bf16.msra.mxu0 0
  %966 = vmatprep.subr.bf16.mxu0 0
  %967 = vmatpush2.bf16.msra.mxu0 0
  %968 = vmatprep.subr.bf16.mxu0 0
  %969 = vmatpush2.bf16.msra.mxu0 0
  %970 = vmatprep.subr.bf16.mxu0 0
  %971 = vmatpush2.bf16.msra.mxu0 0
  %972 = vmatprep.mubr.bf16.mxu0 0
  %973 = vmatmul.mubr.bf16.gmra.mxu0 %v935
  %v974 = vpop.f32.mrf.mxu0
  %v975 = vadd.f32 0.0, %v974
  %v976 = vpop.f32.mrf.mxu0
  %v977 = vpop.f32.mrf.mxu0
  %v978 = vpop.f32.mrf.mxu0
  %979 = vdwg.mxu0
  %980 = vrot.lane.b32.xlu0 %v348, 48
  %v981 = vpop.permute.xlu0 %980
  %v983 = vsel %vm352, %v931, 0
  %v986 = vsel %vm479, %v981, 0
  %988 = vmatprep.subr.bf16.mxu0 0
  %989 = vmatpush1.bf16.msra.mxu0 0
  %990 = vmatprep.subr.bf16.mxu0 0
  %991 = vmatpush1.bf16.msra.mxu0 0
  %992 = vmatprep.subr.bf16.mxu0 0
  %993 = vmatpush1.bf16.msra.mxu0 0
  %994 = vmatprep.subr.bf16.mxu0 0
  %995 = vmatpush1.bf16.msra.mxu0 0
  %996 = vmatprep.subr.bf16.mxu0 0
  %997 = vmatpush1.bf16.msra.mxu0 0
  %998 = vmatprep.subr.bf16.mxu0 0
  %999 = vmatpush1.bf16.msra.mxu0 0
  %1000 = vmatprep.subr.bf16.mxu0 0
  %1001 = vmatpush1.bf16.msra.mxu0 0
  %1002 = vmatprep.subr.bf16.mxu0 0
  %1003 = vmatpush1.bf16.msra.mxu0 %v986
  %1004 = vmatprep.subr.bf16.mxu0 0
  %1005 = vmatpush2.bf16.msra.mxu0 0
  %1006 = vmatprep.subr.bf16.mxu0 0
  %1007 = vmatpush2.bf16.msra.mxu0 0
  %1008 = vmatprep.subr.bf16.mxu0 0
  %1009 = vmatpush2.bf16.msra.mxu0 0
  %1010 = vmatprep.subr.bf16.mxu0 0
  %1011 = vmatpush2.bf16.msra.mxu0 0
  %1012 = vmatprep.subr.bf16.mxu0 0
  %1013 = vmatpush2.bf16.msra.mxu0 0
  %1014 = vmatprep.subr.bf16.mxu0 0
  %1015 = vmatpush2.bf16.msra.mxu0 0
  %1016 = vmatprep.subr.bf16.mxu0 0
  %1017 = vmatpush2.bf16.msra.mxu0 0
  %1018 = vmatprep.subr.bf16.mxu0 0
  %1019 = vmatpush2.bf16.msra.mxu0 0
  %1020 = vmatprep.mubr.bf16.mxu0 0
  %1021 = vmatmul.mubr.bf16.gmra.mxu0 %v983
  %v1022 = vpop.f32.mrf.mxu0
  %v1023 = vadd.f32 0.0, %v1022
  %v1024 = vpop.f32.mrf.mxu0
  %v1025 = vpop.f32.mrf.mxu0
  %v1026 = vpop.f32.mrf.mxu0
  %1027 = vdwg.mxu0
  %1030 = vrot.lane.b32.xlu0 %v975, 16
  %v1031 = vpop.permute.xlu0 %1030
  %1032 = vrot.lane.b32.xlu0 %v1023, 16
  %v1033 = vpop.permute.xlu0 %1032
  %vm1036 = vcmask 195712
  %1037 = vst.msk [vmem:[#allocation2] sm:$0xff] %vm1036, %v1031
  %1038 = vst.msk [vmem:[#allocation2 + $0x10] sm:$0xff] %vm1036, %v1033
  %1039 = vrot.lane.b32.xlu0 %v347, 104
  %v1040 = vpop.permute.xlu0 %1039
  %1041 = vrot.lane.b32.xlu0 %v347, 72
  %v1042 = vpop.permute.xlu0 %1041
  %v1044 = vsel %vm352, %v1040, 0
  %v1047 = vsel %vm352, %v1042, 0
  %1049 = vmatprep.subr.bf16.mxu0 0
  %1050 = vmatpush1.bf16.xpose.msra.mxu0 0
  %1051 = vmatprep.subr.bf16.mxu0 0
  %1052 = vmatpush1.bf16.xpose.msra.mxu0 0
  %1053 = vmatprep.subr.bf16.mxu0 0
  %1054 = vmatpush1.bf16.xpose.msra.mxu0 0
  %1055 = vmatprep.subr.bf16.mxu0 0
  %1056 = vmatpush1.bf16.xpose.msra.mxu0 0
  %1057 = vmatprep.subr.bf16.mxu0 0
  %1058 = vmatpush1.bf16.xpose.msra.mxu0 0
  %1059 = vmatprep.subr.bf16.mxu0 0
  %1060 = vmatpush1.bf16.xpose.msra.mxu0 0
  %1061 = vmatprep.subr.bf16.mxu0 0
  %1062 = vmatpush1.bf16.xpose.msra.mxu0 0
  %1063 = vmatprep.subr.bf16.mxu0 0
  %1064 = vmatpush1.bf16.xpose.msra.mxu0 %v1047
  %1065 = vmatprep.subr.bf16.mxu0 0
  %1066 = vmatpush2.bf16.xpose.msra.mxu0 0
  %1067 = vmatprep.subr.bf16.mxu0 0
  %1068 = vmatpush2.bf16.xpose.msra.mxu0 0
  %1069 = vmatprep.subr.bf16.mxu0 0
  %1070 = vmatpush2.bf16.xpose.msra.mxu0 0
  %1071 = vmatprep.subr.bf16.mxu0 0
  %1072 = vmatpush2.bf16.xpose.msra.mxu0 0
  %1073 = vmatprep.subr.bf16.mxu0 0
  %1074 = vmatpush2.bf16.xpose.msra.mxu0 0
  %1075 = vmatprep.subr.bf16.mxu0 0
  %1076 = vmatpush2.bf16.xpose.msra.mxu0 0
  %1077 = vmatprep.subr.bf16.mxu0 0
  %1078 = vmatpush2.bf16.xpose.msra.mxu0 0
  %1079 = vmatprep.subr.bf16.mxu0 0
  %1080 = vmatpush2.bf16.xpose.msra.mxu0 0
  %1081 = vmatprep.mubr.bf16.mxu0 0
  %1082 = vmatmul.mubr.bf16.gmra.mxu0 %v1044
  %v1083 = vpop.f32.mrf.mxu0
  %v1084 = vadd.f32 0.0, %v1083
  %v1085 = vpop.f32.mrf.mxu0
  %v1086 = vpop.f32.mrf.mxu0
  %v1087 = vpop.f32.mrf.mxu0
  %1088 = vdwg.mxu0
  %1089 = vrot.lane.b32.xlu0 %v348, 104
  %v1090 = vpop.permute.xlu0 %1089
  %1091 = vrot.lane.b32.xlu0 %v348, 72
  %v1092 = vpop.permute.xlu0 %1091
  %v1094 = vsel %vm352, %v1090, 0
  %v1097 = vsel %vm352, %v1092, 0
  %1099 = vmatprep.subr.bf16.mxu0 0
  %1100 = vmatpush1.bf16.xpose.msra.mxu0 0
  %1101 = vmatprep.subr.bf16.mxu0 0
  %1102 = vmatpush1.bf16.xpose.msra.mxu0 0
  %1103 = vmatprep.subr.bf16.mxu0 0
  %1104 = vmatpush1.bf16.xpose.msra.mxu0 0
  %1105 = vmatprep.subr.bf16.mxu0 0
  %1106 = vmatpush1.bf16.xpose.msra.mxu0 0
  %1107 = vmatprep.subr.bf16.mxu0 0
  %1108 = vmatpush1.bf16.xpose.msra.mxu0 0
  %1109 = vmatprep.subr.bf16.mxu0 0
  %1110 = vmatpush1.bf16.xpose.msra.mxu0 0
  %1111 = vmatprep.subr.bf16.mxu0 0
  %1112 = vmatpush1.bf16.xpose.msra.mxu0 0
  %1113 = vmatprep.subr.bf16.mxu0 0
  %1114 = vmatpush1.bf16.xpose.msra.mxu0 %v1097
  %1115 = vmatprep.subr.bf16.mxu0 0
  %1116 = vmatpush2.bf16.xpose.msra.mxu0 0
  %1117 = vmatprep.subr.bf16.mxu0 0
  %1118 = vmatpush2.bf16.xpose.msra.mxu0 0
  %1119 = vmatprep.subr.bf16.mxu0 0
  %1120 = vmatpush2.bf16.xpose.msra.mxu0 0
  %1121 = vmatprep.subr.bf16.mxu0 0
  %1122 = vmatpush2.bf16.xpose.msra.mxu0 0
  %1123 = vmatprep.subr.bf16.mxu0 0
  %1124 = vmatpush2.bf16.xpose.msra.mxu0 0
  %1125 = vmatprep.subr.bf16.mxu0 0
  %1126 = vmatpush2.bf16.xpose.msra.mxu0 0
  %1127 = vmatprep.subr.bf16.mxu0 0
  %1128 = vmatpush2.bf16.xpose.msra.mxu0 0
  %1129 = vmatprep.subr.bf16.mxu0 0
  %1130 = vmatpush2.bf16.xpose.msra.mxu0 0
  %1131 = vmatprep.mubr.bf16.mxu0 0
  %1132 = vmatmul.mubr.bf16.gmra.mxu0 %v1094
  %v1133 = vpop.f32.mrf.mxu0
  %v1134 = vadd.f32 0.0, %v1133
  %v1135 = vpop.f32.mrf.mxu0
  %v1136 = vpop.f32.mrf.mxu0
  %v1137 = vpop.f32.mrf.mxu0
  %1138 = vdwg.mxu0
  %v1139 = vmul.f32 %v1084, 0.35355338
  %v1140 = vmul.f32 %v1134, 0.35355338
  %v1141 = vsel %vm352, %v1139, -inf
  %1142 = vmax.xlane.f32.xlu0 %v1141
  %v1143 = vpop.xlane.xlu0 %1142
  %v1144 = vsel %vm352, %v1140, -inf
  %1145 = vmax.xlane.f32.xlu0 %v1144
  %v1146 = vpop.xlane.xlu0 %1145
  %v1147 = vsub.f32 %v1139, %v1143
  %v1148 = vsub.f32 %v1140, %v1146
  %v1149 = vmul.f32 %v1147, 1.442695
  %v1150 = vpow.pop %v1149
  %v1151 = vmul.f32 %v1148, 1.442695
  %v1152 = vpow.pop %v1151
  %v1153 = vsel %vm352, %v1150, 0.0
  %1154 = vadd.xlane.f32.xlu0 %v1153
  %v1155 = vpop.xlane.xlu0 %1154
  %v1156 = vsel %vm352, %v1152, 0.0
  %1157 = vadd.xlane.f32.xlu0 %v1156
  %v1158 = vpop.xlane.xlu0 %1157
  %v1159 = vrcp.pop %v1155
  %v1160 = vrcp.pop %v1158
  %v1161 = vmul.f32 %v1150, %v1159
  %v1162 = vmul.f32 %v1152, %v1160
  %v1163 = vpack.c.bf16 %v1161, %v1161
  %v1164 = vpack.c.bf16 %v1162, %v1162
  %1165 = vrot.lane.b32.xlu0 %v347, 40
  %v1166 = vpop.permute.xlu0 %1165
  %v1168 = vsel %vm352, %v1163, 0
  %v1171 = vsel %vm479, %v1166, 0
  %1173 = vmatprep.subr.bf16.mxu0 0
  %1174 = vmatpush1.bf16.msra.mxu0 0
  %1175 = vmatprep.subr.bf16.mxu0 0
  %1176 = vmatpush1.bf16.msra.mxu0 0
  %1177 = vmatprep.subr.bf16.mxu0 0
  %1178 = vmatpush1.bf16.msra.mxu0 0
  %1179 = vmatprep.subr.bf16.mxu0 0
  %1180 = vmatpush1.bf16.msra.mxu0 0
  %1181 = vmatprep.subr.bf16.mxu0 0
  %1182 = vmatpush1.bf16.msra.mxu0 0
  %1183 = vmatprep.subr.bf16.mxu0 0
  %1184 = vmatpush1.bf16.msra.mxu0 0
  %1185 = vmatprep.subr.bf16.mxu0 0
  %1186 = vmatpush1.bf16.msra.mxu0 0
  %1187 = vmatprep.subr.bf16.mxu0 0
  %1188 = vmatpush1.bf16.msra.mxu0 %v1171
  %1189 = vmatprep.subr.bf16.mxu0 0
  %1190 = vmatpush2.bf16.msra.mxu0 0
  %1191 = vmatprep.subr.bf16.mxu0 0
  %1192 = vmatpush2.bf16.msra.mxu0 0
  %1193 = vmatprep.subr.bf16.mxu0 0
  %1194 = vmatpush2.bf16.msra.mxu0 0
  %1195 = vmatprep.subr.bf16.mxu0 0
  %1196 = vmatpush2.bf16.msra.mxu0 0
  %1197 = vmatprep.subr.bf16.mxu0 0
  %1198 = vmatpush2.bf16.msra.mxu0 0
  %1199 = vmatprep.subr.bf16.mxu0 0
  %1200 = vmatpush2.bf16.msra.mxu0 0
  %1201 = vmatprep.subr.bf16.mxu0 0
  %1202 = vmatpush2.bf16.msra.mxu0 0
  %1203 = vmatprep.subr.bf16.mxu0 0
  %1204 = vmatpush2.bf16.msra.mxu0 0
  %1205 = vmatprep.mubr.bf16.mxu0 0
  %1206 = vmatmul.mubr.bf16.gmra.mxu0 %v1168
  %v1207 = vpop.f32.mrf.mxu0
  %v1208 = vadd.f32 0.0, %v1207
  %v1209 = vpop.f32.mrf.mxu0
  %v1210 = vpop.f32.mrf.mxu0
  %v1211 = vpop.f32.mrf.mxu0
  %1212 = vdwg.mxu0
  %1213 = vrot.lane.b32.xlu0 %v348, 40
  %v1214 = vpop.permute.xlu0 %1213
  %v1216 = vsel %vm352, %v1164, 0
  %v1219 = vsel %vm479, %v1214, 0
  %1221 = vmatprep.subr.bf16.mxu0 0
  %1222 = vmatpush1.bf16.msra.mxu0 0
  %1223 = vmatprep.subr.bf16.mxu0 0
  %1224 = vmatpush1.bf16.msra.mxu0 0
  %1225 = vmatprep.subr.bf16.mxu0 0
  %1226 = vmatpush1.bf16.msra.mxu0 0
  %1227 = vmatprep.subr.bf16.mxu0 0
  %1228 = vmatpush1.bf16.msra.mxu0 0
  %1229 = vmatprep.subr.bf16.mxu0 0
  %1230 = vmatpush1.bf16.msra.mxu0 0
  %1231 = vmatprep.subr.bf16.mxu0 0
  %1232 = vmatpush1.bf16.msra.mxu0 0
  %1233 = vmatprep.subr.bf16.mxu0 0
  %1234 = vmatpush1.bf16.msra.mxu0 0
  %1235 = vmatprep.subr.bf16.mxu0 0
  %1236 = vmatpush1.bf16.msra.mxu0 %v1219
  %1237 = vmatprep.subr.bf16.mxu0 0
  %1238 = vmatpush2.bf16.msra.mxu0 0
  %1239 = vmatprep.subr.bf16.mxu0 0
  %1240 = vmatpush2.bf16.msra.mxu0 0
  %1241 = vmatprep.subr.bf16.mxu0 0
  %1242 = vmatpush2.bf16.msra.mxu0 0
  %1243 = vmatprep.subr.bf16.mxu0 0
  %1244 = vmatpush2.bf16.msra.mxu0 0
  %1245 = vmatprep.subr.bf16.mxu0 0
  %1246 = vmatpush2.bf16.msra.mxu0 0
  %1247 = vmatprep.subr.bf16.mxu0 0
  %1248 = vmatpush2.bf16.msra.mxu0 0
  %1249 = vmatprep.subr.bf16.mxu0 0
  %1250 = vmatpush2.bf16.msra.mxu0 0
  %1251 = vmatprep.subr.bf16.mxu0 0
  %1252 = vmatpush2.bf16.msra.mxu0 0
  %1253 = vmatprep.mubr.bf16.mxu0 0
  %1254 = vmatmul.mubr.bf16.gmra.mxu0 %v1216
  %v1255 = vpop.f32.mrf.mxu0
  %v1256 = vadd.f32 0.0, %v1255
  %v1257 = vpop.f32.mrf.mxu0
  %v1258 = vpop.f32.mrf.mxu0
  %v1259 = vpop.f32.mrf.mxu0
  %1260 = vdwg.mxu0
  %1263 = vrot.lane.b32.xlu0 %v1208, 24
  %v1264 = vpop.permute.xlu0 %1263
  %1265 = vrot.lane.b32.xlu0 %v1256, 24
  %v1266 = vpop.permute.xlu0 %1265
  %vm1269 = vcmask 261312
  %1270 = vst.msk [vmem:[#allocation2] sm:$0xff] %vm1269, %v1264
  %1271 = vst.msk [vmem:[#allocation2 + $0x10] sm:$0xff] %vm1269, %v1266
  %v1272 = vld [vmem:[#allocation2] sm:$0xff]
  %v1273 = vld [vmem:[#allocation2 + $0x10] sm:$0xff]
  %v1274 = vpack.c.bf16 %v1273, %v1272
  %v1279 = vunpack.c.l.b16 %v278
  %v1280 = vunpack.c.l.b16 %v279
  %v1281 = vunpack.c.l.b16 %v280
  %v1282 = vunpack.c.l.b16 %v281
  %v1283 = vpack.c.b16 %v1280, %v1279
  %v1284 = vpack.c.b16 %v1282, %v1281
  %v1288 = vsel %vm296, %v1274, 0
  %1290 = vmatprep.subr.bf16.mxu0 0
  %1291 = vmatpush1.bf16.msra.mxu0 0
  %1292 = vmatprep.subr.bf16.mxu0 0
  %1293 = vmatpush1.bf16.msra.mxu0 0
  %1294 = vmatprep.subr.bf16.mxu0 0
  %1295 = vmatpush1.bf16.msra.mxu0 0
  %1296 = vmatprep.subr.bf16.mxu0 0
  %1297 = vmatpush1.bf16.msra.mxu0 0
  %1298 = vmatprep.subr.bf16.mxu0 0
  %1299 = vmatpush1.bf16.msra.mxu0 0
  %1300 = vmatprep.subr.bf16.mxu0 0
  %1301 = vmatpush1.bf16.msra.mxu0 0
  %1302 = vmatprep.subr.bf16.mxu0 0
  %1303 = vmatpush1.bf16.msra.mxu0 %v1284
  %1304 = vmatprep.subr.bf16.mxu0 0
  %1305 = vmatpush1.bf16.msra.mxu0 %v1283
  %1306 = vmatprep.subr.bf16.mxu0 0
  %1307 = vmatpush2.bf16.msra.mxu0 0
  %1308 = vmatprep.subr.bf16.mxu0 0
  %1309 = vmatpush2.bf16.msra.mxu0 0
  %1310 = vmatprep.subr.bf16.mxu0 0
  %1311 = vmatpush2.bf16.msra.mxu0 0
  %1312 = vmatprep.subr.bf16.mxu0 0
  %1313 = vmatpush2.bf16.msra.mxu0 0
  %1314 = vmatprep.subr.bf16.mxu0 0
  %1315 = vmatpush2.bf16.msra.mxu0 0
  %1316 = vmatprep.subr.bf16.mxu0 0
  %1317 = vmatpush2.bf16.msra.mxu0 0
  %1318 = vmatprep.subr.bf16.mxu0 0
  %1319 = vmatpush2.bf16.msra.mxu0 0
  %1320 = vmatprep.subr.bf16.mxu0 0
  %1321 = vmatpush2.bf16.msra.mxu0 0
  %1322 = vmatprep.mubr.bf16.mxu0 0
  %1323 = vmatmul.mubr.bf16.gmra.mxu0 %v1288
  %v1324 = vpop.f32.mrf.mxu0
  %v1325 = vadd.f32 0.0, %v1324
  %v1326 = vpop.f32.mrf.mxu0
  %v1327 = vpop.f32.mrf.mxu0
  %v1328 = vadd.f32 0.0, %v1327
  %v1329 = vpop.f32.mrf.mxu0
  %1330 = vdwg.mxu0
  %v1331 = vlaneseq
  %v1332 = vshrl.u32 %v1331, 7
  %v1333 = vsub.s32 0, %v1332
  %v1334 = vrot.slane %v282, %v1333
  %v1335 = vadd.f32 %v1325, %v1334
  %v1336 = vadd.f32 %v1328, %v1334
  %v1337 = vadd.f32 %v271, %v1335
  %v1338 = vadd.f32 %v272, %v1336
  %v1339 = vld [vmem:[%s9 + $0x9] sm:$0x1]
  %v1340 = vld [vmem:[%s9 + $0xa] sm:$0x1]
  %v1341 = vsel %vm296, %v1337, 0.0
  %1342 = vadd.xlane.f32.xlu0 %v1341
  %v1343 = vpop.xlane.xlu0 %1342
  %v1344 = vsel %vm296, %v1338, 0.0
  %1345 = vadd.xlane.f32.xlu0 %v1344
  %v1346 = vpop.xlane.xlu0 %1345
  %v1347 = vrcp.pop 32.0
  %v1348 = vmul.f32 %v1343, %v1347
  %v1349 = vmul.f32 %v1346, %v1347
  %v1350 = vsub.f32 %v1337, %v1348
  %v1351 = vsub.f32 %v1338, %v1349
  %v1352 = vmul.f32 %v1350, %v1350
  %v1353 = vmul.f32 %v1351, %v1351
  %v1354 = vsel %vm296, %v1352, 0.0
  %1355 = vadd.xlane.f32.xlu0 %v1354
  %v1356 = vpop.xlane.xlu0 %1355
  %v1357 = vsel %vm296, %v1353, 0.0
  %1358 = vadd.xlane.f32.xlu0 %v1357
  %v1359 = vpop.xlane.xlu0 %1358
  %v1360 = vmul.f32 %v1356, %v1347
  %v1361 = vmul.f32 %v1359, %v1347
  %v1362 = vadd.f32 %v1360, 1e-05
  %v1363 = vadd.f32 %v1361, 1e-05
  %v1364 = vrsqrt.pop %v1362
  %v1365 = vrsqrt.pop %v1363
  %v1366 = vmul.f32 %v1350, %v1364
  %v1367 = vmul.f32 %v1351, %v1365
  %v1368 = vlaneseq
  %v1369 = vshrl.u32 %v1368, 7
  %v1370 = vsub.s32 0, %v1369
  %v1371 = vrot.slane %v1339, %v1370
  %v1372 = vmul.f32 %v1366, %v1371
  %v1373 = vmul.f32 %v1367, %v1371
  %v1374 = vlaneseq
  %v1375 = vshrl.u32 %v1374, 7
  %v1376 = vsub.s32 0, %v1375
  %v1377 = vrot.slane %v1340, %v1376
  %v1378 = vadd.f32 %v1372, %v1377
  %v1379 = vadd.f32 %v1373, %v1377
  %v1380 = vld [vmem:[%s5] sm:$0xf]
  %v1381 = vld [vmem:[%s5 + $0x4] sm:$0xf]
  %v1382 = vld [vmem:[%s5 + $0x8] sm:$0xf]
  %v1383 = vld [vmem:[%s5 + $0xc] sm:$0xf]
  %v1384 = vld [vmem:[%s9 + $0x7] sm:$0x1]
  %v1385 = vpack.c.bf16 %v1379, %v1378
  %v1390 = vunpack.c.l.b16 %v1380
  %v1391 = vunpack.c.l.b16 %v1381
  %v1392 = vunpack.c.l.b16 %v1382
  %v1393 = vunpack.c.l.b16 %v1383
  %v1394 = vpack.c.b16 %v1391, %v1390
  %v1395 = vpack.c.b16 %v1393, %v1392
  %v1399 = vsel %vm296, %v1385, 0
  %1401 = vmatprep.subr.bf16.mxu0 0
  %1402 = vmatpush1.bf16.msra.mxu0 0
  %1403 = vmatprep.subr.bf16.mxu0 0
  %1404 = vmatpush1.bf16.msra.mxu0 0
  %1405 = vmatprep.subr.bf16.mxu0 0
  %1406 = vmatpush1.bf16.msra.mxu0 0
  %1407 = vmatprep.subr.bf16.mxu0 0
  %1408 = vmatpush1.bf16.msra.mxu0 0
  %1409 = vmatprep.subr.bf16.mxu0 0
  %1410 = vmatpush1.bf16.msra.mxu0 0
  %1411 = vmatprep.subr.bf16.mxu0 0
  %1412 = vmatpush1.bf16.msra.mxu0 0
  %1413 = vmatprep.subr.bf16.mxu0 0
  %1414 = vmatpush1.bf16.msra.mxu0 %v1395
  %1415 = vmatprep.subr.bf16.mxu0 0
  %1416 = vmatpush1.bf16.msra.mxu0 %v1394
  %1417 = vmatprep.subr.bf16.mxu0 0
  %1418 = vmatpush2.bf16.msra.mxu0 0
  %1419 = vmatprep.subr.bf16.mxu0 0
  %1420 = vmatpush2.bf16.msra.mxu0 0
  %1421 = vmatprep.subr.bf16.mxu0 0
  %1422 = vmatpush2.bf16.msra.mxu0 0
  %1423 = vmatprep.subr.bf16.mxu0 0
  %1424 = vmatpush2.bf16.msra.mxu0 0
  %1425 = vmatprep.subr.bf16.mxu0 0
  %1426 = vmatpush2.bf16.msra.mxu0 0
  %1427 = vmatprep.subr.bf16.mxu0 0
  %1428 = vmatpush2.bf16.msra.mxu0 0
  %1429 = vmatprep.subr.bf16.mxu0 0
  %1430 = vmatpush2.bf16.msra.mxu0 0
  %1431 = vmatprep.subr.bf16.mxu0 0
  %1432 = vmatpush2.bf16.msra.mxu0 0
  %1433 = vmatprep.mubr.bf16.mxu0 0
  %1434 = vmatmul.mubr.bf16.gmra.mxu0 %v1399
  %v1435 = vpop.f32.mrf.mxu0
  %v1436 = vadd.f32 0.0, %v1435
  %v1437 = vpop.f32.mrf.mxu0
  %v1438 = vpop.f32.mrf.mxu0
  %v1439 = vadd.f32 0.0, %v1438
  %v1440 = vpop.f32.mrf.mxu0
  %1441 = vdwg.mxu0
  %v1442 = vlaneseq
  %v1443 = vshrl.u32 %v1442, 7
  %v1444 = vsub.s32 0, %v1443
  %v1445 = vrot.slane %v1384, %v1444
  %v1446 = vadd.f32 %v1436, %v1445
  %v1447 = vadd.f32 %v1439, %v1445
  %v1448 = vmax.f32 %v1446, 0.0
  %v1449 = vmax.f32 %v1447, 0.0
  %v1450 = vld [vmem:[%s6] sm:$0xf]
  %v1451 = vld [vmem:[%s6 + $0x4] sm:$0xf]
  %v1452 = vld [vmem:[%s6 + $0x8] sm:$0xf]
  %v1453 = vld [vmem:[%s6 + $0xc] sm:$0xf]
  %v1454 = vld [vmem:[%s6 + $0x10] sm:$0xf]
  %v1455 = vld [vmem:[%s6 + $0x14] sm:$0xf]
  %v1456 = vld [vmem:[%s6 + $0x18] sm:$0xf]
  %v1457 = vld [vmem:[%s6 + $0x1c] sm:$0xf]
  %v1458 = vld [vmem:[%s9 + $0x8] sm:$0x1]
  %v1459 = vpack.c.bf16 %v1449, %v1448
  %v1468 = vunpack.c.l.b16 %v1450
  %v1469 = vunpack.c.l.b16 %v1451
  %v1470 = vunpack.c.l.b16 %v1452
  %v1471 = vunpack.c.l.b16 %v1453
  %v1472 = vunpack.c.l.b16 %v1454
  %v1473 = vunpack.c.l.b16 %v1455
  %v1474 = vunpack.c.l.b16 %v1456
  %v1475 = vunpack.c.l.b16 %v1457
  %v1476 = vpack.c.b16 %v1469, %v1468
  %v1477 = vpack.c.b16 %v1471, %v1470
  %v1478 = vpack.c.b16 %v1473, %v1472
  %v1479 = vpack.c.b16 %v1475, %v1474
  %vm1484 = vcmask 523264
  %v1486 = vsel %vm1484, %v1459, 0
  %1488 = vmatprep.subr.bf16.mxu0 0
  %1489 = vmatpush1.bf16.msra.mxu0 0
  %1490 = vmatprep.subr.bf16.mxu0 0
  %1491 = vmatpush1.bf16.msra.mxu0 0
  %1492 = vmatprep.subr.bf16.mxu0 0
  %1493 = vmatpush1.bf16.msra.mxu0 0
  %1494 = vmatprep.subr.bf16.mxu0 0
  %1495 = vmatpush1.bf16.msra.mxu0 0
  %1496 = vmatprep.subr.bf16.mxu0 0
  %1497 = vmatpush1.bf16.msra.mxu0 %v1479
  %1498 = vmatprep.subr.bf16.mxu0 0
  %1499 = vmatpush1.bf16.msra.mxu0 %v1478
  %1500 = vmatprep.subr.bf16.mxu0 0
  %1501 = vmatpush1.bf16.msra.mxu0 %v1477
  %1502 = vmatprep.subr.bf16.mxu0 0
  %1503 = vmatpush1.bf16.msra.mxu0 %v1476
  %1504 = vmatprep.subr.bf16.mxu0 0
  %1505 = vmatpush2.bf16.msra.mxu0 0
  %1506 = vmatprep.subr.bf16.mxu0 0
  %1507 = vmatpush2.bf16.msra.mxu0 0
  %1508 = vmatprep.subr.bf16.mxu0 0
  %1509 = vmatpush2.bf16.msra.mxu0 0
  %1510 = vmatprep.subr.bf16.mxu0 0
  %1511 = vmatpush2.bf16.msra.mxu0 0
  %1512 = vmatprep.subr.bf16.mxu0 0
  %1513 = vmatpush2.bf16.msra.mxu0 0
  %1514 = vmatprep.subr.bf16.mxu0 0
  %1515 = vmatpush2.bf16.msra.mxu0 0
  %1516 = vmatprep.subr.bf16.mxu0 0
  %1517 = vmatpush2.bf16.msra.mxu0 0
  %1518 = vmatprep.subr.bf16.mxu0 0
  %1519 = vmatpush2.bf16.msra.mxu0 0
  %1520 = vmatprep.mubr.bf16.mxu0 0
  %1521 = vmatmul.mubr.bf16.gmra.mxu0 %v1486
  %v1522 = vpop.f32.mrf.mxu0
  %v1523 = vadd.f32 0.0, %v1522
  %v1524 = vpop.f32.mrf.mxu0
  %v1525 = vpop.f32.mrf.mxu0
  %v1526 = vadd.f32 0.0, %v1525
  %v1527 = vpop.f32.mrf.mxu0
  %1528 = vdwg.mxu0
  %v1529 = vlaneseq
  %v1530 = vshrl.u32 %v1529, 7
  %v1531 = vsub.s32 0, %v1530
  %v1532 = vrot.slane %v1458, %v1531
  %v1533 = vadd.f32 %v1523, %v1532
  %v1534 = vadd.f32 %v1526, %v1532
  %v1535 = vadd.f32 %v1378, %v1533
  %v1536 = vadd.f32 %v1379, %v1534
  %v1537 = vld [vmem:[%s9 + $0xb] sm:$0x1]
  %v1538 = vld [vmem:[%s9 + $0xc] sm:$0x1]
  %v1539 = vsel %vm296, %v1535, 0.0
  %1540 = vadd.xlane.f32.xlu0 %v1539
  %v1541 = vpop.xlane.xlu0 %1540
  %v1542 = vsel %vm296, %v1536, 0.0
  %1543 = vadd.xlane.f32.xlu0 %v1542
  %v1544 = vpop.xlane.xlu0 %1543
  %v1545 = vmul.f32 %v1541, %v1347
  %v1546 = vmul.f32 %v1544, %v1347
  %v1547 = vsub.f32 %v1535, %v1545
  %v1548 = vsub.f32 %v1536, %v1546
  %v1549 = vmul.f32 %v1547, %v1547
  %v1550 = vmul.f32 %v1548, %v1548
  %v1551 = vsel %vm296, %v1549, 0.0
  %1552 = vadd.xlane.f32.xlu0 %v1551
  %v1553 = vpop.xlane.xlu0 %1552
  %v1554 = vsel %vm296, %v1550, 0.0
  %1555 = vadd.xlane.f32.xlu0 %v1554
  %v1556 = vpop.xlane.xlu0 %1555
  %v1557 = vmul.f32 %v1553, %v1347
  %v1558 = vmul.f32 %v1556, %v1347
  %v1559 = vadd.f32 %v1557, 1e-05
  %v1560 = vadd.f32 %v1558, 1e-05
  %v1561 = vrsqrt.pop %v1559
  %v1562 = vrsqrt.pop %v1560
  %v1563 = vmul.f32 %v1547, %v1561
  %v1564 = vmul.f32 %v1548, %v1562
  %v1565 = vlaneseq
  %v1566 = vshrl.u32 %v1565, 7
  %v1567 = vsub.s32 0, %v1566
  %v1568 = vrot.slane %v1537, %v1567
  %v1569 = vmul.f32 %v1563, %v1568
  %v1570 = vmul.f32 %v1564, %v1568
  %v1571 = vlaneseq
  %v1572 = vshrl.u32 %v1571, 7
  %v1573 = vsub.s32 0, %v1572
  %v1574 = vrot.slane %v1538, %v1573
  %v1575 = vadd.f32 %v1569, %v1574
  %v1576 = vadd.f32 %v1570, %v1574
  %s1577 = scalar_lea.vmem %s2, 16
  %v1578 = vld [vmem:[%s1577] sm:$0xf]
  %v1579 = vld [vmem:[%s1577 + $0x4] sm:$0xf]
  %v1580 = vld [vmem:[%s1577 + $0x8] sm:$0xf]
  %v1581 = vld [vmem:[%s1577 + $0xc] sm:$0xf]
  %v1582 = vld [vmem:[%s9 + $0xd] sm:$0x1]
  %s1583 = scalar_lea.vmem %s3, 16
  %v1584 = vld [vmem:[%s1583] sm:$0xf]
  %v1585 = vld [vmem:[%s1583 + $0x4] sm:$0xf]
  %v1586 = vld [vmem:[%s1583 + $0x8] sm:$0xf]
  %v1587 = vld [vmem:[%s1583 + $0xc] sm:$0xf]
  %v1588 = vld [vmem:[%s9 + $0xe] sm:$0x1]
  %v1589 = vpack.c.bf16 %v1576, %v1575
  %v1594 = vunpack.c.l.b16 %v1578
  %v1595 = vunpack.c.l.b16 %v1579
  %v1596 = vunpack.c.l.b16 %v1580
  %v1597 = vunpack.c.l.b16 %v1581
  %v1598 = vpack.c.b16 %v1595, %v1594
  %v1599 = vpack.c.b16 %v1597, %v1596
  %v1603 = vsel %vm296, %v1589, 0
  %1605 = vmatprep.subr.bf16.mxu0 0
  %1606 = vmatpush1.bf16.msra.mxu0 0
  %1607 = vmatprep.subr.bf16.mxu0 0
  %1608 = vmatpush1.bf16.msra.mxu0 0
  %1609 = vmatprep.subr.bf16.mxu0 0
  %1610 = vmatpush1.bf16.msra.mxu0 0
  %1611 = vmatprep.subr.bf16.mxu0 0
  %1612 = vmatpush1.bf16.msra.mxu0 0
  %1613 = vmatprep.subr.bf16.mxu0 0
  %1614 = vmatpush1.bf16.msra.mxu0 0
  %1615 = vmatprep.subr.bf16.mxu0 0
  %1616 = vmatpush1.bf16.msra.mxu0 0
  %1617 = vmatprep.subr.bf16.mxu0 0
  %1618 = vmatpush1.bf16.msra.mxu0 %v1599
  %1619 = vmatprep.subr.bf16.mxu0 0
  %1620 = vmatpush1.bf16.msra.mxu0 %v1598
  %1621 = vmatprep.subr.bf16.mxu0 0
  %1622 = vmatpush2.bf16.msra.mxu0 0
  %1623 = vmatprep.subr.bf16.mxu0 0
  %1624 = vmatpush2.bf16.msra.mxu0 0
  %1625 = vmatprep.subr.bf16.mxu0 0
  %1626 = vmatpush2.bf16.msra.mxu0 0
  %1627 = vmatprep.subr.bf16.mxu0 0
  %1628 = vmatpush2.bf16.msra.mxu0 0
  %1629 = vmatprep.subr.bf16.mxu0 0
  %1630 = vmatpush2.bf16.msra.mxu0 0
  %1631 = vmatprep.subr.bf16.mxu0 0
  %1632 = vmatpush2.bf16.msra.mxu0 0
  %1633 = vmatprep.subr.bf16.mxu0 0
  %1634 = vmatpush2.bf16.msra.mxu0 0
  %1635 = vmatprep.subr.bf16.mxu0 0
  %1636 = vmatpush2.bf16.msra.mxu0 0
  %1637 = vmatprep.mubr.bf16.mxu0 0
  %1638 = vmatmul.mubr.bf16.gmra.mxu0 %v1603
  %v1639 = vpop.f32.mrf.mxu0
  %v1640 = vadd.f32 0.0, %v1639
  %v1641 = vpop.f32.mrf.mxu0
  %v1642 = vpop.f32.mrf.mxu0
  %v1643 = vadd.f32 0.0, %v1642
  %v1644 = vpop.f32.mrf.mxu0
  %1645 = vdwg.mxu0
  %v1646 = vlaneseq
  %v1647 = vshrl.u32 %v1646, 7
  %v1648 = vsub.s32 0, %v1647
  %v1649 = vrot.slane %v1582, %v1648
  %v1650 = vadd.f32 %v1640, %v1649
  %v1651 = vadd.f32 %v1643, %v1649
  %v1652 = vpack.c.bf16 %v1650, %v1650
  %v1653 = vpack.c.bf16 %v1651, %v1651
  %1655 = vrot.lane.b32.xlu0 %v1652, 96
  %v1656 = vpop.permute.xlu0 %1655
  %v1658 = vsel %vm352, %v1652, 0
  %v1661 = vsel %vm352, %v1656, 0
  %1663 = vmatprep.subr.bf16.mxu0 0
  %1664 = vmatpush1.bf16.xpose.msra.mxu0 0
  %1665 = vmatprep.subr.bf16.mxu0 0
  %1666 = vmatpush1.bf16.xpose.msra.mxu0 0
  %1667 = vmatprep.subr.bf16.mxu0 0
  %1668 = vmatpush1.bf16.xpose.msra.mxu0 0
  %1669 = vmatprep.subr.bf16.mxu0 0
  %1670 = vmatpush1.bf16.xpose.msra.mxu0 0
  %1671 = vmatprep.subr.bf16.mxu0 0
  %1672 = vmatpush1.bf16.xpose.msra.mxu0 0
  %1673 = vmatprep.subr.bf16.mxu0 0
  %1674 = vmatpush1.bf16.xpose.msra.mxu0 0
  %1675 = vmatprep.subr.bf16.mxu0 0
  %1676 = vmatpush1.bf16.xpose.msra.mxu0 0
  %1677 = vmatprep.subr.bf16.mxu0 0
  %1678 = vmatpush1.bf16.xpose.msra.mxu0 %v1661
  %1679 = vmatprep.subr.bf16.mxu0 0
  %1680 = vmatpush2.bf16.xpose.msra.mxu0 0
  %1681 = vmatprep.subr.bf16.mxu0 0
  %1682 = vmatpush2.bf16.xpose.msra.mxu0 0
  %1683 = vmatprep.subr.bf16.mxu0 0
  %1684 = vmatpush2.bf16.xpose.msra.mxu0 0
  %1685 = vmatprep.subr.bf16.mxu0 0
  %1686 = vmatpush2.bf16.xpose.msra.mxu0 0
  %1687 = vmatprep.subr.bf16.mxu0 0
  %1688 = vmatpush2.bf16.xpose.msra.mxu0 0
  %1689 = vmatprep.subr.bf16.mxu0 0
  %1690 = vmatpush2.bf16.xpose.msra.mxu0 0
  %1691 = vmatprep.subr.bf16.mxu0 0
  %1692 = vmatpush2.bf16.xpose.msra.mxu0 0
  %1693 = vmatprep.subr.bf16.mxu0 0
  %1694 = vmatpush2.bf16.xpose.msra.mxu0 0
  %1695 = vmatprep.mubr.bf16.mxu0 0
  %1696 = vmatmul.mubr.bf16.gmra.mxu0 %v1658
  %v1697 = vpop.f32.mrf.mxu0
  %v1698 = vadd.f32 0.0, %v1697
  %v1699 = vpop.f32.mrf.mxu0
  %v1700 = vpop.f32.mrf.mxu0
  %v1701 = vpop.f32.mrf.mxu0
  %1702 = vdwg.mxu0
  %1704 = vrot.lane.b32.xlu0 %v1653, 96
  %v1705 = vpop.permute.xlu0 %1704
  %v1707 = vsel %vm352, %v1653, 0
  %v1710 = vsel %vm352, %v1705, 0
  %1712 = vmatprep.subr.bf16.mxu0 0
  %1713 = vmatpush1.bf16.xpose.msra.mxu0 0
  %1714 = vmatprep.subr.bf16.mxu0 0
  %1715 = vmatpush1.bf16.xpose.msra.mxu0 0
  %1716 = vmatprep.subr.bf16.mxu0 0
  %1717 = vmatpush1.bf16.xpose.msra.mxu0 0
  %1718 = vmatprep.subr.bf16.mxu0 0
  %1719 = vmatpush1.bf16.xpose.msra.mxu0 0
  %1720 = vmatprep.subr.bf16.mxu0 0
  %1721 = vmatpush1.bf16.xpose.msra.mxu0 0
  %1722 = vmatprep.subr.bf16.mxu0 0
  %1723 = vmatpush1.bf16.xpose.msra.mxu0 0
  %1724 = vmatprep.subr.bf16.mxu0 0
  %1725 = vmatpush1.bf16.xpose.msra.mxu0 0
  %1726 = vmatprep.subr.bf16.mxu0 0
  %1727 = vmatpush1.bf16.xpose.msra.mxu0 %v1710
  %1728 = vmatprep.subr.bf16.mxu0 0
  %1729 = vmatpush2.bf16.xpose.msra.mxu0 0
  %1730 = vmatprep.subr.bf16.mxu0 0
  %1731 = vmatpush2.bf16.xpose.msra.mxu0 0
  %1732 = vmatprep.subr.bf16.mxu0 0
  %1733 = vmatpush2.bf16.xpose.msra.mxu0 0
  %1734 = vmatprep.subr.bf16.mxu0 0
  %1735 = vmatpush2.bf16.xpose.msra.mxu0 0
  %1736 = vmatprep.subr.bf16.mxu0 0
  %1737 = vmatpush2.bf16.xpose.msra.mxu0 0
  %1738 = vmatprep.subr.bf16.mxu0 0
  %1739 = vmatpush2.bf16.xpose.msra.mxu0 0
  %1740 = vmatprep.subr.bf16.mxu0 0
  %1741 = vmatpush2.bf16.xpose.msra.mxu0 0
  %1742 = vmatprep.subr.bf16.mxu0 0
  %1743 = vmatpush2.bf16.xpose.msra.mxu0 0
  %1744 = vmatprep.mubr.bf16.mxu0 0
  %1745 = vmatmul.mubr.bf16.gmra.mxu0 %v1707
  %v1746 = vpop.f32.mrf.mxu0
  %v1747 = vadd.f32 0.0, %v1746
  %v1748 = vpop.f32.mrf.mxu0
  %v1749 = vpop.f32.mrf.mxu0
  %v1750 = vpop.f32.mrf.mxu0
  %1751 = vdwg.mxu0
  %v1752 = vmul.f32 %v1698, 0.35355338
  %v1753 = vmul.f32 %v1747, 0.35355338
  %v1754 = vsel %vm352, %v1752, -inf
  %1755 = vmax.xlane.f32.xlu0 %v1754
  %v1756 = vpop.xlane.xlu0 %1755
  %v1757 = vsel %vm352, %v1753, -inf
  %1758 = vmax.xlane.f32.xlu0 %v1757
  %v1759 = vpop.xlane.xlu0 %1758
  %v1760 = vsub.f32 %v1752, %v1756
  %v1761 = vsub.f32 %v1753, %v1759
  %v1762 = vmul.f32 %v1760, 1.442695
  %v1763 = vpow.pop %v1762
  %v1764 = vmul.f32 %v1761, 1.442695
  %v1765 = vpow.pop %v1764
  %v1766 = vsel %vm352, %v1763, 0.0
  %1767 = vadd.xlane.f32.xlu0 %v1766
  %v1768 = vpop.xlane.xlu0 %1767
  %v1769 = vsel %vm352, %v1765, 0.0
  %1770 = vadd.xlane.f32.xlu0 %v1769
  %v1771 = vpop.xlane.xlu0 %1770
  %v1772 = vrcp.pop %v1768
  %v1773 = vrcp.pop %v1771
  %v1774 = vmul.f32 %v1763, %v1772
  %v1775 = vmul.f32 %v1765, %v1773
  %v1776 = vpack.c.bf16 %v1774, %v1774
  %v1777 = vpack.c.bf16 %v1775, %v1775
  %1778 = vrot.lane.b32.xlu0 %v1652, 64
  %v1779 = vpop.permute.xlu0 %1778
  %v1781 = vsel %vm352, %v1776, 0
  %v1784 = vsel %vm479, %v1779, 0
  %1786 = vmatprep.subr.bf16.mxu0 0
  %1787 = vmatpush1.bf16.msra.mxu0 0
  %1788 = vmatprep.subr.bf16.mxu0 0
  %1789 = vmatpush1.bf16.msra.mxu0 0
  %1790 = vmatprep.subr.bf16.mxu0 0
  %1791 = vmatpush1.bf16.msra.mxu0 0
  %1792 = vmatprep.subr.bf16.mxu0 0
  %1793 = vmatpush1.bf16.msra.mxu0 0
  %1794 = vmatprep.subr.bf16.mxu0 0
  %1795 = vmatpush1.bf16.msra.mxu0 0
  %1796 = vmatprep.subr.bf16.mxu0 0
  %1797 = vmatpush1.bf16.msra.mxu0 0
  %1798 = vmatprep.subr.bf16.mxu0 0
  %1799 = vmatpush1.bf16.msra.mxu0 0
  %1800 = vmatprep.subr.bf16.mxu0 0
  %1801 = vmatpush1.bf16.msra.mxu0 %v1784
  %1802 = vmatprep.subr.bf16.mxu0 0
  %1803 = vmatpush2.bf16.msra.mxu0 0
  %1804 = vmatprep.subr.bf16.mxu0 0
  %1805 = vmatpush2.bf16.msra.mxu0 0
  %1806 = vmatprep.subr.bf16.mxu0 0
  %1807 = vmatpush2.bf16.msra.mxu0 0
  %1808 = vmatprep.subr.bf16.mxu0 0
  %1809 = vmatpush2.bf16.msra.mxu0 0
  %1810 = vmatprep.subr.bf16.mxu0 0
  %1811 = vmatpush2.bf16.msra.mxu0 0
  %1812 = vmatprep.subr.bf16.mxu0 0
  %1813 = vmatpush2.bf16.msra.mxu0 0
  %1814 = vmatprep.subr.bf16.mxu0 0
  %1815 = vmatpush2.bf16.msra.mxu0 0
  %1816 = vmatprep.subr.bf16.mxu0 0
  %1817 = vmatpush2.bf16.msra.mxu0 0
  %1818 = vmatprep.mubr.bf16.mxu0 0
  %1819 = vmatmul.mubr.bf16.gmra.mxu0 %v1781
  %v1820 = vpop.f32.mrf.mxu0
  %v1821 = vadd.f32 0.0, %v1820
  %v1822 = vpop.f32.mrf.mxu0
  %v1823 = vpop.f32.mrf.mxu0
  %v1824 = vpop.f32.mrf.mxu0
  %1825 = vdwg.mxu0
  %1826 = vrot.lane.b32.xlu0 %v1653, 64
  %v1827 = vpop.permute.xlu0 %1826
  %v1829 = vsel %vm352, %v1777, 0
  %v1832 = vsel %vm479, %v1827, 0
  %1834 = vmatprep.subr.bf16.mxu0 0
  %1835 = vmatpush1.bf16.msra.mxu0 0
  %1836 = vmatprep.subr.bf16.mxu0 0
  %1837 = vmatpush1.bf16.msra.mxu0 0
  %1838 = vmatprep.subr.bf16.mxu0 0
  %1839 = vmatpush1.bf16.msra.mxu0 0
  %1840 = vmatprep.subr.bf16.mxu0 0
  %1841 = vmatpush1.bf16.msra.mxu0 0
  %1842 = vmatprep.subr.bf16.mxu0 0
  %1843 = vmatpush1.bf16.msra.mxu0 0
  %1844 = vmatprep.subr.bf16.mxu0 0
  %1845 = vmatpush1.bf16.msra.mxu0 0
  %1846 = vmatprep.subr.bf16.mxu0 0
  %1847 = vmatpush1.bf16.msra.mxu0 0
  %1848 = vmatprep.subr.bf16.mxu0 0
  %1849 = vmatpush1.bf16.msra.mxu0 %v1832
  %1850 = vmatprep.subr.bf16.mxu0 0
  %1851 = vmatpush2.bf16.msra.mxu0 0
  %1852 = vmatprep.subr.bf16.mxu0 0
  %1853 = vmatpush2.bf16.msra.mxu0 0
  %1854 = vmatprep.subr.bf16.mxu0 0
  %1855 = vmatpush2.bf16.msra.mxu0 0
  %1856 = vmatprep.subr.bf16.mxu0 0
  %1857 = vmatpush2.bf16.msra.mxu0 0
  %1858 = vmatprep.subr.bf16.mxu0 0
  %1859 = vmatpush2.bf16.msra.mxu0 0
  %1860 = vmatprep.subr.bf16.mxu0 0
  %1861 = vmatpush2.bf16.msra.mxu0 0
  %1862 = vmatprep.subr.bf16.mxu0 0
  %1863 = vmatpush2.bf16.msra.mxu0 0
  %1864 = vmatprep.subr.bf16.mxu0 0
  %1865 = vmatpush2.bf16.msra.mxu0 0
  %1866 = vmatprep.mubr.bf16.mxu0 0
  %1867 = vmatmul.mubr.bf16.gmra.mxu0 %v1829
  %v1868 = vpop.f32.mrf.mxu0
  %v1869 = vadd.f32 0.0, %v1868
  %v1870 = vpop.f32.mrf.mxu0
  %v1871 = vpop.f32.mrf.mxu0
  %v1872 = vpop.f32.mrf.mxu0
  %1873 = vdwg.mxu0
  %1874 = vst.msk [vmem:[#allocation2] sm:$0xff] %vm352, %v1821
  %1875 = vst.msk [vmem:[#allocation2 + $0x10] sm:$0xff] %vm352, %v1869
  %1876 = vrot.lane.b32.xlu0 %v1652, 120
  %v1877 = vpop.permute.xlu0 %1876
  %1878 = vrot.lane.b32.xlu0 %v1652, 88
  %v1879 = vpop.permute.xlu0 %1878
  %v1881 = vsel %vm352, %v1877, 0
  %v1884 = vsel %vm352, %v1879, 0
  %1886 = vmatprep.subr.bf16.mxu0 0
  %1887 = vmatpush1.bf16.xpose.msra.mxu0 0
  %1888 = vmatprep.subr.bf16.mxu0 0
  %1889 = vmatpush1.bf16.xpose.msra.mxu0 0
  %1890 = vmatprep.subr.bf16.mxu0 0
  %1891 = vmatpush1.bf16.xpose.msra.mxu0 0
  %1892 = vmatprep.subr.bf16.mxu0 0
  %1893 = vmatpush1.bf16.xpose.msra.mxu0 0
  %1894 = vmatprep.subr.bf16.mxu0 0
  %1895 = vmatpush1.bf16.xpose.msra.mxu0 0
  %1896 = vmatprep.subr.bf16.mxu0 0
  %1897 = vmatpush1.bf16.xpose.msra.mxu0 0
  %1898 = vmatprep.subr.bf16.mxu0 0
  %1899 = vmatpush1.bf16.xpose.msra.mxu0 0
  %1900 = vmatprep.subr.bf16.mxu0 0
  %1901 = vmatpush1.bf16.xpose.msra.mxu0 %v1884
  %1902 = vmatprep.subr.bf16.mxu0 0
  %1903 = vmatpush2.bf16.xpose.msra.mxu0 0
  %1904 = vmatprep.subr.bf16.mxu0 0
  %1905 = vmatpush2.bf16.xpose.msra.mxu0 0
  %1906 = vmatprep.subr.bf16.mxu0 0
  %1907 = vmatpush2.bf16.xpose.msra.mxu0 0
  %1908 = vmatprep.subr.bf16.mxu0 0
  %1909 = vmatpush2.bf16.xpose.msra.mxu0 0
  %1910 = vmatprep.subr.bf16.mxu0 0
  %1911 = vmatpush2.bf16.xpose.msra.mxu0 0
  %1912 = vmatprep.subr.bf16.mxu0 0
  %1913 = vmatpush2.bf16.xpose.msra.mxu0 0
  %1914 = vmatprep.subr.bf16.mxu0 0
  %1915 = vmatpush2.bf16.xpose.msra.mxu0 0
  %1916 = vmatprep.subr.bf16.mxu0 0
  %1917 = vmatpush2.bf16.xpose.msra.mxu0 0
  %1918 = vmatprep.mubr.bf16.mxu0 0
  %1919 = vmatmul.mubr.bf16.gmra.mxu0 %v1881
  %v1920 = vpop.f32.mrf.mxu0
  %v1921 = vadd.f32 0.0, %v1920
  %v1922 = vpop.f32.mrf.mxu0
  %v1923 = vpop.f32.mrf.mxu0
  %v1924 = vpop.f32.mrf.mxu0
  %1925 = vdwg.mxu0
  %1926 = vrot.lane.b32.xlu0 %v1653, 120
  %v1927 = vpop.permute.xlu0 %1926
  %1928 = vrot.lane.b32.xlu0 %v1653, 88
  %v1929 = vpop.permute.xlu0 %1928
  %v1931 = vsel %vm352, %v1927, 0
  %v1934 = vsel %vm352, %v1929, 0
  %1936 = vmatprep.subr.bf16.mxu0 0
  %1937 = vmatpush1.bf16.xpose.msra.mxu0 0
  %1938 = vmatprep.subr.bf16.mxu0 0
  %1939 = vmatpush1.bf16.xpose.msra.mxu0 0
  %1940 = vmatprep.subr.bf16.mxu0 0
  %1941 = vmatpush1.bf16.xpose.msra.mxu0 0
  %1942 = vmatprep.subr.bf16.mxu0 0
  %1943 = vmatpush1.bf16.xpose.msra.mxu0 0
  %1944 = vmatprep.subr.bf16.mxu0 0
  %1945 = vmatpush1.bf16.xpose.msra.mxu0 0
  %1946 = vmatprep.subr.bf16.mxu0 0
  %1947 = vmatpush1.bf16.xpose.msra.mxu0 0
  %1948 = vmatprep.subr.bf16.mxu0 0
  %1949 = vmatpush1.bf16.xpose.msra.mxu0 0
  %1950 = vmatprep.subr.bf16.mxu0 0
  %1951 = vmatpush1.bf16.xpose.msra.mxu0 %v1934
  %1952 = vmatprep.subr.bf16.mxu0 0
  %1953 = vmatpush2.bf16.xpose.msra.mxu0 0
  %1954 = vmatprep.subr.bf16.mxu0 0
  %1955 = vmatpush2.bf16.xpose.msra.mxu0 0
  %1956 = vmatprep.subr.bf16.mxu0 0
  %1957 = vmatpush2.bf16.xpose.msra.mxu0 0
  %1958 = vmatprep.subr.bf16.mxu0 0
  %1959 = vmatpush2.bf16.xpose.msra.mxu0 0
  %1960 = vmatprep.subr.bf16.mxu0 0
  %1961 = vmatpush2.bf16.xpose.msra.mxu0 0
  %1962 = vmatprep.subr.bf16.mxu0 0
  %1963 = vmatpush2.bf16.xpose.msra.mxu0 0
  %1964 = vmatprep.subr.bf16.mxu0 0
  %1965 = vmatpush2.bf16.xpose.msra.mxu0 0
  %1966 = vmatprep.subr.bf16.mxu0 0
  %1967 = vmatpush2.bf16.xpose.msra.mxu0 0
  %1968 = vmatprep.mubr.bf16.mxu0 0
  %1969 = vmatmul.mubr.bf16.gmra.mxu0 %v1931
  %v1970 = vpop.f32.mrf.mxu0
  %v1971 = vadd.f32 0.0, %v1970
  %v1972 = vpop.f32.mrf.mxu0
  %v1973 = vpop.f32.mrf.mxu0
  %v1974 = vpop.f32.mrf.mxu0
  %1975 = vdwg.mxu0
  %v1976 = vmul.f32 %v1921, 0.35355338
  %v1977 = vmul.f32 %v1971, 0.35355338
  %v1978 = vsel %vm352, %v1976, -inf
  %1979 = vmax.xlane.f32.xlu0 %v1978
  %v1980 = vpop.xlane.xlu0 %1979
  %v1981 = vsel %vm352, %v1977, -inf
  %1982 = vmax.xlane.f32.xlu0 %v1981
  %v1983 = vpop.xlane.xlu0 %1982
  %v1984 = vsub.f32 %v1976, %v1980
  %v1985 = vsub.f32 %v1977, %v1983
  %v1986 = vmul.f32 %v1984, 1.442695
  %v1987 = vpow.pop %v1986
  %v1988 = vmul.f32 %v1985, 1.442695
  %v1989 = vpow.pop %v1988
  %v1990 = vsel %vm352, %v1987, 0.0
  %1991 = vadd.xlane.f32.xlu0 %v1990
  %v1992 = vpop.xlane.xlu0 %1991
  %v1993 = vsel %vm352, %v1989, 0.0
  %1994 = vadd.xlane.f32.xlu0 %v1993
  %v1995 = vpop.xlane.xlu0 %1994
  %v1996 = vrcp.pop %v1992
  %v1997 = vrcp.pop %v1995
  %v1998 = vmul.f32 %v1987, %v1996
  %v1999 = vmul.f32 %v1989, %v1997
  %v2000 = vpack.c.bf16 %v1998, %v1998
  %v2001 = vpack.c.bf16 %v1999, %v1999
  %2002 = vrot.lane.b32.xlu0 %v1652, 56
  %v2003 = vpop.permute.xlu0 %2002
  %v2005 = vsel %vm352, %v2000, 0
  %v2008 = vsel %vm479, %v2003, 0
  %2010 = vmatprep.subr.bf16.mxu0 0
  %2011 = vmatpush1.bf16.msra.mxu0 0
  %2012 = vmatprep.subr.bf16.mxu0 0
  %2013 = vmatpush1.bf16.msra.mxu0 0
  %2014 = vmatprep.subr.bf16.mxu0 0
  %2015 = vmatpush1.bf16.msra.mxu0 0
  %2016 = vmatprep.subr.bf16.mxu0 0
  %2017 = vmatpush1.bf16.msra.mxu0 0
  %2018 = vmatprep.subr.bf16.mxu0 0
  %2019 = vmatpush1.bf16.msra.mxu0 0
  %2020 = vmatprep.subr.bf16.mxu0 0
  %2021 = vmatpush1.bf16.msra.mxu0 0
  %2022 = vmatprep.subr.bf16.mxu0 0
  %2023 = vmatpush1.bf16.msra.mxu0 0
  %2024 = vmatprep.subr.bf16.mxu0 0
  %2025 = vmatpush1.bf16.msra.mxu0 %v2008
  %2026 = vmatprep.subr.bf16.mxu0 0
  %2027 = vmatpush2.bf16.msra.mxu0 0
  %2028 = vmatprep.subr.bf16.mxu0 0
  %2029 = vmatpush2.bf16.msra.mxu0 0
  %2030 = vmatprep.subr.bf16.mxu0 0
  %2031 = vmatpush2.bf16.msra.mxu0 0
  %2032 = vmatprep.subr.bf16.mxu0 0
  %2033 = vmatpush2.bf16.msra.mxu0 0
  %2034 = vmatprep.subr.bf16.mxu0 0
  %2035 = vmatpush2.bf16.msra.mxu0 0
  %2036 = vmatprep.subr.bf16.mxu0 0
  %2037 = vmatpush2.bf16.msra.mxu0 0
  %2038 = vmatprep.subr.bf16.mxu0 0
  %2039 = vmatpush2.bf16.msra.mxu0 0
  %2040 = vmatprep.subr.bf16.mxu0 0
  %2041 = vmatpush2.bf16.msra.mxu0 0
  %2042 = vmatprep.mubr.bf16.mxu0 0
  %2043 = vmatmul.mubr.bf16.gmra.mxu0 %v2005
  %v2044 = vpop.f32.mrf.mxu0
  %v2045 = vadd.f32 0.0, %v2044
  %v2046 = vpop.f32.mrf.mxu0
  %v2047 = vpop.f32.mrf.mxu0
  %v2048 = vpop.f32.mrf.mxu0
  %2049 = vdwg.mxu0
  %2050 = vrot.lane.b32.xlu0 %v1653, 56
  %v2051 = vpop.permute.xlu0 %2050
  %v2053 = vsel %vm352, %v2001, 0
  %v2056 = vsel %vm479, %v2051, 0
  %2058 = vmatprep.subr.bf16.mxu0 0
  %2059 = vmatpush1.bf16.msra.mxu0 0
  %2060 = vmatprep.subr.bf16.mxu0 0
  %2061 = vmatpush1.bf16.msra.mxu0 0
  %2062 = vmatprep.subr.bf16.mxu0 0
  %2063 = vmatpush1.bf16.msra.mxu0 0
  %2064 = vmatprep.subr.bf16.mxu0 0
  %2065 = vmatpush1.bf16.msra.mxu0 0
  %2066 = vmatprep.subr.bf16.mxu0 0
  %2067 = vmatpush1.bf16.msra.mxu0 0
  %2068 = vmatprep.subr.bf16.mxu0 0
  %2069 = vmatpush1.bf16.msra.mxu0 0
  %2070 = vmatprep.subr.bf16.mxu0 0
  %2071 = vmatpush1.bf16.msra.mxu0 0
  %2072 = vmatprep.subr.bf16.mxu0 0
  %2073 = vmatpush1.bf16.msra.mxu0 %v2056
  %2074 = vmatprep.subr.bf16.mxu0 0
  %2075 = vmatpush2.bf16.msra.mxu0 0
  %2076 = vmatprep.subr.bf16.mxu0 0
  %2077 = vmatpush2.bf16.msra.mxu0 0
  %2078 = vmatprep.subr.bf16.mxu0 0
  %2079 = vmatpush2.bf16.msra.mxu0 0
  %2080 = vmatprep.subr.bf16.mxu0 0
  %2081 = vmatpush2.bf16.msra.mxu0 0
  %2082 = vmatprep.subr.bf16.mxu0 0
  %2083 = vmatpush2.bf16.msra.mxu0 0
  %2084 = vmatprep.subr.bf16.mxu0 0
  %2085 = vmatpush2.bf16.msra.mxu0 0
  %2086 = vmatprep.subr.bf16.mxu0 0
  %2087 = vmatpush2.bf16.msra.mxu0 0
  %2088 = vmatprep.subr.bf16.mxu0 0
  %2089 = vmatpush2.bf16.msra.mxu0 0
  %2090 = vmatprep.mubr.bf16.mxu0 0
  %2091 = vmatmul.mubr.bf16.gmra.mxu0 %v2053
  %v2092 = vpop.f32.mrf.mxu0
  %v2093 = vadd.f32 0.0, %v2092
  %v2094 = vpop.f32.mrf.mxu0
  %v2095 = vpop.f32.mrf.mxu0
  %v2096 = vpop.f32.mrf.mxu0
  %2097 = vdwg.mxu0
  %2100 = vrot.lane.b32.xlu0 %v2045, 8
  %v2101 = vpop.permute.xlu0 %2100
  %2102 = vrot.lane.b32.xlu0 %v2093, 8
  %v2103 = vpop.permute.xlu0 %2102
  %2106 = vst.msk [vmem:[#allocation2] sm:$0xff] %vm803, %v2101
  %2107 = vst.msk [vmem:[#allocation2 + $0x10] sm:$0xff] %vm803, %v2103
  %2108 = vrot.lane.b32.xlu0 %v1652, 112
  %v2109 = vpop.permute.xlu0 %2108
  %2110 = vrot.lane.b32.xlu0 %v1652, 80
  %v2111 = vpop.permute.xlu0 %2110
  %v2113 = vsel %vm352, %v2109, 0
  %v2116 = vsel %vm352, %v2111, 0
  %2118 = vmatprep.subr.bf16.mxu0 0
  %2119 = vmatpush1.bf16.xpose.msra.mxu0 0
  %2120 = vmatprep.subr.bf16.mxu0 0
  %2121 = vmatpush1.bf16.xpose.msra.mxu0 0
  %2122 = vmatprep.subr.bf16.mxu0 0
  %2123 = vmatpush1.bf16.xpose.msra.mxu0 0
  %2124 = vmatprep.subr.bf16.mxu0 0
  %2125 = vmatpush1.bf16.xpose.msra.mxu0 0
  %2126 = vmatprep.subr.bf16.mxu0 0
  %2127 = vmatpush1.bf16.xpose.msra.mxu0 0
  %2128 = vmatprep.subr.bf16.mxu0 0
  %2129 = vmatpush1.bf16.xpose.msra.mxu0 0
  %2130 = vmatprep.subr.bf16.mxu0 0
  %2131 = vmatpush1.bf16.xpose.msra.mxu0 0
  %2132 = vmatprep.subr.bf16.mxu0 0
  %2133 = vmatpush1.bf16.xpose.msra.mxu0 %v2116
  %2134 = vmatprep.subr.bf16.mxu0 0
  %2135 = vmatpush2.bf16.xpose.msra.mxu0 0
  %2136 = vmatprep.subr.bf16.mxu0 0
  %2137 = vmatpush2.bf16.xpose.msra.mxu0 0
  %2138 = vmatprep.subr.bf16.mxu0 0
  %2139 = vmatpush2.bf16.xpose.msra.mxu0 0
  %2140 = vmatprep.subr.bf16.mxu0 0
  %2141 = vmatpush2.bf16.xpose.msra.mxu0 0
  %2142 = vmatprep.subr.bf16.mxu0 0
  %2143 = vmatpush2.bf16.xpose.msra.mxu0 0
  %2144 = vmatprep.subr.bf16.mxu0 0
  %2145 = vmatpush2.bf16.xpose.msra.mxu0 0
  %2146 = vmatprep.subr.bf16.mxu0 0
  %2147 = vmatpush2.bf16.xpose.msra.mxu0 0
  %2148 = vmatprep.subr.bf16.mxu0 0
  %2149 = vmatpush2.bf16.xpose.msra.mxu0 0
  %2150 = vmatprep.mubr.bf16.mxu0 0
  %2151 = vmatmul.mubr.bf16.gmra.mxu0 %v2113
  %v2152 = vpop.f32.mrf.mxu0
  %v2153 = vadd.f32 0.0, %v2152
  %v2154 = vpop.f32.mrf.mxu0
  %v2155 = vpop.f32.mrf.mxu0
  %v2156 = vpop.f32.mrf.mxu0
  %2157 = vdwg.mxu0
  %2158 = vrot.lane.b32.xlu0 %v1653, 112
  %v2159 = vpop.permute.xlu0 %2158
  %2160 = vrot.lane.b32.xlu0 %v1653, 80
  %v2161 = vpop.permute.xlu0 %2160
  %v2163 = vsel %vm352, %v2159, 0
  %v2166 = vsel %vm352, %v2161, 0
  %2168 = vmatprep.subr.bf16.mxu0 0
  %2169 = vmatpush1.bf16.xpose.msra.mxu0 0
  %2170 = vmatprep.subr.bf16.mxu0 0
  %2171 = vmatpush1.bf16.xpose.msra.mxu0 0
  %2172 = vmatprep.subr.bf16.mxu0 0
  %2173 = vmatpush1.bf16.xpose.msra.mxu0 0
  %2174 = vmatprep.subr.bf16.mxu0 0
  %2175 = vmatpush1.bf16.xpose.msra.mxu0 0
  %2176 = vmatprep.subr.bf16.mxu0 0
  %2177 = vmatpush1.bf16.xpose.msra.mxu0 0
  %2178 = vmatprep.subr.bf16.mxu0 0
  %2179 = vmatpush1.bf16.xpose.msra.mxu0 0
  %2180 = vmatprep.subr.bf16.mxu0 0
  %2181 = vmatpush1.bf16.xpose.msra.mxu0 0
  %2182 = vmatprep.subr.bf16.mxu0 0
  %2183 = vmatpush1.bf16.xpose.msra.mxu0 %v2166
  %2184 = vmatprep.subr.bf16.mxu0 0
  %2185 = vmatpush2.bf16.xpose.msra.mxu0 0
  %2186 = vmatprep.subr.bf16.mxu0 0
  %2187 = vmatpush2.bf16.xpose.msra.mxu0 0
  %2188 = vmatprep.subr.bf16.mxu0 0
  %2189 = vmatpush2.bf16.xpose.msra.mxu0 0
  %2190 = vmatprep.subr.bf16.mxu0 0
  %2191 = vmatpush2.bf16.xpose.msra.mxu0 0
  %2192 = vmatprep.subr.bf16.mxu0 0
  %2193 = vmatpush2.bf16.xpose.msra.mxu0 0
  %2194 = vmatprep.subr.bf16.mxu0 0
  %2195 = vmatpush2.bf16.xpose.msra.mxu0 0
  %2196 = vmatprep.subr.bf16.mxu0 0
  %2197 = vmatpush2.bf16.xpose.msra.mxu0 0
  %2198 = vmatprep.subr.bf16.mxu0 0
  %2199 = vmatpush2.bf16.xpose.msra.mxu0 0
  %2200 = vmatprep.mubr.bf16.mxu0 0
  %2201 = vmatmul.mubr.bf16.gmra.mxu0 %v2163
  %v2202 = vpop.f32.mrf.mxu0
  %v2203 = vadd.f32 0.0, %v2202
  %v2204 = vpop.f32.mrf.mxu0
  %v2205 = vpop.f32.mrf.mxu0
  %v2206 = vpop.f32.mrf.mxu0
  %2207 = vdwg.mxu0
  %v2208 = vmul.f32 %v2153, 0.35355338
  %v2209 = vmul.f32 %v2203, 0.35355338
  %v2210 = vsel %vm352, %v2208, -inf
  %2211 = vmax.xlane.f32.xlu0 %v2210
  %v2212 = vpop.xlane.xlu0 %2211
  %v2213 = vsel %vm352, %v2209, -inf
  %2214 = vmax.xlane.f32.xlu0 %v2213
  %v2215 = vpop.xlane.xlu0 %2214
  %v2216 = vsub.f32 %v2208, %v2212
  %v2217 = vsub.f32 %v2209, %v2215
  %v2218 = vmul.f32 %v2216, 1.442695
  %v2219 = vpow.pop %v2218
  %v2220 = vmul.f32 %v2217, 1.442695
  %v2221 = vpow.pop %v2220
  %v2222 = vsel %vm352, %v2219, 0.0
  %2223 = vadd.xlane.f32.xlu0 %v2222
  %v2224 = vpop.xlane.xlu0 %2223
  %v2225 = vsel %vm352, %v2221, 0.0
  %2226 = vadd.xlane.f32.xlu0 %v2225
  %v2227 = vpop.xlane.xlu0 %2226
  %v2228 = vrcp.pop %v2224
  %v2229 = vrcp.pop %v2227
  %v2230 = vmul.f32 %v2219, %v2228
  %v2231 = vmul.f32 %v2221, %v2229
  %v2232 = vpack.c.bf16 %v2230, %v2230
  %v2233 = vpack.c.bf16 %v2231, %v2231
  %2234 = vrot.lane.b32.xlu0 %v1652, 48
  %v2235 = vpop.permute.xlu0 %2234
  %v2237 = vsel %vm352, %v2232, 0
  %v2240 = vsel %vm479, %v2235, 0
  %2242 = vmatprep.subr.bf16.mxu0 0
  %2243 = vmatpush1.bf16.msra.mxu0 0
  %2244 = vmatprep.subr.bf16.mxu0 0
  %2245 = vmatpush1.bf16.msra.mxu0 0
  %2246 = vmatprep.subr.bf16.mxu0 0
  %2247 = vmatpush1.bf16.msra.mxu0 0
  %2248 = vmatprep.subr.bf16.mxu0 0
  %2249 = vmatpush1.bf16.msra.mxu0 0
  %2250 = vmatprep.subr.bf16.mxu0 0
  %2251 = vmatpush1.bf16.msra.mxu0 0
  %2252 = vmatprep.subr.bf16.mxu0 0
  %2253 = vmatpush1.bf16.msra.mxu0 0
  %2254 = vmatprep.subr.bf16.mxu0 0
  %2255 = vmatpush1.bf16.msra.mxu0 0
  %2256 = vmatprep.subr.bf16.mxu0 0
  %2257 = vmatpush1.bf16.msra.mxu0 %v2240
  %2258 = vmatprep.subr.bf16.mxu0 0
  %2259 = vmatpush2.bf16.msra.mxu0 0
  %2260 = vmatprep.subr.bf16.mxu0 0
  %2261 = vmatpush2.bf16.msra.mxu0 0
  %2262 = vmatprep.subr.bf16.mxu0 0
  %2263 = vmatpush2.bf16.msra.mxu0 0
  %2264 = vmatprep.subr.bf16.mxu0 0
  %2265 = vmatpush2.bf16.msra.mxu0 0
  %2266 = vmatprep.subr.bf16.mxu0 0
  %2267 = vmatpush2.bf16.msra.mxu0 0
  %2268 = vmatprep.subr.bf16.mxu0 0
  %2269 = vmatpush2.bf16.msra.mxu0 0
  %2270 = vmatprep.subr.bf16.mxu0 0
  %2271 = vmatpush2.bf16.msra.mxu0 0
  %2272 = vmatprep.subr.bf16.mxu0 0
  %2273 = vmatpush2.bf16.msra.mxu0 0
  %2274 = vmatprep.mubr.bf16.mxu0 0
  %2275 = vmatmul.mubr.bf16.gmra.mxu0 %v2237
  %v2276 = vpop.f32.mrf.mxu0
  %v2277 = vadd.f32 0.0, %v2276
  %v2278 = vpop.f32.mrf.mxu0
  %v2279 = vpop.f32.mrf.mxu0
  %v2280 = vpop.f32.mrf.mxu0
  %2281 = vdwg.mxu0
  %2282 = vrot.lane.b32.xlu0 %v1653, 48
  %v2283 = vpop.permute.xlu0 %2282
  %v2285 = vsel %vm352, %v2233, 0
  %v2288 = vsel %vm479, %v2283, 0
  %2290 = vmatprep.subr.bf16.mxu0 0
  %2291 = vmatpush1.bf16.msra.mxu0 0
  %2292 = vmatprep.subr.bf16.mxu0 0
  %2293 = vmatpush1.bf16.msra.mxu0 0
  %2294 = vmatprep.subr.bf16.mxu0 0
  %2295 = vmatpush1.bf16.msra.mxu0 0
  %2296 = vmatprep.subr.bf16.mxu0 0
  %2297 = vmatpush1.bf16.msra.mxu0 0
  %2298 = vmatprep.subr.bf16.mxu0 0
  %2299 = vmatpush1.bf16.msra.mxu0 0
  %2300 = vmatprep.subr.bf16.mxu0 0
  %2301 = vmatpush1.bf16.msra.mxu0 0
  %2302 = vmatprep.subr.bf16.mxu0 0
  %2303 = vmatpush1.bf16.msra.mxu0 0
  %2304 = vmatprep.subr.bf16.mxu0 0
  %2305 = vmatpush1.bf16.msra.mxu0 %v2288
  %2306 = vmatprep.subr.bf16.mxu0 0
  %2307 = vmatpush2.bf16.msra.mxu0 0
  %2308 = vmatprep.subr.bf16.mxu0 0
  %2309 = vmatpush2.bf16.msra.mxu0 0
  %2310 = vmatprep.subr.bf16.mxu0 0
  %2311 = vmatpush2.bf16.msra.mxu0 0
  %2312 = vmatprep.subr.bf16.mxu0 0
  %2313 = vmatpush2.bf16.msra.mxu0 0
  %2314 = vmatprep.subr.bf16.mxu0 0
  %2315 = vmatpush2.bf16.msra.mxu0 0
  %2316 = vmatprep.subr.bf16.mxu0 0
  %2317 = vmatpush2.bf16.msra.mxu0 0
  %2318 = vmatprep.subr.bf16.mxu0 0
  %2319 = vmatpush2.bf16.msra.mxu0 0
  %2320 = vmatprep.subr.bf16.mxu0 0
  %2321 = vmatpush2.bf16.msra.mxu0 0
  %2322 = vmatprep.mubr.bf16.mxu0 0
  %2323 = vmatmul.mubr.bf16.gmra.mxu0 %v2285
  %v2324 = vpop.f32.mrf.mxu0
  %v2325 = vadd.f32 0.0, %v2324
  %v2326 = vpop.f32.mrf.mxu0
  %v2327 = vpop.f32.mrf.mxu0
  %v2328 = vpop.f32.mrf.mxu0
  %2329 = vdwg.mxu0
  %2332 = vrot.lane.b32.xlu0 %v2277, 16
  %v2333 = vpop.permute.xlu0 %2332
  %2334 = vrot.lane.b32.xlu0 %v2325, 16
  %v2335 = vpop.permute.xlu0 %2334
  %2338 = vst.msk [vmem:[#allocation2] sm:$0xff] %vm1036, %v2333
  %2339 = vst.msk [vmem:[#allocation2 + $0x10] sm:$0xff] %vm1036, %v2335
  %2340 = vrot.lane.b32.xlu0 %v1652, 104
  %v2341 = vpop.permute.xlu0 %2340
  %2342 = vrot.lane.b32.xlu0 %v1652, 72
  %v2343 = vpop.permute.xlu0 %2342
  %v2345 = vsel %vm352, %v2341, 0
  %v2348 = vsel %vm352, %v2343, 0
  %2350 = vmatprep.subr.bf16.mxu0 0
  %2351 = vmatpush1.bf16.xpose.msra.mxu0 0
  %2352 = vmatprep.subr.bf16.mxu0 0
  %2353 = vmatpush1.bf16.xpose.msra.mxu0 0
  %2354 = vmatprep.subr.bf16.mxu0 0
  %2355 = vmatpush1.bf16.xpose.msra.mxu0 0
  %2356 = vmatprep.subr.bf16.mxu0 0
  %2357 = vmatpush1.bf16.xpose.msra.mxu0 0
  %2358 = vmatprep.subr.bf16.mxu0 0
  %2359 = vmatpush1.bf16.xpose.msra.mxu0 0
  %2360 = vmatprep.subr.bf16.mxu0 0
  %2361 = vmatpush1.bf16.xpose.msra.mxu0 0
  %2362 = vmatprep.subr.bf16.mxu0 0
  %2363 = vmatpush1.bf16.xpose.msra.mxu0 0
  %2364 = vmatprep.subr.bf16.mxu0 0
  %2365 = vmatpush1.bf16.xpose.msra.mxu0 %v2348
  %2366 = vmatprep.subr.bf16.mxu0 0
  %2367 = vmatpush2.bf16.xpose.msra.mxu0 0
  %2368 = vmatprep.subr.bf16.mxu0 0
  %2369 = vmatpush2.bf16.xpose.msra.mxu0 0
  %2370 = vmatprep.subr.bf16.mxu0 0
  %2371 = vmatpush2.bf16.xpose.msra.mxu0 0
  %2372 = vmatprep.subr.bf16.mxu0 0
  %2373 = vmatpush2.bf16.xpose.msra.mxu0 0
  %2374 = vmatprep.subr.bf16.mxu0 0
  %2375 = vmatpush2.bf16.xpose.msra.mxu0 0
  %2376 = vmatprep.subr.bf16.mxu0 0
  %2377 = vmatpush2.bf16.xpose.msra.mxu0 0
  %2378 = vmatprep.subr.bf16.mxu0 0
  %2379 = vmatpush2.bf16.xpose.msra.mxu0 0
  %2380 = vmatprep.subr.bf16.mxu0 0
  %2381 = vmatpush2.bf16.xpose.msra.mxu0 0
  %2382 = vmatprep.mubr.bf16.mxu0 0
  %2383 = vmatmul.mubr.bf16.gmra.mxu0 %v2345
  %v2384 = vpop.f32.mrf.mxu0
  %v2385 = vadd.f32 0.0, %v2384
  %v2386 = vpop.f32.mrf.mxu0
  %v2387 = vpop.f32.mrf.mxu0
  %v2388 = vpop.f32.mrf.mxu0
  %2389 = vdwg.mxu0
  %2390 = vrot.lane.b32.xlu0 %v1653, 104
  %v2391 = vpop.permute.xlu0 %2390
  %2392 = vrot.lane.b32.xlu0 %v1653, 72
  %v2393 = vpop.permute.xlu0 %2392
  %v2395 = vsel %vm352, %v2391, 0
  %v2398 = vsel %vm352, %v2393, 0
  %2400 = vmatprep.subr.bf16.mxu0 0
  %2401 = vmatpush1.bf16.xpose.msra.mxu0 0
  %2402 = vmatprep.subr.bf16.mxu0 0
  %2403 = vmatpush1.bf16.xpose.msra.mxu0 0
  %2404 = vmatprep.subr.bf16.mxu0 0
  %2405 = vmatpush1.bf16.xpose.msra.mxu0 0
  %2406 = vmatprep.subr.bf16.mxu0 0
  %2407 = vmatpush1.bf16.xpose.msra.mxu0 0
  %2408 = vmatprep.subr.bf16.mxu0 0
  %2409 = vmatpush1.bf16.xpose.msra.mxu0 0
  %2410 = vmatprep.subr.bf16.mxu0 0
  %2411 = vmatpush1.bf16.xpose.msra.mxu0 0
  %2412 = vmatprep.subr.bf16.mxu0 0
  %2413 = vmatpush1.bf16.xpose.msra.mxu0 0
  %2414 = vmatprep.subr.bf16.mxu0 0
  %2415 = vmatpush1.bf16.xpose.msra.mxu0 %v2398
  %2416 = vmatprep.subr.bf16.mxu0 0
  %2417 = vmatpush2.bf16.xpose.msra.mxu0 0
  %2418 = vmatprep.subr.bf16.mxu0 0
  %2419 = vmatpush2.bf16.xpose.msra.mxu0 0
  %2420 = vmatprep.subr.bf16.mxu0 0
  %2421 = vmatpush2.bf16.xpose.msra.mxu0 0
  %2422 = vmatprep.subr.bf16.mxu0 0
  %2423 = vmatpush2.bf16.xpose.msra.mxu0 0
  %2424 = vmatprep.subr.bf16.mxu0 0
  %2425 = vmatpush2.bf16.xpose.msra.mxu0 0
  %2426 = vmatprep.subr.bf16.mxu0 0
  %2427 = vmatpush2.bf16.xpose.msra.mxu0 0
  %2428 = vmatprep.subr.bf16.mxu0 0
  %2429 = vmatpush2.bf16.xpose.msra.mxu0 0
  %2430 = vmatprep.subr.bf16.mxu0 0
  %2431 = vmatpush2.bf16.xpose.msra.mxu0 0
  %2432 = vmatprep.mubr.bf16.mxu0 0
  %2433 = vmatmul.mubr.bf16.gmra.mxu0 %v2395
  %v2434 = vpop.f32.mrf.mxu0
  %v2435 = vadd.f32 0.0, %v2434
  %v2436 = vpop.f32.mrf.mxu0
  %v2437 = vpop.f32.mrf.mxu0
  %v2438 = vpop.f32.mrf.mxu0
  %2439 = vdwg.mxu0
  %v2440 = vmul.f32 %v2385, 0.35355338
  %v2441 = vmul.f32 %v2435, 0.35355338
  %v2442 = vsel %vm352, %v2440, -inf
  %2443 = vmax.xlane.f32.xlu0 %v2442
  %v2444 = vpop.xlane.xlu0 %2443
  %v2445 = vsel %vm352, %v2441, -inf
  %2446 = vmax.xlane.f32.xlu0 %v2445
  %v2447 = vpop.xlane.xlu0 %2446
  %v2448 = vsub.f32 %v2440, %v2444
  %v2449 = vsub.f32 %v2441, %v2447
  %v2450 = vmul.f32 %v2448, 1.442695
  %v2451 = vpow.pop %v2450
  %v2452 = vmul.f32 %v2449, 1.442695
  %v2453 = vpow.pop %v2452
  %v2454 = vsel %vm352, %v2451, 0.0
  %2455 = vadd.xlane.f32.xlu0 %v2454
  %v2456 = vpop.xlane.xlu0 %2455
  %v2457 = vsel %vm352, %v2453, 0.0
  %2458 = vadd.xlane.f32.xlu0 %v2457
  %v2459 = vpop.xlane.xlu0 %2458
  %v2460 = vrcp.pop %v2456
  %v2461 = vrcp.pop %v2459
  %v2462 = vmul.f32 %v2451, %v2460
  %v2463 = vmul.f32 %v2453, %v2461
  %v2464 = vpack.c.bf16 %v2462, %v2462
  %v2465 = vpack.c.bf16 %v2463, %v2463
  %2466 = vrot.lane.b32.xlu0 %v1652, 40
  %v2467 = vpop.permute.xlu0 %2466
  %v2469 = vsel %vm352, %v2464, 0
  %v2472 = vsel %vm479, %v2467, 0
  %2474 = vmatprep.subr.bf16.mxu0 0
  %2475 = vmatpush1.bf16.msra.mxu0 0
  %2476 = vmatprep.subr.bf16.mxu0 0
  %2477 = vmatpush1.bf16.msra.mxu0 0
  %2478 = vmatprep.subr.bf16.mxu0 0
  %2479 = vmatpush1.bf16.msra.mxu0 0
  %2480 = vmatprep.subr.bf16.mxu0 0
  %2481 = vmatpush1.bf16.msra.mxu0 0
  %2482 = vmatprep.subr.bf16.mxu0 0
  %2483 = vmatpush1.bf16.msra.mxu0 0
  %2484 = vmatprep.subr.bf16.mxu0 0
  %2485 = vmatpush1.bf16.msra.mxu0 0
  %2486 = vmatprep.subr.bf16.mxu0 0
  %2487 = vmatpush1.bf16.msra.mxu0 0
  %2488 = vmatprep.subr.bf16.mxu0 0
  %2489 = vmatpush1.bf16.msra.mxu0 %v2472
  %2490 = vmatprep.subr.bf16.mxu0 0
  %2491 = vmatpush2.bf16.msra.mxu0 0
  %2492 = vmatprep.subr.bf16.mxu0 0
  %2493 = vmatpush2.bf16.msra.mxu0 0
  %2494 = vmatprep.subr.bf16.mxu0 0
  %2495 = vmatpush2.bf16.msra.mxu0 0
  %2496 = vmatprep.subr.bf16.mxu0 0
  %2497 = vmatpush2.bf16.msra.mxu0 0
  %2498 = vmatprep.subr.bf16.mxu0 0
  %2499 = vmatpush2.bf16.msra.mxu0 0
  %2500 = vmatprep.subr.bf16.mxu0 0
  %2501 = vmatpush2.bf16.msra.mxu0 0
  %2502 = vmatprep.subr.bf16.mxu0 0
  %2503 = vmatpush2.bf16.msra.mxu0 0
  %2504 = vmatprep.subr.bf16.mxu0 0
  %2505 = vmatpush2.bf16.msra.mxu0 0
  %2506 = vmatprep.mubr.bf16.mxu0 0
  %2507 = vmatmul.mubr.bf16.gmra.mxu0 %v2469
  %v2508 = vpop.f32.mrf.mxu0
  %v2509 = vadd.f32 0.0, %v2508
  %v2510 = vpop.f32.mrf.mxu0
  %v2511 = vpop.f32.mrf.mxu0
  %v2512 = vpop.f32.mrf.mxu0
  %2513 = vdwg.mxu0
  %2514 = vrot.lane.b32.xlu0 %v1653, 40
  %v2515 = vpop.permute.xlu0 %2514
  %v2517 = vsel %vm352, %v2465, 0
  %v2520 = vsel %vm479, %v2515, 0
  %2522 = vmatprep.subr.bf16.mxu0 0
  %2523 = vmatpush1.bf16.msra.mxu0 0
  %2524 = vmatprep.subr.bf16.mxu0 0
  %2525 = vmatpush1.bf16.msra.mxu0 0
  %2526 = vmatprep.subr.bf16.mxu0 0
  %2527 = vmatpush1.bf16.msra.mxu0 0
  %2528 = vmatprep.subr.bf16.mxu0 0
  %2529 = vmatpush1.bf16.msra.mxu0 0
  %2530 = vmatprep.subr.bf16.mxu0 0
  %2531 = vmatpush1.bf16.msra.mxu0 0
  %2532 = vmatprep.subr.bf16.mxu0 0
  %2533 = vmatpush1.bf16.msra.mxu0 0
  %2534 = vmatprep.subr.bf16.mxu0 0
  %2535 = vmatpush1.bf16.msra.mxu0 0
  %2536 = vmatprep.subr.bf16.mxu0 0
  %2537 = vmatpush1.bf16.msra.mxu0 %v2520
  %2538 = vmatprep.subr.bf16.mxu0 0
  %2539 = vmatpush2.bf16.msra.mxu0 0
  %2540 = vmatprep.subr.bf16.mxu0 0
  %2541 = vmatpush2.bf16.msra.mxu0 0
  %2542 = vmatprep.subr.bf16.mxu0 0
  %2543 = vmatpush2.bf16.msra.mxu0 0
  %2544 = vmatprep.subr.bf16.mxu0 0
  %2545 = vmatpush2.bf16.msra.mxu0 0
  %2546 = vmatprep.subr.bf16.mxu0 0
  %2547 = vmatpush2.bf16.msra.mxu0 0
  %2548 = vmatprep.subr.bf16.mxu0 0
  %2549 = vmatpush2.bf16.msra.mxu0 0
  %2550 = vmatprep.subr.bf16.mxu0 0
  %2551 = vmatpush2.bf16.msra.mxu0 0
  %2552 = vmatprep.subr.bf16.mxu0 0
  %2553 = vmatpush2.bf16.msra.mxu0 0
  %2554 = vmatprep.mubr.bf16.mxu0 0
  %2555 = vmatmul.mubr.bf16.gmra.mxu0 %v2517
  %v2556 = vpop.f32.mrf.mxu0
  %v2557 = vadd.f32 0.0, %v2556
  %v2558 = vpop.f32.mrf.mxu0
  %v2559 = vpop.f32.mrf.mxu0
  %v2560 = vpop.f32.mrf.mxu0
  %2561 = vdwg.mxu0
  %2564 = vrot.lane.b32.xlu0 %v2509, 24
  %v2565 = vpop.permute.xlu0 %2564
  %2566 = vrot.lane.b32.xlu0 %v2557, 24
  %v2567 = vpop.permute.xlu0 %2566
  %2570 = vst.msk [vmem:[#allocation2] sm:$0xff] %vm1269, %v2565
  %2571 = vst.msk [vmem:[#allocation2 + $0x10] sm:$0xff] %vm1269, %v2567
  %v2572 = vld [vmem:[#allocation2] sm:$0xff]
  %v2573 = vld [vmem:[#allocation2 + $0x10] sm:$0xff]
  %v2574 = vpack.c.bf16 %v2573, %v2572
  %v2579 = vunpack.c.l.b16 %v1584
  %v2580 = vunpack.c.l.b16 %v1585
  %v2581 = vunpack.c.l.b16 %v1586
  %v2582 = vunpack.c.l.b16 %v1587
  %v2583 = vpack.c.b16 %v2580, %v2579
  %v2584 = vpack.c.b16 %v2582, %v2581
  %v2588 = vsel %vm296, %v2574, 0
  %2590 = vmatprep.subr.bf16.mxu0 0
  %2591 = vmatpush1.bf16.msra.mxu0 0
  %2592 = vmatprep.subr.bf16.mxu0 0
  %2593 = vmatpush1.bf16.msra.mxu0 0
  %2594 = vmatprep.subr.bf16.mxu0 0
  %2595 = vmatpush1.bf16.msra.mxu0 0
  %2596 = vmatprep.subr.bf16.mxu0 0
  %2597 = vmatpush1.bf16.msra.mxu0 0
  %2598 = vmatprep.subr.bf16.mxu0 0
  %2599 = vmatpush1.bf16.msra.mxu0 0
  %2600 = vmatprep.subr.bf16.mxu0 0
  %2601 = vmatpush1.bf16.msra.mxu0 0
  %2602 = vmatprep.subr.bf16.mxu0 0
  %2603 = vmatpush1.bf16.msra.mxu0 %v2584
  %2604 = vmatprep.subr.bf16.mxu0 0
  %2605 = vmatpush1.bf16.msra.mxu0 %v2583
  %2606 = vmatprep.subr.bf16.mxu0 0
  %2607 = vmatpush2.bf16.msra.mxu0 0
  %2608 = vmatprep.subr.bf16.mxu0 0
  %2609 = vmatpush2.bf16.msra.mxu0 0
  %2610 = vmatprep.subr.bf16.mxu0 0
  %2611 = vmatpush2.bf16.msra.mxu0 0
  %2612 = vmatprep.subr.bf16.mxu0 0
  %2613 = vmatpush2.bf16.msra.mxu0 0
  %2614 = vmatprep.subr.bf16.mxu0 0
  %2615 = vmatpush2.bf16.msra.mxu0 0
  %2616 = vmatprep.subr.bf16.mxu0 0
  %2617 = vmatpush2.bf16.msra.mxu0 0
  %2618 = vmatprep.subr.bf16.mxu0 0
  %2619 = vmatpush2.bf16.msra.mxu0 0
  %2620 = vmatprep.subr.bf16.mxu0 0
  %2621 = vmatpush2.bf16.msra.mxu0 0
  %2622 = vmatprep.mubr.bf16.mxu0 0
  %2623 = vmatmul.mubr.bf16.gmra.mxu0 %v2588
  %v2624 = vpop.f32.mrf.mxu0
  %v2625 = vadd.f32 0.0, %v2624
  %v2626 = vpop.f32.mrf.mxu0
  %v2627 = vpop.f32.mrf.mxu0
  %v2628 = vadd.f32 0.0, %v2627
  %v2629 = vpop.f32.mrf.mxu0
  %2630 = vdwg.mxu0
  %v2631 = vlaneseq
  %v2632 = vshrl.u32 %v2631, 7
  %v2633 = vsub.s32 0, %v2632
  %v2634 = vrot.slane %v1588, %v2633
  %v2635 = vadd.f32 %v2625, %v2634
  %v2636 = vadd.f32 %v2628, %v2634
  %v2637 = vadd.f32 %v1575, %v2635
  %v2638 = vadd.f32 %v1576, %v2636
  %v2639 = vld [vmem:[%s9 + $0x11] sm:$0x1]
  %v2640 = vld [vmem:[%s9 + $0x12] sm:$0x1]
  %v2641 = vsel %vm296, %v2637, 0.0
  %2642 = vadd.xlane.f32.xlu0 %v2641
  %v2643 = vpop.xlane.xlu0 %2642
  %v2644 = vsel %vm296, %v2638, 0.0
  %2645 = vadd.xlane.f32.xlu0 %v2644
  %v2646 = vpop.xlane.xlu0 %2645
  %v2647 = vmul.f32 %v2643, %v1347
  %v2648 = vmul.f32 %v2646, %v1347
  %v2649 = vsub.f32 %v2637, %v2647
  %v2650 = vsub.f32 %v2638, %v2648
  %v2651 = vmul.f32 %v2649, %v2649
  %v2652 = vmul.f32 %v2650, %v2650
  %v2653 = vsel %vm296, %v2651, 0.0
  %2654 = vadd.xlane.f32.xlu0 %v2653
  %v2655 = vpop.xlane.xlu0 %2654
  %v2656 = vsel %vm296, %v2652, 0.0
  %2657 = vadd.xlane.f32.xlu0 %v2656
  %v2658 = vpop.xlane.xlu0 %2657
  %v2659 = vmul.f32 %v2655, %v1347
  %v2660 = vmul.f32 %v2658, %v1347
  %v2661 = vadd.f32 %v2659, 1e-05
  %v2662 = vadd.f32 %v2660, 1e-05
  %v2663 = vrsqrt.pop %v2661
  %v2664 = vrsqrt.pop %v2662
  %v2665 = vmul.f32 %v2649, %v2663
  %v2666 = vmul.f32 %v2650, %v2664
  %v2667 = vlaneseq
  %v2668 = vshrl.u32 %v2667, 7
  %v2669 = vsub.s32 0, %v2668
  %v2670 = vrot.slane %v2639, %v2669
  %v2671 = vmul.f32 %v2665, %v2670
  %v2672 = vmul.f32 %v2666, %v2670
  %v2673 = vlaneseq
  %v2674 = vshrl.u32 %v2673, 7
  %v2675 = vsub.s32 0, %v2674
  %v2676 = vrot.slane %v2640, %v2675
  %v2677 = vadd.f32 %v2671, %v2676
  %v2678 = vadd.f32 %v2672, %v2676
  %s2679 = scalar_lea.vmem %s5, 16
  %v2680 = vld [vmem:[%s2679] sm:$0xf]
  %v2681 = vld [vmem:[%s2679 + $0x4] sm:$0xf]
  %v2682 = vld [vmem:[%s2679 + $0x8] sm:$0xf]
  %v2683 = vld [vmem:[%s2679 + $0xc] sm:$0xf]
  %v2684 = vld [vmem:[%s9 + $0xf] sm:$0x1]
  %v2685 = vpack.c.bf16 %v2678, %v2677
  %v2690 = vunpack.c.l.b16 %v2680
  %v2691 = vunpack.c.l.b16 %v2681
  %v2692 = vunpack.c.l.b16 %v2682
  %v2693 = vunpack.c.l.b16 %v2683
  %v2694 = vpack.c.b16 %v2691, %v2690
  %v2695 = vpack.c.b16 %v2693, %v2692
  %v2699 = vsel %vm296, %v2685, 0
  %2701 = vmatprep.subr.bf16.mxu0 0
  %2702 = vmatpush1.bf16.msra.mxu0 0
  %2703 = vmatprep.subr.bf16.mxu0 0
  %2704 = vmatpush1.bf16.msra.mxu0 0
  %2705 = vmatprep.subr.bf16.mxu0 0
  %2706 = vmatpush1.bf16.msra.mxu0 0
  %2707 = vmatprep.subr.bf16.mxu0 0
  %2708 = vmatpush1.bf16.msra.mxu0 0
  %2709 = vmatprep.subr.bf16.mxu0 0
  %2710 = vmatpush1.bf16.msra.mxu0 0
  %2711 = vmatprep.subr.bf16.mxu0 0
  %2712 = vmatpush1.bf16.msra.mxu0 0
  %2713 = vmatprep.subr.bf16.mxu0 0
  %2714 = vmatpush1.bf16.msra.mxu0 %v2695
  %2715 = vmatprep.subr.bf16.mxu0 0
  %2716 = vmatpush1.bf16.msra.mxu0 %v2694
  %2717 = vmatprep.subr.bf16.mxu0 0
  %2718 = vmatpush2.bf16.msra.mxu0 0
  %2719 = vmatprep.subr.bf16.mxu0 0
  %2720 = vmatpush2.bf16.msra.mxu0 0
  %2721 = vmatprep.subr.bf16.mxu0 0
  %2722 = vmatpush2.bf16.msra.mxu0 0
  %2723 = vmatprep.subr.bf16.mxu0 0
  %2724 = vmatpush2.bf16.msra.mxu0 0
  %2725 = vmatprep.subr.bf16.mxu0 0
  %2726 = vmatpush2.bf16.msra.mxu0 0
  %2727 = vmatprep.subr.bf16.mxu0 0
  %2728 = vmatpush2.bf16.msra.mxu0 0
  %2729 = vmatprep.subr.bf16.mxu0 0
  %2730 = vmatpush2.bf16.msra.mxu0 0
  %2731 = vmatprep.subr.bf16.mxu0 0
  %2732 = vmatpush2.bf16.msra.mxu0 0
  %2733 = vmatprep.mubr.bf16.mxu0 0
  %2734 = vmatmul.mubr.bf16.gmra.mxu0 %v2699
  %v2735 = vpop.f32.mrf.mxu0
  %v2736 = vadd.f32 0.0, %v2735
  %v2737 = vpop.f32.mrf.mxu0
  %v2738 = vpop.f32.mrf.mxu0
  %v2739 = vadd.f32 0.0, %v2738
  %v2740 = vpop.f32.mrf.mxu0
  %2741 = vdwg.mxu0
  %v2742 = vlaneseq
  %v2743 = vshrl.u32 %v2742, 7
  %v2744 = vsub.s32 0, %v2743
  %v2745 = vrot.slane %v2684, %v2744
  %v2746 = vadd.f32 %v2736, %v2745
  %v2747 = vadd.f32 %v2739, %v2745
  %v2748 = vmax.f32 %v2746, 0.0
  %v2749 = vmax.f32 %v2747, 0.0
  %s2750 = scalar_lea.vmem %s6, 32
  %v2751 = vld [vmem:[%s2750] sm:$0xf]
  %v2752 = vld [vmem:[%s2750 + $0x4] sm:$0xf]
  %v2753 = vld [vmem:[%s2750 + $0x8] sm:$0xf]
  %v2754 = vld [vmem:[%s2750 + $0xc] sm:$0xf]
  %v2755 = vld [vmem:[%s2750 + $0x10] sm:$0xf]
  %v2756 = vld [vmem:[%s2750 + $0x14] sm:$0xf]
  %v2757 = vld [vmem:[%s2750 + $0x18] sm:$0xf]
  %v2758 = vld [vmem:[%s2750 + $0x1c] sm:$0xf]
  %v2759 = vld [vmem:[%s9 + $0x10] sm:$0x1]
  %v2760 = vpack.c.bf16 %v2749, %v2748
  %v2769 = vunpack.c.l.b16 %v2751
  %v2770 = vunpack.c.l.b16 %v2752
  %v2771 = vunpack.c.l.b16 %v2753
  %v2772 = vunpack.c.l.b16 %v2754
  %v2773 = vunpack.c.l.b16 %v2755
  %v2774 = vunpack.c.l.b16 %v2756
  %v2775 = vunpack.c.l.b16 %v2757
  %v2776 = vunpack.c.l.b16 %v2758
  %v2777 = vpack.c.b16 %v2770, %v2769
  %v2778 = vpack.c.b16 %v2772, %v2771
  %v2779 = vpack.c.b16 %v2774, %v2773
  %v2780 = vpack.c.b16 %v2776, %v2775
  %v2786 = vsel %vm1484, %v2760, 0
  %2788 = vmatprep.subr.bf16.mxu0 0
  %2789 = vmatpush1.bf16.msra.mxu0 0
  %2790 = vmatprep.subr.bf16.mxu0 0
  %2791 = vmatpush1.bf16.msra.mxu0 0
  %2792 = vmatprep.subr.bf16.mxu0 0
  %2793 = vmatpush1.bf16.msra.mxu0 0
  %2794 = vmatprep.subr.bf16.mxu0 0
  %2795 = vmatpush1.bf16.msra.mxu0 0
  %2796 = vmatprep.subr.bf16.mxu0 0
  %2797 = vmatpush1.bf16.msra.mxu0 %v2780
  %2798 = vmatprep.subr.bf16.mxu0 0
  %2799 = vmatpush1.bf16.msra.mxu0 %v2779
  %2800 = vmatprep.subr.bf16.mxu0 0
  %2801 = vmatpush1.bf16.msra.mxu0 %v2778
  %2802 = vmatprep.subr.bf16.mxu0 0
  %2803 = vmatpush1.bf16.msra.mxu0 %v2777
  %2804 = vmatprep.subr.bf16.mxu0 0
  %2805 = vmatpush2.bf16.msra.mxu0 0
  %2806 = vmatprep.subr.bf16.mxu0 0
  %2807 = vmatpush2.bf16.msra.mxu0 0
  %2808 = vmatprep.subr.bf16.mxu0 0
  %2809 = vmatpush2.bf16.msra.mxu0 0
  %2810 = vmatprep.subr.bf16.mxu0 0
  %2811 = vmatpush2.bf16.msra.mxu0 0
  %2812 = vmatprep.subr.bf16.mxu0 0
  %2813 = vmatpush2.bf16.msra.mxu0 0
  %2814 = vmatprep.subr.bf16.mxu0 0
  %2815 = vmatpush2.bf16.msra.mxu0 0
  %2816 = vmatprep.subr.bf16.mxu0 0
  %2817 = vmatpush2.bf16.msra.mxu0 0
  %2818 = vmatprep.subr.bf16.mxu0 0
  %2819 = vmatpush2.bf16.msra.mxu0 0
  %2820 = vmatprep.mubr.bf16.mxu0 0
  %2821 = vmatmul.mubr.bf16.gmra.mxu0 %v2786
  %v2822 = vpop.f32.mrf.mxu0
  %v2823 = vadd.f32 0.0, %v2822
  %v2824 = vpop.f32.mrf.mxu0
  %v2825 = vpop.f32.mrf.mxu0
  %v2826 = vadd.f32 0.0, %v2825
  %v2827 = vpop.f32.mrf.mxu0
  %2828 = vdwg.mxu0
  %v2829 = vlaneseq
  %v2830 = vshrl.u32 %v2829, 7
  %v2831 = vsub.s32 0, %v2830
  %v2832 = vrot.slane %v2759, %v2831
  %v2833 = vadd.f32 %v2823, %v2832
  %v2834 = vadd.f32 %v2826, %v2832
  %v2835 = vadd.f32 %v2677, %v2833
  %v2836 = vadd.f32 %v2678, %v2834
  %v2837 = vld [vmem:[%s9 + $0x13] sm:$0x1]
  %v2838 = vld [vmem:[%s9 + $0x14] sm:$0x1]
  %v2839 = vsel %vm296, %v2835, 0.0
  %2840 = vadd.xlane.f32.xlu0 %v2839
  %v2841 = vpop.xlane.xlu0 %2840
  %v2842 = vsel %vm296, %v2836, 0.0
  %2843 = vadd.xlane.f32.xlu0 %v2842
  %v2844 = vpop.xlane.xlu0 %2843
  %v2845 = vmul.f32 %v2841, %v1347
  %v2846 = vmul.f32 %v2844, %v1347
  %v2847 = vsub.f32 %v2835, %v2845
  %v2848 = vsub.f32 %v2836, %v2846
  %v2849 = vmul.f32 %v2847, %v2847
  %v2850 = vmul.f32 %v2848, %v2848
  %v2851 = vsel %vm296, %v2849, 0.0
  %2852 = vadd.xlane.f32.xlu0 %v2851
  %v2853 = vpop.xlane.xlu0 %2852
  %v2854 = vsel %vm296, %v2850, 0.0
  %2855 = vadd.xlane.f32.xlu0 %v2854
  %v2856 = vpop.xlane.xlu0 %2855
  %v2857 = vmul.f32 %v2853, %v1347
  %v2858 = vmul.f32 %v2856, %v1347
  %v2859 = vadd.f32 %v2857, 1e-05
  %v2860 = vadd.f32 %v2858, 1e-05
  %v2861 = vrsqrt.pop %v2859
  %v2862 = vrsqrt.pop %v2860
  %v2863 = vmul.f32 %v2847, %v2861
  %v2864 = vmul.f32 %v2848, %v2862
  %v2865 = vlaneseq
  %v2866 = vshrl.u32 %v2865, 7
  %v2867 = vsub.s32 0, %v2866
  %v2868 = vrot.slane %v2837, %v2867
  %v2869 = vmul.f32 %v2863, %v2868
  %v2870 = vmul.f32 %v2864, %v2868
  %v2871 = vlaneseq
  %v2872 = vshrl.u32 %v2871, 7
  %v2873 = vsub.s32 0, %v2872
  %v2874 = vrot.slane %v2838, %v2873
  %v2875 = vadd.f32 %v2869, %v2874
  %v2876 = vadd.f32 %v2870, %v2874
  %v2877 = vld [vmem:[%s9 + $0x1] sm:$0x1]
  %v2878 = vld [vmem:[%s9 + $0x2] sm:$0x1]
  %v2879 = vsel %vm296, %v2875, 0.0
  %2880 = vadd.xlane.f32.xlu0 %v2879
  %v2881 = vpop.xlane.xlu0 %2880
  %v2882 = vsel %vm296, %v2876, 0.0
  %2883 = vadd.xlane.f32.xlu0 %v2882
  %v2884 = vpop.xlane.xlu0 %2883
  %v2885 = vmul.f32 %v2881, %v1347
  %v2886 = vmul.f32 %v2884, %v1347
  %v2887 = vsub.f32 %v2875, %v2885
  %v2888 = vsub.f32 %v2876, %v2886
  %v2889 = vmul.f32 %v2887, %v2887
  %v2890 = vmul.f32 %v2888, %v2888
  %v2891 = vsel %vm296, %v2889, 0.0
  %2892 = vadd.xlane.f32.xlu0 %v2891
  %v2893 = vpop.xlane.xlu0 %2892
  %v2894 = vsel %vm296, %v2890, 0.0
  %2895 = vadd.xlane.f32.xlu0 %v2894
  %v2896 = vpop.xlane.xlu0 %2895
  %v2897 = vmul.f32 %v2893, %v1347
  %v2898 = vmul.f32 %v2896, %v1347
  %v2899 = vadd.f32 %v2897, 1e-05
  %v2900 = vadd.f32 %v2898, 1e-05
  %v2901 = vrsqrt.pop %v2899
  %v2902 = vrsqrt.pop %v2900
  %v2903 = vmul.f32 %v2887, %v2901
  %v2904 = vmul.f32 %v2888, %v2902
  %v2905 = vlaneseq
  %v2906 = vshrl.u32 %v2905, 7
  %v2907 = vsub.s32 0, %v2906
  %v2908 = vrot.slane %v2877, %v2907
  %v2909 = vmul.f32 %v2903, %v2908
  %v2910 = vmul.f32 %v2904, %v2908
  %v2911 = vlaneseq
  %v2912 = vshrl.u32 %v2911, 7
  %v2913 = vsub.s32 0, %v2912
  %v2914 = vrot.slane %v2878, %v2913
  %v2915 = vadd.f32 %v2909, %v2914
  %v2916 = vadd.f32 %v2910, %v2914
  %v2917 = vld [vmem:[%s9 + $0x2f] sm:$0xff]
  %v2918 = vld [vmem:[%s9 + $0x37] sm:$0xff]
  %v2919 = vld [vmem:[%s1] sm:$0xff]
  %v2920 = vld [vmem:[%s1 + $0x8] sm:$0xff]
  %v2921 = vld [vmem:[%s1 + $0x10] sm:$0xff]
  %v2922 = vld [vmem:[%s1 + $0x18] sm:$0xff]
  %v2923 = vld [vmem:[%s8 + $0x8] sm:$0xf]
  %v2924 = vld [vmem:[%s8 + $0xc] sm:$0xf]
  %v2925 = vpack.c.bf16 %v2920, %v2919
  %v2926 = vpack.c.bf16 %v2922, %v2921
  %v2929 = vunpack.c.l.b16 %v2923
  %v2930 = vunpack.c.l.b16 %v2924
  %v2931 = vpack.c.b16 %v2930, %v2929
  %v2934 = vsel %vm38, %v2925, 0
  %v2937 = vsel %vm38, %v2926, 0
  %2939 = vmatprep.subr.bf16.mxu0 0
  %2940 = vmatpush1.bf16.msra.mxu0 0
  %2941 = vmatprep.subr.bf16.mxu0 0
  %2942 = vmatpush1.bf16.msra.mxu0 0
  %2943 = vmatprep.subr.bf16.mxu0 0
  %2944 = vmatpush1.bf16.msra.mxu0 0
  %2945 = vmatprep.subr.bf16.mxu0 0
  %2946 = vmatpush1.bf16.msra.mxu0 0
  %2947 = vmatprep.subr.bf16.mxu0 0
  %2948 = vmatpush1.bf16.msra.mxu0 0
  %2949 = vmatprep.subr.bf16.mxu0 0
  %2950 = vmatpush1.bf16.msra.mxu0 0
  %2951 = vmatprep.subr.bf16.mxu0 0
  %2952 = vmatpush1.bf16.msra.mxu0 0
  %2953 = vmatprep.subr.bf16.mxu0 0
  %2954 = vmatpush1.bf16.msra.mxu0 %v2931
  %2955 = vmatprep.subr.bf16.mxu0 0
  %2956 = vmatpush2.bf16.msra.mxu0 0
  %2957 = vmatprep.subr.bf16.mxu0 0
  %2958 = vmatpush2.bf16.msra.mxu0 0
  %2959 = vmatprep.subr.bf16.mxu0 0
  %2960 = vmatpush2.bf16.msra.mxu0 0
  %2961 = vmatprep.subr.bf16.mxu0 0
  %2962 = vmatpush2.bf16.msra.mxu0 0
  %2963 = vmatprep.subr.bf16.mxu0 0
  %2964 = vmatpush2.bf16.msra.mxu0 0
  %2965 = vmatprep.subr.bf16.mxu0 0
  %2966 = vmatpush2.bf16.msra.mxu0 0
  %2967 = vmatprep.subr.bf16.mxu0 0
  %2968 = vmatpush2.bf16.msra.mxu0 0
  %2969 = vmatprep.subr.bf16.mxu0 0
  %2970 = vmatpush2.bf16.msra.mxu0 0
  %2971 = vmatprep.mubr.bf16.mxu0 0
  %2972 = vmatmul.mubr.bf16.gmra.mxu0 %v2934
  %v2973 = vpop.f32.mrf.mxu0
  %v2974 = vadd.f32 0.0, %v2973
  %v2975 = vpop.f32.mrf.mxu0
  %v2976 = vpop.f32.mrf.mxu0
  %v2977 = vadd.f32 0.0, %v2976
  %v2978 = vpop.f32.mrf.mxu0
  %2979 = vmatprep.mubr.bf16.mxu0 0
  %2980 = vmatmul.mubr.bf16.gmra.mxu0 %v2937
  %v2981 = vpop.f32.mrf.mxu0
  %v2982 = vadd.f32 0.0, %v2981
  %v2983 = vpop.f32.mrf.mxu0
  %v2984 = vpop.f32.mrf.mxu0
  %v2985 = vadd.f32 0.0, %v2984
  %v2986 = vpop.f32.mrf.mxu0
  %2987 = vdwg.mxu0
  %v2988 = vadd.f32 %v2974, %v2917
  %v2989 = vadd.f32 %v2977, %v2918
  %v2990 = vadd.f32 %v2982, %v2917
  %v2991 = vadd.f32 %v2985, %v2918
  %s2992 = scalar_lea.vmem %s2, 32
  %v2993 = vld [vmem:[%s2992] sm:$0xf]
  %v2994 = vld [vmem:[%s2992 + $0x4] sm:$0xf]
  %v2995 = vld [vmem:[%s2992 + $0x8] sm:$0xf]
  %v2996 = vld [vmem:[%s2992 + $0xc] sm:$0xf]
  %v2997 = vld [vmem:[%s9 + $0x15] sm:$0x1]
  %s2998 = scalar_lea.vmem %s3, 32
  %v2999 = vld [vmem:[%s2998] sm:$0xf]
  %v3000 = vld [vmem:[%s2998 + $0x4] sm:$0xf]
  %v3001 = vld [vmem:[%s2998 + $0x8] sm:$0xf]
  %v3002 = vld [vmem:[%s2998 + $0xc] sm:$0xf]
  %v3003 = vld [vmem:[%s9 + $0x16] sm:$0x1]
  %v3004 = vpack.c.bf16 %v2989, %v2988
  %v3005 = vpack.c.bf16 %v2991, %v2990
  %v3010 = vunpack.c.l.b16 %v2993
  %v3011 = vunpack.c.l.b16 %v2994
  %v3012 = vunpack.c.l.b16 %v2995
  %v3013 = vunpack.c.l.b16 %v2996
  %v3014 = vpack.c.b16 %v3011, %v3010
  %v3015 = vpack.c.b16 %v3013, %v3012
  %v3019 = vsel %vm296, %v3004, 0
  %v3022 = vsel %vm296, %v3005, 0
  %3024 = vmatprep.subr.bf16.mxu0 0
  %3025 = vmatpush1.bf16.msra.mxu0 0
  %3026 = vmatprep.subr.bf16.mxu0 0
  %3027 = vmatpush1.bf16.msra.mxu0 0
  %3028 = vmatprep.subr.bf16.mxu0 0
  %3029 = vmatpush1.bf16.msra.mxu0 0
  %3030 = vmatprep.subr.bf16.mxu0 0
  %3031 = vmatpush1.bf16.msra.mxu0 0
  %3032 = vmatprep.subr.bf16.mxu0 0
  %3033 = vmatpush1.bf16.msra.mxu0 0
  %3034 = vmatprep.subr.bf16.mxu0 0
  %3035 = vmatpush1.bf16.msra.mxu0 0
  %3036 = vmatprep.subr.bf16.mxu0 0
  %3037 = vmatpush1.bf16.msra.mxu0 %v3015
  %3038 = vmatprep.subr.bf16.mxu0 0
  %3039 = vmatpush1.bf16.msra.mxu0 %v3014
  %3040 = vmatprep.subr.bf16.mxu0 0
  %3041 = vmatpush2.bf16.msra.mxu0 0
  %3042 = vmatprep.subr.bf16.mxu0 0
  %3043 = vmatpush2.bf16.msra.mxu0 0
  %3044 = vmatprep.subr.bf16.mxu0 0
  %3045 = vmatpush2.bf16.msra.mxu0 0
  %3046 = vmatprep.subr.bf16.mxu0 0
  %3047 = vmatpush2.bf16.msra.mxu0 0
  %3048 = vmatprep.subr.bf16.mxu0 0
  %3049 = vmatpush2.bf16.msra.mxu0 0
  %3050 = vmatprep.subr.bf16.mxu0 0
  %3051 = vmatpush2.bf16.msra.mxu0 0
  %3052 = vmatprep.subr.bf16.mxu0 0
  %3053 = vmatpush2.bf16.msra.mxu0 0
  %3054 = vmatprep.subr.bf16.mxu0 0
  %3055 = vmatpush2.bf16.msra.mxu0 0
  %3056 = vmatprep.mubr.bf16.mxu0 0
  %3057 = vmatmul.mubr.bf16.gmra.mxu0 %v3019
  %v3058 = vpop.f32.mrf.mxu0
  %v3059 = vadd.f32 0.0, %v3058
  %v3060 = vpop.f32.mrf.mxu0
  %v3061 = vpop.f32.mrf.mxu0
  %v3062 = vadd.f32 0.0, %v3061
  %v3063 = vpop.f32.mrf.mxu0
  %3064 = vmatprep.mubr.bf16.mxu0 0
  %3065 = vmatmul.mubr.bf16.gmra.mxu0 %v3022
  %v3066 = vpop.f32.mrf.mxu0
  %v3067 = vadd.f32 0.0, %v3066
  %v3068 = vpop.f32.mrf.mxu0
  %v3069 = vpop.f32.mrf.mxu0
  %v3070 = vadd.f32 0.0, %v3069
  %v3071 = vpop.f32.mrf.mxu0
  %3072 = vdwg.mxu0
  %v3073 = vlaneseq
  %v3074 = vshrl.u32 %v3073, 7
  %v3075 = vsub.s32 0, %v3074
  %v3076 = vrot.slane %v2997, %v3075
  %v3077 = vadd.f32 %v3059, %v3076
  %v3078 = vadd.f32 %v3062, %v3076
  %v3079 = vadd.f32 %v3067, %v3076
  %v3080 = vadd.f32 %v3070, %v3076
  %v3081 = vpack.c.bf16 %v3078, %v3077
  %v3082 = vpack.c.bf16 %v3080, %v3079
  %3084 = vrot.lane.b32.xlu0 %v3081, 96
  %v3085 = vpop.permute.xlu0 %3084
  %v3087 = vsel %vm352, %v3081, 0
  %v3090 = vsel %vm352, %v3085, 0
  %3092 = vmatprep.subr.bf16.mxu0 0
  %3093 = vmatpush1.bf16.xpose.msra.mxu0 0
  %3094 = vmatprep.subr.bf16.mxu0 0
  %3095 = vmatpush1.bf16.xpose.msra.mxu0 0
  %3096 = vmatprep.subr.bf16.mxu0 0
  %3097 = vmatpush1.bf16.xpose.msra.mxu0 0
  %3098 = vmatprep.subr.bf16.mxu0 0
  %3099 = vmatpush1.bf16.xpose.msra.mxu0 0
  %3100 = vmatprep.subr.bf16.mxu0 0
  %3101 = vmatpush1.bf16.xpose.msra.mxu0 0
  %3102 = vmatprep.subr.bf16.mxu0 0
  %3103 = vmatpush1.bf16.xpose.msra.mxu0 0
  %3104 = vmatprep.subr.bf16.mxu0 0
  %3105 = vmatpush1.bf16.xpose.msra.mxu0 0
  %3106 = vmatprep.subr.bf16.mxu0 0
  %3107 = vmatpush1.bf16.xpose.msra.mxu0 %v3090
  %3108 = vmatprep.subr.bf16.mxu0 0
  %3109 = vmatpush2.bf16.xpose.msra.mxu0 0
  %3110 = vmatprep.subr.bf16.mxu0 0
  %3111 = vmatpush2.bf16.xpose.msra.mxu0 0
  %3112 = vmatprep.subr.bf16.mxu0 0
  %3113 = vmatpush2.bf16.xpose.msra.mxu0 0
  %3114 = vmatprep.subr.bf16.mxu0 0
  %3115 = vmatpush2.bf16.xpose.msra.mxu0 0
  %3116 = vmatprep.subr.bf16.mxu0 0
  %3117 = vmatpush2.bf16.xpose.msra.mxu0 0
  %3118 = vmatprep.subr.bf16.mxu0 0
  %3119 = vmatpush2.bf16.xpose.msra.mxu0 0
  %3120 = vmatprep.subr.bf16.mxu0 0
  %3121 = vmatpush2.bf16.xpose.msra.mxu0 0
  %3122 = vmatprep.subr.bf16.mxu0 0
  %3123 = vmatpush2.bf16.xpose.msra.mxu0 0
  %3124 = vmatprep.mubr.bf16.mxu0 0
  %3125 = vmatmul.mubr.bf16.gmra.mxu0 %v3087
  %v3126 = vpop.f32.mrf.mxu0
  %v3127 = vadd.f32 0.0, %v3126
  %v3128 = vpop.f32.mrf.mxu0
  %v3129 = vpop.f32.mrf.mxu0
  %v3130 = vadd.f32 0.0, %v3129
  %v3131 = vpop.f32.mrf.mxu0
  %3132 = vdwg.mxu0
  %3134 = vrot.lane.b32.xlu0 %v3082, 96
  %v3135 = vpop.permute.xlu0 %3134
  %v3137 = vsel %vm352, %v3082, 0
  %v3140 = vsel %vm352, %v3135, 0
  %3142 = vmatprep.subr.bf16.mxu0 0
  %3143 = vmatpush1.bf16.xpose.msra.mxu0 0
  %3144 = vmatprep.subr.bf16.mxu0 0
  %3145 = vmatpush1.bf16.xpose.msra.mxu0 0
  %3146 = vmatprep.subr.bf16.mxu0 0
  %3147 = vmatpush1.bf16.xpose.msra.mxu0 0
  %3148 = vmatprep.subr.bf16.mxu0 0
  %3149 = vmatpush1.bf16.xpose.msra.mxu0 0
  %3150 = vmatprep.subr.bf16.mxu0 0
  %3151 = vmatpush1.bf16.xpose.msra.mxu0 0
  %3152 = vmatprep.subr.bf16.mxu0 0
  %3153 = vmatpush1.bf16.xpose.msra.mxu0 0
  %3154 = vmatprep.subr.bf16.mxu0 0
  %3155 = vmatpush1.bf16.xpose.msra.mxu0 0
  %3156 = vmatprep.subr.bf16.mxu0 0
  %3157 = vmatpush1.bf16.xpose.msra.mxu0 %v3140
  %3158 = vmatprep.subr.bf16.mxu0 0
  %3159 = vmatpush2.bf16.xpose.msra.mxu0 0
  %3160 = vmatprep.subr.bf16.mxu0 0
  %3161 = vmatpush2.bf16.xpose.msra.mxu0 0
  %3162 = vmatprep.subr.bf16.mxu0 0
  %3163 = vmatpush2.bf16.xpose.msra.mxu0 0
  %3164 = vmatprep.subr.bf16.mxu0 0
  %3165 = vmatpush2.bf16.xpose.msra.mxu0 0
  %3166 = vmatprep.subr.bf16.mxu0 0
  %3167 = vmatpush2.bf16.xpose.msra.mxu0 0
  %3168 = vmatprep.subr.bf16.mxu0 0
  %3169 = vmatpush2.bf16.xpose.msra.mxu0 0
  %3170 = vmatprep.subr.bf16.mxu0 0
  %3171 = vmatpush2.bf16.xpose.msra.mxu0 0
  %3172 = vmatprep.subr.bf16.mxu0 0
  %3173 = vmatpush2.bf16.xpose.msra.mxu0 0
  %3174 = vmatprep.mubr.bf16.mxu0 0
  %3175 = vmatmul.mubr.bf16.gmra.mxu0 %v3137
  %v3176 = vpop.f32.mrf.mxu0
  %v3177 = vadd.f32 0.0, %v3176
  %v3178 = vpop.f32.mrf.mxu0
  %v3179 = vpop.f32.mrf.mxu0
  %v3180 = vadd.f32 0.0, %v3179
  %v3181 = vpop.f32.mrf.mxu0
  %3182 = vdwg.mxu0
  %v3183 = vmul.f32 %v3127, 0.35355338
  %v3184 = vmul.f32 %v3130, 0.35355338
  %v3185 = vmul.f32 %v3177, 0.35355338
  %v3186 = vmul.f32 %v3180, 0.35355338
  %v3187 = vsel %vm38, %v3183, -inf
  %3188 = vmax.xlane.f32.xlu0 %v3187
  %v3189 = vpop.xlane.xlu0 %3188
  %v3190 = vsel %vm38, %v3184, -inf
  %3191 = vmax.xlane.f32.xlu0 %v3190
  %v3192 = vpop.xlane.xlu0 %3191
  %v3193 = vsel %vm38, %v3185, -inf
  %3194 = vmax.xlane.f32.xlu0 %v3193
  %v3195 = vpop.xlane.xlu0 %3194
  %v3196 = vsel %vm38, %v3186, -inf
  %3197 = vmax.xlane.f32.xlu0 %v3196
  %v3198 = vpop.xlane.xlu0 %3197
  %v3199 = vsub.f32 %v3183, %v3189
  %v3200 = vsub.f32 %v3184, %v3192
  %v3201 = vsub.f32 %v3185, %v3195
  %v3202 = vsub.f32 %v3186, %v3198
  %v3203 = vmul.f32 %v3199, 1.442695
  %v3204 = vpow.pop %v3203
  %v3205 = vmul.f32 %v3200, 1.442695
  %v3206 = vpow.pop %v3205
  %v3207 = vmul.f32 %v3201, 1.442695
  %v3208 = vpow.pop %v3207
  %v3209 = vmul.f32 %v3202, 1.442695
  %v3210 = vpow.pop %v3209
  %v3211 = vsel %vm38, %v3204, 0.0
  %3212 = vadd.xlane.f32.xlu0 %v3211
  %v3213 = vpop.xlane.xlu0 %3212
  %v3214 = vsel %vm38, %v3206, 0.0
  %3215 = vadd.xlane.f32.xlu0 %v3214
  %v3216 = vpop.xlane.xlu0 %3215
  %v3217 = vsel %vm38, %v3208, 0.0
  %3218 = vadd.xlane.f32.xlu0 %v3217
  %v3219 = vpop.xlane.xlu0 %3218
  %v3220 = vsel %vm38, %v3210, 0.0
  %3221 = vadd.xlane.f32.xlu0 %v3220
  %v3222 = vpop.xlane.xlu0 %3221
  %v3223 = vrcp.pop %v3213
  %v3224 = vrcp.pop %v3216
  %v3225 = vrcp.pop %v3219
  %v3226 = vrcp.pop %v3222
  %v3227 = vmul.f32 %v3204, %v3223
  %v3228 = vmul.f32 %v3206, %v3224
  %v3229 = vmul.f32 %v3208, %v3225
  %v3230 = vmul.f32 %v3210, %v3226
  %v3231 = vpack.c.bf16 %v3228, %v3227
  %v3232 = vpack.c.bf16 %v3230, %v3229
  %3233 = vrot.lane.b32.xlu0 %v3081, 64
  %v3234 = vpop.permute.xlu0 %3233
  %v3237 = vsel %vm38, %v3231, 0
  %3239 = vmatprep.subr.bf16.mxu0 0
  %3240 = vmatpush1.bf16.msra.mxu0 0
  %3241 = vmatprep.subr.bf16.mxu0 0
  %3242 = vmatpush1.bf16.msra.mxu0 0
  %3243 = vmatprep.subr.bf16.mxu0 0
  %3244 = vmatpush1.bf16.msra.mxu0 0
  %3245 = vmatprep.subr.bf16.mxu0 0
  %3246 = vmatpush1.bf16.msra.mxu0 0
  %3247 = vmatprep.subr.bf16.mxu0 0
  %3248 = vmatpush1.bf16.msra.mxu0 0
  %3249 = vmatprep.subr.bf16.mxu0 0
  %3250 = vmatpush1.bf16.msra.mxu0 0
  %3251 = vmatprep.subr.bf16.mxu0 0
  %3252 = vmatpush1.bf16.msra.mxu0 0
  %3253 = vmatprep.subr.bf16.mxu0 0
  %3254 = vmatpush1.bf16.msra.mxu0 %v3234
  %3255 = vmatprep.subr.bf16.mxu0 0
  %3256 = vmatpush2.bf16.msra.mxu0 0
  %3257 = vmatprep.subr.bf16.mxu0 0
  %3258 = vmatpush2.bf16.msra.mxu0 0
  %3259 = vmatprep.subr.bf16.mxu0 0
  %3260 = vmatpush2.bf16.msra.mxu0 0
  %3261 = vmatprep.subr.bf16.mxu0 0
  %3262 = vmatpush2.bf16.msra.mxu0 0
  %3263 = vmatprep.subr.bf16.mxu0 0
  %3264 = vmatpush2.bf16.msra.mxu0 0
  %3265 = vmatprep.subr.bf16.mxu0 0
  %3266 = vmatpush2.bf16.msra.mxu0 0
  %3267 = vmatprep.subr.bf16.mxu0 0
  %3268 = vmatpush2.bf16.msra.mxu0 0
  %3269 = vmatprep.subr.bf16.mxu0 0
  %3270 = vmatpush2.bf16.msra.mxu0 0
  %3271 = vmatprep.mubr.bf16.mxu0 0
  %3272 = vmatmul.mubr.bf16.gmra.mxu0 %v3237
  %v3273 = vpop.f32.mrf.mxu0
  %v3274 = vadd.f32 0.0, %v3273
  %v3275 = vpop.f32.mrf.mxu0
  %v3276 = vpop.f32.mrf.mxu0
  %v3277 = vadd.f32 0.0, %v3276
  %v3278 = vpop.f32.mrf.mxu0
  %3279 = vdwg.mxu0
  %3280 = vrot.lane.b32.xlu0 %v3082, 64
  %v3281 = vpop.permute.xlu0 %3280
  %v3284 = vsel %vm38, %v3232, 0
  %3286 = vmatprep.subr.bf16.mxu0 0
  %3287 = vmatpush1.bf16.msra.mxu0 0
  %3288 = vmatprep.subr.bf16.mxu0 0
  %3289 = vmatpush1.bf16.msra.mxu0 0
  %3290 = vmatprep.subr.bf16.mxu0 0
  %3291 = vmatpush1.bf16.msra.mxu0 0
  %3292 = vmatprep.subr.bf16.mxu0 0
  %3293 = vmatpush1.bf16.msra.mxu0 0
  %3294 = vmatprep.subr.bf16.mxu0 0
  %3295 = vmatpush1.bf16.msra.mxu0 0
  %3296 = vmatprep.subr.bf16.mxu0 0
  %3297 = vmatpush1.bf16.msra.mxu0 0
  %3298 = vmatprep.subr.bf16.mxu0 0
  %3299 = vmatpush1.bf16.msra.mxu0 0
  %3300 = vmatprep.subr.bf16.mxu0 0
  %3301 = vmatpush1.bf16.msra.mxu0 %v3281
  %3302 = vmatprep.subr.bf16.mxu0 0
  %3303 = vmatpush2.bf16.msra.mxu0 0
  %3304 = vmatprep.subr.bf16.mxu0 0
  %3305 = vmatpush2.bf16.msra.mxu0 0
  %3306 = vmatprep.subr.bf16.mxu0 0
  %3307 = vmatpush2.bf16.msra.mxu0 0
  %3308 = vmatprep.subr.bf16.mxu0 0
  %3309 = vmatpush2.bf16.msra.mxu0 0
  %3310 = vmatprep.subr.bf16.mxu0 0
  %3311 = vmatpush2.bf16.msra.mxu0 0
  %3312 = vmatprep.subr.bf16.mxu0 0
  %3313 = vmatpush2.bf16.msra.mxu0 0
  %3314 = vmatprep.subr.bf16.mxu0 0
  %3315 = vmatpush2.bf16.msra.mxu0 0
  %3316 = vmatprep.subr.bf16.mxu0 0
  %3317 = vmatpush2.bf16.msra.mxu0 0
  %3318 = vmatprep.mubr.bf16.mxu0 0
  %3319 = vmatmul.mubr.bf16.gmra.mxu0 %v3284
  %v3320 = vpop.f32.mrf.mxu0
  %v3321 = vadd.f32 0.0, %v3320
  %v3322 = vpop.f32.mrf.mxu0
  %v3323 = vpop.f32.mrf.mxu0
  %v3324 = vadd.f32 0.0, %v3323
  %v3325 = vpop.f32.mrf.mxu0
  %3326 = vdwg.mxu0
  %3327 = vst.msk [vmem:[#allocation2] sm:$0xff] %vm352, %v3274
  %3328 = vst.msk [vmem:[#allocation2 + $0x8] sm:$0xff] %vm352, %v3277
  %3329 = vst.msk [vmem:[#allocation2 + $0x10] sm:$0xff] %vm352, %v3321
  %3330 = vst.msk [vmem:[#allocation2 + $0x18] sm:$0xff] %vm352, %v3324
  %3331 = vrot.lane.b32.xlu0 %v3081, 120
  %v3332 = vpop.permute.xlu0 %3331
  %3333 = vrot.lane.b32.xlu0 %v3081, 88
  %v3334 = vpop.permute.xlu0 %3333
  %v3336 = vsel %vm352, %v3332, 0
  %v3339 = vsel %vm352, %v3334, 0
  %3341 = vmatprep.subr.bf16.mxu0 0
  %3342 = vmatpush1.bf16.xpose.msra.mxu0 0
  %3343 = vmatprep.subr.bf16.mxu0 0
  %3344 = vmatpush1.bf16.xpose.msra.mxu0 0
  %3345 = vmatprep.subr.bf16.mxu0 0
  %3346 = vmatpush1.bf16.xpose.msra.mxu0 0
  %3347 = vmatprep.subr.bf16.mxu0 0
  %3348 = vmatpush1.bf16.xpose.msra.mxu0 0
  %3349 = vmatprep.subr.bf16.mxu0 0
  %3350 = vmatpush1.bf16.xpose.msra.mxu0 0
  %3351 = vmatprep.subr.bf16.mxu0 0
  %3352 = vmatpush1.bf16.xpose.msra.mxu0 0
  %3353 = vmatprep.subr.bf16.mxu0 0
  %3354 = vmatpush1.bf16.xpose.msra.mxu0 0
  %3355 = vmatprep.subr.bf16.mxu0 0
  %3356 = vmatpush1.bf16.xpose.msra.mxu0 %v3339
  %3357 = vmatprep.subr.bf16.mxu0 0
  %3358 = vmatpush2.bf16.xpose.msra.mxu0 0
  %3359 = vmatprep.subr.bf16.mxu0 0
  %3360 = vmatpush2.bf16.xpose.msra.mxu0 0
  %3361 = vmatprep.subr.bf16.mxu0 0
  %3362 = vmatpush2.bf16.xpose.msra.mxu0 0
  %3363 = vmatprep.subr.bf16.mxu0 0
  %3364 = vmatpush2.bf16.xpose.msra.mxu0 0
  %3365 = vmatprep.subr.bf16.mxu0 0
  %3366 = vmatpush2.bf16.xpose.msra.mxu0 0
  %3367 = vmatprep.subr.bf16.mxu0 0
  %3368 = vmatpush2.bf16.xpose.msra.mxu0 0
  %3369 = vmatprep.subr.bf16.mxu0 0
  %3370 = vmatpush2.bf16.xpose.msra.mxu0 0
  %3371 = vmatprep.subr.bf16.mxu0 0
  %3372 = vmatpush2.bf16.xpose.msra.mxu0 0
  %3373 = vmatprep.mubr.bf16.mxu0 0
  %3374 = vmatmul.mubr.bf16.gmra.mxu0 %v3336
  %v3375 = vpop.f32.mrf.mxu0
  %v3376 = vadd.f32 0.0, %v3375
  %v3377 = vpop.f32.mrf.mxu0
  %v3378 = vpop.f32.mrf.mxu0
  %v3379 = vadd.f32 0.0, %v3378
  %v3380 = vpop.f32.mrf.mxu0
  %3381 = vdwg.mxu0
  %3382 = vrot.lane.b32.xlu0 %v3082, 120
  %v3383 = vpop.permute.xlu0 %3382
  %3384 = vrot.lane.b32.xlu0 %v3082, 88
  %v3385 = vpop.permute.xlu0 %3384
  %v3387 = vsel %vm352, %v3383, 0
  %v3390 = vsel %vm352, %v3385, 0
  %3392 = vmatprep.subr.bf16.mxu0 0
  %3393 = vmatpush1.bf16.xpose.msra.mxu0 0
  %3394 = vmatprep.subr.bf16.mxu0 0
  %3395 = vmatpush1.bf16.xpose.msra.mxu0 0
  %3396 = vmatprep.subr.bf16.mxu0 0
  %3397 = vmatpush1.bf16.xpose.msra.mxu0 0
  %3398 = vmatprep.subr.bf16.mxu0 0
  %3399 = vmatpush1.bf16.xpose.msra.mxu0 0
  %3400 = vmatprep.subr.bf16.mxu0 0
  %3401 = vmatpush1.bf16.xpose.msra.mxu0 0
  %3402 = vmatprep.subr.bf16.mxu0 0
  %3403 = vmatpush1.bf16.xpose.msra.mxu0 0
  %3404 = vmatprep.subr.bf16.mxu0 0
  %3405 = vmatpush1.bf16.xpose.msra.mxu0 0
  %3406 = vmatprep.subr.bf16.mxu0 0
  %3407 = vmatpush1.bf16.xpose.msra.mxu0 %v3390
  %3408 = vmatprep.subr.bf16.mxu0 0
  %3409 = vmatpush2.bf16.xpose.msra.mxu0 0
  %3410 = vmatprep.subr.bf16.mxu0 0
  %3411 = vmatpush2.bf16.xpose.msra.mxu0 0
  %3412 = vmatprep.subr.bf16.mxu0 0
  %3413 = vmatpush2.bf16.xpose.msra.mxu0 0
  %3414 = vmatprep.subr.bf16.mxu0 0
  %3415 = vmatpush2.bf16.xpose.msra.mxu0 0
  %3416 = vmatprep.subr.bf16.mxu0 0
  %3417 = vmatpush2.bf16.xpose.msra.mxu0 0
  %3418 = vmatprep.subr.bf16.mxu0 0
  %3419 = vmatpush2.bf16.xpose.msra.mxu0 0
  %3420 = vmatprep.subr.bf16.mxu0 0
  %3421 = vmatpush2.bf16.xpose.msra.mxu0 0
  %3422 = vmatprep.subr.bf16.mxu0 0
  %3423 = vmatpush2.bf16.xpose.msra.mxu0 0
  %3424 = vmatprep.mubr.bf16.mxu0 0
  %3425 = vmatmul.mubr.bf16.gmra.mxu0 %v3387
  %v3426 = vpop.f32.mrf.mxu0
  %v3427 = vadd.f32 0.0, %v3426
  %v3428 = vpop.f32.mrf.mxu0
  %v3429 = vpop.f32.mrf.mxu0
  %v3430 = vadd.f32 0.0, %v3429
  %v3431 = vpop.f32.mrf.mxu0
  %3432 = vdwg.mxu0
  %v3433 = vmul.f32 %v3376, 0.35355338
  %v3434 = vmul.f32 %v3379, 0.35355338
  %v3435 = vmul.f32 %v3427, 0.35355338
  %v3436 = vmul.f32 %v3430, 0.35355338
  %v3437 = vsel %vm38, %v3433, -inf
  %3438 = vmax.xlane.f32.xlu0 %v3437
  %v3439 = vpop.xlane.xlu0 %3438
  %v3440 = vsel %vm38, %v3434, -inf
  %3441 = vmax.xlane.f32.xlu0 %v3440
  %v3442 = vpop.xlane.xlu0 %3441
  %v3443 = vsel %vm38, %v3435, -inf
  %3444 = vmax.xlane.f32.xlu0 %v3443
  %v3445 = vpop.xlane.xlu0 %3444
  %v3446 = vsel %vm38, %v3436, -inf
  %3447 = vmax.xlane.f32.xlu0 %v3446
  %v3448 = vpop.xlane.xlu0 %3447
  %v3449 = vsub.f32 %v3433, %v3439
  %v3450 = vsub.f32 %v3434, %v3442
  %v3451 = vsub.f32 %v3435, %v3445
  %v3452 = vsub.f32 %v3436, %v3448
  %v3453 = vmul.f32 %v3449, 1.442695
  %v3454 = vpow.pop %v3453
  %v3455 = vmul.f32 %v3450, 1.442695
  %v3456 = vpow.pop %v3455
  %v3457 = vmul.f32 %v3451, 1.442695
  %v3458 = vpow.pop %v3457
  %v3459 = vmul.f32 %v3452, 1.442695
  %v3460 = vpow.pop %v3459
  %v3461 = vsel %vm38, %v3454, 0.0
  %3462 = vadd.xlane.f32.xlu0 %v3461
  %v3463 = vpop.xlane.xlu0 %3462
  %v3464 = vsel %vm38, %v3456, 0.0
  %3465 = vadd.xlane.f32.xlu0 %v3464
  %v3466 = vpop.xlane.xlu0 %3465
  %v3467 = vsel %vm38, %v3458, 0.0
  %3468 = vadd.xlane.f32.xlu0 %v3467
  %v3469 = vpop.xlane.xlu0 %3468
  %v3470 = vsel %vm38, %v3460, 0.0
  %3471 = vadd.xlane.f32.xlu0 %v3470
  %v3472 = vpop.xlane.xlu0 %3471
  %v3473 = vrcp.pop %v3463
  %v3474 = vrcp.pop %v3466
  %v3475 = vrcp.pop %v3469
  %v3476 = vrcp.pop %v3472
  %v3477 = vmul.f32 %v3454, %v3473
  %v3478 = vmul.f32 %v3456, %v3474
  %v3479 = vmul.f32 %v3458, %v3475
  %v3480 = vmul.f32 %v3460, %v3476
  %v3481 = vpack.c.bf16 %v3478, %v3477
  %v3482 = vpack.c.bf16 %v3480, %v3479
  %3483 = vrot.lane.b32.xlu0 %v3081, 56
  %v3484 = vpop.permute.xlu0 %3483
  %v3487 = vsel %vm38, %v3481, 0
  %3489 = vmatprep.subr.bf16.mxu0 0
  %3490 = vmatpush1.bf16.msra.mxu0 0
  %3491 = vmatprep.subr.bf16.mxu0 0
  %3492 = vmatpush1.bf16.msra.mxu0 0
  %3493 = vmatprep.subr.bf16.mxu0 0
  %3494 = vmatpush1.bf16.msra.mxu0 0
  %3495 = vmatprep.subr.bf16.mxu0 0
  %3496 = vmatpush1.bf16.msra.mxu0 0
  %3497 = vmatprep.subr.bf16.mxu0 0
  %3498 = vmatpush1.bf16.msra.mxu0 0
  %3499 = vmatprep.subr.bf16.mxu0 0
  %3500 = vmatpush1.bf16.msra.mxu0 0
  %3501 = vmatprep.subr.bf16.mxu0 0
  %3502 = vmatpush1.bf16.msra.mxu0 0
  %3503 = vmatprep.subr.bf16.mxu0 0
  %3504 = vmatpush1.bf16.msra.mxu0 %v3484
  %3505 = vmatprep.subr.bf16.mxu0 0
  %3506 = vmatpush2.bf16.msra.mxu0 0
  %3507 = vmatprep.subr.bf16.mxu0 0
  %3508 = vmatpush2.bf16.msra.mxu0 0
  %3509 = vmatprep.subr.bf16.mxu0 0
  %3510 = vmatpush2.bf16.msra.mxu0 0
  %3511 = vmatprep.subr.bf16.mxu0 0
  %3512 = vmatpush2.bf16.msra.mxu0 0
  %3513 = vmatprep.subr.bf16.mxu0 0
  %3514 = vmatpush2.bf16.msra.mxu0 0
  %3515 = vmatprep.subr.bf16.mxu0 0
  %3516 = vmatpush2.bf16.msra.mxu0 0
  %3517 = vmatprep.subr.bf16.mxu0 0
  %3518 = vmatpush2.bf16.msra.mxu0 0
  %3519 = vmatprep.subr.bf16.mxu0 0
  %3520 = vmatpush2.bf16.msra.mxu0 0
  %3521 = vmatprep.mubr.bf16.mxu0 0
  %3522 = vmatmul.mubr.bf16.gmra.mxu0 %v3487
  %v3523 = vpop.f32.mrf.mxu0
  %v3524 = vadd.f32 0.0, %v3523
  %v3525 = vpop.f32.mrf.mxu0
  %v3526 = vpop.f32.mrf.mxu0
  %v3527 = vadd.f32 0.0, %v3526
  %v3528 = vpop.f32.mrf.mxu0
  %3529 = vdwg.mxu0
  %3530 = vrot.lane.b32.xlu0 %v3082, 56
  %v3531 = vpop.permute.xlu0 %3530
  %v3534 = vsel %vm38, %v3482, 0
  %3536 = vmatprep.subr.bf16.mxu0 0
  %3537 = vmatpush1.bf16.msra.mxu0 0
  %3538 = vmatprep.subr.bf16.mxu0 0
  %3539 = vmatpush1.bf16.msra.mxu0 0
  %3540 = vmatprep.subr.bf16.mxu0 0
  %3541 = vmatpush1.bf16.msra.mxu0 0
  %3542 = vmatprep.subr.bf16.mxu0 0
  %3543 = vmatpush1.bf16.msra.mxu0 0
  %3544 = vmatprep.subr.bf16.mxu0 0
  %3545 = vmatpush1.bf16.msra.mxu0 0
  %3546 = vmatprep.subr.bf16.mxu0 0
  %3547 = vmatpush1.bf16.msra.mxu0 0
  %3548 = vmatprep.subr.bf16.mxu0 0
  %3549 = vmatpush1.bf16.msra.mxu0 0
  %3550 = vmatprep.subr.bf16.mxu0 0
  %3551 = vmatpush1.bf16.msra.mxu0 %v3531
  %3552 = vmatprep.subr.bf16.mxu0 0
  %3553 = vmatpush2.bf16.msra.mxu0 0
  %3554 = vmatprep.subr.bf16.mxu0 0
  %3555 = vmatpush2.bf16.msra.mxu0 0
  %3556 = vmatprep.subr.bf16.mxu0 0
  %3557 = vmatpush2.bf16.msra.mxu0 0
  %3558 = vmatprep.subr.bf16.mxu0 0
  %3559 = vmatpush2.bf16.msra.mxu0 0
  %3560 = vmatprep.subr.bf16.mxu0 0
  %3561 = vmatpush2.bf16.msra.mxu0 0
  %3562 = vmatprep.subr.bf16.mxu0 0
  %3563 = vmatpush2.bf16.msra.mxu0 0
  %3564 = vmatprep.subr.bf16.mxu0 0
  %3565 = vmatpush2.bf16.msra.mxu0 0
  %3566 = vmatprep.subr.bf16.mxu0 0
  %3567 = vmatpush2.bf16.msra.mxu0 0
  %3568 = vmatprep.mubr.bf16.mxu0 0
  %3569 = vmatmul.mubr.bf16.gmra.mxu0 %v3534
  %v3570 = vpop.f32.mrf.mxu0
  %v3571 = vadd.f32 0.0, %v3570
  %v3572 = vpop.f32.mrf.mxu0
  %v3573 = vpop.f32.mrf.mxu0
  %v3574 = vadd.f32 0.0, %v3573
  %v3575 = vpop.f32.mrf.mxu0
  %3576 = vdwg.mxu0
  %3581 = vrot.lane.b32.xlu0 %v3524, 8
  %v3582 = vpop.permute.xlu0 %3581
  %3583 = vrot.lane.b32.xlu0 %v3527, 8
  %v3584 = vpop.permute.xlu0 %3583
  %3585 = vrot.lane.b32.xlu0 %v3571, 8
  %v3586 = vpop.permute.xlu0 %3585
  %3587 = vrot.lane.b32.xlu0 %v3574, 8
  %v3588 = vpop.permute.xlu0 %3587
  %3593 = vst.msk [vmem:[#allocation2] sm:$0xff] %vm803, %v3582
  %3594 = vst.msk [vmem:[#allocation2 + $0x8] sm:$0xff] %vm803, %v3584
  %3595 = vst.msk [vmem:[#allocation2 + $0x10] sm:$0xff] %vm803, %v3586
  %3596 = vst.msk [vmem:[#allocation2 + $0x18] sm:$0xff] %vm803, %v3588
  %3597 = vrot.lane.b32.xlu0 %v3081, 112
  %v3598 = vpop.permute.xlu0 %3597
  %3599 = vrot.lane.b32.xlu0 %v3081, 80
  %v3600 = vpop.permute.xlu0 %3599
  %v3602 = vsel %vm352, %v3598, 0
  %v3605 = vsel %vm352, %v3600, 0
  %3607 = vmatprep.subr.bf16.mxu0 0
  %3608 = vmatpush1.bf16.xpose.msra.mxu0 0
  %3609 = vmatprep.subr.bf16.mxu0 0
  %3610 = vmatpush1.bf16.xpose.msra.mxu0 0
  %3611 = vmatprep.subr.bf16.mxu0 0
  %3612 = vmatpush1.bf16.xpose.msra.mxu0 0
  %3613 = vmatprep.subr.bf16.mxu0 0
  %3614 = vmatpush1.bf16.xpose.msra.mxu0 0
  %3615 = vmatprep.subr.bf16.mxu0 0
  %3616 = vmatpush1.bf16.xpose.msra.mxu0 0
  %3617 = vmatprep.subr.bf16.mxu0 0
  %3618 = vmatpush1.bf16.xpose.msra.mxu0 0
  %3619 = vmatprep.subr.bf16.mxu0 0
  %3620 = vmatpush1.bf16.xpose.msra.mxu0 0
  %3621 = vmatprep.subr.bf16.mxu0 0
  %3622 = vmatpush1.bf16.xpose.msra.mxu0 %v3605
  %3623 = vmatprep.subr.bf16.mxu0 0
  %3624 = vmatpush2.bf16.xpose.msra.mxu0 0
  %3625 = vmatprep.subr.bf16.mxu0 0
  %3626 = vmatpush2.bf16.xpose.msra.mxu0 0
  %3627 = vmatprep.subr.bf16.mxu0 0
  %3628 = vmatpush2.bf16.xpose.msra.mxu0 0
  %3629 = vmatprep.subr.bf16.mxu0 0
  %3630 = vmatpush2.bf16.xpose.msra.mxu0 0
  %3631 = vmatprep.subr.bf16.mxu0 0
  %3632 = vmatpush2.bf16.xpose.msra.mxu0 0
  %3633 = vmatprep.subr.bf16.mxu0 0
  %3634 = vmatpush2.bf16.xpose.msra.mxu0 0
  %3635 = vmatprep.subr.bf16.mxu0 0
  %3636 = vmatpush2.bf16.xpose.msra.mxu0 0
  %3637 = vmatprep.subr.bf16.mxu0 0
  %3638 = vmatpush2.bf16.xpose.msra.mxu0 0
  %3639 = vmatprep.mubr.bf16.mxu0 0
  %3640 = vmatmul.mubr.bf16.gmra.mxu0 %v3602
  %v3641 = vpop.f32.mrf.mxu0
  %v3642 = vadd.f32 0.0, %v3641
  %v3643 = vpop.f32.mrf.mxu0
  %v3644 = vpop.f32.mrf.mxu0
  %v3645 = vadd.f32 0.0, %v3644
  %v3646 = vpop.f32.mrf.mxu0
  %3647 = vdwg.mxu0
  %3648 = vrot.lane.b32.xlu0 %v3082, 112
  %v3649 = vpop.permute.xlu0 %3648
  %3650 = vrot.lane.b32.xlu0 %v3082, 80
  %v3651 = vpop.permute.xlu0 %3650
  %v3653 = vsel %vm352, %v3649, 0
  %v3656 = vsel %vm352, %v3651, 0
  %3658 = vmatprep.subr.bf16.mxu0 0
  %3659 = vmatpush1.bf16.xpose.msra.mxu0 0
  %3660 = vmatprep.subr.bf16.mxu0 0
  %3661 = vmatpush1.bf16.xpose.msra.mxu0 0
  %3662 = vmatprep.subr.bf16.mxu0 0
  %3663 = vmatpush1.bf16.xpose.msra.mxu0 0
  %3664 = vmatprep.subr.bf16.mxu0 0
  %3665 = vmatpush1.bf16.xpose.msra.mxu0 0
  %3666 = vmatprep.subr.bf16.mxu0 0
  %3667 = vmatpush1.bf16.xpose.msra.mxu0 0
  %3668 = vmatprep.subr.bf16.mxu0 0
  %3669 = vmatpush1.bf16.xpose.msra.mxu0 0
  %3670 = vmatprep.subr.bf16.mxu0 0
  %3671 = vmatpush1.bf16.xpose.msra.mxu0 0
  %3672 = vmatprep.subr.bf16.mxu0 0
  %3673 = vmatpush1.bf16.xpose.msra.mxu0 %v3656
  %3674 = vmatprep.subr.bf16.mxu0 0
  %3675 = vmatpush2.bf16.xpose.msra.mxu0 0
  %3676 = vmatprep.subr.bf16.mxu0 0
  %3677 = vmatpush2.bf16.xpose.msra.mxu0 0
  %3678 = vmatprep.subr.bf16.mxu0 0
  %3679 = vmatpush2.bf16.xpose.msra.mxu0 0
  %3680 = vmatprep.subr.bf16.mxu0 0
  %3681 = vmatpush2.bf16.xpose.msra.mxu0 0
  %3682 = vmatprep.subr.bf16.mxu0 0
  %3683 = vmatpush2.bf16.xpose.msra.mxu0 0
  %3684 = vmatprep.subr.bf16.mxu0 0
  %3685 = vmatpush2.bf16.xpose.msra.mxu0 0
  %3686 = vmatprep.subr.bf16.mxu0 0
  %3687 = vmatpush2.bf16.xpose.msra.mxu0 0
  %3688 = vmatprep.subr.bf16.mxu0 0
  %3689 = vmatpush2.bf16.xpose.msra.mxu0 0
  %3690 = vmatprep.mubr.bf16.mxu0 0
  %3691 = vmatmul.mubr.bf16.gmra.mxu0 %v3653
  %v3692 = vpop.f32.mrf.mxu0
  %v3693 = vadd.f32 0.0, %v3692
  %v3694 = vpop.f32.mrf.mxu0
  %v3695 = vpop.f32.mrf.mxu0
  %v3696 = vadd.f32 0.0, %v3695
  %v3697 = vpop.f32.mrf.mxu0
  %3698 = vdwg.mxu0
  %v3699 = vmul.f32 %v3642, 0.35355338
  %v3700 = vmul.f32 %v3645, 0.35355338
  %v3701 = vmul.f32 %v3693, 0.35355338
  %v3702 = vmul.f32 %v3696, 0.35355338
  %v3703 = vsel %vm38, %v3699, -inf
  %3704 = vmax.xlane.f32.xlu0 %v3703
  %v3705 = vpop.xlane.xlu0 %3704
  %v3706 = vsel %vm38, %v3700, -inf
  %3707 = vmax.xlane.f32.xlu0 %v3706
  %v3708 = vpop.xlane.xlu0 %3707
  %v3709 = vsel %vm38, %v3701, -inf
  %3710 = vmax.xlane.f32.xlu0 %v3709
  %v3711 = vpop.xlane.xlu0 %3710
  %v3712 = vsel %vm38, %v3702, -inf
  %3713 = vmax.xlane.f32.xlu0 %v3712
  %v3714 = vpop.xlane.xlu0 %3713
  %v3715 = vsub.f32 %v3699, %v3705
  %v3716 = vsub.f32 %v3700, %v3708
  %v3717 = vsub.f32 %v3701, %v3711
  %v3718 = vsub.f32 %v3702, %v3714
  %v3719 = vmul.f32 %v3715, 1.442695
  %v3720 = vpow.pop %v3719
  %v3721 = vmul.f32 %v3716, 1.442695
  %v3722 = vpow.pop %v3721
  %v3723 = vmul.f32 %v3717, 1.442695
  %v3724 = vpow.pop %v3723
  %v3725 = vmul.f32 %v3718, 1.442695
  %v3726 = vpow.pop %v3725
  %v3727 = vsel %vm38, %v3720, 0.0
  %3728 = vadd.xlane.f32.xlu0 %v3727
  %v3729 = vpop.xlane.xlu0 %3728
  %v3730 = vsel %vm38, %v3722, 0.0
  %3731 = vadd.xlane.f32.xlu0 %v3730
  %v3732 = vpop.xlane.xlu0 %3731
  %v3733 = vsel %vm38, %v3724, 0.0
  %3734 = vadd.xlane.f32.xlu0 %v3733
  %v3735 = vpop.xlane.xlu0 %3734
  %v3736 = vsel %vm38, %v3726, 0.0
  %3737 = vadd.xlane.f32.xlu0 %v3736
  %v3738 = vpop.xlane.xlu0 %3737
  %v3739 = vrcp.pop %v3729
  %v3740 = vrcp.pop %v3732
  %v3741 = vrcp.pop %v3735
  %v3742 = vrcp.pop %v3738
  %v3743 = vmul.f32 %v3720, %v3739
  %v3744 = vmul.f32 %v3722, %v3740
  %v3745 = vmul.f32 %v3724, %v3741
  %v3746 = vmul.f32 %v3726, %v3742
  %v3747 = vpack.c.bf16 %v3744, %v3743
  %v3748 = vpack.c.bf16 %v3746, %v3745
  %3749 = vrot.lane.b32.xlu0 %v3081, 48
  %v3750 = vpop.permute.xlu0 %3749
  %v3753 = vsel %vm38, %v3747, 0
  %3755 = vmatprep.subr.bf16.mxu0 0
  %3756 = vmatpush1.bf16.msra.mxu0 0
  %3757 = vmatprep.subr.bf16.mxu0 0
  %3758 = vmatpush1.bf16.msra.mxu0 0
  %3759 = vmatprep.subr.bf16.mxu0 0
  %3760 = vmatpush1.bf16.msra.mxu0 0
  %3761 = vmatprep.subr.bf16.mxu0 0
  %3762 = vmatpush1.bf16.msra.mxu0 0
  %3763 = vmatprep.subr.bf16.mxu0 0
  %3764 = vmatpush1.bf16.msra.mxu0 0
  %3765 = vmatprep.subr.bf16.mxu0 0
  %3766 = vmatpush1.bf16.msra.mxu0 0
  %3767 = vmatprep.subr.bf16.mxu0 0
  %3768 = vmatpush1.bf16.msra.mxu0 0
  %3769 = vmatprep.subr.bf16.mxu0 0
  %3770 = vmatpush1.bf16.msra.mxu0 %v3750
  %3771 = vmatprep.subr.bf16.mxu0 0
  %3772 = vmatpush2.bf16.msra.mxu0 0
  %3773 = vmatprep.subr.bf16.mxu0 0
  %3774 = vmatpush2.bf16.msra.mxu0 0
  %3775 = vmatprep.subr.bf16.mxu0 0
  %3776 = vmatpush2.bf16.msra.mxu0 0
  %3777 = vmatprep.subr.bf16.mxu0 0
  %3778 = vmatpush2.bf16.msra.mxu0 0
  %3779 = vmatprep.subr.bf16.mxu0 0
  %3780 = vmatpush2.bf16.msra.mxu0 0
  %3781 = vmatprep.subr.bf16.mxu0 0
  %3782 = vmatpush2.bf16.msra.mxu0 0
  %3783 = vmatprep.subr.bf16.mxu0 0
  %3784 = vmatpush2.bf16.msra.mxu0 0
  %3785 = vmatprep.subr.bf16.mxu0 0
  %3786 = vmatpush2.bf16.msra.mxu0 0
  %3787 = vmatprep.mubr.bf16.mxu0 0
  %3788 = vmatmul.mubr.bf16.gmra.mxu0 %v3753
  %v3789 = vpop.f32.mrf.mxu0
  %v3790 = vadd.f32 0.0, %v3789
  %v3791 = vpop.f32.mrf.mxu0
  %v3792 = vpop.f32.mrf.mxu0
  %v3793 = vadd.f32 0.0, %v3792
  %v3794 = vpop.f32.mrf.mxu0
  %3795 = vdwg.mxu0
  %3796 = vrot.lane.b32.xlu0 %v3082, 48
  %v3797 = vpop.permute.xlu0 %3796
  %v3800 = vsel %vm38, %v3748, 0
  %3802 = vmatprep.subr.bf16.mxu0 0
  %3803 = vmatpush1.bf16.msra.mxu0 0
  %3804 = vmatprep.subr.bf16.mxu0 0
  %3805 = vmatpush1.bf16.msra.mxu0 0
  %3806 = vmatprep.subr.bf16.mxu0 0
  %3807 = vmatpush1.bf16.msra.mxu0 0
  %3808 = vmatprep.subr.bf16.mxu0 0
  %3809 = vmatpush1.bf16.msra.mxu0 0
  %3810 = vmatprep.subr.bf16.mxu0 0
  %3811 = vmatpush1.bf16.msra.mxu0 0
  %3812 = vmatprep.subr.bf16.mxu0 0
  %3813 = vmatpush1.bf16.msra.mxu0 0
  %3814 = vmatprep.subr.bf16.mxu0 0
  %3815 = vmatpush1.bf16.msra.mxu0 0
  %3816 = vmatprep.subr.bf16.mxu0 0
  %3817 = vmatpush1.bf16.msra.mxu0 %v3797
  %3818 = vmatprep.subr.bf16.mxu0 0
  %3819 = vmatpush2.bf16.msra.mxu0 0
  %3820 = vmatprep.subr.bf16.mxu0 0
  %3821 = vmatpush2.bf16.msra.mxu0 0
  %3822 = vmatprep.subr.bf16.mxu0 0
  %3823 = vmatpush2.bf16.msra.mxu0 0
  %3824 = vmatprep.subr.bf16.mxu0 0
  %3825 = vmatpush2.bf16.msra.mxu0 0
  %3826 = vmatprep.subr.bf16.mxu0 0
  %3827 = vmatpush2.bf16.msra.mxu0 0
  %3828 = vmatprep.subr.bf16.mxu0 0
  %3829 = vmatpush2.bf16.msra.mxu0 0
  %3830 = vmatprep.subr.bf16.mxu0 0
  %3831 = vmatpush2.bf16.msra.mxu0 0
  %3832 = vmatprep.subr.bf16.mxu0 0
  %3833 = vmatpush2.bf16.msra.mxu0 0
  %3834 = vmatprep.mubr.bf16.mxu0 0
  %3835 = vmatmul.mubr.bf16.gmra.mxu0 %v3800
  %v3836 = vpop.f32.mrf.mxu0
  %v3837 = vadd.f32 0.0, %v3836
  %v3838 = vpop.f32.mrf.mxu0
  %v3839 = vpop.f32.mrf.mxu0
  %v3840 = vadd.f32 0.0, %v3839
  %v3841 = vpop.f32.mrf.mxu0
  %3842 = vdwg.mxu0
  %3847 = vrot.lane.b32.xlu0 %v3790, 16
  %v3848 = vpop.permute.xlu0 %3847
  %3849 = vrot.lane.b32.xlu0 %v3793, 16
  %v3850 = vpop.permute.xlu0 %3849
  %3851 = vrot.lane.b32.xlu0 %v3837, 16
  %v3852 = vpop.permute.xlu0 %3851
  %3853 = vrot.lane.b32.xlu0 %v3840, 16
  %v3854 = vpop.permute.xlu0 %3853
  %3859 = vst.msk [vmem:[#allocation2] sm:$0xff] %vm1036, %v3848
  %3860 = vst.msk [vmem:[#allocation2 + $0x8] sm:$0xff] %vm1036, %v3850
  %3861 = vst.msk [vmem:[#allocation2 + $0x10] sm:$0xff] %vm1036, %v3852
  %3862 = vst.msk [vmem:[#allocation2 + $0x18] sm:$0xff] %vm1036, %v3854
  %3863 = vrot.lane.b32.xlu0 %v3081, 104
  %v3864 = vpop.permute.xlu0 %3863
  %3865 = vrot.lane.b32.xlu0 %v3081, 72
  %v3866 = vpop.permute.xlu0 %3865
  %v3868 = vsel %vm352, %v3864, 0
  %v3871 = vsel %vm352, %v3866, 0
  %3873 = vmatprep.subr.bf16.mxu0 0
  %3874 = vmatpush1.bf16.xpose.msra.mxu0 0
  %3875 = vmatprep.subr.bf16.mxu0 0
  %3876 = vmatpush1.bf16.xpose.msra.mxu0 0
  %3877 = vmatprep.subr.bf16.mxu0 0
  %3878 = vmatpush1.bf16.xpose.msra.mxu0 0
  %3879 = vmatprep.subr.bf16.mxu0 0
  %3880 = vmatpush1.bf16.xpose.msra.mxu0 0
  %3881 = vmatprep.subr.bf16.mxu0 0
  %3882 = vmatpush1.bf16.xpose.msra.mxu0 0
  %3883 = vmatprep.subr.bf16.mxu0 0
  %3884 = vmatpush1.bf16.xpose.msra.mxu0 0
  %3885 = vmatprep.subr.bf16.mxu0 0
  %3886 = vmatpush1.bf16.xpose.msra.mxu0 0
  %3887 = vmatprep.subr.bf16.mxu0 0
  %3888 = vmatpush1.bf16.xpose.msra.mxu0 %v3871
  %3889 = vmatprep.subr.bf16.mxu0 0
  %3890 = vmatpush2.bf16.xpose.msra.mxu0 0
  %3891 = vmatprep.subr.bf16.mxu0 0
  %3892 = vmatpush2.bf16.xpose.msra.mxu0 0
  %3893 = vmatprep.subr.bf16.mxu0 0
  %3894 = vmatpush2.bf16.xpose.msra.mxu0 0
  %3895 = vmatprep.subr.bf16.mxu0 0
  %3896 = vmatpush2.bf16.xpose.msra.mxu0 0
  %3897 = vmatprep.subr.bf16.mxu0 0
  %3898 = vmatpush2.bf16.xpose.msra.mxu0 0
  %3899 = vmatprep.subr.bf16.mxu0 0
  %3900 = vmatpush2.bf16.xpose.msra.mxu0 0
  %3901 = vmatprep.subr.bf16.mxu0 0
  %3902 = vmatpush2.bf16.xpose.msra.mxu0 0
  %3903 = vmatprep.subr.bf16.mxu0 0
  %3904 = vmatpush2.bf16.xpose.msra.mxu0 0
  %3905 = vmatprep.mubr.bf16.mxu0 0
  %3906 = vmatmul.mubr.bf16.gmra.mxu0 %v3868
  %v3907 = vpop.f32.mrf.mxu0
  %v3908 = vadd.f32 0.0, %v3907
  %v3909 = vpop.f32.mrf.mxu0
  %v3910 = vpop.f32.mrf.mxu0
  %v3911 = vadd.f32 0.0, %v3910
  %v3912 = vpop.f32.mrf.mxu0
  %3913 = vdwg.mxu0
  %3914 = vrot.lane.b32.xlu0 %v3082, 104
  %v3915 = vpop.permute.xlu0 %3914
  %3916 = vrot.lane.b32.xlu0 %v3082, 72
  %v3917 = vpop.permute.xlu0 %3916
  %v3919 = vsel %vm352, %v3915, 0
  %v3922 = vsel %vm352, %v3917, 0
  %3924 = vmatprep.subr.bf16.mxu0 0
  %3925 = vmatpush1.bf16.xpose.msra.mxu0 0
  %3926 = vmatprep.subr.bf16.mxu0 0
  %3927 = vmatpush1.bf16.xpose.msra.mxu0 0
  %3928 = vmatprep.subr.bf16.mxu0 0
  %3929 = vmatpush1.bf16.xpose.msra.mxu0 0
  %3930 = vmatprep.subr.bf16.mxu0 0
  %3931 = vmatpush1.bf16.xpose.msra.mxu0 0
  %3932 = vmatprep.subr.bf16.mxu0 0
  %3933 = vmatpush1.bf16.xpose.msra.mxu0 0
  %3934 = vmatprep.subr.bf16.mxu0 0
  %3935 = vmatpush1.bf16.xpose.msra.mxu0 0
  %3936 = vmatprep.subr.bf16.mxu0 0
  %3937 = vmatpush1.bf16.xpose.msra.mxu0 0
  %3938 = vmatprep.subr.bf16.mxu0 0
  %3939 = vmatpush1.bf16.xpose.msra.mxu0 %v3922
  %3940 = vmatprep.subr.bf16.mxu0 0
  %3941 = vmatpush2.bf16.xpose.msra.mxu0 0
  %3942 = vmatprep.subr.bf16.mxu0 0
  %3943 = vmatpush2.bf16.xpose.msra.mxu0 0
  %3944 = vmatprep.subr.bf16.mxu0 0
  %3945 = vmatpush2.bf16.xpose.msra.mxu0 0
  %3946 = vmatprep.subr.bf16.mxu0 0
  %3947 = vmatpush2.bf16.xpose.msra.mxu0 0
  %3948 = vmatprep.subr.bf16.mxu0 0
  %3949 = vmatpush2.bf16.xpose.msra.mxu0 0
  %3950 = vmatprep.subr.bf16.mxu0 0
  %3951 = vmatpush2.bf16.xpose.msra.mxu0 0
  %3952 = vmatprep.subr.bf16.mxu0 0
  %3953 = vmatpush2.bf16.xpose.msra.mxu0 0
  %3954 = vmatprep.subr.bf16.mxu0 0
  %3955 = vmatpush2.bf16.xpose.msra.mxu0 0
  %3956 = vmatprep.mubr.bf16.mxu0 0
  %3957 = vmatmul.mubr.bf16.gmra.mxu0 %v3919
  %v3958 = vpop.f32.mrf.mxu0
  %v3959 = vadd.f32 0.0, %v3958
  %v3960 = vpop.f32.mrf.mxu0
  %v3961 = vpop.f32.mrf.mxu0
  %v3962 = vadd.f32 0.0, %v3961
  %v3963 = vpop.f32.mrf.mxu0
  %3964 = vdwg.mxu0
  %v3965 = vmul.f32 %v3908, 0.35355338
  %v3966 = vmul.f32 %v3911, 0.35355338
  %v3967 = vmul.f32 %v3959, 0.35355338
  %v3968 = vmul.f32 %v3962, 0.35355338
  %v3969 = vsel %vm38, %v3965, -inf
  %3970 = vmax.xlane.f32.xlu0 %v3969
  %v3971 = vpop.xlane.xlu0 %3970
  %v3972 = vsel %vm38, %v3966, -inf
  %3973 = vmax.xlane.f32.xlu0 %v3972
  %v3974 = vpop.xlane.xlu0 %3973
  %v3975 = vsel %vm38, %v3967, -inf
  %3976 = vmax.xlane.f32.xlu0 %v3975
  %v3977 = vpop.xlane.xlu0 %3976
  %v3978 = vsel %vm38, %v3968, -inf
  %3979 = vmax.xlane.f32.xlu0 %v3978
  %v3980 = vpop.xlane.xlu0 %3979
  %v3981 = vsub.f32 %v3965, %v3971
  %v3982 = vsub.f32 %v3966, %v3974
  %v3983 = vsub.f32 %v3967, %v3977
  %v3984 = vsub.f32 %v3968, %v3980
  %v3985 = vmul.f32 %v3981, 1.442695
  %v3986 = vpow.pop %v3985
  %v3987 = vmul.f32 %v3982, 1.442695
  %v3988 = vpow.pop %v3987
  %v3989 = vmul.f32 %v3983, 1.442695
  %v3990 = vpow.pop %v3989
  %v3991 = vmul.f32 %v3984, 1.442695
  %v3992 = vpow.pop %v3991
  %v3993 = vsel %vm38, %v3986, 0.0
  %3994 = vadd.xlane.f32.xlu0 %v3993
  %v3995 = vpop.xlane.xlu0 %3994
  %v3996 = vsel %vm38, %v3988, 0.0
  %3997 = vadd.xlane.f32.xlu0 %v3996
  %v3998 = vpop.xlane.xlu0 %3997
  %v3999 = vsel %vm38, %v3990, 0.0
  %4000 = vadd.xlane.f32.xlu0 %v3999
  %v4001 = vpop.xlane.xlu0 %4000
  %v4002 = vsel %vm38, %v3992, 0.0
  %4003 = vadd.xlane.f32.xlu0 %v4002
  %v4004 = vpop.xlane.xlu0 %4003
  %v4005 = vrcp.pop %v3995
  %v4006 = vrcp.pop %v3998
  %v4007 = vrcp.pop %v4001
  %v4008 = vrcp.pop %v4004
  %v4009 = vmul.f32 %v3986, %v4005
  %v4010 = vmul.f32 %v3988, %v4006
  %v4011 = vmul.f32 %v3990, %v4007
  %v4012 = vmul.f32 %v3992, %v4008
  %v4013 = vpack.c.bf16 %v4010, %v4009
  %v4014 = vpack.c.bf16 %v4012, %v4011
  %4015 = vrot.lane.b32.xlu0 %v3081, 40
  %v4016 = vpop.permute.xlu0 %4015
  %v4019 = vsel %vm38, %v4013, 0
  %4021 = vmatprep.subr.bf16.mxu0 0
  %4022 = vmatpush1.bf16.msra.mxu0 0
  %4023 = vmatprep.subr.bf16.mxu0 0
  %4024 = vmatpush1.bf16.msra.mxu0 0
  %4025 = vmatprep.subr.bf16.mxu0 0
  %4026 = vmatpush1.bf16.msra.mxu0 0
  %4027 = vmatprep.subr.bf16.mxu0 0
  %4028 = vmatpush1.bf16.msra.mxu0 0
  %4029 = vmatprep.subr.bf16.mxu0 0
  %4030 = vmatpush1.bf16.msra.mxu0 0
  %4031 = vmatprep.subr.bf16.mxu0 0
  %4032 = vmatpush1.bf16.msra.mxu0 0
  %4033 = vmatprep.subr.bf16.mxu0 0
  %4034 = vmatpush1.bf16.msra.mxu0 0
  %4035 = vmatprep.subr.bf16.mxu0 0
  %4036 = vmatpush1.bf16.msra.mxu0 %v4016
  %4037 = vmatprep.subr.bf16.mxu0 0
  %4038 = vmatpush2.bf16.msra.mxu0 0
  %4039 = vmatprep.subr.bf16.mxu0 0
  %4040 = vmatpush2.bf16.msra.mxu0 0
  %4041 = vmatprep.subr.bf16.mxu0 0
  %4042 = vmatpush2.bf16.msra.mxu0 0
  %4043 = vmatprep.subr.bf16.mxu0 0
  %4044 = vmatpush2.bf16.msra.mxu0 0
  %4045 = vmatprep.subr.bf16.mxu0 0
  %4046 = vmatpush2.bf16.msra.mxu0 0
  %4047 = vmatprep.subr.bf16.mxu0 0
  %4048 = vmatpush2.bf16.msra.mxu0 0
  %4049 = vmatprep.subr.bf16.mxu0 0
  %4050 = vmatpush2.bf16.msra.mxu0 0
  %4051 = vmatprep.subr.bf16.mxu0 0
  %4052 = vmatpush2.bf16.msra.mxu0 0
  %4053 = vmatprep.mubr.bf16.mxu0 0
  %4054 = vmatmul.mubr.bf16.gmra.mxu0 %v4019
  %v4055 = vpop.f32.mrf.mxu0
  %v4056 = vadd.f32 0.0, %v4055
  %v4057 = vpop.f32.mrf.mxu0
  %v4058 = vpop.f32.mrf.mxu0
  %v4059 = vadd.f32 0.0, %v4058
  %v4060 = vpop.f32.mrf.mxu0
  %4061 = vdwg.mxu0
  %4062 = vrot.lane.b32.xlu0 %v3082, 40
  %v4063 = vpop.permute.xlu0 %4062
  %v4066 = vsel %vm38, %v4014, 0
  %4068 = vmatprep.subr.bf16.mxu0 0
  %4069 = vmatpush1.bf16.msra.mxu0 0
  %4070 = vmatprep.subr.bf16.mxu0 0
  %4071 = vmatpush1.bf16.msra.mxu0 0
  %4072 = vmatprep.subr.bf16.mxu0 0
  %4073 = vmatpush1.bf16.msra.mxu0 0
  %4074 = vmatprep.subr.bf16.mxu0 0
  %4075 = vmatpush1.bf16.msra.mxu0 0
  %4076 = vmatprep.subr.bf16.mxu0 0
  %4077 = vmatpush1.bf16.msra.mxu0 0
  %4078 = vmatprep.subr.bf16.mxu0 0
  %4079 = vmatpush1.bf16.msra.mxu0 0
  %4080 = vmatprep.subr.bf16.mxu0 0
  %4081 = vmatpush1.bf16.msra.mxu0 0
  %4082 = vmatprep.subr.bf16.mxu0 0
  %4083 = vmatpush1.bf16.msra.mxu0 %v4063
  %4084 = vmatprep.subr.bf16.mxu0 0
  %4085 = vmatpush2.bf16.msra.mxu0 0
  %4086 = vmatprep.subr.bf16.mxu0 0
  %4087 = vmatpush2.bf16.msra.mxu0 0
  %4088 = vmatprep.subr.bf16.mxu0 0
  %4089 = vmatpush2.bf16.msra.mxu0 0
  %4090 = vmatprep.subr.bf16.mxu0 0
  %4091 = vmatpush2.bf16.msra.mxu0 0
  %4092 = vmatprep.subr.bf16.mxu0 0
  %4093 = vmatpush2.bf16.msra.mxu0 0
  %4094 = vmatprep.subr.bf16.mxu0 0
  %4095 = vmatpush2.bf16.msra.mxu0 0
  %4096 = vmatprep.subr.bf16.mxu0 0
  %4097 = vmatpush2.bf16.msra.mxu0 0
  %4098 = vmatprep.subr.bf16.mxu0 0
  %4099 = vmatpush2.bf16.msra.mxu0 0
  %4100 = vmatprep.mubr.bf16.mxu0 0
  %4101 = vmatmul.mubr.bf16.gmra.mxu0 %v4066
  %v4102 = vpop.f32.mrf.mxu0
  %v4103 = vadd.f32 0.0, %v4102
  %v4104 = vpop.f32.mrf.mxu0
  %v4105 = vpop.f32.mrf.mxu0
  %v4106 = vadd.f32 0.0, %v4105
  %v4107 = vpop.f32.mrf.mxu0
  %4108 = vdwg.mxu0
  %4113 = vrot.lane.b32.xlu0 %v4056, 24
  %v4114 = vpop.permute.xlu0 %4113
  %4115 = vrot.lane.b32.xlu0 %v4059, 24
  %v4116 = vpop.permute.xlu0 %4115
  %4117 = vrot.lane.b32.xlu0 %v4103, 24
  %v4118 = vpop.permute.xlu0 %4117
  %4119 = vrot.lane.b32.xlu0 %v4106, 24
  %v4120 = vpop.permute.xlu0 %4119
  %4125 = vst.msk [vmem:[#allocation2] sm:$0xff] %vm1269, %v4114
  %4126 = vst.msk [vmem:[#allocation2 + $0x8] sm:$0xff] %vm1269, %v4116
  %4127 = vst.msk [vmem:[#allocation2 + $0x10] sm:$0xff] %vm1269, %v4118
  %4128 = vst.msk [vmem:[#allocation2 + $0x18] sm:$0xff] %vm1269, %v4120
  %v4129 = vld [vmem:[#allocation2] sm:$0xff]
  %v4130 = vld [vmem:[#allocation2 + $0x8] sm:$0xff]
  %v4131 = vld [vmem:[#allocation2 + $0x10] sm:$0xff]
  %v4132 = vld [vmem:[#allocation2 + $0x18] sm:$0xff]
  %v4133 = vpack.c.bf16 %v4130, %v4129
  %v4134 = vpack.c.bf16 %v4132, %v4131
  %v4139 = vunpack.c.l.b16 %v2999
  %v4140 = vunpack.c.l.b16 %v3000
  %v4141 = vunpack.c.l.b16 %v3001
  %v4142 = vunpack.c.l.b16 %v3002
  %v4143 = vpack.c.b16 %v4140, %v4139
  %v4144 = vpack.c.b16 %v4142, %v4141
  %v4148 = vsel %vm296, %v4133, 0
  %v4151 = vsel %vm296, %v4134, 0
  %4153 = vmatprep.subr.bf16.mxu0 0
  %4154 = vmatpush1.bf16.msra.mxu0 0
  %4155 = vmatprep.subr.bf16.mxu0 0
  %4156 = vmatpush1.bf16.msra.mxu0 0
  %4157 = vmatprep.subr.bf16.mxu0 0
  %4158 = vmatpush1.bf16.msra.mxu0 0
  %4159 = vmatprep.subr.bf16.mxu0 0
  %4160 = vmatpush1.bf16.msra.mxu0 0
  %4161 = vmatprep.subr.bf16.mxu0 0
  %4162 = vmatpush1.bf16.msra.mxu0 0
  %4163 = vmatprep.subr.bf16.mxu0 0
  %4164 = vmatpush1.bf16.msra.mxu0 0
  %4165 = vmatprep.subr.bf16.mxu0 0
  %4166 = vmatpush1.bf16.msra.mxu0 %v4144
  %4167 = vmatprep.subr.bf16.mxu0 0
  %4168 = vmatpush1.bf16.msra.mxu0 %v4143
  %4169 = vmatprep.subr.bf16.mxu0 0
  %4170 = vmatpush2.bf16.msra.mxu0 0
  %4171 = vmatprep.subr.bf16.mxu0 0
  %4172 = vmatpush2.bf16.msra.mxu0 0
  %4173 = vmatprep.subr.bf16.mxu0 0
  %4174 = vmatpush2.bf16.msra.mxu0 0
  %4175 = vmatprep.subr.bf16.mxu0 0
  %4176 = vmatpush2.bf16.msra.mxu0 0
  %4177 = vmatprep.subr.bf16.mxu0 0
  %4178 = vmatpush2.bf16.msra.mxu0 0
  %4179 = vmatprep.subr.bf16.mxu0 0
  %4180 = vmatpush2.bf16.msra.mxu0 0
  %4181 = vmatprep.subr.bf16.mxu0 0
  %4182 = vmatpush2.bf16.msra.mxu0 0
  %4183 = vmatprep.subr.bf16.mxu0 0
  %4184 = vmatpush2.bf16.msra.mxu0 0
  %4185 = vmatprep.mubr.bf16.mxu0 0
  %4186 = vmatmul.mubr.bf16.gmra.mxu0 %v4148
  %v4187 = vpop.f32.mrf.mxu0
  %v4188 = vadd.f32 0.0, %v4187
  %v4189 = vpop.f32.mrf.mxu0
  %v4190 = vpop.f32.mrf.mxu0
  %v4191 = vadd.f32 0.0, %v4190
  %v4192 = vpop.f32.mrf.mxu0
  %4193 = vmatprep.mubr.bf16.mxu0 0
  %4194 = vmatmul.mubr.bf16.gmra.mxu0 %v4151
  %v4195 = vpop.f32.mrf.mxu0
  %v4196 = vadd.f32 0.0, %v4195
  %v4197 = vpop.f32.mrf.mxu0
  %v4198 = vpop.f32.mrf.mxu0
  %v4199 = vadd.f32 0.0, %v4198
  %v4200 = vpop.f32.mrf.mxu0
  %4201 = vdwg.mxu0
  %v4202 = vlaneseq
  %v4203 = vshrl.u32 %v4202, 7
  %v4204 = vsub.s32 0, %v4203
  %v4205 = vrot.slane %v3003, %v4204
  %v4206 = vadd.f32 %v4188, %v4205
  %v4207 = vadd.f32 %v4191, %v4205
  %v4208 = vadd.f32 %v4196, %v4205
  %v4209 = vadd.f32 %v4199, %v4205
  %v4210 = vadd.f32 %v2988, %v4206
  %v4211 = vadd.f32 %v2989, %v4207
  %v4212 = vadd.f32 %v2990, %v4208
  %v4213 = vadd.f32 %v2991, %v4209
  %v4214 = vld [vmem:[%s9 + $0x1c] sm:$0x1]
  %v4215 = vld [vmem:[%s9 + $0x1d] sm:$0x1]
  %v4216 = vsel %vm296, %v4210, 0.0
  %4217 = vadd.xlane.f32.xlu0 %v4216
  %v4218 = vpop.xlane.xlu0 %4217
  %v4219 = vsel %vm296, %v4211, 0.0
  %4220 = vadd.xlane.f32.xlu0 %v4219
  %v4221 = vpop.xlane.xlu0 %4220
  %v4222 = vsel %vm296, %v4212, 0.0
  %4223 = vadd.xlane.f32.xlu0 %v4222
  %v4224 = vpop.xlane.xlu0 %4223
  %v4225 = vsel %vm296, %v4213, 0.0
  %4226 = vadd.xlane.f32.xlu0 %v4225
  %v4227 = vpop.xlane.xlu0 %4226
  %v4228 = vmul.f32 %v4218, %v1347
  %v4229 = vmul.f32 %v4221, %v1347
  %v4230 = vmul.f32 %v4224, %v1347
  %v4231 = vmul.f32 %v4227, %v1347
  %v4232 = vsub.f32 %v4210, %v4228
  %v4233 = vsub.f32 %v4211, %v4229
  %v4234 = vsub.f32 %v4212, %v4230
  %v4235 = vsub.f32 %v4213, %v4231
  %v4236 = vmul.f32 %v4232, %v4232
  %v4237 = vmul.f32 %v4233, %v4233
  %v4238 = vmul.f32 %v4234, %v4234
  %v4239 = vmul.f32 %v4235, %v4235
  %v4240 = vsel %vm296, %v4236, 0.0
  %4241 = vadd.xlane.f32.xlu0 %v4240
  %v4242 = vpop.xlane.xlu0 %4241
  %v4243 = vsel %vm296, %v4237, 0.0
  %4244 = vadd.xlane.f32.xlu0 %v4243
  %v4245 = vpop.xlane.xlu0 %4244
  %v4246 = vsel %vm296, %v4238, 0.0
  %4247 = vadd.xlane.f32.xlu0 %v4246
  %v4248 = vpop.xlane.xlu0 %4247
  %v4249 = vsel %vm296, %v4239, 0.0
  %4250 = vadd.xlane.f32.xlu0 %v4249
  %v4251 = vpop.xlane.xlu0 %4250
  %v4252 = vmul.f32 %v4242, %v1347
  %v4253 = vmul.f32 %v4245, %v1347
  %v4254 = vmul.f32 %v4248, %v1347
  %v4255 = vmul.f32 %v4251, %v1347
  %v4256 = vadd.f32 %v4252, 1e-05
  %v4257 = vadd.f32 %v4253, 1e-05
  %v4258 = vadd.f32 %v4254, 1e-05
  %v4259 = vadd.f32 %v4255, 1e-05
  %v4260 = vrsqrt.pop %v4256
  %v4261 = vrsqrt.pop %v4257
  %v4262 = vrsqrt.pop %v4258
  %v4263 = vrsqrt.pop %v4259
  %v4264 = vmul.f32 %v4232, %v4260
  %v4265 = vmul.f32 %v4233, %v4261
  %v4266 = vmul.f32 %v4234, %v4262
  %v4267 = vmul.f32 %v4235, %v4263
  %v4268 = vlaneseq
  %v4269 = vshrl.u32 %v4268, 7
  %v4270 = vsub.s32 0, %v4269
  %v4271 = vrot.slane %v4214, %v4270
  %v4272 = vmul.f32 %v4264, %v4271
  %v4273 = vmul.f32 %v4265, %v4271
  %v4274 = vmul.f32 %v4266, %v4271
  %v4275 = vmul.f32 %v4267, %v4271
  %v4276 = vlaneseq
  %v4277 = vshrl.u32 %v4276, 7
  %v4278 = vsub.s32 0, %v4277
  %v4279 = vrot.slane %v4215, %v4278
  %v4280 = vadd.f32 %v4272, %v4279
  %v4281 = vadd.f32 %v4273, %v4279
  %v4282 = vadd.f32 %v4274, %v4279
  %v4283 = vadd.f32 %v4275, %v4279
  %s4284 = scalar_lea.vmem %s3, 64
  %v4285 = vld [vmem:[%s4284] sm:$0xf]
  %v4286 = vld [vmem:[%s4284 + $0x4] sm:$0xf]
  %v4287 = vld [vmem:[%s4284 + $0x8] sm:$0xf]
  %v4288 = vld [vmem:[%s4284 + $0xc] sm:$0xf]
  %v4289 = vld [vmem:[%s9 + $0x17] sm:$0x1]
  %v4290 = vld [vmem:[%s4] sm:$0xf]
  %v4291 = vld [vmem:[%s4 + $0x4] sm:$0xf]
  %v4292 = vld [vmem:[%s4 + $0x8] sm:$0xf]
  %v4293 = vld [vmem:[%s4 + $0xc] sm:$0xf]
  %v4294 = vld [vmem:[%s9 + $0x18] sm:$0x1]
  %s4295 = scalar_lea.vmem %s3, 96
  %v4296 = vld [vmem:[%s4295] sm:$0xf]
  %v4297 = vld [vmem:[%s4295 + $0x4] sm:$0xf]
  %v4298 = vld [vmem:[%s4295 + $0x8] sm:$0xf]
  %v4299 = vld [vmem:[%s4295 + $0xc] sm:$0xf]
  %v4300 = vld [vmem:[%s9 + $0x19] sm:$0x1]
  %v4301 = vpack.c.bf16 %v4281, %v4280
  %v4302 = vpack.c.bf16 %v4283, %v4282
  %v4307 = vunpack.c.l.b16 %v4285
  %v4308 = vunpack.c.l.b16 %v4286
  %v4309 = vunpack.c.l.b16 %v4287
  %v4310 = vunpack.c.l.b16 %v4288
  %v4311 = vpack.c.b16 %v4308, %v4307
  %v4312 = vpack.c.b16 %v4310, %v4309
  %v4316 = vsel %vm296, %v4301, 0
  %v4319 = vsel %vm296, %v4302, 0
  %4321 = vmatprep.subr.bf16.mxu0 0
  %4322 = vmatpush1.bf16.msra.mxu0 0
  %4323 = vmatprep.subr.bf16.mxu0 0
  %4324 = vmatpush1.bf16.msra.mxu0 0
  %4325 = vmatprep.subr.bf16.mxu0 0
  %4326 = vmatpush1.bf16.msra.mxu0 0
  %4327 = vmatprep.subr.bf16.mxu0 0
  %4328 = vmatpush1.bf16.msra.mxu0 0
  %4329 = vmatprep.subr.bf16.mxu0 0
  %4330 = vmatpush1.bf16.msra.mxu0 0
  %4331 = vmatprep.subr.bf16.mxu0 0
  %4332 = vmatpush1.bf16.msra.mxu0 0
  %4333 = vmatprep.subr.bf16.mxu0 0
  %4334 = vmatpush1.bf16.msra.mxu0 %v4312
  %4335 = vmatprep.subr.bf16.mxu0 0
  %4336 = vmatpush1.bf16.msra.mxu0 %v4311
  %4337 = vmatprep.subr.bf16.mxu0 0
  %4338 = vmatpush2.bf16.msra.mxu0 0
  %4339 = vmatprep.subr.bf16.mxu0 0
  %4340 = vmatpush2.bf16.msra.mxu0 0
  %4341 = vmatprep.subr.bf16.mxu0 0
  %4342 = vmatpush2.bf16.msra.mxu0 0
  %4343 = vmatprep.subr.bf16.mxu0 0
  %4344 = vmatpush2.bf16.msra.mxu0 0
  %4345 = vmatprep.subr.bf16.mxu0 0
  %4346 = vmatpush2.bf16.msra.mxu0 0
  %4347 = vmatprep.subr.bf16.mxu0 0
  %4348 = vmatpush2.bf16.msra.mxu0 0
  %4349 = vmatprep.subr.bf16.mxu0 0
  %4350 = vmatpush2.bf16.msra.mxu0 0
  %4351 = vmatprep.subr.bf16.mxu0 0
  %4352 = vmatpush2.bf16.msra.mxu0 0
  %4353 = vmatprep.mubr.bf16.mxu0 0
  %4354 = vmatmul.mubr.bf16.gmra.mxu0 %v4316
  %v4355 = vpop.f32.mrf.mxu0
  %v4356 = vadd.f32 0.0, %v4355
  %v4357 = vpop.f32.mrf.mxu0
  %v4358 = vpop.f32.mrf.mxu0
  %v4359 = vadd.f32 0.0, %v4358
  %v4360 = vpop.f32.mrf.mxu0
  %4361 = vmatprep.mubr.bf16.mxu0 0
  %4362 = vmatmul.mubr.bf16.gmra.mxu0 %v4319
  %v4363 = vpop.f32.mrf.mxu0
  %v4364 = vadd.f32 0.0, %v4363
  %v4365 = vpop.f32.mrf.mxu0
  %v4366 = vpop.f32.mrf.mxu0
  %v4367 = vadd.f32 0.0, %v4366
  %v4368 = vpop.f32.mrf.mxu0
  %4369 = vdwg.mxu0
  %v4370 = vlaneseq
  %v4371 = vshrl.u32 %v4370, 7
  %v4372 = vsub.s32 0, %v4371
  %v4373 = vrot.slane %v4289, %v4372
  %v4374 = vadd.f32 %v4356, %v4373
  %v4375 = vadd.f32 %v4359, %v4373
  %v4376 = vadd.f32 %v4364, %v4373
  %v4377 = vadd.f32 %v4367, %v4373
  %v4378 = vpack.c.bf16 %v2916, %v2915
  %v4383 = vunpack.c.l.b16 %v4290
  %v4384 = vunpack.c.l.b16 %v4291
  %v4385 = vunpack.c.l.b16 %v4292
  %v4386 = vunpack.c.l.b16 %v4293
  %v4387 = vpack.c.b16 %v4384, %v4383
  %v4388 = vpack.c.b16 %v4386, %v4385
  %v4392 = vsel %vm296, %v4378, 0
  %4394 = vmatprep.subr.bf16.mxu0 0
  %4395 = vmatpush1.bf16.msra.mxu0 0
  %4396 = vmatprep.subr.bf16.mxu0 0
  %4397 = vmatpush1.bf16.msra.mxu0 0
  %4398 = vmatprep.subr.bf16.mxu0 0
  %4399 = vmatpush1.bf16.msra.mxu0 0
  %4400 = vmatprep.subr.bf16.mxu0 0
  %4401 = vmatpush1.bf16.msra.mxu0 0
  %4402 = vmatprep.subr.bf16.mxu0 0
  %4403 = vmatpush1.bf16.msra.mxu0 0
  %4404 = vmatprep.subr.bf16.mxu0 0
  %4405 = vmatpush1.bf16.msra.mxu0 0
  %4406 = vmatprep.subr.bf16.mxu0 0
  %4407 = vmatpush1.bf16.msra.mxu0 %v4388
  %4408 = vmatprep.subr.bf16.mxu0 0
  %4409 = vmatpush1.bf16.msra.mxu0 %v4387
  %4410 = vmatprep.subr.bf16.mxu0 0
  %4411 = vmatpush2.bf16.msra.mxu0 0
  %4412 = vmatprep.subr.bf16.mxu0 0
  %4413 = vmatpush2.bf16.msra.mxu0 0
  %4414 = vmatprep.subr.bf16.mxu0 0
  %4415 = vmatpush2.bf16.msra.mxu0 0
  %4416 = vmatprep.subr.bf16.mxu0 0
  %4417 = vmatpush2.bf16.msra.mxu0 0
  %4418 = vmatprep.subr.bf16.mxu0 0
  %4419 = vmatpush2.bf16.msra.mxu0 0
  %4420 = vmatprep.subr.bf16.mxu0 0
  %4421 = vmatpush2.bf16.msra.mxu0 0
  %4422 = vmatprep.subr.bf16.mxu0 0
  %4423 = vmatpush2.bf16.msra.mxu0 0
  %4424 = vmatprep.subr.bf16.mxu0 0
  %4425 = vmatpush2.bf16.msra.mxu0 0
  %4426 = vmatprep.mubr.bf16.mxu0 0
  %4427 = vmatmul.mubr.bf16.gmra.mxu0 %v4392
  %v4428 = vpop.f32.mrf.mxu0
  %v4429 = vadd.f32 0.0, %v4428
  %v4430 = vpop.f32.mrf.mxu0
  %v4431 = vpop.f32.mrf.mxu0
  %v4432 = vadd.f32 0.0, %v4431
  %v4433 = vpop.f32.mrf.mxu0
  %4434 = vdwg.mxu0
  %v4435 = vlaneseq
  %v4436 = vshrl.u32 %v4435, 7
  %v4437 = vsub.s32 0, %v4436
  %v4438 = vrot.slane %v4294, %v4437
  %v4439 = vadd.f32 %v4429, %v4438
  %v4440 = vadd.f32 %v4432, %v4438
  %v4441 = vpack.c.bf16 %v4375, %v4374
  %v4442 = vpack.c.bf16 %v4377, %v4376
  %v4443 = vpack.c.bf16 %v4439, %v4439
  %v4444 = vpack.c.bf16 %v4440, %v4440
  %v4446 = vsel %vm352, %v4441, 0
  %v4449 = vsel %vm352, %v4443, 0
  %4451 = vmatprep.subr.bf16.mxu0 0
  %4452 = vmatpush1.bf16.xpose.msra.mxu0 0
  %4453 = vmatprep.subr.bf16.mxu0 0
  %4454 = vmatpush1.bf16.xpose.msra.mxu0 0
  %4455 = vmatprep.subr.bf16.mxu0 0
  %4456 = vmatpush1.bf16.xpose.msra.mxu0 0
  %4457 = vmatprep.subr.bf16.mxu0 0
  %4458 = vmatpush1.bf16.xpose.msra.mxu0 0
  %4459 = vmatprep.subr.bf16.mxu0 0
  %4460 = vmatpush1.bf16.xpose.msra.mxu0 0
  %4461 = vmatprep.subr.bf16.mxu0 0
  %4462 = vmatpush1.bf16.xpose.msra.mxu0 0
  %4463 = vmatprep.subr.bf16.mxu0 0
  %4464 = vmatpush1.bf16.xpose.msra.mxu0 0
  %4465 = vmatprep.subr.bf16.mxu0 0
  %4466 = vmatpush1.bf16.xpose.msra.mxu0 %v4449
  %4467 = vmatprep.subr.bf16.mxu0 0
  %4468 = vmatpush2.bf16.xpose.msra.mxu0 0
  %4469 = vmatprep.subr.bf16.mxu0 0
  %4470 = vmatpush2.bf16.xpose.msra.mxu0 0
  %4471 = vmatprep.subr.bf16.mxu0 0
  %4472 = vmatpush2.bf16.xpose.msra.mxu0 0
  %4473 = vmatprep.subr.bf16.mxu0 0
  %4474 = vmatpush2.bf16.xpose.msra.mxu0 0
  %4475 = vmatprep.subr.bf16.mxu0 0
  %4476 = vmatpush2.bf16.xpose.msra.mxu0 0
  %4477 = vmatprep.subr.bf16.mxu0 0
  %4478 = vmatpush2.bf16.xpose.msra.mxu0 0
  %4479 = vmatprep.subr.bf16.mxu0 0
  %4480 = vmatpush2.bf16.xpose.msra.mxu0 0
  %4481 = vmatprep.subr.bf16.mxu0 0
  %4482 = vmatpush2.bf16.xpose.msra.mxu0 0
  %4483 = vmatprep.mubr.bf16.mxu0 0
  %4484 = vmatmul.mubr.bf16.gmra.mxu0 %v4446
  %v4485 = vpop.f32.mrf.mxu0
  %v4486 = vadd.f32 0.0, %v4485
  %v4487 = vpop.f32.mrf.mxu0
  %v4488 = vpop.f32.mrf.mxu0
  %v4489 = vadd.f32 0.0, %v4488
  %v4490 = vpop.f32.mrf.mxu0
  %4491 = vdwg.mxu0
  %v4493 = vsel %vm352, %v4442, 0
  %v4496 = vsel %vm352, %v4444, 0
  %4498 = vmatprep.subr.bf16.mxu0 0
  %4499 = vmatpush1.bf16.xpose.msra.mxu0 0
  %4500 = vmatprep.subr.bf16.mxu0 0
  %4501 = vmatpush1.bf16.xpose.msra.mxu0 0
  %4502 = vmatprep.subr.bf16.mxu0 0
  %4503 = vmatpush1.bf16.xpose.msra.mxu0 0
  %4504 = vmatprep.subr.bf16.mxu0 0
  %4505 = vmatpush1.bf16.xpose.msra.mxu0 0
  %4506 = vmatprep.subr.bf16.mxu0 0
  %4507 = vmatpush1.bf16.xpose.msra.mxu0 0
  %4508 = vmatprep.subr.bf16.mxu0 0
  %4509 = vmatpush1.bf16.xpose.msra.mxu0 0
  %4510 = vmatprep.subr.bf16.mxu0 0
  %4511 = vmatpush1.bf16.xpose.msra.mxu0 0
  %4512 = vmatprep.subr.bf16.mxu0 0
  %4513 = vmatpush1.bf16.xpose.msra.mxu0 %v4496
  %4514 = vmatprep.subr.bf16.mxu0 0
  %4515 = vmatpush2.bf16.xpose.msra.mxu0 0
  %4516 = vmatprep.subr.bf16.mxu0 0
  %4517 = vmatpush2.bf16.xpose.msra.mxu0 0
  %4518 = vmatprep.subr.bf16.mxu0 0
  %4519 = vmatpush2.bf16.xpose.msra.mxu0 0
  %4520 = vmatprep.subr.bf16.mxu0 0
  %4521 = vmatpush2.bf16.xpose.msra.mxu0 0
  %4522 = vmatprep.subr.bf16.mxu0 0
  %4523 = vmatpush2.bf16.xpose.msra.mxu0 0
  %4524 = vmatprep.subr.bf16.mxu0 0
  %4525 = vmatpush2.bf16.xpose.msra.mxu0 0
  %4526 = vmatprep.subr.bf16.mxu0 0
  %4527 = vmatpush2.bf16.xpose.msra.mxu0 0
  %4528 = vmatprep.subr.bf16.mxu0 0
  %4529 = vmatpush2.bf16.xpose.msra.mxu0 0
  %4530 = vmatprep.mubr.bf16.mxu0 0
  %4531 = vmatmul.mubr.bf16.gmra.mxu0 %v4493
  %v4532 = vpop.f32.mrf.mxu0
  %v4533 = vadd.f32 0.0, %v4532
  %v4534 = vpop.f32.mrf.mxu0
  %v4535 = vpop.f32.mrf.mxu0
  %v4536 = vadd.f32 0.0, %v4535
  %v4537 = vpop.f32.mrf.mxu0
  %4538 = vdwg.mxu0
  %v4539 = vmul.f32 %v4486, 0.35355338
  %v4540 = vmul.f32 %v4489, 0.35355338
  %v4541 = vmul.f32 %v4533, 0.35355338
  %v4542 = vmul.f32 %v4536, 0.35355338
  %v4543 = vsel %vm352, %v4539, -inf
  %4544 = vmax.xlane.f32.xlu0 %v4543
  %v4545 = vpop.xlane.xlu0 %4544
  %v4546 = vsel %vm352, %v4540, -inf
  %4547 = vmax.xlane.f32.xlu0 %v4546
  %v4548 = vpop.xlane.xlu0 %4547
  %v4549 = vsel %vm352, %v4541, -inf
  %4550 = vmax.xlane.f32.xlu0 %v4549
  %v4551 = vpop.xlane.xlu0 %4550
  %v4552 = vsel %vm352, %v4542, -inf
  %4553 = vmax.xlane.f32.xlu0 %v4552
  %v4554 = vpop.xlane.xlu0 %4553
  %v4555 = vsub.f32 %v4539, %v4545
  %v4556 = vsub.f32 %v4540, %v4548
  %v4557 = vsub.f32 %v4541, %v4551
  %v4558 = vsub.f32 %v4542, %v4554
  %v4559 = vmul.f32 %v4555, 1.442695
  %v4560 = vpow.pop %v4559
  %v4561 = vmul.f32 %v4556, 1.442695
  %v4562 = vpow.pop %v4561
  %v4563 = vmul.f32 %v4557, 1.442695
  %v4564 = vpow.pop %v4563
  %v4565 = vmul.f32 %v4558, 1.442695
  %v4566 = vpow.pop %v4565
  %v4567 = vsel %vm352, %v4560, 0.0
  %4568 = vadd.xlane.f32.xlu0 %v4567
  %v4569 = vpop.xlane.xlu0 %4568
  %v4570 = vsel %vm352, %v4562, 0.0
  %4571 = vadd.xlane.f32.xlu0 %v4570
  %v4572 = vpop.xlane.xlu0 %4571
  %v4573 = vsel %vm352, %v4564, 0.0
  %4574 = vadd.xlane.f32.xlu0 %v4573
  %v4575 = vpop.xlane.xlu0 %4574
  %v4576 = vsel %vm352, %v4566, 0.0
  %4577 = vadd.xlane.f32.xlu0 %v4576
  %v4578 = vpop.xlane.xlu0 %4577
  %v4579 = vrcp.pop %v4569
  %v4580 = vrcp.pop %v4572
  %v4581 = vrcp.pop %v4575
  %v4582 = vrcp.pop %v4578
  %v4583 = vmul.f32 %v4560, %v4579
  %v4584 = vmul.f32 %v4562, %v4580
  %v4585 = vmul.f32 %v4564, %v4581
  %v4586 = vmul.f32 %v4566, %v4582
  %v4587 = vpack.c.bf16 %v4584, %v4583
  %v4588 = vpack.c.bf16 %v4586, %v4585
  %4590 = vrot.lane.b32.xlu0 %v4443, 96
  %v4591 = vpop.permute.xlu0 %4590
  %v4593 = vsel %vm352, %v4587, 0
  %v4596 = vsel %vm479, %v4591, 0
  %4598 = vmatprep.subr.bf16.mxu0 0
  %4599 = vmatpush1.bf16.msra.mxu0 0
  %4600 = vmatprep.subr.bf16.mxu0 0
  %4601 = vmatpush1.bf16.msra.mxu0 0
  %4602 = vmatprep.subr.bf16.mxu0 0
  %4603 = vmatpush1.bf16.msra.mxu0 0
  %4604 = vmatprep.subr.bf16.mxu0 0
  %4605 = vmatpush1.bf16.msra.mxu0 0
  %4606 = vmatprep.subr.bf16.mxu0 0
  %4607 = vmatpush1.bf16.msra.mxu0 0
  %4608 = vmatprep.subr.bf16.mxu0 0
  %4609 = vmatpush1.bf16.msra.mxu0 0
  %4610 = vmatprep.subr.bf16.mxu0 0
  %4611 = vmatpush1.bf16.msra.mxu0 0
  %4612 = vmatprep.subr.bf16.mxu0 0
  %4613 = vmatpush1.bf16.msra.mxu0 %v4596
  %4614 = vmatprep.subr.bf16.mxu0 0
  %4615 = vmatpush2.bf16.msra.mxu0 0
  %4616 = vmatprep.subr.bf16.mxu0 0
  %4617 = vmatpush2.bf16.msra.mxu0 0
  %4618 = vmatprep.subr.bf16.mxu0 0
  %4619 = vmatpush2.bf16.msra.mxu0 0
  %4620 = vmatprep.subr.bf16.mxu0 0
  %4621 = vmatpush2.bf16.msra.mxu0 0
  %4622 = vmatprep.subr.bf16.mxu0 0
  %4623 = vmatpush2.bf16.msra.mxu0 0
  %4624 = vmatprep.subr.bf16.mxu0 0
  %4625 = vmatpush2.bf16.msra.mxu0 0
  %4626 = vmatprep.subr.bf16.mxu0 0
  %4627 = vmatpush2.bf16.msra.mxu0 0
  %4628 = vmatprep.subr.bf16.mxu0 0
  %4629 = vmatpush2.bf16.msra.mxu0 0
  %4630 = vmatprep.mubr.bf16.mxu0 0
  %4631 = vmatmul.mubr.bf16.gmra.mxu0 %v4593
  %v4632 = vpop.f32.mrf.mxu0
  %v4633 = vadd.f32 0.0, %v4632
  %v4634 = vpop.f32.mrf.mxu0
  %v4635 = vpop.f32.mrf.mxu0
  %v4636 = vadd.f32 0.0, %v4635
  %v4637 = vpop.f32.mrf.mxu0
  %4638 = vdwg.mxu0
  %4640 = vrot.lane.b32.xlu0 %v4444, 96
  %v4641 = vpop.permute.xlu0 %4640
  %v4643 = vsel %vm352, %v4588, 0
  %v4646 = vsel %vm479, %v4641, 0
  %4648 = vmatprep.subr.bf16.mxu0 0
  %4649 = vmatpush1.bf16.msra.mxu0 0
  %4650 = vmatprep.subr.bf16.mxu0 0
  %4651 = vmatpush1.bf16.msra.mxu0 0
  %4652 = vmatprep.subr.bf16.mxu0 0
  %4653 = vmatpush1.bf16.msra.mxu0 0
  %4654 = vmatprep.subr.bf16.mxu0 0
  %4655 = vmatpush1.bf16.msra.mxu0 0
  %4656 = vmatprep.subr.bf16.mxu0 0
  %4657 = vmatpush1.bf16.msra.mxu0 0
  %4658 = vmatprep.subr.bf16.mxu0 0
  %4659 = vmatpush1.bf16.msra.mxu0 0
  %4660 = vmatprep.subr.bf16.mxu0 0
  %4661 = vmatpush1.bf16.msra.mxu0 0
  %4662 = vmatprep.subr.bf16.mxu0 0
  %4663 = vmatpush1.bf16.msra.mxu0 %v4646
  %4664 = vmatprep.subr.bf16.mxu0 0
  %4665 = vmatpush2.bf16.msra.mxu0 0
  %4666 = vmatprep.subr.bf16.mxu0 0
  %4667 = vmatpush2.bf16.msra.mxu0 0
  %4668 = vmatprep.subr.bf16.mxu0 0
  %4669 = vmatpush2.bf16.msra.mxu0 0
  %4670 = vmatprep.subr.bf16.mxu0 0
  %4671 = vmatpush2.bf16.msra.mxu0 0
  %4672 = vmatprep.subr.bf16.mxu0 0
  %4673 = vmatpush2.bf16.msra.mxu0 0
  %4674 = vmatprep.subr.bf16.mxu0 0
  %4675 = vmatpush2.bf16.msra.mxu0 0
  %4676 = vmatprep.subr.bf16.mxu0 0
  %4677 = vmatpush2.bf16.msra.mxu0 0
  %4678 = vmatprep.subr.bf16.mxu0 0
  %4679 = vmatpush2.bf16.msra.mxu0 0
  %4680 = vmatprep.mubr.bf16.mxu0 0
  %4681 = vmatmul.mubr.bf16.gmra.mxu0 %v4643
  %v4682 = vpop.f32.mrf.mxu0
  %v4683 = vadd.f32 0.0, %v4682
  %v4684 = vpop.f32.mrf.mxu0
  %v4685 = vpop.f32.mrf.mxu0
  %v4686 = vadd.f32 0.0, %v4685
  %v4687 = vpop.f32.mrf.mxu0
  %4688 = vdwg.mxu0
  %4689 = vst.msk [vmem:[#allocation2] sm:$0xff] %vm352, %v4633
  %4690 = vst.msk [vmem:[#allocation2 + $0x8] sm:$0xff] %vm352, %v4636
  %4691 = vst.msk [vmem:[#allocation2 + $0x10] sm:$0xff] %vm352, %v4683
  %4692 = vst.msk [vmem:[#allocation2 + $0x18] sm:$0xff] %vm352, %v4686
  %4694 = vrot.lane.b32.xlu0 %v4441, 120
  %v4695 = vpop.permute.xlu0 %4694
  %4696 = vrot.lane.b32.xlu0 %v4443, 120
  %v4697 = vpop.permute.xlu0 %4696
  %v4699 = vsel %vm352, %v4695, 0
  %v4702 = vsel %vm352, %v4697, 0
  %4704 = vmatprep.subr.bf16.mxu0 0
  %4705 = vmatpush1.bf16.xpose.msra.mxu0 0
  %4706 = vmatprep.subr.bf16.mxu0 0
  %4707 = vmatpush1.bf16.xpose.msra.mxu0 0
  %4708 = vmatprep.subr.bf16.mxu0 0
  %4709 = vmatpush1.bf16.xpose.msra.mxu0 0
  %4710 = vmatprep.subr.bf16.mxu0 0
  %4711 = vmatpush1.bf16.xpose.msra.mxu0 0
  %4712 = vmatprep.subr.bf16.mxu0 0
  %4713 = vmatpush1.bf16.xpose.msra.mxu0 0
  %4714 = vmatprep.subr.bf16.mxu0 0
  %4715 = vmatpush1.bf16.xpose.msra.mxu0 0
  %4716 = vmatprep.subr.bf16.mxu0 0
  %4717 = vmatpush1.bf16.xpose.msra.mxu0 0
  %4718 = vmatprep.subr.bf16.mxu0 0
  %4719 = vmatpush1.bf16.xpose.msra.mxu0 %v4702
  %4720 = vmatprep.subr.bf16.mxu0 0
  %4721 = vmatpush2.bf16.xpose.msra.mxu0 0
  %4722 = vmatprep.subr.bf16.mxu0 0
  %4723 = vmatpush2.bf16.xpose.msra.mxu0 0
  %4724 = vmatprep.subr.bf16.mxu0 0
  %4725 = vmatpush2.bf16.xpose.msra.mxu0 0
  %4726 = vmatprep.subr.bf16.mxu0 0
  %4727 = vmatpush2.bf16.xpose.msra.mxu0 0
  %4728 = vmatprep.subr.bf16.mxu0 0
  %4729 = vmatpush2.bf16.xpose.msra.mxu0 0
  %4730 = vmatprep.subr.bf16.mxu0 0
  %4731 = vmatpush2.bf16.xpose.msra.mxu0 0
  %4732 = vmatprep.subr.bf16.mxu0 0
  %4733 = vmatpush2.bf16.xpose.msra.mxu0 0
  %4734 = vmatprep.subr.bf16.mxu0 0
  %4735 = vmatpush2.bf16.xpose.msra.mxu0 0
  %4736 = vmatprep.mubr.bf16.mxu0 0
  %4737 = vmatmul.mubr.bf16.gmra.mxu0 %v4699
  %v4738 = vpop.f32.mrf.mxu0
  %v4739 = vadd.f32 0.0, %v4738
  %v4740 = vpop.f32.mrf.mxu0
  %v4741 = vpop.f32.mrf.mxu0
  %v4742 = vadd.f32 0.0, %v4741
  %v4743 = vpop.f32.mrf.mxu0
  %4744 = vdwg.mxu0
  %4746 = vrot.lane.b32.xlu0 %v4442, 120
  %v4747 = vpop.permute.xlu0 %4746
  %4748 = vrot.lane.b32.xlu0 %v4444, 120
  %v4749 = vpop.permute.xlu0 %4748
  %v4751 = vsel %vm352, %v4747, 0
  %v4754 = vsel %vm352, %v4749, 0
  %4756 = vmatprep.subr.bf16.mxu0 0
  %4757 = vmatpush1.bf16.xpose.msra.mxu0 0
  %4758 = vmatprep.subr.bf16.mxu0 0
  %4759 = vmatpush1.bf16.xpose.msra.mxu0 0
  %4760 = vmatprep.subr.bf16.mxu0 0
  %4761 = vmatpush1.bf16.xpose.msra.mxu0 0
  %4762 = vmatprep.subr.bf16.mxu0 0
  %4763 = vmatpush1.bf16.xpose.msra.mxu0 0
  %4764 = vmatprep.subr.bf16.mxu0 0
  %4765 = vmatpush1.bf16.xpose.msra.mxu0 0
  %4766 = vmatprep.subr.bf16.mxu0 0
  %4767 = vmatpush1.bf16.xpose.msra.mxu0 0
  %4768 = vmatprep.subr.bf16.mxu0 0
  %4769 = vmatpush1.bf16.xpose.msra.mxu0 0
  %4770 = vmatprep.subr.bf16.mxu0 0
  %4771 = vmatpush1.bf16.xpose.msra.mxu0 %v4754
  %4772 = vmatprep.subr.bf16.mxu0 0
  %4773 = vmatpush2.bf16.xpose.msra.mxu0 0
  %4774 = vmatprep.subr.bf16.mxu0 0
  %4775 = vmatpush2.bf16.xpose.msra.mxu0 0
  %4776 = vmatprep.subr.bf16.mxu0 0
  %4777 = vmatpush2.bf16.xpose.msra.mxu0 0
  %4778 = vmatprep.subr.bf16.mxu0 0
  %4779 = vmatpush2.bf16.xpose.msra.mxu0 0
  %4780 = vmatprep.subr.bf16.mxu0 0
  %4781 = vmatpush2.bf16.xpose.msra.mxu0 0
  %4782 = vmatprep.subr.bf16.mxu0 0
  %4783 = vmatpush2.bf16.xpose.msra.mxu0 0
  %4784 = vmatprep.subr.bf16.mxu0 0
  %4785 = vmatpush2.bf16.xpose.msra.mxu0 0
  %4786 = vmatprep.subr.bf16.mxu0 0
  %4787 = vmatpush2.bf16.xpose.msra.mxu0 0
  %4788 = vmatprep.mubr.bf16.mxu0 0
  %4789 = vmatmul.mubr.bf16.gmra.mxu0 %v4751
  %v4790 = vpop.f32.mrf.mxu0
  %v4791 = vadd.f32 0.0, %v4790
  %v4792 = vpop.f32.mrf.mxu0
  %v4793 = vpop.f32.mrf.mxu0
  %v4794 = vadd.f32 0.0, %v4793
  %v4795 = vpop.f32.mrf.mxu0
  %4796 = vdwg.mxu0
  %v4797 = vmul.f32 %v4739, 0.35355338
  %v4798 = vmul.f32 %v4742, 0.35355338
  %v4799 = vmul.f32 %v4791, 0.35355338
  %v4800 = vmul.f32 %v4794, 0.35355338
  %v4801 = vsel %vm352, %v4797, -inf
  %4802 = vmax.xlane.f32.xlu0 %v4801
  %v4803 = vpop.xlane.xlu0 %4802
  %v4804 = vsel %vm352, %v4798, -inf
  %4805 = vmax.xlane.f32.xlu0 %v4804
  %v4806 = vpop.xlane.xlu0 %4805
  %v4807 = vsel %vm352, %v4799, -inf
  %4808 = vmax.xlane.f32.xlu0 %v4807
  %v4809 = vpop.xlane.xlu0 %4808
  %v4810 = vsel %vm352, %v4800, -inf
  %4811 = vmax.xlane.f32.xlu0 %v4810
  %v4812 = vpop.xlane.xlu0 %4811
  %v4813 = vsub.f32 %v4797, %v4803
  %v4814 = vsub.f32 %v4798, %v4806
  %v4815 = vsub.f32 %v4799, %v4809
  %v4816 = vsub.f32 %v4800, %v4812
  %v4817 = vmul.f32 %v4813, 1.442695
  %v4818 = vpow.pop %v4817
  %v4819 = vmul.f32 %v4814, 1.442695
  %v4820 = vpow.pop %v4819
  %v4821 = vmul.f32 %v4815, 1.442695
  %v4822 = vpow.pop %v4821
  %v4823 = vmul.f32 %v4816, 1.442695
  %v4824 = vpow.pop %v4823
  %v4825 = vsel %vm352, %v4818, 0.0
  %4826 = vadd.xlane.f32.xlu0 %v4825
  %v4827 = vpop.xlane.xlu0 %4826
  %v4828 = vsel %vm352, %v4820, 0.0
  %4829 = vadd.xlane.f32.xlu0 %v4828
  %v4830 = vpop.xlane.xlu0 %4829
  %v4831 = vsel %vm352, %v4822, 0.0
  %4832 = vadd.xlane.f32.xlu0 %v4831
  %v4833 = vpop.xlane.xlu0 %4832
  %v4834 = vsel %vm352, %v4824, 0.0
  %4835 = vadd.xlane.f32.xlu0 %v4834
  %v4836 = vpop.xlane.xlu0 %4835
  %v4837 = vrcp.pop %v4827
  %v4838 = vrcp.pop %v4830
  %v4839 = vrcp.pop %v4833
  %v4840 = vrcp.pop %v4836
  %v4841 = vmul.f32 %v4818, %v4837
  %v4842 = vmul.f32 %v4820, %v4838
  %v4843 = vmul.f32 %v4822, %v4839
  %v4844 = vmul.f32 %v4824, %v4840
  %v4845 = vpack.c.bf16 %v4842, %v4841
  %v4846 = vpack.c.bf16 %v4844, %v4843
  %4847 = vrot.lane.b32.xlu0 %v4443, 88
  %v4848 = vpop.permute.xlu0 %4847
  %v4850 = vsel %vm352, %v4845, 0
  %v4853 = vsel %vm479, %v4848, 0
  %4855 = vmatprep.subr.bf16.mxu0 0
  %4856 = vmatpush1.bf16.msra.mxu0 0
  %4857 = vmatprep.subr.bf16.mxu0 0
  %4858 = vmatpush1.bf16.msra.mxu0 0
  %4859 = vmatprep.subr.bf16.mxu0 0
  %4860 = vmatpush1.bf16.msra.mxu0 0
  %4861 = vmatprep.subr.bf16.mxu0 0
  %4862 = vmatpush1.bf16.msra.mxu0 0
  %4863 = vmatprep.subr.bf16.mxu0 0
  %4864 = vmatpush1.bf16.msra.mxu0 0
  %4865 = vmatprep.subr.bf16.mxu0 0
  %4866 = vmatpush1.bf16.msra.mxu0 0
  %4867 = vmatprep.subr.bf16.mxu0 0
  %4868 = vmatpush1.bf16.msra.mxu0 0
  %4869 = vmatprep.subr.bf16.mxu0 0
  %4870 = vmatpush1.bf16.msra.mxu0 %v4853
  %4871 = vmatprep.subr.bf16.mxu0 0
  %4872 = vmatpush2.bf16.msra.mxu0 0
  %4873 = vmatprep.subr.bf16.mxu0 0
  %4874 = vmatpush2.bf16.msra.mxu0 0
  %4875 = vmatprep.subr.bf16.mxu0 0
  %4876 = vmatpush2.bf16.msra.mxu0 0
  %4877 = vmatprep.subr.bf16.mxu0 0
  %4878 = vmatpush2.bf16.msra.mxu0 0
  %4879 = vmatprep.subr.bf16.mxu0 0
  %4880 = vmatpush2.bf16.msra.mxu0 0
  %4881 = vmatprep.subr.bf16.mxu0 0
  %4882 = vmatpush2.bf16.msra.mxu0 0
  %4883 = vmatprep.subr.bf16.mxu0 0
  %4884 = vmatpush2.bf16.msra.mxu0 0
  %4885 = vmatprep.subr.bf16.mxu0 0
  %4886 = vmatpush2.bf16.msra.mxu0 0
  %4887 = vmatprep.mubr.bf16.mxu0 0
  %4888 = vmatmul.mubr.bf16.gmra.mxu0 %v4850
  %v4889 = vpop.f32.mrf.mxu0
  %v4890 = vadd.f32 0.0, %v4889
  %v4891 = vpop.f32.mrf.mxu0
  %v4892 = vpop.f32.mrf.mxu0
  %v4893 = vadd.f32 0.0, %v4892
  %v4894 = vpop.f32.mrf.mxu0
  %4895 = vdwg.mxu0
  %4896 = vrot.lane.b32.xlu0 %v4444, 88
  %v4897 = vpop.permute.xlu0 %4896
  %v4899 = vsel %vm352, %v4846, 0
  %v4902 = vsel %vm479, %v4897, 0
  %4904 = vmatprep.subr.bf16.mxu0 0
  %4905 = vmatpush1.bf16.msra.mxu0 0
  %4906 = vmatprep.subr.bf16.mxu0 0
  %4907 = vmatpush1.bf16.msra.mxu0 0
  %4908 = vmatprep.subr.bf16.mxu0 0
  %4909 = vmatpush1.bf16.msra.mxu0 0
  %4910 = vmatprep.subr.bf16.mxu0 0
  %4911 = vmatpush1.bf16.msra.mxu0 0
  %4912 = vmatprep.subr.bf16.mxu0 0
  %4913 = vmatpush1.bf16.msra.mxu0 0
  %4914 = vmatprep.subr.bf16.mxu0 0
  %4915 = vmatpush1.bf16.msra.mxu0 0
  %4916 = vmatprep.subr.bf16.mxu0 0
  %4917 = vmatpush1.bf16.msra.mxu0 0
  %4918 = vmatprep.subr.bf16.mxu0 0
  %4919 = vmatpush1.bf16.msra.mxu0 %v4902
  %4920 = vmatprep.subr.bf16.mxu0 0
  %4921 = vmatpush2.bf16.msra.mxu0 0
  %4922 = vmatprep.subr.bf16.mxu0 0
  %4923 = vmatpush2.bf16.msra.mxu0 0
  %4924 = vmatprep.subr.bf16.mxu0 0
  %4925 = vmatpush2.bf16.msra.mxu0 0
  %4926 = vmatprep.subr.bf16.mxu0 0
  %4927 = vmatpush2.bf16.msra.mxu0 0
  %4928 = vmatprep.subr.bf16.mxu0 0
  %4929 = vmatpush2.bf16.msra.mxu0 0
  %4930 = vmatprep.subr.bf16.mxu0 0
  %4931 = vmatpush2.bf16.msra.mxu0 0
  %4932 = vmatprep.subr.bf16.mxu0 0
  %4933 = vmatpush2.bf16.msra.mxu0 0
  %4934 = vmatprep.subr.bf16.mxu0 0
  %4935 = vmatpush2.bf16.msra.mxu0 0
  %4936 = vmatprep.mubr.bf16.mxu0 0
  %4937 = vmatmul.mubr.bf16.gmra.mxu0 %v4899
  %v4938 = vpop.f32.mrf.mxu0
  %v4939 = vadd.f32 0.0, %v4938
  %v4940 = vpop.f32.mrf.mxu0
  %v4941 = vpop.f32.mrf.mxu0
  %v4942 = vadd.f32 0.0, %v4941
  %v4943 = vpop.f32.mrf.mxu0
  %4944 = vdwg.mxu0
  %4949 = vrot.lane.b32.xlu0 %v4890, 8
  %v4950 = vpop.permute.xlu0 %4949
  %4951 = vrot.lane.b32.xlu0 %v4893, 8
  %v4952 = vpop.permute.xlu0 %4951
  %4953 = vrot.lane.b32.xlu0 %v4939, 8
  %v4954 = vpop.permute.xlu0 %4953
  %4955 = vrot.lane.b32.xlu0 %v4942, 8
  %v4956 = vpop.permute.xlu0 %4955
  %4961 = vst.msk [vmem:[#allocation2] sm:$0xff] %vm803, %v4950
  %4962 = vst.msk [vmem:[#allocation2 + $0x8] sm:$0xff] %vm803, %v4952
  %4963 = vst.msk [vmem:[#allocation2 + $0x10] sm:$0xff] %vm803, %v4954
  %4964 = vst.msk [vmem:[#allocation2 + $0x18] sm:$0xff] %vm803, %v4956
  %4965 = vrot.lane.b32.xlu0 %v4441, 112
  %v4966 = vpop.permute.xlu0 %4965
  %4967 = vrot.lane.b32.xlu0 %v4443, 112
  %v4968 = vpop.permute.xlu0 %4967
  %v4970 = vsel %vm352, %v4966, 0
  %v4973 = vsel %vm352, %v4968, 0
  %4975 = vmatprep.subr.bf16.mxu0 0
  %4976 = vmatpush1.bf16.xpose.msra.mxu0 0
  %4977 = vmatprep.subr.bf16.mxu0 0
  %4978 = vmatpush1.bf16.xpose.msra.mxu0 0
  %4979 = vmatprep.subr.bf16.mxu0 0
  %4980 = vmatpush1.bf16.xpose.msra.mxu0 0
  %4981 = vmatprep.subr.bf16.mxu0 0
  %4982 = vmatpush1.bf16.xpose.msra.mxu0 0
  %4983 = vmatprep.subr.bf16.mxu0 0
  %4984 = vmatpush1.bf16.xpose.msra.mxu0 0
  %4985 = vmatprep.subr.bf16.mxu0 0
  %4986 = vmatpush1.bf16.xpose.msra.mxu0 0
  %4987 = vmatprep.subr.bf16.mxu0 0
  %4988 = vmatpush1.bf16.xpose.msra.mxu0 0
  %4989 = vmatprep.subr.bf16.mxu0 0
  %4990 = vmatpush1.bf16.xpose.msra.mxu0 %v4973
  %4991 = vmatprep.subr.bf16.mxu0 0
  %4992 = vmatpush2.bf16.xpose.msra.mxu0 0
  %4993 = vmatprep.subr.bf16.mxu0 0
  %4994 = vmatpush2.bf16.xpose.msra.mxu0 0
  %4995 = vmatprep.subr.bf16.mxu0 0
  %4996 = vmatpush2.bf16.xpose.msra.mxu0 0
  %4997 = vmatprep.subr.bf16.mxu0 0
  %4998 = vmatpush2.bf16.xpose.msra.mxu0 0
  %4999 = vmatprep.subr.bf16.mxu0 0
  %5000 = vmatpush2.bf16.xpose.msra.mxu0 0
  %5001 = vmatprep.subr.bf16.mxu0 0
  %5002 = vmatpush2.bf16.xpose.msra.mxu0 0
  %5003 = vmatprep.subr.bf16.mxu0 0
  %5004 = vmatpush2.bf16.xpose.msra.mxu0 0
  %5005 = vmatprep.subr.bf16.mxu0 0
  %5006 = vmatpush2.bf16.xpose.msra.mxu0 0
  %5007 = vmatprep.mubr.bf16.mxu0 0
  %5008 = vmatmul.mubr.bf16.gmra.mxu0 %v4970
  %v5009 = vpop.f32.mrf.mxu0
  %v5010 = vadd.f32 0.0, %v5009
  %v5011 = vpop.f32.mrf.mxu0
  %v5012 = vpop.f32.mrf.mxu0
  %v5013 = vadd.f32 0.0, %v5012
  %v5014 = vpop.f32.mrf.mxu0
  %5015 = vdwg.mxu0
  %5016 = vrot.lane.b32.xlu0 %v4442, 112
  %v5017 = vpop.permute.xlu0 %5016
  %5018 = vrot.lane.b32.xlu0 %v4444, 112
  %v5019 = vpop.permute.xlu0 %5018
  %v5021 = vsel %vm352, %v5017, 0
  %v5024 = vsel %vm352, %v5019, 0
  %5026 = vmatprep.subr.bf16.mxu0 0
  %5027 = vmatpush1.bf16.xpose.msra.mxu0 0
  %5028 = vmatprep.subr.bf16.mxu0 0
  %5029 = vmatpush1.bf16.xpose.msra.mxu0 0
  %5030 = vmatprep.subr.bf16.mxu0 0
  %5031 = vmatpush1.bf16.xpose.msra.mxu0 0
  %5032 = vmatprep.subr.bf16.mxu0 0
  %5033 = vmatpush1.bf16.xpose.msra.mxu0 0
  %5034 = vmatprep.subr.bf16.mxu0 0
  %5035 = vmatpush1.bf16.xpose.msra.mxu0 0
  %5036 = vmatprep.subr.bf16.mxu0 0
  %5037 = vmatpush1.bf16.xpose.msra.mxu0 0
  %5038 = vmatprep.subr.bf16.mxu0 0
  %5039 = vmatpush1.bf16.xpose.msra.mxu0 0
  %5040 = vmatprep.subr.bf16.mxu0 0
  %5041 = vmatpush1.bf16.xpose.msra.mxu0 %v5024
  %5042 = vmatprep.subr.bf16.mxu0 0
  %5043 = vmatpush2.bf16.xpose.msra.mxu0 0
  %5044 = vmatprep.subr.bf16.mxu0 0
  %5045 = vmatpush2.bf16.xpose.msra.mxu0 0
  %5046 = vmatprep.subr.bf16.mxu0 0
  %5047 = vmatpush2.bf16.xpose.msra.mxu0 0
  %5048 = vmatprep.subr.bf16.mxu0 0
  %5049 = vmatpush2.bf16.xpose.msra.mxu0 0
  %5050 = vmatprep.subr.bf16.mxu0 0
  %5051 = vmatpush2.bf16.xpose.msra.mxu0 0
  %5052 = vmatprep.subr.bf16.mxu0 0
  %5053 = vmatpush2.bf16.xpose.msra.mxu0 0
  %5054 = vmatprep.subr.bf16.mxu0 0
  %5055 = vmatpush2.bf16.xpose.msra.mxu0 0
  %5056 = vmatprep.subr.bf16.mxu0 0
  %5057 = vmatpush2.bf16.xpose.msra.mxu0 0
  %5058 = vmatprep.mubr.bf16.mxu0 0
  %5059 = vmatmul.mubr.bf16.gmra.mxu0 %v5021
  %v5060 = vpop.f32.mrf.mxu0
  %v5061 = vadd.f32 0.0, %v5060
  %v5062 = vpop.f32.mrf.mxu0
  %v5063 = vpop.f32.mrf.mxu0
  %v5064 = vadd.f32 0.0, %v5063
  %v5065 = vpop.f32.mrf.mxu0
  %5066 = vdwg.mxu0
  %v5067 = vmul.f32 %v5010, 0.35355338
  %v5068 = vmul.f32 %v5013, 0.35355338
  %v5069 = vmul.f32 %v5061, 0.35355338
  %v5070 = vmul.f32 %v5064, 0.35355338
  %v5071 = vsel %vm352, %v5067, -inf
  %5072 = vmax.xlane.f32.xlu0 %v5071
  %v5073 = vpop.xlane.xlu0 %5072
  %v5074 = vsel %vm352, %v5068, -inf
  %5075 = vmax.xlane.f32.xlu0 %v5074
  %v5076 = vpop.xlane.xlu0 %5075
  %v5077 = vsel %vm352, %v5069, -inf
  %5078 = vmax.xlane.f32.xlu0 %v5077
  %v5079 = vpop.xlane.xlu0 %5078
  %v5080 = vsel %vm352, %v5070, -inf
  %5081 = vmax.xlane.f32.xlu0 %v5080
  %v5082 = vpop.xlane.xlu0 %5081
  %v5083 = vsub.f32 %v5067, %v5073
  %v5084 = vsub.f32 %v5068, %v5076
  %v5085 = vsub.f32 %v5069, %v5079
  %v5086 = vsub.f32 %v5070, %v5082
  %v5087 = vmul.f32 %v5083, 1.442695
  %v5088 = vpow.pop %v5087
  %v5089 = vmul.f32 %v5084, 1.442695
  %v5090 = vpow.pop %v5089
  %v5091 = vmul.f32 %v5085, 1.442695
  %v5092 = vpow.pop %v5091
  %v5093 = vmul.f32 %v5086, 1.442695
  %v5094 = vpow.pop %v5093
  %v5095 = vsel %vm352, %v5088, 0.0
  %5096 = vadd.xlane.f32.xlu0 %v5095
  %v5097 = vpop.xlane.xlu0 %5096
  %v5098 = vsel %vm352, %v5090, 0.0
  %5099 = vadd.xlane.f32.xlu0 %v5098
  %v5100 = vpop.xlane.xlu0 %5099
  %v5101 = vsel %vm352, %v5092, 0.0
  %5102 = vadd.xlane.f32.xlu0 %v5101
  %v5103 = vpop.xlane.xlu0 %5102
  %v5104 = vsel %vm352, %v5094, 0.0
  %5105 = vadd.xlane.f32.xlu0 %v5104
  %v5106 = vpop.xlane.xlu0 %5105
  %v5107 = vrcp.pop %v5097
  %v5108 = vrcp.pop %v5100
  %v5109 = vrcp.pop %v5103
  %v5110 = vrcp.pop %v5106
  %v5111 = vmul.f32 %v5088, %v5107
  %v5112 = vmul.f32 %v5090, %v5108
  %v5113 = vmul.f32 %v5092, %v5109
  %v5114 = vmul.f32 %v5094, %v5110
  %v5115 = vpack.c.bf16 %v5112, %v5111
  %v5116 = vpack.c.bf16 %v5114, %v5113
  %5117 = vrot.lane.b32.xlu0 %v4443, 80
  %v5118 = vpop.permute.xlu0 %5117
  %v5120 = vsel %vm352, %v5115, 0
  %v5123 = vsel %vm479, %v5118, 0
  %5125 = vmatprep.subr.bf16.mxu0 0
  %5126 = vmatpush1.bf16.msra.mxu0 0
  %5127 = vmatprep.subr.bf16.mxu0 0
  %5128 = vmatpush1.bf16.msra.mxu0 0
  %5129 = vmatprep.subr.bf16.mxu0 0
  %5130 = vmatpush1.bf16.msra.mxu0 0
  %5131 = vmatprep.subr.bf16.mxu0 0
  %5132 = vmatpush1.bf16.msra.mxu0 0
  %5133 = vmatprep.subr.bf16.mxu0 0
  %5134 = vmatpush1.bf16.msra.mxu0 0
  %5135 = vmatprep.subr.bf16.mxu0 0
  %5136 = vmatpush1.bf16.msra.mxu0 0
  %5137 = vmatprep.subr.bf16.mxu0 0
  %5138 = vmatpush1.bf16.msra.mxu0 0
  %5139 = vmatprep.subr.bf16.mxu0 0
  %5140 = vmatpush1.bf16.msra.mxu0 %v5123
  %5141 = vmatprep.subr.bf16.mxu0 0
  %5142 = vmatpush2.bf16.msra.mxu0 0
  %5143 = vmatprep.subr.bf16.mxu0 0
  %5144 = vmatpush2.bf16.msra.mxu0 0
  %5145 = vmatprep.subr.bf16.mxu0 0
  %5146 = vmatpush2.bf16.msra.mxu0 0
  %5147 = vmatprep.subr.bf16.mxu0 0
  %5148 = vmatpush2.bf16.msra.mxu0 0
  %5149 = vmatprep.subr.bf16.mxu0 0
  %5150 = vmatpush2.bf16.msra.mxu0 0
  %5151 = vmatprep.subr.bf16.mxu0 0
  %5152 = vmatpush2.bf16.msra.mxu0 0
  %5153 = vmatprep.subr.bf16.mxu0 0
  %5154 = vmatpush2.bf16.msra.mxu0 0
  %5155 = vmatprep.subr.bf16.mxu0 0
  %5156 = vmatpush2.bf16.msra.mxu0 0
  %5157 = vmatprep.mubr.bf16.mxu0 0
  %5158 = vmatmul.mubr.bf16.gmra.mxu0 %v5120
  %v5159 = vpop.f32.mrf.mxu0
  %v5160 = vadd.f32 0.0, %v5159
  %v5161 = vpop.f32.mrf.mxu0
  %v5162 = vpop.f32.mrf.mxu0
  %v5163 = vadd.f32 0.0, %v5162
  %v5164 = vpop.f32.mrf.mxu0
  %5165 = vdwg.mxu0
  %5166 = vrot.lane.b32.xlu0 %v4444, 80
  %v5167 = vpop.permute.xlu0 %5166
  %v5169 = vsel %vm352, %v5116, 0
  %v5172 = vsel %vm479, %v5167, 0
  %5174 = vmatprep.subr.bf16.mxu0 0
  %5175 = vmatpush1.bf16.msra.mxu0 0
  %5176 = vmatprep.subr.bf16.mxu0 0
  %5177 = vmatpush1.bf16.msra.mxu0 0
  %5178 = vmatprep.subr.bf16.mxu0 0
  %5179 = vmatpush1.bf16.msra.mxu0 0
  %5180 = vmatprep.subr.bf16.mxu0 0
  %5181 = vmatpush1.bf16.msra.mxu0 0
  %5182 = vmatprep.subr.bf16.mxu0 0
  %5183 = vmatpush1.bf16.msra.mxu0 0
  %5184 = vmatprep.subr.bf16.mxu0 0
  %5185 = vmatpush1.bf16.msra.mxu0 0
  %5186 = vmatprep.subr.bf16.mxu0 0
  %5187 = vmatpush1.bf16.msra.mxu0 0
  %5188 = vmatprep.subr.bf16.mxu0 0
  %5189 = vmatpush1.bf16.msra.mxu0 %v5172
  %5190 = vmatprep.subr.bf16.mxu0 0
  %5191 = vmatpush2.bf16.msra.mxu0 0
  %5192 = vmatprep.subr.bf16.mxu0 0
  %5193 = vmatpush2.bf16.msra.mxu0 0
  %5194 = vmatprep.subr.bf16.mxu0 0
  %5195 = vmatpush2.bf16.msra.mxu0 0
  %5196 = vmatprep.subr.bf16.mxu0 0
  %5197 = vmatpush2.bf16.msra.mxu0 0
  %5198 = vmatprep.subr.bf16.mxu0 0
  %5199 = vmatpush2.bf16.msra.mxu0 0
  %5200 = vmatprep.subr.bf16.mxu0 0
  %5201 = vmatpush2.bf16.msra.mxu0 0
  %5202 = vmatprep.subr.bf16.mxu0 0
  %5203 = vmatpush2.bf16.msra.mxu0 0
  %5204 = vmatprep.subr.bf16.mxu0 0
  %5205 = vmatpush2.bf16.msra.mxu0 0
  %5206 = vmatprep.mubr.bf16.mxu0 0
  %5207 = vmatmul.mubr.bf16.gmra.mxu0 %v5169
  %v5208 = vpop.f32.mrf.mxu0
  %v5209 = vadd.f32 0.0, %v5208
  %v5210 = vpop.f32.mrf.mxu0
  %v5211 = vpop.f32.mrf.mxu0
  %v5212 = vadd.f32 0.0, %v5211
  %v5213 = vpop.f32.mrf.mxu0
  %5214 = vdwg.mxu0
  %5219 = vrot.lane.b32.xlu0 %v5160, 16
  %v5220 = vpop.permute.xlu0 %5219
  %5221 = vrot.lane.b32.xlu0 %v5163, 16
  %v5222 = vpop.permute.xlu0 %5221
  %5223 = vrot.lane.b32.xlu0 %v5209, 16
  %v5224 = vpop.permute.xlu0 %5223
  %5225 = vrot.lane.b32.xlu0 %v5212, 16
  %v5226 = vpop.permute.xlu0 %5225
  %5231 = vst.msk [vmem:[#allocation2] sm:$0xff] %vm1036, %v5220
  %5232 = vst.msk [vmem:[#allocation2 + $0x8] sm:$0xff] %vm1036, %v5222
  %5233 = vst.msk [vmem:[#allocation2 + $0x10] sm:$0xff] %vm1036, %v5224
  %5234 = vst.msk [vmem:[#allocation2 + $0x18] sm:$0xff] %vm1036, %v5226
  %5235 = vrot.lane.b32.xlu0 %v4441, 104
  %v5236 = vpop.permute.xlu0 %5235
  %5237 = vrot.lane.b32.xlu0 %v4443, 104
  %v5238 = vpop.permute.xlu0 %5237
  %v5240 = vsel %vm352, %v5236, 0
  %v5243 = vsel %vm352, %v5238, 0
  %5245 = vmatprep.subr.bf16.mxu0 0
  %5246 = vmatpush1.bf16.xpose.msra.mxu0 0
  %5247 = vmatprep.subr.bf16.mxu0 0
  %5248 = vmatpush1.bf16.xpose.msra.mxu0 0
  %5249 = vmatprep.subr.bf16.mxu0 0
  %5250 = vmatpush1.bf16.xpose.msra.mxu0 0
  %5251 = vmatprep.subr.bf16.mxu0 0
  %5252 = vmatpush1.bf16.xpose.msra.mxu0 0
  %5253 = vmatprep.subr.bf16.mxu0 0
  %5254 = vmatpush1.bf16.xpose.msra.mxu0 0
  %5255 = vmatprep.subr.bf16.mxu0 0
  %5256 = vmatpush1.bf16.xpose.msra.mxu0 0
  %5257 = vmatprep.subr.bf16.mxu0 0
  %5258 = vmatpush1.bf16.xpose.msra.mxu0 0
  %5259 = vmatprep.subr.bf16.mxu0 0
  %5260 = vmatpush1.bf16.xpose.msra.mxu0 %v5243
  %5261 = vmatprep.subr.bf16.mxu0 0
  %5262 = vmatpush2.bf16.xpose.msra.mxu0 0
  %5263 = vmatprep.subr.bf16.mxu0 0
  %5264 = vmatpush2.bf16.xpose.msra.mxu0 0
  %5265 = vmatprep.subr.bf16.mxu0 0
  %5266 = vmatpush2.bf16.xpose.msra.mxu0 0
  %5267 = vmatprep.subr.bf16.mxu0 0
  %5268 = vmatpush2.bf16.xpose.msra.mxu0 0
  %5269 = vmatprep.subr.bf16.mxu0 0
  %5270 = vmatpush2.bf16.xpose.msra.mxu0 0
  %5271 = vmatprep.subr.bf16.mxu0 0
  %5272 = vmatpush2.bf16.xpose.msra.mxu0 0
  %5273 = vmatprep.subr.bf16.mxu0 0
  %5274 = vmatpush2.bf16.xpose.msra.mxu0 0
  %5275 = vmatprep.subr.bf16.mxu0 0
  %5276 = vmatpush2.bf16.xpose.msra.mxu0 0
  %5277 = vmatprep.mubr.bf16.mxu0 0
  %5278 = vmatmul.mubr.bf16.gmra.mxu0 %v5240
  %v5279 = vpop.f32.mrf.mxu0
  %v5280 = vadd.f32 0.0, %v5279
  %v5281 = vpop.f32.mrf.mxu0
  %v5282 = vpop.f32.mrf.mxu0
  %v5283 = vadd.f32 0.0, %v5282
  %v5284 = vpop.f32.mrf.mxu0
  %5285 = vdwg.mxu0
  %5286 = vrot.lane.b32.xlu0 %v4442, 104
  %v5287 = vpop.permute.xlu0 %5286
  %5288 = vrot.lane.b32.xlu0 %v4444, 104
  %v5289 = vpop.permute.xlu0 %5288
  %v5291 = vsel %vm352, %v5287, 0
  %v5294 = vsel %vm352, %v5289, 0
  %5296 = vmatprep.subr.bf16.mxu0 0
  %5297 = vmatpush1.bf16.xpose.msra.mxu0 0
  %5298 = vmatprep.subr.bf16.mxu0 0
  %5299 = vmatpush1.bf16.xpose.msra.mxu0 0
  %5300 = vmatprep.subr.bf16.mxu0 0
  %5301 = vmatpush1.bf16.xpose.msra.mxu0 0
  %5302 = vmatprep.subr.bf16.mxu0 0
  %5303 = vmatpush1.bf16.xpose.msra.mxu0 0
  %5304 = vmatprep.subr.bf16.mxu0 0
  %5305 = vmatpush1.bf16.xpose.msra.mxu0 0
  %5306 = vmatprep.subr.bf16.mxu0 0
  %5307 = vmatpush1.bf16.xpose.msra.mxu0 0
  %5308 = vmatprep.subr.bf16.mxu0 0
  %5309 = vmatpush1.bf16.xpose.msra.mxu0 0
  %5310 = vmatprep.subr.bf16.mxu0 0
  %5311 = vmatpush1.bf16.xpose.msra.mxu0 %v5294
  %5312 = vmatprep.subr.bf16.mxu0 0
  %5313 = vmatpush2.bf16.xpose.msra.mxu0 0
  %5314 = vmatprep.subr.bf16.mxu0 0
  %5315 = vmatpush2.bf16.xpose.msra.mxu0 0
  %5316 = vmatprep.subr.bf16.mxu0 0
  %5317 = vmatpush2.bf16.xpose.msra.mxu0 0
  %5318 = vmatprep.subr.bf16.mxu0 0
  %5319 = vmatpush2.bf16.xpose.msra.mxu0 0
  %5320 = vmatprep.subr.bf16.mxu0 0
  %5321 = vmatpush2.bf16.xpose.msra.mxu0 0
  %5322 = vmatprep.subr.bf16.mxu0 0
  %5323 = vmatpush2.bf16.xpose.msra.mxu0 0
  %5324 = vmatprep.subr.bf16.mxu0 0
  %5325 = vmatpush2.bf16.xpose.msra.mxu0 0
  %5326 = vmatprep.subr.bf16.mxu0 0
  %5327 = vmatpush2.bf16.xpose.msra.mxu0 0
  %5328 = vmatprep.mubr.bf16.mxu0 0
  %5329 = vmatmul.mubr.bf16.gmra.mxu0 %v5291
  %v5330 = vpop.f32.mrf.mxu0
  %v5331 = vadd.f32 0.0, %v5330
  %v5332 = vpop.f32.mrf.mxu0
  %v5333 = vpop.f32.mrf.mxu0
  %v5334 = vadd.f32 0.0, %v5333
  %v5335 = vpop.f32.mrf.mxu0
  %5336 = vdwg.mxu0
  %v5337 = vmul.f32 %v5280, 0.35355338
  %v5338 = vmul.f32 %v5283, 0.35355338
  %v5339 = vmul.f32 %v5331, 0.35355338
  %v5340 = vmul.f32 %v5334, 0.35355338
  %v5341 = vsel %vm352, %v5337, -inf
  %5342 = vmax.xlane.f32.xlu0 %v5341
  %v5343 = vpop.xlane.xlu0 %5342
  %v5344 = vsel %vm352, %v5338, -inf
  %5345 = vmax.xlane.f32.xlu0 %v5344
  %v5346 = vpop.xlane.xlu0 %5345
  %v5347 = vsel %vm352, %v5339, -inf
  %5348 = vmax.xlane.f32.xlu0 %v5347
  %v5349 = vpop.xlane.xlu0 %5348
  %v5350 = vsel %vm352, %v5340, -inf
  %5351 = vmax.xlane.f32.xlu0 %v5350
  %v5352 = vpop.xlane.xlu0 %5351
  %v5353 = vsub.f32 %v5337, %v5343
  %v5354 = vsub.f32 %v5338, %v5346
  %v5355 = vsub.f32 %v5339, %v5349
  %v5356 = vsub.f32 %v5340, %v5352
  %v5357 = vmul.f32 %v5353, 1.442695
  %v5358 = vpow.pop %v5357
  %v5359 = vmul.f32 %v5354, 1.442695
  %v5360 = vpow.pop %v5359
  %v5361 = vmul.f32 %v5355, 1.442695
  %v5362 = vpow.pop %v5361
  %v5363 = vmul.f32 %v5356, 1.442695
  %v5364 = vpow.pop %v5363
  %v5365 = vsel %vm352, %v5358, 0.0
  %5366 = vadd.xlane.f32.xlu0 %v5365
  %v5367 = vpop.xlane.xlu0 %5366
  %v5368 = vsel %vm352, %v5360, 0.0
  %5369 = vadd.xlane.f32.xlu0 %v5368
  %v5370 = vpop.xlane.xlu0 %5369
  %v5371 = vsel %vm352, %v5362, 0.0
  %5372 = vadd.xlane.f32.xlu0 %v5371
  %v5373 = vpop.xlane.xlu0 %5372
  %v5374 = vsel %vm352, %v5364, 0.0
  %5375 = vadd.xlane.f32.xlu0 %v5374
  %v5376 = vpop.xlane.xlu0 %5375
  %v5377 = vrcp.pop %v5367
  %v5378 = vrcp.pop %v5370
  %v5379 = vrcp.pop %v5373
  %v5380 = vrcp.pop %v5376
  %v5381 = vmul.f32 %v5358, %v5377
  %v5382 = vmul.f32 %v5360, %v5378
  %v5383 = vmul.f32 %v5362, %v5379
  %v5384 = vmul.f32 %v5364, %v5380
  %v5385 = vpack.c.bf16 %v5382, %v5381
  %v5386 = vpack.c.bf16 %v5384, %v5383
  %5387 = vrot.lane.b32.xlu0 %v4443, 72
  %v5388 = vpop.permute.xlu0 %5387
  %v5390 = vsel %vm352, %v5385, 0
  %v5393 = vsel %vm479, %v5388, 0
  %5395 = vmatprep.subr.bf16.mxu0 0
  %5396 = vmatpush1.bf16.msra.mxu0 0
  %5397 = vmatprep.subr.bf16.mxu0 0
  %5398 = vmatpush1.bf16.msra.mxu0 0
  %5399 = vmatprep.subr.bf16.mxu0 0
  %5400 = vmatpush1.bf16.msra.mxu0 0
  %5401 = vmatprep.subr.bf16.mxu0 0
  %5402 = vmatpush1.bf16.msra.mxu0 0
  %5403 = vmatprep.subr.bf16.mxu0 0
  %5404 = vmatpush1.bf16.msra.mxu0 0
  %5405 = vmatprep.subr.bf16.mxu0 0
  %5406 = vmatpush1.bf16.msra.mxu0 0
  %5407 = vmatprep.subr.bf16.mxu0 0
  %5408 = vmatpush1.bf16.msra.mxu0 0
  %5409 = vmatprep.subr.bf16.mxu0 0
  %5410 = vmatpush1.bf16.msra.mxu0 %v5393
  %5411 = vmatprep.subr.bf16.mxu0 0
  %5412 = vmatpush2.bf16.msra.mxu0 0
  %5413 = vmatprep.subr.bf16.mxu0 0
  %5414 = vmatpush2.bf16.msra.mxu0 0
  %5415 = vmatprep.subr.bf16.mxu0 0
  %5416 = vmatpush2.bf16.msra.mxu0 0
  %5417 = vmatprep.subr.bf16.mxu0 0
  %5418 = vmatpush2.bf16.msra.mxu0 0
  %5419 = vmatprep.subr.bf16.mxu0 0
  %5420 = vmatpush2.bf16.msra.mxu0 0
  %5421 = vmatprep.subr.bf16.mxu0 0
  %5422 = vmatpush2.bf16.msra.mxu0 0
  %5423 = vmatprep.subr.bf16.mxu0 0
  %5424 = vmatpush2.bf16.msra.mxu0 0
  %5425 = vmatprep.subr.bf16.mxu0 0
  %5426 = vmatpush2.bf16.msra.mxu0 0
  %5427 = vmatprep.mubr.bf16.mxu0 0
  %5428 = vmatmul.mubr.bf16.gmra.mxu0 %v5390
  %v5429 = vpop.f32.mrf.mxu0
  %v5430 = vadd.f32 0.0, %v5429
  %v5431 = vpop.f32.mrf.mxu0
  %v5432 = vpop.f32.mrf.mxu0
  %v5433 = vadd.f32 0.0, %v5432
  %v5434 = vpop.f32.mrf.mxu0
  %5435 = vdwg.mxu0
  %5436 = vrot.lane.b32.xlu0 %v4444, 72
  %v5437 = vpop.permute.xlu0 %5436
  %v5439 = vsel %vm352, %v5386, 0
  %v5442 = vsel %vm479, %v5437, 0
  %5444 = vmatprep.subr.bf16.mxu0 0
  %5445 = vmatpush1.bf16.msra.mxu0 0
  %5446 = vmatprep.subr.bf16.mxu0 0
  %5447 = vmatpush1.bf16.msra.mxu0 0
  %5448 = vmatprep.subr.bf16.mxu0 0
  %5449 = vmatpush1.bf16.msra.mxu0 0
  %5450 = vmatprep.subr.bf16.mxu0 0
  %5451 = vmatpush1.bf16.msra.mxu0 0
  %5452 = vmatprep.subr.bf16.mxu0 0
  %5453 = vmatpush1.bf16.msra.mxu0 0
  %5454 = vmatprep.subr.bf16.mxu0 0
  %5455 = vmatpush1.bf16.msra.mxu0 0
  %5456 = vmatprep.subr.bf16.mxu0 0
  %5457 = vmatpush1.bf16.msra.mxu0 0
  %5458 = vmatprep.subr.bf16.mxu0 0
  %5459 = vmatpush1.bf16.msra.mxu0 %v5442
  %5460 = vmatprep.subr.bf16.mxu0 0
  %5461 = vmatpush2.bf16.msra.mxu0 0
  %5462 = vmatprep.subr.bf16.mxu0 0
  %5463 = vmatpush2.bf16.msra.mxu0 0
  %5464 = vmatprep.subr.bf16.mxu0 0
  %5465 = vmatpush2.bf16.msra.mxu0 0
  %5466 = vmatprep.subr.bf16.mxu0 0
  %5467 = vmatpush2.bf16.msra.mxu0 0
  %5468 = vmatprep.subr.bf16.mxu0 0
  %5469 = vmatpush2.bf16.msra.mxu0 0
  %5470 = vmatprep.subr.bf16.mxu0 0
  %5471 = vmatpush2.bf16.msra.mxu0 0
  %5472 = vmatprep.subr.bf16.mxu0 0
  %5473 = vmatpush2.bf16.msra.mxu0 0
  %5474 = vmatprep.subr.bf16.mxu0 0
  %5475 = vmatpush2.bf16.msra.mxu0 0
  %5476 = vmatprep.mubr.bf16.mxu0 0
  %5477 = vmatmul.mubr.bf16.gmra.mxu0 %v5439
  %v5478 = vpop.f32.mrf.mxu0
  %v5479 = vadd.f32 0.0, %v5478
  %v5480 = vpop.f32.mrf.mxu0
  %v5481 = vpop.f32.mrf.mxu0
  %v5482 = vadd.f32 0.0, %v5481
  %v5483 = vpop.f32.mrf.mxu0
  %5484 = vdwg.mxu0
  %5489 = vrot.lane.b32.xlu0 %v5430, 24
  %v5490 = vpop.permute.xlu0 %5489
  %5491 = vrot.lane.b32.xlu0 %v5433, 24
  %v5492 = vpop.permute.xlu0 %5491
  %5493 = vrot.lane.b32.xlu0 %v5479, 24
  %v5494 = vpop.permute.xlu0 %5493
  %5495 = vrot.lane.b32.xlu0 %v5482, 24
  %v5496 = vpop.permute.xlu0 %5495
  %5501 = vst.msk [vmem:[#allocation2] sm:$0xff] %vm1269, %v5490
  %5502 = vst.msk [vmem:[#allocation2 + $0x8] sm:$0xff] %vm1269, %v5492
  %5503 = vst.msk [vmem:[#allocation2 + $0x10] sm:$0xff] %vm1269, %v5494
  %5504 = vst.msk [vmem:[#allocation2 + $0x18] sm:$0xff] %vm1269, %v5496
  %v5505 = vld [vmem:[#allocation2] sm:$0xff]
  %v5506 = vld [vmem:[#allocation2 + $0x8] sm:$0xff]
  %v5507 = vld [vmem:[#allocation2 + $0x10] sm:$0xff]
  %v5508 = vld [vmem:[#allocation2 + $0x18] sm:$0xff]
  %v5509 = vpack.c.bf16 %v5506, %v5505
  %v5510 = vpack.c.bf16 %v5508, %v5507
  %v5515 = vunpack.c.l.b16 %v4296
  %v5516 = vunpack.c.l.b16 %v4297
  %v5517 = vunpack.c.l.b16 %v4298
  %v5518 = vunpack.c.l.b16 %v4299
  %v5519 = vpack.c.b16 %v5516, %v5515
  %v5520 = vpack.c.b16 %v5518, %v5517
  %v5524 = vsel %vm296, %v5509, 0
  %v5527 = vsel %vm296, %v5510, 0
  %5529 = vmatprep.subr.bf16.mxu0 0
  %5530 = vmatpush1.bf16.msra.mxu0 0
  %5531 = vmatprep.subr.bf16.mxu0 0
  %5532 = vmatpush1.bf16.msra.mxu0 0
  %5533 = vmatprep.subr.bf16.mxu0 0
  %5534 = vmatpush1.bf16.msra.mxu0 0
  %5535 = vmatprep.subr.bf16.mxu0 0
  %5536 = vmatpush1.bf16.msra.mxu0 0
  %5537 = vmatprep.subr.bf16.mxu0 0
  %5538 = vmatpush1.bf16.msra.mxu0 0
  %5539 = vmatprep.subr.bf16.mxu0 0
  %5540 = vmatpush1.bf16.msra.mxu0 0
  %5541 = vmatprep.subr.bf16.mxu0 0
  %5542 = vmatpush1.bf16.msra.mxu0 %v5520
  %5543 = vmatprep.subr.bf16.mxu0 0
  %5544 = vmatpush1.bf16.msra.mxu0 %v5519
  %5545 = vmatprep.subr.bf16.mxu0 0
  %5546 = vmatpush2.bf16.msra.mxu0 0
  %5547 = vmatprep.subr.bf16.mxu0 0
  %5548 = vmatpush2.bf16.msra.mxu0 0
  %5549 = vmatprep.subr.bf16.mxu0 0
  %5550 = vmatpush2.bf16.msra.mxu0 0
  %5551 = vmatprep.subr.bf16.mxu0 0
  %5552 = vmatpush2.bf16.msra.mxu0 0
  %5553 = vmatprep.subr.bf16.mxu0 0
  %5554 = vmatpush2.bf16.msra.mxu0 0
  %5555 = vmatprep.subr.bf16.mxu0 0
  %5556 = vmatpush2.bf16.msra.mxu0 0
  %5557 = vmatprep.subr.bf16.mxu0 0
  %5558 = vmatpush2.bf16.msra.mxu0 0
  %5559 = vmatprep.subr.bf16.mxu0 0
  %5560 = vmatpush2.bf16.msra.mxu0 0
  %5561 = vmatprep.mubr.bf16.mxu0 0
  %5562 = vmatmul.mubr.bf16.gmra.mxu0 %v5524
  %v5563 = vpop.f32.mrf.mxu0
  %v5564 = vadd.f32 0.0, %v5563
  %v5565 = vpop.f32.mrf.mxu0
  %v5566 = vpop.f32.mrf.mxu0
  %v5567 = vadd.f32 0.0, %v5566
  %v5568 = vpop.f32.mrf.mxu0
  %5569 = vmatprep.mubr.bf16.mxu0 0
  %5570 = vmatmul.mubr.bf16.gmra.mxu0 %v5527
  %v5571 = vpop.f32.mrf.mxu0
  %v5572 = vadd.f32 0.0, %v5571
  %v5573 = vpop.f32.mrf.mxu0
  %v5574 = vpop.f32.mrf.mxu0
  %v5575 = vadd.f32 0.0, %v5574
  %v5576 = vpop.f32.mrf.mxu0
  %5577 = vdwg.mxu0
  %v5578 = vlaneseq
  %v5579 = vshrl.u32 %v5578, 7
  %v5580 = vsub.s32 0, %v5579
  %v5581 = vrot.slane %v4300, %v5580
  %v5582 = vadd.f32 %v5564, %v5581
  %v5583 = vadd.f32 %v5567, %v5581
  %v5584 = vadd.f32 %v5572, %v5581
  %v5585 = vadd.f32 %v5575, %v5581
  %v5586 = vadd.f32 %v4280, %v5582
  %v5587 = vadd.f32 %v4281, %v5583
  %v5588 = vadd.f32 %v4282, %v5584
  %v5589 = vadd.f32 %v4283, %v5585
  %v5590 = vld [vmem:[%s9 + $0x1e] sm:$0x1]
  %v5591 = vld [vmem:[%s9 + $0x1f] sm:$0x1]
  %v5592 = vsel %vm296, %v5586, 0.0
  %5593 = vadd.xlane.f32.xlu0 %v5592
  %v5594 = vpop.xlane.xlu0 %5593
  %v5595 = vsel %vm296, %v5587, 0.0
  %5596 = vadd.xlane.f32.xlu0 %v5595
  %v5597 = vpop.xlane.xlu0 %5596
  %v5598 = vsel %vm296, %v5588, 0.0
  %5599 = vadd.xlane.f32.xlu0 %v5598
  %v5600 = vpop.xlane.xlu0 %5599
  %v5601 = vsel %vm296, %v5589, 0.0
  %5602 = vadd.xlane.f32.xlu0 %v5601
  %v5603 = vpop.xlane.xlu0 %5602
  %v5604 = vmul.f32 %v5594, %v1347
  %v5605 = vmul.f32 %v5597, %v1347
  %v5606 = vmul.f32 %v5600, %v1347
  %v5607 = vmul.f32 %v5603, %v1347
  %v5608 = vsub.f32 %v5586, %v5604
  %v5609 = vsub.f32 %v5587, %v5605
  %v5610 = vsub.f32 %v5588, %v5606
  %v5611 = vsub.f32 %v5589, %v5607
  %v5612 = vmul.f32 %v5608, %v5608
  %v5613 = vmul.f32 %v5609, %v5609
  %v5614 = vmul.f32 %v5610, %v5610
  %v5615 = vmul.f32 %v5611, %v5611
  %v5616 = vsel %vm296, %v5612, 0.0
  %5617 = vadd.xlane.f32.xlu0 %v5616
  %v5618 = vpop.xlane.xlu0 %5617
  %v5619 = vsel %vm296, %v5613, 0.0
  %5620 = vadd.xlane.f32.xlu0 %v5619
  %v5621 = vpop.xlane.xlu0 %5620
  %v5622 = vsel %vm296, %v5614, 0.0
  %5623 = vadd.xlane.f32.xlu0 %v5622
  %v5624 = vpop.xlane.xlu0 %5623
  %v5625 = vsel %vm296, %v5615, 0.0
  %5626 = vadd.xlane.f32.xlu0 %v5625
  %v5627 = vpop.xlane.xlu0 %5626
  %v5628 = vmul.f32 %v5618, %v1347
  %v5629 = vmul.f32 %v5621, %v1347
  %v5630 = vmul.f32 %v5624, %v1347
  %v5631 = vmul.f32 %v5627, %v1347
  %v5632 = vadd.f32 %v5628, 1e-05
  %v5633 = vadd.f32 %v5629, 1e-05
  %v5634 = vadd.f32 %v5630, 1e-05
  %v5635 = vadd.f32 %v5631, 1e-05
  %v5636 = vrsqrt.pop %v5632
  %v5637 = vrsqrt.pop %v5633
  %v5638 = vrsqrt.pop %v5634
  %v5639 = vrsqrt.pop %v5635
  %v5640 = vmul.f32 %v5608, %v5636
  %v5641 = vmul.f32 %v5609, %v5637
  %v5642 = vmul.f32 %v5610, %v5638
  %v5643 = vmul.f32 %v5611, %v5639
  %v5644 = vlaneseq
  %v5645 = vshrl.u32 %v5644, 7
  %v5646 = vsub.s32 0, %v5645
  %v5647 = vrot.slane %v5590, %v5646
  %v5648 = vmul.f32 %v5640, %v5647
  %v5649 = vmul.f32 %v5641, %v5647
  %v5650 = vmul.f32 %v5642, %v5647
  %v5651 = vmul.f32 %v5643, %v5647
  %v5652 = vlaneseq
  %v5653 = vshrl.u32 %v5652, 7
  %v5654 = vsub.s32 0, %v5653
  %v5655 = vrot.slane %v5591, %v5654
  %v5656 = vadd.f32 %v5648, %v5655
  %v5657 = vadd.f32 %v5649, %v5655
  %v5658 = vadd.f32 %v5650, %v5655
  %v5659 = vadd.f32 %v5651, %v5655
  %s5660 = scalar_lea.vmem %s4, 32
  %v5661 = vld [vmem:[%s5660] sm:$0xf]
  %v5662 = vld [vmem:[%s5660 + $0x4] sm:$0xf]
  %v5663 = vld [vmem:[%s5660 + $0x8] sm:$0xf]
  %v5664 = vld [vmem:[%s5660 + $0xc] sm:$0xf]
  %v5665 = vld [vmem:[%s9 + $0x1a] sm:$0x1]
  %v5666 = vpack.c.bf16 %v5657, %v5656
  %v5667 = vpack.c.bf16 %v5659, %v5658
  %v5672 = vunpack.c.l.b16 %v5661
  %v5673 = vunpack.c.l.b16 %v5662
  %v5674 = vunpack.c.l.b16 %v5663
  %v5675 = vunpack.c.l.b16 %v5664
  %v5676 = vpack.c.b16 %v5673, %v5672
  %v5677 = vpack.c.b16 %v5675, %v5674
  %v5681 = vsel %vm296, %v5666, 0
  %v5684 = vsel %vm296, %v5667, 0
  %5686 = vmatprep.subr.bf16.mxu0 0
  %5687 = vmatpush1.bf16.msra.mxu0 0
  %5688 = vmatprep.subr.bf16.mxu0 0
  %5689 = vmatpush1.bf16.msra.mxu0 0
  %5690 = vmatprep.subr.bf16.mxu0 0
  %5691 = vmatpush1.bf16.msra.mxu0 0
  %5692 = vmatprep.subr.bf16.mxu0 0
  %5693 = vmatpush1.bf16.msra.mxu0 0
  %5694 = vmatprep.subr.bf16.mxu0 0
  %5695 = vmatpush1.bf16.msra.mxu0 0
  %5696 = vmatprep.subr.bf16.mxu0 0
  %5697 = vmatpush1.bf16.msra.mxu0 0
  %5698 = vmatprep.subr.bf16.mxu0 0
  %5699 = vmatpush1.bf16.msra.mxu0 %v5677
  %5700 = vmatprep.subr.bf16.mxu0 0
  %5701 = vmatpush1.bf16.msra.mxu0 %v5676
  %5702 = vmatprep.subr.bf16.mxu0 0
  %5703 = vmatpush2.bf16.msra.mxu0 0
  %5704 = vmatprep.subr.bf16.mxu0 0
  %5705 = vmatpush2.bf16.msra.mxu0 0
  %5706 = vmatprep.subr.bf16.mxu0 0
  %5707 = vmatpush2.bf16.msra.mxu0 0
  %5708 = vmatprep.subr.bf16.mxu0 0
  %5709 = vmatpush2.bf16.msra.mxu0 0
  %5710 = vmatprep.subr.bf16.mxu0 0
  %5711 = vmatpush2.bf16.msra.mxu0 0
  %5712 = vmatprep.subr.bf16.mxu0 0
  %5713 = vmatpush2.bf16.msra.mxu0 0
  %5714 = vmatprep.subr.bf16.mxu0 0
  %5715 = vmatpush2.bf16.msra.mxu0 0
  %5716 = vmatprep.subr.bf16.mxu0 0
  %5717 = vmatpush2.bf16.msra.mxu0 0
  %5718 = vmatprep.mubr.bf16.mxu0 0
  %5719 = vmatmul.mubr.bf16.gmra.mxu0 %v5681
  %v5720 = vpop.f32.mrf.mxu0
  %v5721 = vadd.f32 0.0, %v5720
  %v5722 = vpop.f32.mrf.mxu0
  %v5723 = vpop.f32.mrf.mxu0
  %v5724 = vadd.f32 0.0, %v5723
  %v5725 = vpop.f32.mrf.mxu0
  %5726 = vmatprep.mubr.bf16.mxu0 0
  %5727 = vmatmul.mubr.bf16.gmra.mxu0 %v5684
  %v5728 = vpop.f32.mrf.mxu0
  %v5729 = vadd.f32 0.0, %v5728
  %v5730 = vpop.f32.mrf.mxu0
  %v5731 = vpop.f32.mrf.mxu0
  %v5732 = vadd.f32 0.0, %v5731
  %v5733 = vpop.f32.mrf.mxu0
  %5734 = vdwg.mxu0
  %v5735 = vlaneseq
  %v5736 = vshrl.u32 %v5735, 7
  %v5737 = vsub.s32 0, %v5736
  %v5738 = vrot.slane %v5665, %v5737
  %v5739 = vadd.f32 %v5721, %v5738
  %v5740 = vadd.f32 %v5724, %v5738
  %v5741 = vadd.f32 %v5729, %v5738
  %v5742 = vadd.f32 %v5732, %v5738
  %v5743 = vmax.f32 %v5739, 0.0
  %v5744 = vmax.f32 %v5740, 0.0
  %v5745 = vmax.f32 %v5741, 0.0
  %v5746 = vmax.f32 %v5742, 0.0
  %v5747 = vld [vmem:[%s7] sm:$0xf]
  %v5748 = vld [vmem:[%s7 + $0x4] sm:$0xf]
  %v5749 = vld [vmem:[%s7 + $0x8] sm:$0xf]
  %v5750 = vld [vmem:[%s7 + $0xc] sm:$0xf]
  %v5751 = vld [vmem:[%s7 + $0x10] sm:$0xf]
  %v5752 = vld [vmem:[%s7 + $0x14] sm:$0xf]
  %v5753 = vld [vmem:[%s7 + $0x18] sm:$0xf]
  %v5754 = vld [vmem:[%s7 + $0x1c] sm:$0xf]
  %v5755 = vld [vmem:[%s9 + $0x1b] sm:$0x1]
  %v5756 = vpack.c.bf16 %v5744, %v5743
  %v5757 = vpack.c.bf16 %v5746, %v5745
  %v5766 = vunpack.c.l.b16 %v5747
  %v5767 = vunpack.c.l.b16 %v5748
  %v5768 = vunpack.c.l.b16 %v5749
  %v5769 = vunpack.c.l.b16 %v5750
  %v5770 = vunpack.c.l.b16 %v5751
  %v5771 = vunpack.c.l.b16 %v5752
  %v5772 = vunpack.c.l.b16 %v5753
  %v5773 = vunpack.c.l.b16 %v5754
  %v5774 = vpack.c.b16 %v5767, %v5766
  %v5775 = vpack.c.b16 %v5769, %v5768
  %v5776 = vpack.c.b16 %v5771, %v5770
  %v5777 = vpack.c.b16 %v5773, %v5772
  %v5783 = vsel %vm1484, %v5756, 0
  %v5786 = vsel %vm1484, %v5757, 0
  %5788 = vmatprep.subr.bf16.mxu0 0
  %5789 = vmatpush1.bf16.msra.mxu0 0
  %5790 = vmatprep.subr.bf16.mxu0 0
  %5791 = vmatpush1.bf16.msra.mxu0 0
  %5792 = vmatprep.subr.bf16.mxu0 0
  %5793 = vmatpush1.bf16.msra.mxu0 0
  %5794 = vmatprep.subr.bf16.mxu0 0
  %5795 = vmatpush1.bf16.msra.mxu0 0
  %5796 = vmatprep.subr.bf16.mxu0 0
  %5797 = vmatpush1.bf16.msra.mxu0 %v5777
  %5798 = vmatprep.subr.bf16.mxu0 0
  %5799 = vmatpush1.bf16.msra.mxu0 %v5776
  %5800 = vmatprep.subr.bf16.mxu0 0
  %5801 = vmatpush1.bf16.msra.mxu0 %v5775
  %5802 = vmatprep.subr.bf16.mxu0 0
  %5803 = vmatpush1.bf16.msra.mxu0 %v5774
  %5804 = vmatprep.subr.bf16.mxu0 0
  %5805 = vmatpush2.bf16.msra.mxu0 0
  %5806 = vmatprep.subr.bf16.mxu0 0
  %5807 = vmatpush2.bf16.msra.mxu0 0
  %5808 = vmatprep.subr.bf16.mxu0 0
  %5809 = vmatpush2.bf16.msra.mxu0 0
  %5810 = vmatprep.subr.bf16.mxu0 0
  %5811 = vmatpush2.bf16.msra.mxu0 0
  %5812 = vmatprep.subr.bf16.mxu0 0
  %5813 = vmatpush2.bf16.msra.mxu0 0
  %5814 = vmatprep.subr.bf16.mxu0 0
  %5815 = vmatpush2.bf16.msra.mxu0 0
  %5816 = vmatprep.subr.bf16.mxu0 0
  %5817 = vmatpush2.bf16.msra.mxu0 0
  %5818 = vmatprep.subr.bf16.mxu0 0
  %5819 = vmatpush2.bf16.msra.mxu0 0
  %5820 = vmatprep.mubr.bf16.mxu0 0
  %5821 = vmatmul.mubr.bf16.gmra.mxu0 %v5783
  %v5822 = vpop.f32.mrf.mxu0
  %v5823 = vadd.f32 0.0, %v5822
  %v5824 = vpop.f32.mrf.mxu0
  %v5825 = vpop.f32.mrf.mxu0
  %v5826 = vadd.f32 0.0, %v5825
  %v5827 = vpop.f32.mrf.mxu0
  %5828 = vmatprep.mubr.bf16.mxu0 0
  %5829 = vmatmul.mubr.bf16.gmra.mxu0 %v5786
  %v5830 = vpop.f32.mrf.mxu0
  %v5831 = vadd.f32 0.0, %v5830
  %v5832 = vpop.f32.mrf.mxu0
  %v5833 = vpop.f32.mrf.mxu0
  %v5834 = vadd.f32 0.0, %v5833
  %v5835 = vpop.f32.mrf.mxu0
  %5836 = vdwg.mxu0
  %v5837 = vlaneseq
  %v5838 = vshrl.u32 %v5837, 7
  %v5839 = vsub.s32 0, %v5838
  %v5840 = vrot.slane %v5755, %v5839
  %v5841 = vadd.f32 %v5823, %v5840
  %v5842 = vadd.f32 %v5826, %v5840
  %v5843 = vadd.f32 %v5831, %v5840
  %v5844 = vadd.f32 %v5834, %v5840
  %v5845 = vadd.f32 %v5656, %v5841
  %v5846 = vadd.f32 %v5657, %v5842
  %v5847 = vadd.f32 %v5658, %v5843
  %v5848 = vadd.f32 %v5659, %v5844
  %v5849 = vld [vmem:[%s9 + $0x20] sm:$0x1]
  %v5850 = vld [vmem:[%s9 + $0x21] sm:$0x1]
  %v5851 = vsel %vm296, %v5845, 0.0
  %5852 = vadd.xlane.f32.xlu0 %v5851
  %v5853 = vpop.xlane.xlu0 %5852
  %v5854 = vsel %vm296, %v5846, 0.0
  %5855 = vadd.xlane.f32.xlu0 %v5854
  %v5856 = vpop.xlane.xlu0 %5855
  %v5857 = vsel %vm296, %v5847, 0.0
  %5858 = vadd.xlane.f32.xlu0 %v5857
  %v5859 = vpop.xlane.xlu0 %5858
  %v5860 = vsel %vm296, %v5848, 0.0
  %5861 = vadd.xlane.f32.xlu0 %v5860
  %v5862 = vpop.xlane.xlu0 %5861
  %v5863 = vmul.f32 %v5853, %v1347
  %v5864 = vmul.f32 %v5856, %v1347
  %v5865 = vmul.f32 %v5859, %v1347
  %v5866 = vmul.f32 %v5862, %v1347
  %v5867 = vsub.f32 %v5845, %v5863
  %v5868 = vsub.f32 %v5846, %v5864
  %v5869 = vsub.f32 %v5847, %v5865
  %v5870 = vsub.f32 %v5848, %v5866
  %v5871 = vmul.f32 %v5867, %v5867
  %v5872 = vmul.f32 %v5868, %v5868
  %v5873 = vmul.f32 %v5869, %v5869
  %v5874 = vmul.f32 %v5870, %v5870
  %v5875 = vsel %vm296, %v5871, 0.0
  %5876 = vadd.xlane.f32.xlu0 %v5875
  %v5877 = vpop.xlane.xlu0 %5876
  %v5878 = vsel %vm296, %v5872, 0.0
  %5879 = vadd.xlane.f32.xlu0 %v5878
  %v5880 = vpop.xlane.xlu0 %5879
  %v5881 = vsel %vm296, %v5873, 0.0
  %5882 = vadd.xlane.f32.xlu0 %v5881
  %v5883 = vpop.xlane.xlu0 %5882
  %v5884 = vsel %vm296, %v5874, 0.0
  %5885 = vadd.xlane.f32.xlu0 %v5884
  %v5886 = vpop.xlane.xlu0 %5885
  %v5887 = vmul.f32 %v5877, %v1347
  %v5888 = vmul.f32 %v5880, %v1347
  %v5889 = vmul.f32 %v5883, %v1347
  %v5890 = vmul.f32 %v5886, %v1347
  %v5891 = vadd.f32 %v5887, 1e-05
  %v5892 = vadd.f32 %v5888, 1e-05
  %v5893 = vadd.f32 %v5889, 1e-05
  %v5894 = vadd.f32 %v5890, 1e-05
  %v5895 = vrsqrt.pop %v5891
  %v5896 = vrsqrt.pop %v5892
  %v5897 = vrsqrt.pop %v5893
  %v5898 = vrsqrt.pop %v5894
  %v5899 = vmul.f32 %v5867, %v5895
  %v5900 = vmul.f32 %v5868, %v5896
  %v5901 = vmul.f32 %v5869, %v5897
  %v5902 = vmul.f32 %v5870, %v5898
  %v5903 = vlaneseq
  %v5904 = vshrl.u32 %v5903, 7
  %v5905 = vsub.s32 0, %v5904
  %v5906 = vrot.slane %v5849, %v5905
  %v5907 = vmul.f32 %v5899, %v5906
  %v5908 = vmul.f32 %v5900, %v5906
  %v5909 = vmul.f32 %v5901, %v5906
  %v5910 = vmul.f32 %v5902, %v5906
  %v5911 = vlaneseq
  %v5912 = vshrl.u32 %v5911, 7
  %v5913 = vsub.s32 0, %v5912
  %v5914 = vrot.slane %v5850, %v5913
  %v5915 = vadd.f32 %v5907, %v5914
  %v5916 = vadd.f32 %v5908, %v5914
  %v5917 = vadd.f32 %v5909, %v5914
  %v5918 = vadd.f32 %v5910, %v5914
  %s5919 = scalar_lea.vmem %s2, 48
  %v5920 = vld [vmem:[%s5919] sm:$0xf]
  %v5921 = vld [vmem:[%s5919 + $0x4] sm:$0xf]
  %v5922 = vld [vmem:[%s5919 + $0x8] sm:$0xf]
  %v5923 = vld [vmem:[%s5919 + $0xc] sm:$0xf]
  %v5924 = vld [vmem:[%s9 + $0x22] sm:$0x1]
  %s5925 = scalar_lea.vmem %s3, 48
  %v5926 = vld [vmem:[%s5925] sm:$0xf]
  %v5927 = vld [vmem:[%s5925 + $0x4] sm:$0xf]
  %v5928 = vld [vmem:[%s5925 + $0x8] sm:$0xf]
  %v5929 = vld [vmem:[%s5925 + $0xc] sm:$0xf]
  %v5930 = vld [vmem:[%s9 + $0x23] sm:$0x1]
  %v5931 = vpack.c.bf16 %v5916, %v5915
  %v5932 = vpack.c.bf16 %v5918, %v5917
  %v5937 = vunpack.c.l.b16 %v5920
  %v5938 = vunpack.c.l.b16 %v5921
  %v5939 = vunpack.c.l.b16 %v5922
  %v5940 = vunpack.c.l.b16 %v5923
  %v5941 = vpack.c.b16 %v5938, %v5937
  %v5942 = vpack.c.b16 %v5940, %v5939
  %v5946 = vsel %vm296, %v5931, 0
  %v5949 = vsel %vm296, %v5932, 0
  %5951 = vmatprep.subr.bf16.mxu0 0
  %5952 = vmatpush1.bf16.msra.mxu0 0
  %5953 = vmatprep.subr.bf16.mxu0 0
  %5954 = vmatpush1.bf16.msra.mxu0 0
  %5955 = vmatprep.subr.bf16.mxu0 0
  %5956 = vmatpush1.bf16.msra.mxu0 0
  %5957 = vmatprep.subr.bf16.mxu0 0
  %5958 = vmatpush1.bf16.msra.mxu0 0
  %5959 = vmatprep.subr.bf16.mxu0 0
  %5960 = vmatpush1.bf16.msra.mxu0 0
  %5961 = vmatprep.subr.bf16.mxu0 0
  %5962 = vmatpush1.bf16.msra.mxu0 0
  %5963 = vmatprep.subr.bf16.mxu0 0
  %5964 = vmatpush1.bf16.msra.mxu0 %v5942
  %5965 = vmatprep.subr.bf16.mxu0 0
  %5966 = vmatpush1.bf16.msra.mxu0 %v5941
  %5967 = vmatprep.subr.bf16.mxu0 0
  %5968 = vmatpush2.bf16.msra.mxu0 0
  %5969 = vmatprep.subr.bf16.mxu0 0
  %5970 = vmatpush2.bf16.msra.mxu0 0
  %5971 = vmatprep.subr.bf16.mxu0 0
  %5972 = vmatpush2.bf16.msra.mxu0 0
  %5973 = vmatprep.subr.bf16.mxu0 0
  %5974 = vmatpush2.bf16.msra.mxu0 0
  %5975 = vmatprep.subr.bf16.mxu0 0
  %5976 = vmatpush2.bf16.msra.mxu0 0
  %5977 = vmatprep.subr.bf16.mxu0 0
  %5978 = vmatpush2.bf16.msra.mxu0 0
  %5979 = vmatprep.subr.bf16.mxu0 0
  %5980 = vmatpush2.bf16.msra.mxu0 0
  %5981 = vmatprep.subr.bf16.mxu0 0
  %5982 = vmatpush2.bf16.msra.mxu0 0
  %5983 = vmatprep.mubr.bf16.mxu0 0
  %5984 = vmatmul.mubr.bf16.gmra.mxu0 %v5946
  %v5985 = vpop.f32.mrf.mxu0
  %v5986 = vadd.f32 0.0, %v5985
  %v5987 = vpop.f32.mrf.mxu0
  %v5988 = vpop.f32.mrf.mxu0
  %v5989 = vadd.f32 0.0, %v5988
  %v5990 = vpop.f32.mrf.mxu0
  %5991 = vmatprep.mubr.bf16.mxu0 0
  %5992 = vmatmul.mubr.bf16.gmra.mxu0 %v5949
  %v5993 = vpop.f32.mrf.mxu0
  %v5994 = vadd.f32 0.0, %v5993
  %v5995 = vpop.f32.mrf.mxu0
  %v5996 = vpop.f32.mrf.mxu0
  %v5997 = vadd.f32 0.0, %v5996
  %v5998 = vpop.f32.mrf.mxu0
  %5999 = vdwg.mxu0
  %v6000 = vlaneseq
  %v6001 = vshrl.u32 %v6000, 7
  %v6002 = vsub.s32 0, %v6001
  %v6003 = vrot.slane %v5924, %v6002
  %v6004 = vadd.f32 %v5986, %v6003
  %v6005 = vadd.f32 %v5989, %v6003
  %v6006 = vadd.f32 %v5994, %v6003
  %v6007 = vadd.f32 %v5997, %v6003
  %v6008 = vpack.c.bf16 %v6005, %v6004
  %v6009 = vpack.c.bf16 %v6007, %v6006
  %6011 = vrot.lane.b32.xlu0 %v6008, 96
  %v6012 = vpop.permute.xlu0 %6011
  %v6014 = vsel %vm352, %v6008, 0
  %v6017 = vsel %vm352, %v6012, 0
  %6019 = vmatprep.subr.bf16.mxu0 0
  %6020 = vmatpush1.bf16.xpose.msra.mxu0 0
  %6021 = vmatprep.subr.bf16.mxu0 0
  %6022 = vmatpush1.bf16.xpose.msra.mxu0 0
  %6023 = vmatprep.subr.bf16.mxu0 0
  %6024 = vmatpush1.bf16.xpose.msra.mxu0 0
  %6025 = vmatprep.subr.bf16.mxu0 0
  %6026 = vmatpush1.bf16.xpose.msra.mxu0 0
  %6027 = vmatprep.subr.bf16.mxu0 0
  %6028 = vmatpush1.bf16.xpose.msra.mxu0 0
  %6029 = vmatprep.subr.bf16.mxu0 0
  %6030 = vmatpush1.bf16.xpose.msra.mxu0 0
  %6031 = vmatprep.subr.bf16.mxu0 0
  %6032 = vmatpush1.bf16.xpose.msra.mxu0 0
  %6033 = vmatprep.subr.bf16.mxu0 0
  %6034 = vmatpush1.bf16.xpose.msra.mxu0 %v6017
  %6035 = vmatprep.subr.bf16.mxu0 0
  %6036 = vmatpush2.bf16.xpose.msra.mxu0 0
  %6037 = vmatprep.subr.bf16.mxu0 0
  %6038 = vmatpush2.bf16.xpose.msra.mxu0 0
  %6039 = vmatprep.subr.bf16.mxu0 0
  %6040 = vmatpush2.bf16.xpose.msra.mxu0 0
  %6041 = vmatprep.subr.bf16.mxu0 0
  %6042 = vmatpush2.bf16.xpose.msra.mxu0 0
  %6043 = vmatprep.subr.bf16.mxu0 0
  %6044 = vmatpush2.bf16.xpose.msra.mxu0 0
  %6045 = vmatprep.subr.bf16.mxu0 0
  %6046 = vmatpush2.bf16.xpose.msra.mxu0 0
  %6047 = vmatprep.subr.bf16.mxu0 0
  %6048 = vmatpush2.bf16.xpose.msra.mxu0 0
  %6049 = vmatprep.subr.bf16.mxu0 0
  %6050 = vmatpush2.bf16.xpose.msra.mxu0 0
  %6051 = vmatprep.mubr.bf16.mxu0 0
  %6052 = vmatmul.mubr.bf16.gmra.mxu0 %v6014
  %v6053 = vpop.f32.mrf.mxu0
  %v6054 = vadd.f32 0.0, %v6053
  %v6055 = vpop.f32.mrf.mxu0
  %v6056 = vpop.f32.mrf.mxu0
  %v6057 = vadd.f32 0.0, %v6056
  %v6058 = vpop.f32.mrf.mxu0
  %6059 = vdwg.mxu0
  %6061 = vrot.lane.b32.xlu0 %v6009, 96
  %v6062 = vpop.permute.xlu0 %6061
  %v6064 = vsel %vm352, %v6009, 0
  %v6067 = vsel %vm352, %v6062, 0
  %6069 = vmatprep.subr.bf16.mxu0 0
  %6070 = vmatpush1.bf16.xpose.msra.mxu0 0
  %6071 = vmatprep.subr.bf16.mxu0 0
  %6072 = vmatpush1.bf16.xpose.msra.mxu0 0
  %6073 = vmatprep.subr.bf16.mxu0 0
  %6074 = vmatpush1.bf16.xpose.msra.mxu0 0
  %6075 = vmatprep.subr.bf16.mxu0 0
  %6076 = vmatpush1.bf16.xpose.msra.mxu0 0
  %6077 = vmatprep.subr.bf16.mxu0 0
  %6078 = vmatpush1.bf16.xpose.msra.mxu0 0
  %6079 = vmatprep.subr.bf16.mxu0 0
  %6080 = vmatpush1.bf16.xpose.msra.mxu0 0
  %6081 = vmatprep.subr.bf16.mxu0 0
  %6082 = vmatpush1.bf16.xpose.msra.mxu0 0
  %6083 = vmatprep.subr.bf16.mxu0 0
  %6084 = vmatpush1.bf16.xpose.msra.mxu0 %v6067
  %6085 = vmatprep.subr.bf16.mxu0 0
  %6086 = vmatpush2.bf16.xpose.msra.mxu0 0
  %6087 = vmatprep.subr.bf16.mxu0 0
  %6088 = vmatpush2.bf16.xpose.msra.mxu0 0
  %6089 = vmatprep.subr.bf16.mxu0 0
  %6090 = vmatpush2.bf16.xpose.msra.mxu0 0
  %6091 = vmatprep.subr.bf16.mxu0 0
  %6092 = vmatpush2.bf16.xpose.msra.mxu0 0
  %6093 = vmatprep.subr.bf16.mxu0 0
  %6094 = vmatpush2.bf16.xpose.msra.mxu0 0
  %6095 = vmatprep.subr.bf16.mxu0 0
  %6096 = vmatpush2.bf16.xpose.msra.mxu0 0
  %6097 = vmatprep.subr.bf16.mxu0 0
  %6098 = vmatpush2.bf16.xpose.msra.mxu0 0
  %6099 = vmatprep.subr.bf16.mxu0 0
  %6100 = vmatpush2.bf16.xpose.msra.mxu0 0
  %6101 = vmatprep.mubr.bf16.mxu0 0
  %6102 = vmatmul.mubr.bf16.gmra.mxu0 %v6064
  %v6103 = vpop.f32.mrf.mxu0
  %v6104 = vadd.f32 0.0, %v6103
  %v6105 = vpop.f32.mrf.mxu0
  %v6106 = vpop.f32.mrf.mxu0
  %v6107 = vadd.f32 0.0, %v6106
  %v6108 = vpop.f32.mrf.mxu0
  %6109 = vdwg.mxu0
  %v6110 = vmul.f32 %v6054, 0.35355338
  %v6111 = vmul.f32 %v6057, 0.35355338
  %v6112 = vmul.f32 %v6104, 0.35355338
  %v6113 = vmul.f32 %v6107, 0.35355338
  %v6114 = vsel %vm38, %v6110, -inf
  %6115 = vmax.xlane.f32.xlu0 %v6114
  %v6116 = vpop.xlane.xlu0 %6115
  %v6117 = vsel %vm38, %v6111, -inf
  %6118 = vmax.xlane.f32.xlu0 %v6117
  %v6119 = vpop.xlane.xlu0 %6118
  %v6120 = vsel %vm38, %v6112, -inf
  %6121 = vmax.xlane.f32.xlu0 %v6120
  %v6122 = vpop.xlane.xlu0 %6121
  %v6123 = vsel %vm38, %v6113, -inf
  %6124 = vmax.xlane.f32.xlu0 %v6123
  %v6125 = vpop.xlane.xlu0 %6124
  %v6126 = vsub.f32 %v6110, %v6116
  %v6127 = vsub.f32 %v6111, %v6119
  %v6128 = vsub.f32 %v6112, %v6122
  %v6129 = vsub.f32 %v6113, %v6125
  %v6130 = vmul.f32 %v6126, 1.442695
  %v6131 = vpow.pop %v6130
  %v6132 = vmul.f32 %v6127, 1.442695
  %v6133 = vpow.pop %v6132
  %v6134 = vmul.f32 %v6128, 1.442695
  %v6135 = vpow.pop %v6134
  %v6136 = vmul.f32 %v6129, 1.442695
  %v6137 = vpow.pop %v6136
  %v6138 = vsel %vm38, %v6131, 0.0
  %6139 = vadd.xlane.f32.xlu0 %v6138
  %v6140 = vpop.xlane.xlu0 %6139
  %v6141 = vsel %vm38, %v6133, 0.0
  %6142 = vadd.xlane.f32.xlu0 %v6141
  %v6143 = vpop.xlane.xlu0 %6142
  %v6144 = vsel %vm38, %v6135, 0.0
  %6145 = vadd.xlane.f32.xlu0 %v6144
  %v6146 = vpop.xlane.xlu0 %6145
  %v6147 = vsel %vm38, %v6137, 0.0
  %6148 = vadd.xlane.f32.xlu0 %v6147
  %v6149 = vpop.xlane.xlu0 %6148
  %v6150 = vrcp.pop %v6140
  %v6151 = vrcp.pop %v6143
  %v6152 = vrcp.pop %v6146
  %v6153 = vrcp.pop %v6149
  %v6154 = vmul.f32 %v6131, %v6150
  %v6155 = vmul.f32 %v6133, %v6151
  %v6156 = vmul.f32 %v6135, %v6152
  %v6157 = vmul.f32 %v6137, %v6153
  %v6158 = vpack.c.bf16 %v6155, %v6154
  %v6159 = vpack.c.bf16 %v6157, %v6156
  %6160 = vrot.lane.b32.xlu0 %v6008, 64
  %v6161 = vpop.permute.xlu0 %6160
  %v6164 = vsel %vm38, %v6158, 0
  %6166 = vmatprep.subr.bf16.mxu0 0
  %6167 = vmatpush1.bf16.msra.mxu0 0
  %6168 = vmatprep.subr.bf16.mxu0 0
  %6169 = vmatpush1.bf16.msra.mxu0 0
  %6170 = vmatprep.subr.bf16.mxu0 0
  %6171 = vmatpush1.bf16.msra.mxu0 0
  %6172 = vmatprep.subr.bf16.mxu0 0
  %6173 = vmatpush1.bf16.msra.mxu0 0
  %6174 = vmatprep.subr.bf16.mxu0 0
  %6175 = vmatpush1.bf16.msra.mxu0 0
  %6176 = vmatprep.subr.bf16.mxu0 0
  %6177 = vmatpush1.bf16.msra.mxu0 0
  %6178 = vmatprep.subr.bf16.mxu0 0
  %6179 = vmatpush1.bf16.msra.mxu0 0
  %6180 = vmatprep.subr.bf16.mxu0 0
  %6181 = vmatpush1.bf16.msra.mxu0 %v6161
  %6182 = vmatprep.subr.bf16.mxu0 0
  %6183 = vmatpush2.bf16.msra.mxu0 0
  %6184 = vmatprep.subr.bf16.mxu0 0
  %6185 = vmatpush2.bf16.msra.mxu0 0
  %6186 = vmatprep.subr.bf16.mxu0 0
  %6187 = vmatpush2.bf16.msra.mxu0 0
  %6188 = vmatprep.subr.bf16.mxu0 0
  %6189 = vmatpush2.bf16.msra.mxu0 0
  %6190 = vmatprep.subr.bf16.mxu0 0
  %6191 = vmatpush2.bf16.msra.mxu0 0
  %6192 = vmatprep.subr.bf16.mxu0 0
  %6193 = vmatpush2.bf16.msra.mxu0 0
  %6194 = vmatprep.subr.bf16.mxu0 0
  %6195 = vmatpush2.bf16.msra.mxu0 0
  %6196 = vmatprep.subr.bf16.mxu0 0
  %6197 = vmatpush2.bf16.msra.mxu0 0
  %6198 = vmatprep.mubr.bf16.mxu0 0
  %6199 = vmatmul.mubr.bf16.gmra.mxu0 %v6164
  %v6200 = vpop.f32.mrf.mxu0
  %v6201 = vadd.f32 0.0, %v6200
  %v6202 = vpop.f32.mrf.mxu0
  %v6203 = vpop.f32.mrf.mxu0
  %v6204 = vadd.f32 0.0, %v6203
  %v6205 = vpop.f32.mrf.mxu0
  %6206 = vdwg.mxu0
  %6207 = vrot.lane.b32.xlu0 %v6009, 64
  %v6208 = vpop.permute.xlu0 %6207
  %v6211 = vsel %vm38, %v6159, 0
  %6213 = vmatprep.subr.bf16.mxu0 0
  %6214 = vmatpush1.bf16.msra.mxu0 0
  %6215 = vmatprep.subr.bf16.mxu0 0
  %6216 = vmatpush1.bf16.msra.mxu0 0
  %6217 = vmatprep.subr.bf16.mxu0 0
  %6218 = vmatpush1.bf16.msra.mxu0 0
  %6219 = vmatprep.subr.bf16.mxu0 0
  %6220 = vmatpush1.bf16.msra.mxu0 0
  %6221 = vmatprep.subr.bf16.mxu0 0
  %6222 = vmatpush1.bf16.msra.mxu0 0
  %6223 = vmatprep.subr.bf16.mxu0 0
  %6224 = vmatpush1.bf16.msra.mxu0 0
  %6225 = vmatprep.subr.bf16.mxu0 0
  %6226 = vmatpush1.bf16.msra.mxu0 0
  %6227 = vmatprep.subr.bf16.mxu0 0
  %6228 = vmatpush1.bf16.msra.mxu0 %v6208
  %6229 = vmatprep.subr.bf16.mxu0 0
  %6230 = vmatpush2.bf16.msra.mxu0 0
  %6231 = vmatprep.subr.bf16.mxu0 0
  %6232 = vmatpush2.bf16.msra.mxu0 0
  %6233 = vmatprep.subr.bf16.mxu0 0
  %6234 = vmatpush2.bf16.msra.mxu0 0
  %6235 = vmatprep.subr.bf16.mxu0 0
  %6236 = vmatpush2.bf16.msra.mxu0 0
  %6237 = vmatprep.subr.bf16.mxu0 0
  %6238 = vmatpush2.bf16.msra.mxu0 0
  %6239 = vmatprep.subr.bf16.mxu0 0
  %6240 = vmatpush2.bf16.msra.mxu0 0
  %6241 = vmatprep.subr.bf16.mxu0 0
  %6242 = vmatpush2.bf16.msra.mxu0 0
  %6243 = vmatprep.subr.bf16.mxu0 0
  %6244 = vmatpush2.bf16.msra.mxu0 0
  %6245 = vmatprep.mubr.bf16.mxu0 0
  %6246 = vmatmul.mubr.bf16.gmra.mxu0 %v6211
  %v6247 = vpop.f32.mrf.mxu0
  %v6248 = vadd.f32 0.0, %v6247
  %v6249 = vpop.f32.mrf.mxu0
  %v6250 = vpop.f32.mrf.mxu0
  %v6251 = vadd.f32 0.0, %v6250
  %v6252 = vpop.f32.mrf.mxu0
  %6253 = vdwg.mxu0
  %6254 = vst.msk [vmem:[#allocation2] sm:$0xff] %vm352, %v6201
  %6255 = vst.msk [vmem:[#allocation2 + $0x8] sm:$0xff] %vm352, %v6204
  %6256 = vst.msk [vmem:[#allocation2 + $0x10] sm:$0xff] %vm352, %v6248
  %6257 = vst.msk [vmem:[#allocation2 + $0x18] sm:$0xff] %vm352, %v6251
  %6258 = vrot.lane.b32.xlu0 %v6008, 120
  %v6259 = vpop.permute.xlu0 %6258
  %6260 = vrot.lane.b32.xlu0 %v6008, 88
  %v6261 = vpop.permute.xlu0 %6260
  %v6263 = vsel %vm352, %v6259, 0
  %v6266 = vsel %vm352, %v6261, 0
  %6268 = vmatprep.subr.bf16.mxu0 0
  %6269 = vmatpush1.bf16.xpose.msra.mxu0 0
  %6270 = vmatprep.subr.bf16.mxu0 0
  %6271 = vmatpush1.bf16.xpose.msra.mxu0 0
  %6272 = vmatprep.subr.bf16.mxu0 0
  %6273 = vmatpush1.bf16.xpose.msra.mxu0 0
  %6274 = vmatprep.subr.bf16.mxu0 0
  %6275 = vmatpush1.bf16.xpose.msra.mxu0 0
  %6276 = vmatprep.subr.bf16.mxu0 0
  %6277 = vmatpush1.bf16.xpose.msra.mxu0 0
  %6278 = vmatprep.subr.bf16.mxu0 0
  %6279 = vmatpush1.bf16.xpose.msra.mxu0 0
  %6280 = vmatprep.subr.bf16.mxu0 0
  %6281 = vmatpush1.bf16.xpose.msra.mxu0 0
  %6282 = vmatprep.subr.bf16.mxu0 0
  %6283 = vmatpush1.bf16.xpose.msra.mxu0 %v6266
  %6284 = vmatprep.subr.bf16.mxu0 0
  %6285 = vmatpush2.bf16.xpose.msra.mxu0 0
  %6286 = vmatprep.subr.bf16.mxu0 0
  %6287 = vmatpush2.bf16.xpose.msra.mxu0 0
  %6288 = vmatprep.subr.bf16.mxu0 0
  %6289 = vmatpush2.bf16.xpose.msra.mxu0 0
  %6290 = vmatprep.subr.bf16.mxu0 0
  %6291 = vmatpush2.bf16.xpose.msra.mxu0 0
  %6292 = vmatprep.subr.bf16.mxu0 0
  %6293 = vmatpush2.bf16.xpose.msra.mxu0 0
  %6294 = vmatprep.subr.bf16.mxu0 0
  %6295 = vmatpush2.bf16.xpose.msra.mxu0 0
  %6296 = vmatprep.subr.bf16.mxu0 0
  %6297 = vmatpush2.bf16.xpose.msra.mxu0 0
  %6298 = vmatprep.subr.bf16.mxu0 0
  %6299 = vmatpush2.bf16.xpose.msra.mxu0 0
  %6300 = vmatprep.mubr.bf16.mxu0 0
  %6301 = vmatmul.mubr.bf16.gmra.mxu0 %v6263
  %v6302 = vpop.f32.mrf.mxu0
  %v6303 = vadd.f32 0.0, %v6302
  %v6304 = vpop.f32.mrf.mxu0
  %v6305 = vpop.f32.mrf.mxu0
  %v6306 = vadd.f32 0.0, %v6305
  %v6307 = vpop.f32.mrf.mxu0
  %6308 = vdwg.mxu0
  %6309 = vrot.lane.b32.xlu0 %v6009, 120
  %v6310 = vpop.permute.xlu0 %6309
  %6311 = vrot.lane.b32.xlu0 %v6009, 88
  %v6312 = vpop.permute.xlu0 %6311
  %v6314 = vsel %vm352, %v6310, 0
  %v6317 = vsel %vm352, %v6312, 0
  %6319 = vmatprep.subr.bf16.mxu0 0
  %6320 = vmatpush1.bf16.xpose.msra.mxu0 0
  %6321 = vmatprep.subr.bf16.mxu0 0
  %6322 = vmatpush1.bf16.xpose.msra.mxu0 0
  %6323 = vmatprep.subr.bf16.mxu0 0
  %6324 = vmatpush1.bf16.xpose.msra.mxu0 0
  %6325 = vmatprep.subr.bf16.mxu0 0
  %6326 = vmatpush1.bf16.xpose.msra.mxu0 0
  %6327 = vmatprep.subr.bf16.mxu0 0
  %6328 = vmatpush1.bf16.xpose.msra.mxu0 0
  %6329 = vmatprep.subr.bf16.mxu0 0
  %6330 = vmatpush1.bf16.xpose.msra.mxu0 0
  %6331 = vmatprep.subr.bf16.mxu0 0
  %6332 = vmatpush1.bf16.xpose.msra.mxu0 0
  %6333 = vmatprep.subr.bf16.mxu0 0
  %6334 = vmatpush1.bf16.xpose.msra.mxu0 %v6317
  %6335 = vmatprep.subr.bf16.mxu0 0
  %6336 = vmatpush2.bf16.xpose.msra.mxu0 0
  %6337 = vmatprep.subr.bf16.mxu0 0
  %6338 = vmatpush2.bf16.xpose.msra.mxu0 0
  %6339 = vmatprep.subr.bf16.mxu0 0
  %6340 = vmatpush2.bf16.xpose.msra.mxu0 0
  %6341 = vmatprep.subr.bf16.mxu0 0
  %6342 = vmatpush2.bf16.xpose.msra.mxu0 0
  %6343 = vmatprep.subr.bf16.mxu0 0
  %6344 = vmatpush2.bf16.xpose.msra.mxu0 0
  %6345 = vmatprep.subr.bf16.mxu0 0
  %6346 = vmatpush2.bf16.xpose.msra.mxu0 0
  %6347 = vmatprep.subr.bf16.mxu0 0
  %6348 = vmatpush2.bf16.xpose.msra.mxu0 0
  %6349 = vmatprep.subr.bf16.mxu0 0
  %6350 = vmatpush2.bf16.xpose.msra.mxu0 0
  %6351 = vmatprep.mubr.bf16.mxu0 0
  %6352 = vmatmul.mubr.bf16.gmra.mxu0 %v6314
  %v6353 = vpop.f32.mrf.mxu0
  %v6354 = vadd.f32 0.0, %v6353
  %v6355 = vpop.f32.mrf.mxu0
  %v6356 = vpop.f32.mrf.mxu0
  %v6357 = vadd.f32 0.0, %v6356
  %v6358 = vpop.f32.mrf.mxu0
  %6359 = vdwg.mxu0
  %v6360 = vmul.f32 %v6303, 0.35355338
  %v6361 = vmul.f32 %v6306, 0.35355338
  %v6362 = vmul.f32 %v6354, 0.35355338
  %v6363 = vmul.f32 %v6357, 0.35355338
  %v6364 = vsel %vm38, %v6360, -inf
  %6365 = vmax.xlane.f32.xlu0 %v6364
  %v6366 = vpop.xlane.xlu0 %6365
  %v6367 = vsel %vm38, %v6361, -inf
  %6368 = vmax.xlane.f32.xlu0 %v6367
  %v6369 = vpop.xlane.xlu0 %6368
  %v6370 = vsel %vm38, %v6362, -inf
  %6371 = vmax.xlane.f32.xlu0 %v6370
  %v6372 = vpop.xlane.xlu0 %6371
  %v6373 = vsel %vm38, %v6363, -inf
  %6374 = vmax.xlane.f32.xlu0 %v6373
  %v6375 = vpop.xlane.xlu0 %6374
  %v6376 = vsub.f32 %v6360, %v6366
  %v6377 = vsub.f32 %v6361, %v6369
  %v6378 = vsub.f32 %v6362, %v6372
  %v6379 = vsub.f32 %v6363, %v6375
  %v6380 = vmul.f32 %v6376, 1.442695
  %v6381 = vpow.pop %v6380
  %v6382 = vmul.f32 %v6377, 1.442695
  %v6383 = vpow.pop %v6382
  %v6384 = vmul.f32 %v6378, 1.442695
  %v6385 = vpow.pop %v6384
  %v6386 = vmul.f32 %v6379, 1.442695
  %v6387 = vpow.pop %v6386
  %v6388 = vsel %vm38, %v6381, 0.0
  %6389 = vadd.xlane.f32.xlu0 %v6388
  %v6390 = vpop.xlane.xlu0 %6389
  %v6391 = vsel %vm38, %v6383, 0.0
  %6392 = vadd.xlane.f32.xlu0 %v6391
  %v6393 = vpop.xlane.xlu0 %6392
  %v6394 = vsel %vm38, %v6385, 0.0
  %6395 = vadd.xlane.f32.xlu0 %v6394
  %v6396 = vpop.xlane.xlu0 %6395
  %v6397 = vsel %vm38, %v6387, 0.0
  %6398 = vadd.xlane.f32.xlu0 %v6397
  %v6399 = vpop.xlane.xlu0 %6398
  %v6400 = vrcp.pop %v6390
  %v6401 = vrcp.pop %v6393
  %v6402 = vrcp.pop %v6396
  %v6403 = vrcp.pop %v6399
  %v6404 = vmul.f32 %v6381, %v6400
  %v6405 = vmul.f32 %v6383, %v6401
  %v6406 = vmul.f32 %v6385, %v6402
  %v6407 = vmul.f32 %v6387, %v6403
  %v6408 = vpack.c.bf16 %v6405, %v6404
  %v6409 = vpack.c.bf16 %v6407, %v6406
  %6410 = vrot.lane.b32.xlu0 %v6008, 56
  %v6411 = vpop.permute.xlu0 %6410
  %v6414 = vsel %vm38, %v6408, 0
  %6416 = vmatprep.subr.bf16.mxu0 0
  %6417 = vmatpush1.bf16.msra.mxu0 0
  %6418 = vmatprep.subr.bf16.mxu0 0
  %6419 = vmatpush1.bf16.msra.mxu0 0
  %6420 = vmatprep.subr.bf16.mxu0 0
  %6421 = vmatpush1.bf16.msra.mxu0 0
  %6422 = vmatprep.subr.bf16.mxu0 0
  %6423 = vmatpush1.bf16.msra.mxu0 0
  %6424 = vmatprep.subr.bf16.mxu0 0
  %6425 = vmatpush1.bf16.msra.mxu0 0
  %6426 = vmatprep.subr.bf16.mxu0 0
  %6427 = vmatpush1.bf16.msra.mxu0 0
  %6428 = vmatprep.subr.bf16.mxu0 0
  %6429 = vmatpush1.bf16.msra.mxu0 0
  %6430 = vmatprep.subr.bf16.mxu0 0
  %6431 = vmatpush1.bf16.msra.mxu0 %v6411
  %6432 = vmatprep.subr.bf16.mxu0 0
  %6433 = vmatpush2.bf16.msra.mxu0 0
  %6434 = vmatprep.subr.bf16.mxu0 0
  %6435 = vmatpush2.bf16.msra.mxu0 0
  %6436 = vmatprep.subr.bf16.mxu0 0
  %6437 = vmatpush2.bf16.msra.mxu0 0
  %6438 = vmatprep.subr.bf16.mxu0 0
  %6439 = vmatpush2.bf16.msra.mxu0 0
  %6440 = vmatprep.subr.bf16.mxu0 0
  %6441 = vmatpush2.bf16.msra.mxu0 0
  %6442 = vmatprep.subr.bf16.mxu0 0
  %6443 = vmatpush2.bf16.msra.mxu0 0
  %6444 = vmatprep.subr.bf16.mxu0 0
  %6445 = vmatpush2.bf16.msra.mxu0 0
  %6446 = vmatprep.subr.bf16.mxu0 0
  %6447 = vmatpush2.bf16.msra.mxu0 0
  %6448 = vmatprep.mubr.bf16.mxu0 0
  %6449 = vmatmul.mubr.bf16.gmra.mxu0 %v6414
  %v6450 = vpop.f32.mrf.mxu0
  %v6451 = vadd.f32 0.0, %v6450
  %v6452 = vpop.f32.mrf.mxu0
  %v6453 = vpop.f32.mrf.mxu0
  %v6454 = vadd.f32 0.0, %v6453
  %v6455 = vpop.f32.mrf.mxu0
  %6456 = vdwg.mxu0
  %6457 = vrot.lane.b32.xlu0 %v6009, 56
  %v6458 = vpop.permute.xlu0 %6457
  %v6461 = vsel %vm38, %v6409, 0
  %6463 = vmatprep.subr.bf16.mxu0 0
  %6464 = vmatpush1.bf16.msra.mxu0 0
  %6465 = vmatprep.subr.bf16.mxu0 0
  %6466 = vmatpush1.bf16.msra.mxu0 0
  %6467 = vmatprep.subr.bf16.mxu0 0
  %6468 = vmatpush1.bf16.msra.mxu0 0
  %6469 = vmatprep.subr.bf16.mxu0 0
  %6470 = vmatpush1.bf16.msra.mxu0 0
  %6471 = vmatprep.subr.bf16.mxu0 0
  %6472 = vmatpush1.bf16.msra.mxu0 0
  %6473 = vmatprep.subr.bf16.mxu0 0
  %6474 = vmatpush1.bf16.msra.mxu0 0
  %6475 = vmatprep.subr.bf16.mxu0 0
  %6476 = vmatpush1.bf16.msra.mxu0 0
  %6477 = vmatprep.subr.bf16.mxu0 0
  %6478 = vmatpush1.bf16.msra.mxu0 %v6458
  %6479 = vmatprep.subr.bf16.mxu0 0
  %6480 = vmatpush2.bf16.msra.mxu0 0
  %6481 = vmatprep.subr.bf16.mxu0 0
  %6482 = vmatpush2.bf16.msra.mxu0 0
  %6483 = vmatprep.subr.bf16.mxu0 0
  %6484 = vmatpush2.bf16.msra.mxu0 0
  %6485 = vmatprep.subr.bf16.mxu0 0
  %6486 = vmatpush2.bf16.msra.mxu0 0
  %6487 = vmatprep.subr.bf16.mxu0 0
  %6488 = vmatpush2.bf16.msra.mxu0 0
  %6489 = vmatprep.subr.bf16.mxu0 0
  %6490 = vmatpush2.bf16.msra.mxu0 0
  %6491 = vmatprep.subr.bf16.mxu0 0
  %6492 = vmatpush2.bf16.msra.mxu0 0
  %6493 = vmatprep.subr.bf16.mxu0 0
  %6494 = vmatpush2.bf16.msra.mxu0 0
  %6495 = vmatprep.mubr.bf16.mxu0 0
  %6496 = vmatmul.mubr.bf16.gmra.mxu0 %v6461
  %v6497 = vpop.f32.mrf.mxu0
  %v6498 = vadd.f32 0.0, %v6497
  %v6499 = vpop.f32.mrf.mxu0
  %v6500 = vpop.f32.mrf.mxu0
  %v6501 = vadd.f32 0.0, %v6500
  %v6502 = vpop.f32.mrf.mxu0
  %6503 = vdwg.mxu0
  %6508 = vrot.lane.b32.xlu0 %v6451, 8
  %v6509 = vpop.permute.xlu0 %6508
  %6510 = vrot.lane.b32.xlu0 %v6454, 8
  %v6511 = vpop.permute.xlu0 %6510
  %6512 = vrot.lane.b32.xlu0 %v6498, 8
  %v6513 = vpop.permute.xlu0 %6512
  %6514 = vrot.lane.b32.xlu0 %v6501, 8
  %v6515 = vpop.permute.xlu0 %6514
  %6520 = vst.msk [vmem:[#allocation2] sm:$0xff] %vm803, %v6509
  %6521 = vst.msk [vmem:[#allocation2 + $0x8] sm:$0xff] %vm803, %v6511
  %6522 = vst.msk [vmem:[#allocation2 + $0x10] sm:$0xff] %vm803, %v6513
  %6523 = vst.msk [vmem:[#allocation2 + $0x18] sm:$0xff] %vm803, %v6515
  %6524 = vrot.lane.b32.xlu0 %v6008, 112
  %v6525 = vpop.permute.xlu0 %6524
  %6526 = vrot.lane.b32.xlu0 %v6008, 80
  %v6527 = vpop.permute.xlu0 %6526
  %v6529 = vsel %vm352, %v6525, 0
  %v6532 = vsel %vm352, %v6527, 0
  %6534 = vmatprep.subr.bf16.mxu0 0
  %6535 = vmatpush1.bf16.xpose.msra.mxu0 0
  %6536 = vmatprep.subr.bf16.mxu0 0
  %6537 = vmatpush1.bf16.xpose.msra.mxu0 0
  %6538 = vmatprep.subr.bf16.mxu0 0
  %6539 = vmatpush1.bf16.xpose.msra.mxu0 0
  %6540 = vmatprep.subr.bf16.mxu0 0
  %6541 = vmatpush1.bf16.xpose.msra.mxu0 0
  %6542 = vmatprep.subr.bf16.mxu0 0
  %6543 = vmatpush1.bf16.xpose.msra.mxu0 0
  %6544 = vmatprep.subr.bf16.mxu0 0
  %6545 = vmatpush1.bf16.xpose.msra.mxu0 0
  %6546 = vmatprep.subr.bf16.mxu0 0
  %6547 = vmatpush1.bf16.xpose.msra.mxu0 0
  %6548 = vmatprep.subr.bf16.mxu0 0
  %6549 = vmatpush1.bf16.xpose.msra.mxu0 %v6532
  %6550 = vmatprep.subr.bf16.mxu0 0
  %6551 = vmatpush2.bf16.xpose.msra.mxu0 0
  %6552 = vmatprep.subr.bf16.mxu0 0
  %6553 = vmatpush2.bf16.xpose.msra.mxu0 0
  %6554 = vmatprep.subr.bf16.mxu0 0
  %6555 = vmatpush2.bf16.xpose.msra.mxu0 0
  %6556 = vmatprep.subr.bf16.mxu0 0
  %6557 = vmatpush2.bf16.xpose.msra.mxu0 0
  %6558 = vmatprep.subr.bf16.mxu0 0
  %6559 = vmatpush2.bf16.xpose.msra.mxu0 0
  %6560 = vmatprep.subr.bf16.mxu0 0
  %6561 = vmatpush2.bf16.xpose.msra.mxu0 0
  %6562 = vmatprep.subr.bf16.mxu0 0
  %6563 = vmatpush2.bf16.xpose.msra.mxu0 0
  %6564 = vmatprep.subr.bf16.mxu0 0
  %6565 = vmatpush2.bf16.xpose.msra.mxu0 0
  %6566 = vmatprep.mubr.bf16.mxu0 0
  %6567 = vmatmul.mubr.bf16.gmra.mxu0 %v6529
  %v6568 = vpop.f32.mrf.mxu0
  %v6569 = vadd.f32 0.0, %v6568
  %v6570 = vpop.f32.mrf.mxu0
  %v6571 = vpop.f32.mrf.mxu0
  %v6572 = vadd.f32 0.0, %v6571
  %v6573 = vpop.f32.mrf.mxu0
  %6574 = vdwg.mxu0
  %6575 = vrot.lane.b32.xlu0 %v6009, 112
  %v6576 = vpop.permute.xlu0 %6575
  %6577 = vrot.lane.b32.xlu0 %v6009, 80
  %v6578 = vpop.permute.xlu0 %6577
  %v6580 = vsel %vm352, %v6576, 0
  %v6583 = vsel %vm352, %v6578, 0
  %6585 = vmatprep.subr.bf16.mxu0 0
  %6586 = vmatpush1.bf16.xpose.msra.mxu0 0
  %6587 = vmatprep.subr.bf16.mxu0 0
  %6588 = vmatpush1.bf16.xpose.msra.mxu0 0
  %6589 = vmatprep.subr.bf16.mxu0 0
  %6590 = vmatpush1.bf16.xpose.msra.mxu0 0
  %6591 = vmatprep.subr.bf16.mxu0 0
  %6592 = vmatpush1.bf16.xpose.msra.mxu0 0
  %6593 = vmatprep.subr.bf16.mxu0 0
  %6594 = vmatpush1.bf16.xpose.msra.mxu0 0
  %6595 = vmatprep.subr.bf16.mxu0 0
  %6596 = vmatpush1.bf16.xpose.msra.mxu0 0
  %6597 = vmatprep.subr.bf16.mxu0 0
  %6598 = vmatpush1.bf16.xpose.msra.mxu0 0
  %6599 = vmatprep.subr.bf16.mxu0 0
  %6600 = vmatpush1.bf16.xpose.msra.mxu0 %v6583
  %6601 = vmatprep.subr.bf16.mxu0 0
  %6602 = vmatpush2.bf16.xpose.msra.mxu0 0
  %6603 = vmatprep.subr.bf16.mxu0 0
  %6604 = vmatpush2.bf16.xpose.msra.mxu0 0
  %6605 = vmatprep.subr.bf16.mxu0 0
  %6606 = vmatpush2.bf16.xpose.msra.mxu0 0
  %6607 = vmatprep.subr.bf16.mxu0 0
  %6608 = vmatpush2.bf16.xpose.msra.mxu0 0
  %6609 = vmatprep.subr.bf16.mxu0 0
  %6610 = vmatpush2.bf16.xpose.msra.mxu0 0
  %6611 = vmatprep.subr.bf16.mxu0 0
  %6612 = vmatpush2.bf16.xpose.msra.mxu0 0
  %6613 = vmatprep.subr.bf16.mxu0 0
  %6614 = vmatpush2.bf16.xpose.msra.mxu0 0
  %6615 = vmatprep.subr.bf16.mxu0 0
  %6616 = vmatpush2.bf16.xpose.msra.mxu0 0
  %6617 = vmatprep.mubr.bf16.mxu0 0
  %6618 = vmatmul.mubr.bf16.gmra.mxu0 %v6580
  %v6619 = vpop.f32.mrf.mxu0
  %v6620 = vadd.f32 0.0, %v6619
  %v6621 = vpop.f32.mrf.mxu0
  %v6622 = vpop.f32.mrf.mxu0
  %v6623 = vadd.f32 0.0, %v6622
  %v6624 = vpop.f32.mrf.mxu0
  %6625 = vdwg.mxu0
  %v6626 = vmul.f32 %v6569, 0.35355338
  %v6627 = vmul.f32 %v6572, 0.35355338
  %v6628 = vmul.f32 %v6620, 0.35355338
  %v6629 = vmul.f32 %v6623, 0.35355338
  %v6630 = vsel %vm38, %v6626, -inf
  %6631 = vmax.xlane.f32.xlu0 %v6630
  %v6632 = vpop.xlane.xlu0 %6631
  %v6633 = vsel %vm38, %v6627, -inf
  %6634 = vmax.xlane.f32.xlu0 %v6633
  %v6635 = vpop.xlane.xlu0 %6634
  %v6636 = vsel %vm38, %v6628, -inf
  %6637 = vmax.xlane.f32.xlu0 %v6636
  %v6638 = vpop.xlane.xlu0 %6637
  %v6639 = vsel %vm38, %v6629, -inf
  %6640 = vmax.xlane.f32.xlu0 %v6639
  %v6641 = vpop.xlane.xlu0 %6640
  %v6642 = vsub.f32 %v6626, %v6632
  %v6643 = vsub.f32 %v6627, %v6635
  %v6644 = vsub.f32 %v6628, %v6638
  %v6645 = vsub.f32 %v6629, %v6641
  %v6646 = vmul.f32 %v6642, 1.442695
  %v6647 = vpow.pop %v6646
  %v6648 = vmul.f32 %v6643, 1.442695
  %v6649 = vpow.pop %v6648
  %v6650 = vmul.f32 %v6644, 1.442695
  %v6651 = vpow.pop %v6650
  %v6652 = vmul.f32 %v6645, 1.442695
  %v6653 = vpow.pop %v6652
  %v6654 = vsel %vm38, %v6647, 0.0
  %6655 = vadd.xlane.f32.xlu0 %v6654
  %v6656 = vpop.xlane.xlu0 %6655
  %v6657 = vsel %vm38, %v6649, 0.0
  %6658 = vadd.xlane.f32.xlu0 %v6657
  %v6659 = vpop.xlane.xlu0 %6658
  %v6660 = vsel %vm38, %v6651, 0.0
  %6661 = vadd.xlane.f32.xlu0 %v6660
  %v6662 = vpop.xlane.xlu0 %6661
  %v6663 = vsel %vm38, %v6653, 0.0
  %6664 = vadd.xlane.f32.xlu0 %v6663
  %v6665 = vpop.xlane.xlu0 %6664
  %v6666 = vrcp.pop %v6656
  %v6667 = vrcp.pop %v6659
  %v6668 = vrcp.pop %v6662
  %v6669 = vrcp.pop %v6665
  %v6670 = vmul.f32 %v6647, %v6666
  %v6671 = vmul.f32 %v6649, %v6667
  %v6672 = vmul.f32 %v6651, %v6668
  %v6673 = vmul.f32 %v6653, %v6669
  %v6674 = vpack.c.bf16 %v6671, %v6670
  %v6675 = vpack.c.bf16 %v6673, %v6672
  %6676 = vrot.lane.b32.xlu0 %v6008, 48
  %v6677 = vpop.permute.xlu0 %6676
  %v6680 = vsel %vm38, %v6674, 0
  %6682 = vmatprep.subr.bf16.mxu0 0
  %6683 = vmatpush1.bf16.msra.mxu0 0
  %6684 = vmatprep.subr.bf16.mxu0 0
  %6685 = vmatpush1.bf16.msra.mxu0 0
  %6686 = vmatprep.subr.bf16.mxu0 0
  %6687 = vmatpush1.bf16.msra.mxu0 0
  %6688 = vmatprep.subr.bf16.mxu0 0
  %6689 = vmatpush1.bf16.msra.mxu0 0
  %6690 = vmatprep.subr.bf16.mxu0 0
  %6691 = vmatpush1.bf16.msra.mxu0 0
  %6692 = vmatprep.subr.bf16.mxu0 0
  %6693 = vmatpush1.bf16.msra.mxu0 0
  %6694 = vmatprep.subr.bf16.mxu0 0
  %6695 = vmatpush1.bf16.msra.mxu0 0
  %6696 = vmatprep.subr.bf16.mxu0 0
  %6697 = vmatpush1.bf16.msra.mxu0 %v6677
  %6698 = vmatprep.subr.bf16.mxu0 0
  %6699 = vmatpush2.bf16.msra.mxu0 0
  %6700 = vmatprep.subr.bf16.mxu0 0
  %6701 = vmatpush2.bf16.msra.mxu0 0
  %6702 = vmatprep.subr.bf16.mxu0 0
  %6703 = vmatpush2.bf16.msra.mxu0 0
  %6704 = vmatprep.subr.bf16.mxu0 0
  %6705 = vmatpush2.bf16.msra.mxu0 0
  %6706 = vmatprep.subr.bf16.mxu0 0
  %6707 = vmatpush2.bf16.msra.mxu0 0
  %6708 = vmatprep.subr.bf16.mxu0 0
  %6709 = vmatpush2.bf16.msra.mxu0 0
  %6710 = vmatprep.subr.bf16.mxu0 0
  %6711 = vmatpush2.bf16.msra.mxu0 0
  %6712 = vmatprep.subr.bf16.mxu0 0
  %6713 = vmatpush2.bf16.msra.mxu0 0
  %6714 = vmatprep.mubr.bf16.mxu0 0
  %6715 = vmatmul.mubr.bf16.gmra.mxu0 %v6680
  %v6716 = vpop.f32.mrf.mxu0
  %v6717 = vadd.f32 0.0, %v6716
  %v6718 = vpop.f32.mrf.mxu0
  %v6719 = vpop.f32.mrf.mxu0
  %v6720 = vadd.f32 0.0, %v6719
  %v6721 = vpop.f32.mrf.mxu0
  %6722 = vdwg.mxu0
  %6723 = vrot.lane.b32.xlu0 %v6009, 48
  %v6724 = vpop.permute.xlu0 %6723
  %v6727 = vsel %vm38, %v6675, 0
  %6729 = vmatprep.subr.bf16.mxu0 0
  %6730 = vmatpush1.bf16.msra.mxu0 0
  %6731 = vmatprep.subr.bf16.mxu0 0
  %6732 = vmatpush1.bf16.msra.mxu0 0
  %6733 = vmatprep.subr.bf16.mxu0 0
  %6734 = vmatpush1.bf16.msra.mxu0 0
  %6735 = vmatprep.subr.bf16.mxu0 0
  %6736 = vmatpush1.bf16.msra.mxu0 0
  %6737 = vmatprep.subr.bf16.mxu0 0
  %6738 = vmatpush1.bf16.msra.mxu0 0
  %6739 = vmatprep.subr.bf16.mxu0 0
  %6740 = vmatpush1.bf16.msra.mxu0 0
  %6741 = vmatprep.subr.bf16.mxu0 0
  %6742 = vmatpush1.bf16.msra.mxu0 0
  %6743 = vmatprep.subr.bf16.mxu0 0
  %6744 = vmatpush1.bf16.msra.mxu0 %v6724
  %6745 = vmatprep.subr.bf16.mxu0 0
  %6746 = vmatpush2.bf16.msra.mxu0 0
  %6747 = vmatprep.subr.bf16.mxu0 0
  %6748 = vmatpush2.bf16.msra.mxu0 0
  %6749 = vmatprep.subr.bf16.mxu0 0
  %6750 = vmatpush2.bf16.msra.mxu0 0
  %6751 = vmatprep.subr.bf16.mxu0 0
  %6752 = vmatpush2.bf16.msra.mxu0 0
  %6753 = vmatprep.subr.bf16.mxu0 0
  %6754 = vmatpush2.bf16.msra.mxu0 0
  %6755 = vmatprep.subr.bf16.mxu0 0
  %6756 = vmatpush2.bf16.msra.mxu0 0
  %6757 = vmatprep.subr.bf16.mxu0 0
  %6758 = vmatpush2.bf16.msra.mxu0 0
  %6759 = vmatprep.subr.bf16.mxu0 0
  %6760 = vmatpush2.bf16.msra.mxu0 0
  %6761 = vmatprep.mubr.bf16.mxu0 0
  %6762 = vmatmul.mubr.bf16.gmra.mxu0 %v6727
  %v6763 = vpop.f32.mrf.mxu0
  %v6764 = vadd.f32 0.0, %v6763
  %v6765 = vpop.f32.mrf.mxu0
  %v6766 = vpop.f32.mrf.mxu0
  %v6767 = vadd.f32 0.0, %v6766
  %v6768 = vpop.f32.mrf.mxu0
  %6769 = vdwg.mxu0
  %6774 = vrot.lane.b32.xlu0 %v6717, 16
  %v6775 = vpop.permute.xlu0 %6774
  %6776 = vrot.lane.b32.xlu0 %v6720, 16
  %v6777 = vpop.permute.xlu0 %6776
  %6778 = vrot.lane.b32.xlu0 %v6764, 16
  %v6779 = vpop.permute.xlu0 %6778
  %6780 = vrot.lane.b32.xlu0 %v6767, 16
  %v6781 = vpop.permute.xlu0 %6780
  %6786 = vst.msk [vmem:[#allocation2] sm:$0xff] %vm1036, %v6775
  %6787 = vst.msk [vmem:[#allocation2 + $0x8] sm:$0xff] %vm1036, %v6777
  %6788 = vst.msk [vmem:[#allocation2 + $0x10] sm:$0xff] %vm1036, %v6779
  %6789 = vst.msk [vmem:[#allocation2 + $0x18] sm:$0xff] %vm1036, %v6781
  %6790 = vrot.lane.b32.xlu0 %v6008, 104
  %v6791 = vpop.permute.xlu0 %6790
  %6792 = vrot.lane.b32.xlu0 %v6008, 72
  %v6793 = vpop.permute.xlu0 %6792
  %v6795 = vsel %vm352, %v6791, 0
  %v6798 = vsel %vm352, %v6793, 0
  %6800 = vmatprep.subr.bf16.mxu0 0
  %6801 = vmatpush1.bf16.xpose.msra.mxu0 0
  %6802 = vmatprep.subr.bf16.mxu0 0
  %6803 = vmatpush1.bf16.xpose.msra.mxu0 0
  %6804 = vmatprep.subr.bf16.mxu0 0
  %6805 = vmatpush1.bf16.xpose.msra.mxu0 0
  %6806 = vmatprep.subr.bf16.mxu0 0
  %6807 = vmatpush1.bf16.xpose.msra.mxu0 0
  %6808 = vmatprep.subr.bf16.mxu0 0
  %6809 = vmatpush1.bf16.xpose.msra.mxu0 0
  %6810 = vmatprep.subr.bf16.mxu0 0
  %6811 = vmatpush1.bf16.xpose.msra.mxu0 0
  %6812 = vmatprep.subr.bf16.mxu0 0
  %6813 = vmatpush1.bf16.xpose.msra.mxu0 0
  %6814 = vmatprep.subr.bf16.mxu0 0
  %6815 = vmatpush1.bf16.xpose.msra.mxu0 %v6798
  %6816 = vmatprep.subr.bf16.mxu0 0
  %6817 = vmatpush2.bf16.xpose.msra.mxu0 0
  %6818 = vmatprep.subr.bf16.mxu0 0
  %6819 = vmatpush2.bf16.xpose.msra.mxu0 0
  %6820 = vmatprep.subr.bf16.mxu0 0
  %6821 = vmatpush2.bf16.xpose.msra.mxu0 0
  %6822 = vmatprep.subr.bf16.mxu0 0
  %6823 = vmatpush2.bf16.xpose.msra.mxu0 0
  %6824 = vmatprep.subr.bf16.mxu0 0
  %6825 = vmatpush2.bf16.xpose.msra.mxu0 0
  %6826 = vmatprep.subr.bf16.mxu0 0
  %6827 = vmatpush2.bf16.xpose.msra.mxu0 0
  %6828 = vmatprep.subr.bf16.mxu0 0
  %6829 = vmatpush2.bf16.xpose.msra.mxu0 0
  %6830 = vmatprep.subr.bf16.mxu0 0
  %6831 = vmatpush2.bf16.xpose.msra.mxu0 0
  %6832 = vmatprep.mubr.bf16.mxu0 0
  %6833 = vmatmul.mubr.bf16.gmra.mxu0 %v6795
  %v6834 = vpop.f32.mrf.mxu0
  %v6835 = vadd.f32 0.0, %v6834
  %v6836 = vpop.f32.mrf.mxu0
  %v6837 = vpop.f32.mrf.mxu0
  %v6838 = vadd.f32 0.0, %v6837
  %v6839 = vpop.f32.mrf.mxu0
  %6840 = vdwg.mxu0
  %6841 = vrot.lane.b32.xlu0 %v6009, 104
  %v6842 = vpop.permute.xlu0 %6841
  %6843 = vrot.lane.b32.xlu0 %v6009, 72
  %v6844 = vpop.permute.xlu0 %6843
  %v6846 = vsel %vm352, %v6842, 0
  %v6849 = vsel %vm352, %v6844, 0
  %6851 = vmatprep.subr.bf16.mxu0 0
  %6852 = vmatpush1.bf16.xpose.msra.mxu0 0
  %6853 = vmatprep.subr.bf16.mxu0 0
  %6854 = vmatpush1.bf16.xpose.msra.mxu0 0
  %6855 = vmatprep.subr.bf16.mxu0 0
  %6856 = vmatpush1.bf16.xpose.msra.mxu0 0
  %6857 = vmatprep.subr.bf16.mxu0 0
  %6858 = vmatpush1.bf16.xpose.msra.mxu0 0
  %6859 = vmatprep.subr.bf16.mxu0 0
  %6860 = vmatpush1.bf16.xpose.msra.mxu0 0
  %6861 = vmatprep.subr.bf16.mxu0 0
  %6862 = vmatpush1.bf16.xpose.msra.mxu0 0
  %6863 = vmatprep.subr.bf16.mxu0 0
  %6864 = vmatpush1.bf16.xpose.msra.mxu0 0
  %6865 = vmatprep.subr.bf16.mxu0 0
  %6866 = vmatpush1.bf16.xpose.msra.mxu0 %v6849
  %6867 = vmatprep.subr.bf16.mxu0 0
  %6868 = vmatpush2.bf16.xpose.msra.mxu0 0
  %6869 = vmatprep.subr.bf16.mxu0 0
  %6870 = vmatpush2.bf16.xpose.msra.mxu0 0
  %6871 = vmatprep.subr.bf16.mxu0 0
  %6872 = vmatpush2.bf16.xpose.msra.mxu0 0
  %6873 = vmatprep.subr.bf16.mxu0 0
  %6874 = vmatpush2.bf16.xpose.msra.mxu0 0
  %6875 = vmatprep.subr.bf16.mxu0 0
  %6876 = vmatpush2.bf16.xpose.msra.mxu0 0
  %6877 = vmatprep.subr.bf16.mxu0 0
  %6878 = vmatpush2.bf16.xpose.msra.mxu0 0
  %6879 = vmatprep.subr.bf16.mxu0 0
  %6880 = vmatpush2.bf16.xpose.msra.mxu0 0
  %6881 = vmatprep.subr.bf16.mxu0 0
  %6882 = vmatpush2.bf16.xpose.msra.mxu0 0
  %6883 = vmatprep.mubr.bf16.mxu0 0
  %6884 = vmatmul.mubr.bf16.gmra.mxu0 %v6846
  %v6885 = vpop.f32.mrf.mxu0
  %v6886 = vadd.f32 0.0, %v6885
  %v6887 = vpop.f32.mrf.mxu0
  %v6888 = vpop.f32.mrf.mxu0
  %v6889 = vadd.f32 0.0, %v6888
  %v6890 = vpop.f32.mrf.mxu0
  %6891 = vdwg.mxu0
  %v6892 = vmul.f32 %v6835, 0.35355338
  %v6893 = vmul.f32 %v6838, 0.35355338
  %v6894 = vmul.f32 %v6886, 0.35355338
  %v6895 = vmul.f32 %v6889, 0.35355338
  %v6896 = vsel %vm38, %v6892, -inf
  %6897 = vmax.xlane.f32.xlu0 %v6896
  %v6898 = vpop.xlane.xlu0 %6897
  %v6899 = vsel %vm38, %v6893, -inf
  %6900 = vmax.xlane.f32.xlu0 %v6899
  %v6901 = vpop.xlane.xlu0 %6900
  %v6902 = vsel %vm38, %v6894, -inf
  %6903 = vmax.xlane.f32.xlu0 %v6902
  %v6904 = vpop.xlane.xlu0 %6903
  %v6905 = vsel %vm38, %v6895, -inf
  %6906 = vmax.xlane.f32.xlu0 %v6905
  %v6907 = vpop.xlane.xlu0 %6906
  %v6908 = vsub.f32 %v6892, %v6898
  %v6909 = vsub.f32 %v6893, %v6901
  %v6910 = vsub.f32 %v6894, %v6904
  %v6911 = vsub.f32 %v6895, %v6907
  %v6912 = vmul.f32 %v6908, 1.442695
  %v6913 = vpow.pop %v6912
  %v6914 = vmul.f32 %v6909, 1.442695
  %v6915 = vpow.pop %v6914
  %v6916 = vmul.f32 %v6910, 1.442695
  %v6917 = vpow.pop %v6916
  %v6918 = vmul.f32 %v6911, 1.442695
  %v6919 = vpow.pop %v6918
  %v6920 = vsel %vm38, %v6913, 0.0
  %6921 = vadd.xlane.f32.xlu0 %v6920
  %v6922 = vpop.xlane.xlu0 %6921
  %v6923 = vsel %vm38, %v6915, 0.0
  %6924 = vadd.xlane.f32.xlu0 %v6923
  %v6925 = vpop.xlane.xlu0 %6924
  %v6926 = vsel %vm38, %v6917, 0.0
  %6927 = vadd.xlane.f32.xlu0 %v6926
  %v6928 = vpop.xlane.xlu0 %6927
  %v6929 = vsel %vm38, %v6919, 0.0
  %6930 = vadd.xlane.f32.xlu0 %v6929
  %v6931 = vpop.xlane.xlu0 %6930
  %v6932 = vrcp.pop %v6922
  %v6933 = vrcp.pop %v6925
  %v6934 = vrcp.pop %v6928
  %v6935 = vrcp.pop %v6931
  %v6936 = vmul.f32 %v6913, %v6932
  %v6937 = vmul.f32 %v6915, %v6933
  %v6938 = vmul.f32 %v6917, %v6934
  %v6939 = vmul.f32 %v6919, %v6935
  %v6940 = vpack.c.bf16 %v6937, %v6936
  %v6941 = vpack.c.bf16 %v6939, %v6938
  %6942 = vrot.lane.b32.xlu0 %v6008, 40
  %v6943 = vpop.permute.xlu0 %6942
  %v6946 = vsel %vm38, %v6940, 0
  %6948 = vmatprep.subr.bf16.mxu0 0
  %6949 = vmatpush1.bf16.msra.mxu0 0
  %6950 = vmatprep.subr.bf16.mxu0 0
  %6951 = vmatpush1.bf16.msra.mxu0 0
  %6952 = vmatprep.subr.bf16.mxu0 0
  %6953 = vmatpush1.bf16.msra.mxu0 0
  %6954 = vmatprep.subr.bf16.mxu0 0
  %6955 = vmatpush1.bf16.msra.mxu0 0
  %6956 = vmatprep.subr.bf16.mxu0 0
  %6957 = vmatpush1.bf16.msra.mxu0 0
  %6958 = vmatprep.subr.bf16.mxu0 0
  %6959 = vmatpush1.bf16.msra.mxu0 0
  %6960 = vmatprep.subr.bf16.mxu0 0
  %6961 = vmatpush1.bf16.msra.mxu0 0
  %6962 = vmatprep.subr.bf16.mxu0 0
  %6963 = vmatpush1.bf16.msra.mxu0 %v6943
  %6964 = vmatprep.subr.bf16.mxu0 0
  %6965 = vmatpush2.bf16.msra.mxu0 0
  %6966 = vmatprep.subr.bf16.mxu0 0
  %6967 = vmatpush2.bf16.msra.mxu0 0
  %6968 = vmatprep.subr.bf16.mxu0 0
  %6969 = vmatpush2.bf16.msra.mxu0 0
  %6970 = vmatprep.subr.bf16.mxu0 0
  %6971 = vmatpush2.bf16.msra.mxu0 0
  %6972 = vmatprep.subr.bf16.mxu0 0
  %6973 = vmatpush2.bf16.msra.mxu0 0
  %6974 = vmatprep.subr.bf16.mxu0 0
  %6975 = vmatpush2.bf16.msra.mxu0 0
  %6976 = vmatprep.subr.bf16.mxu0 0
  %6977 = vmatpush2.bf16.msra.mxu0 0
  %6978 = vmatprep.subr.bf16.mxu0 0
  %6979 = vmatpush2.bf16.msra.mxu0 0
  %6980 = vmatprep.mubr.bf16.mxu0 0
  %6981 = vmatmul.mubr.bf16.gmra.mxu0 %v6946
  %v6982 = vpop.f32.mrf.mxu0
  %v6983 = vadd.f32 0.0, %v6982
  %v6984 = vpop.f32.mrf.mxu0
  %v6985 = vpop.f32.mrf.mxu0
  %v6986 = vadd.f32 0.0, %v6985
  %v6987 = vpop.f32.mrf.mxu0
  %6988 = vdwg.mxu0
  %6989 = vrot.lane.b32.xlu0 %v6009, 40
  %v6990 = vpop.permute.xlu0 %6989
  %v6993 = vsel %vm38, %v6941, 0
  %6995 = vmatprep.subr.bf16.mxu0 0
  %6996 = vmatpush1.bf16.msra.mxu0 0
  %6997 = vmatprep.subr.bf16.mxu0 0
  %6998 = vmatpush1.bf16.msra.mxu0 0
  %6999 = vmatprep.subr.bf16.mxu0 0
  %7000 = vmatpush1.bf16.msra.mxu0 0
  %7001 = vmatprep.subr.bf16.mxu0 0
  %7002 = vmatpush1.bf16.msra.mxu0 0
  %7003 = vmatprep.subr.bf16.mxu0 0
  %7004 = vmatpush1.bf16.msra.mxu0 0
  %7005 = vmatprep.subr.bf16.mxu0 0
  %7006 = vmatpush1.bf16.msra.mxu0 0
  %7007 = vmatprep.subr.bf16.mxu0 0
  %7008 = vmatpush1.bf16.msra.mxu0 0
  %7009 = vmatprep.subr.bf16.mxu0 0
  %7010 = vmatpush1.bf16.msra.mxu0 %v6990
  %7011 = vmatprep.subr.bf16.mxu0 0
  %7012 = vmatpush2.bf16.msra.mxu0 0
  %7013 = vmatprep.subr.bf16.mxu0 0
  %7014 = vmatpush2.bf16.msra.mxu0 0
  %7015 = vmatprep.subr.bf16.mxu0 0
  %7016 = vmatpush2.bf16.msra.mxu0 0
  %7017 = vmatprep.subr.bf16.mxu0 0
  %7018 = vmatpush2.bf16.msra.mxu0 0
  %7019 = vmatprep.subr.bf16.mxu0 0
  %7020 = vmatpush2.bf16.msra.mxu0 0
  %7021 = vmatprep.subr.bf16.mxu0 0
  %7022 = vmatpush2.bf16.msra.mxu0 0
  %7023 = vmatprep.subr.bf16.mxu0 0
  %7024 = vmatpush2.bf16.msra.mxu0 0
  %7025 = vmatprep.subr.bf16.mxu0 0
  %7026 = vmatpush2.bf16.msra.mxu0 0
  %7027 = vmatprep.mubr.bf16.mxu0 0
  %7028 = vmatmul.mubr.bf16.gmra.mxu0 %v6993
  %v7029 = vpop.f32.mrf.mxu0
  %v7030 = vadd.f32 0.0, %v7029
  %v7031 = vpop.f32.mrf.mxu0
  %v7032 = vpop.f32.mrf.mxu0
  %v7033 = vadd.f32 0.0, %v7032
  %v7034 = vpop.f32.mrf.mxu0
  %7035 = vdwg.mxu0
  %7040 = vrot.lane.b32.xlu0 %v6983, 24
  %v7041 = vpop.permute.xlu0 %7040
  %7042 = vrot.lane.b32.xlu0 %v6986, 24
  %v7043 = vpop.permute.xlu0 %7042
  %7044 = vrot.lane.b32.xlu0 %v7030, 24
  %v7045 = vpop.permute.xlu0 %7044
  %7046 = vrot.lane.b32.xlu0 %v7033, 24
  %v7047 = vpop.permute.xlu0 %7046
  %7052 = vst.msk [vmem:[#allocation2] sm:$0xff] %vm1269, %v7041
  %7053 = vst.msk [vmem:[#allocation2 + $0x8] sm:$0xff] %vm1269, %v7043
  %7054 = vst.msk [vmem:[#allocation2 + $0x10] sm:$0xff] %vm1269, %v7045
  %7055 = vst.msk [vmem:[#allocation2 + $0x18] sm:$0xff] %vm1269, %v7047
  %v7056 = vld [vmem:[#allocation2] sm:$0xff]
  %v7057 = vld [vmem:[#allocation2 + $0x8] sm:$0xff]
  %v7058 = vld [vmem:[#allocation2 + $0x10] sm:$0xff]
  %v7059 = vld [vmem:[#allocation2 + $0x18] sm:$0xff]
  %v7060 = vpack.c.bf16 %v7057, %v7056
  %v7061 = vpack.c.bf16 %v7059, %v7058
  %v7066 = vunpack.c.l.b16 %v5926
  %v7067 = vunpack.c.l.b16 %v5927
  %v7068 = vunpack.c.l.b16 %v5928
  %v7069 = vunpack.c.l.b16 %v5929
  %v7070 = vpack.c.b16 %v7067, %v7066
  %v7071 = vpack.c.b16 %v7069, %v7068
  %v7075 = vsel %vm296, %v7060, 0
  %v7078 = vsel %vm296, %v7061, 0
  %7080 = vmatprep.subr.bf16.mxu0 0
  %7081 = vmatpush1.bf16.msra.mxu0 0
  %7082 = vmatprep.subr.bf16.mxu0 0
  %7083 = vmatpush1.bf16.msra.mxu0 0
  %7084 = vmatprep.subr.bf16.mxu0 0
  %7085 = vmatpush1.bf16.msra.mxu0 0
  %7086 = vmatprep.subr.bf16.mxu0 0
  %7087 = vmatpush1.bf16.msra.mxu0 0
  %7088 = vmatprep.subr.bf16.mxu0 0
  %7089 = vmatpush1.bf16.msra.mxu0 0
  %7090 = vmatprep.subr.bf16.mxu0 0
  %7091 = vmatpush1.bf16.msra.mxu0 0
  %7092 = vmatprep.subr.bf16.mxu0 0
  %7093 = vmatpush1.bf16.msra.mxu0 %v7071
  %7094 = vmatprep.subr.bf16.mxu0 0
  %7095 = vmatpush1.bf16.msra.mxu0 %v7070
  %7096 = vmatprep.subr.bf16.mxu0 0
  %7097 = vmatpush2.bf16.msra.mxu0 0
  %7098 = vmatprep.subr.bf16.mxu0 0
  %7099 = vmatpush2.bf16.msra.mxu0 0
  %7100 = vmatprep.subr.bf16.mxu0 0
  %7101 = vmatpush2.bf16.msra.mxu0 0
  %7102 = vmatprep.subr.bf16.mxu0 0
  %7103 = vmatpush2.bf16.msra.mxu0 0
  %7104 = vmatprep.subr.bf16.mxu0 0
  %7105 = vmatpush2.bf16.msra.mxu0 0
  %7106 = vmatprep.subr.bf16.mxu0 0
  %7107 = vmatpush2.bf16.msra.mxu0 0
  %7108 = vmatprep.subr.bf16.mxu0 0
  %7109 = vmatpush2.bf16.msra.mxu0 0
  %7110 = vmatprep.subr.bf16.mxu0 0
  %7111 = vmatpush2.bf16.msra.mxu0 0
  %7112 = vmatprep.mubr.bf16.mxu0 0
  %7113 = vmatmul.mubr.bf16.gmra.mxu0 %v7075
  %v7114 = vpop.f32.mrf.mxu0
  %v7115 = vadd.f32 0.0, %v7114
  %v7116 = vpop.f32.mrf.mxu0
  %v7117 = vpop.f32.mrf.mxu0
  %v7118 = vadd.f32 0.0, %v7117
  %v7119 = vpop.f32.mrf.mxu0
  %7120 = vmatprep.mubr.bf16.mxu0 0
  %7121 = vmatmul.mubr.bf16.gmra.mxu0 %v7078
  %v7122 = vpop.f32.mrf.mxu0
  %v7123 = vadd.f32 0.0, %v7122
  %v7124 = vpop.f32.mrf.mxu0
  %v7125 = vpop.f32.mrf.mxu0
  %v7126 = vadd.f32 0.0, %v7125
  %v7127 = vpop.f32.mrf.mxu0
  %7128 = vdwg.mxu0
  %v7129 = vlaneseq
  %v7130 = vshrl.u32 %v7129, 7
  %v7131 = vsub.s32 0, %v7130
  %v7132 = vrot.slane %v5930, %v7131
  %v7133 = vadd.f32 %v7115, %v7132
  %v7134 = vadd.f32 %v7118, %v7132
  %v7135 = vadd.f32 %v7123, %v7132
  %v7136 = vadd.f32 %v7126, %v7132
  %v7137 = vadd.f32 %v5915, %v7133
  %v7138 = vadd.f32 %v5916, %v7134
  %v7139 = vadd.f32 %v5917, %v7135
  %v7140 = vadd.f32 %v5918, %v7136
  %v7141 = vld [vmem:[%s9 + $0x29] sm:$0x1]
  %v7142 = vld [vmem:[%s9 + $0x2a] sm:$0x1]
  %v7143 = vsel %vm296, %v7137, 0.0
  %7144 = vadd.xlane.f32.xlu0 %v7143
  %v7145 = vpop.xlane.xlu0 %7144
  %v7146 = vsel %vm296, %v7138, 0.0
  %7147 = vadd.xlane.f32.xlu0 %v7146
  %v7148 = vpop.xlane.xlu0 %7147
  %v7149 = vsel %vm296, %v7139, 0.0
  %7150 = vadd.xlane.f32.xlu0 %v7149
  %v7151 = vpop.xlane.xlu0 %7150
  %v7152 = vsel %vm296, %v7140, 0.0
  %7153 = vadd.xlane.f32.xlu0 %v7152
  %v7154 = vpop.xlane.xlu0 %7153
  %v7155 = vmul.f32 %v7145, %v1347
  %v7156 = vmul.f32 %v7148, %v1347
  %v7157 = vmul.f32 %v7151, %v1347
  %v7158 = vmul.f32 %v7154, %v1347
  %v7159 = vsub.f32 %v7137, %v7155
  %v7160 = vsub.f32 %v7138, %v7156
  %v7161 = vsub.f32 %v7139, %v7157
  %v7162 = vsub.f32 %v7140, %v7158
  %v7163 = vmul.f32 %v7159, %v7159
  %v7164 = vmul.f32 %v7160, %v7160
  %v7165 = vmul.f32 %v7161, %v7161
  %v7166 = vmul.f32 %v7162, %v7162
  %v7167 = vsel %vm296, %v7163, 0.0
  %7168 = vadd.xlane.f32.xlu0 %v7167
  %v7169 = vpop.xlane.xlu0 %7168
  %v7170 = vsel %vm296, %v7164, 0.0
  %7171 = vadd.xlane.f32.xlu0 %v7170
  %v7172 = vpop.xlane.xlu0 %7171
  %v7173 = vsel %vm296, %v7165, 0.0
  %7174 = vadd.xlane.f32.xlu0 %v7173
  %v7175 = vpop.xlane.xlu0 %7174
  %v7176 = vsel %vm296, %v7166, 0.0
  %7177 = vadd.xlane.f32.xlu0 %v7176
  %v7178 = vpop.xlane.xlu0 %7177
  %v7179 = vmul.f32 %v7169, %v1347
  %v7180 = vmul.f32 %v7172, %v1347
  %v7181 = vmul.f32 %v7175, %v1347
  %v7182 = vmul.f32 %v7178, %v1347
  %v7183 = vadd.f32 %v7179, 1e-05
  %v7184 = vadd.f32 %v7180, 1e-05
  %v7185 = vadd.f32 %v7181, 1e-05
  %v7186 = vadd.f32 %v7182, 1e-05
  %v7187 = vrsqrt.pop %v7183
  %v7188 = vrsqrt.pop %v7184
  %v7189 = vrsqrt.pop %v7185
  %v7190 = vrsqrt.pop %v7186
  %v7191 = vmul.f32 %v7159, %v7187
  %v7192 = vmul.f32 %v7160, %v7188
  %v7193 = vmul.f32 %v7161, %v7189
  %v7194 = vmul.f32 %v7162, %v7190
  %v7195 = vlaneseq
  %v7196 = vshrl.u32 %v7195, 7
  %v7197 = vsub.s32 0, %v7196
  %v7198 = vrot.slane %v7141, %v7197
  %v7199 = vmul.f32 %v7191, %v7198
  %v7200 = vmul.f32 %v7192, %v7198
  %v7201 = vmul.f32 %v7193, %v7198
  %v7202 = vmul.f32 %v7194, %v7198
  %v7203 = vlaneseq
  %v7204 = vshrl.u32 %v7203, 7
  %v7205 = vsub.s32 0, %v7204
  %v7206 = vrot.slane %v7142, %v7205
  %v7207 = vadd.f32 %v7199, %v7206
  %v7208 = vadd.f32 %v7200, %v7206
  %v7209 = vadd.f32 %v7201, %v7206
  %v7210 = vadd.f32 %v7202, %v7206
  %s7211 = scalar_lea.vmem %s3, 80
  %v7212 = vld [vmem:[%s7211] sm:$0xf]
  %v7213 = vld [vmem:[%s7211 + $0x4] sm:$0xf]
  %v7214 = vld [vmem:[%s7211 + $0x8] sm:$0xf]
  %v7215 = vld [vmem:[%s7211 + $0xc] sm:$0xf]
  %v7216 = vld [vmem:[%s9 + $0x24] sm:$0x1]
  %s7217 = scalar_lea.vmem %s4, 16
  %v7218 = vld [vmem:[%s7217] sm:$0xf]
  %v7219 = vld [vmem:[%s7217 + $0x4] sm:$0xf]
  %v7220 = vld [vmem:[%s7217 + $0x8] sm:$0xf]
  %v7221 = vld [vmem:[%s7217 + $0xc] sm:$0xf]
  %v7222 = vld [vmem:[%s9 + $0x25] sm:$0x1]
  %s7223 = scalar_lea.vmem %s3, 112
  %v7224 = vld [vmem:[%s7223] sm:$0xf]
  %v7225 = vld [vmem:[%s7223 + $0x4] sm:$0xf]
  %v7226 = vld [vmem:[%s7223 + $0x8] sm:$0xf]
  %v7227 = vld [vmem:[%s7223 + $0xc] sm:$0xf]
  %v7228 = vld [vmem:[%s9 + $0x26] sm:$0x1]
  %v7229 = vpack.c.bf16 %v7208, %v7207
  %v7230 = vpack.c.bf16 %v7210, %v7209
  %v7235 = vunpack.c.l.b16 %v7212
  %v7236 = vunpack.c.l.b16 %v7213
  %v7237 = vunpack.c.l.b16 %v7214
  %v7238 = vunpack.c.l.b16 %v7215
  %v7239 = vpack.c.b16 %v7236, %v7235
  %v7240 = vpack.c.b16 %v7238, %v7237
  %v7244 = vsel %vm296, %v7229, 0
  %v7247 = vsel %vm296, %v7230, 0
  %7249 = vmatprep.subr.bf16.mxu0 0
  %7250 = vmatpush1.bf16.msra.mxu0 0
  %7251 = vmatprep.subr.bf16.mxu0 0
  %7252 = vmatpush1.bf16.msra.mxu0 0
  %7253 = vmatprep.subr.bf16.mxu0 0
  %7254 = vmatpush1.bf16.msra.mxu0 0
  %7255 = vmatprep.subr.bf16.mxu0 0
  %7256 = vmatpush1.bf16.msra.mxu0 0
  %7257 = vmatprep.subr.bf16.mxu0 0
  %7258 = vmatpush1.bf16.msra.mxu0 0
  %7259 = vmatprep.subr.bf16.mxu0 0
  %7260 = vmatpush1.bf16.msra.mxu0 0
  %7261 = vmatprep.subr.bf16.mxu0 0
  %7262 = vmatpush1.bf16.msra.mxu0 %v7240
  %7263 = vmatprep.subr.bf16.mxu0 0
  %7264 = vmatpush1.bf16.msra.mxu0 %v7239
  %7265 = vmatprep.subr.bf16.mxu0 0
  %7266 = vmatpush2.bf16.msra.mxu0 0
  %7267 = vmatprep.subr.bf16.mxu0 0
  %7268 = vmatpush2.bf16.msra.mxu0 0
  %7269 = vmatprep.subr.bf16.mxu0 0
  %7270 = vmatpush2.bf16.msra.mxu0 0
  %7271 = vmatprep.subr.bf16.mxu0 0
  %7272 = vmatpush2.bf16.msra.mxu0 0
  %7273 = vmatprep.subr.bf16.mxu0 0
  %7274 = vmatpush2.bf16.msra.mxu0 0
  %7275 = vmatprep.subr.bf16.mxu0 0
  %7276 = vmatpush2.bf16.msra.mxu0 0
  %7277 = vmatprep.subr.bf16.mxu0 0
  %7278 = vmatpush2.bf16.msra.mxu0 0
  %7279 = vmatprep.subr.bf16.mxu0 0
  %7280 = vmatpush2.bf16.msra.mxu0 0
  %7281 = vmatprep.mubr.bf16.mxu0 0
  %7282 = vmatmul.mubr.bf16.gmra.mxu0 %v7244
  %v7283 = vpop.f32.mrf.mxu0
  %v7284 = vadd.f32 0.0, %v7283
  %v7285 = vpop.f32.mrf.mxu0
  %v7286 = vpop.f32.mrf.mxu0
  %v7287 = vadd.f32 0.0, %v7286
  %v7288 = vpop.f32.mrf.mxu0
  %7289 = vmatprep.mubr.bf16.mxu0 0
  %7290 = vmatmul.mubr.bf16.gmra.mxu0 %v7247
  %v7291 = vpop.f32.mrf.mxu0
  %v7292 = vadd.f32 0.0, %v7291
  %v7293 = vpop.f32.mrf.mxu0
  %v7294 = vpop.f32.mrf.mxu0
  %v7295 = vadd.f32 0.0, %v7294
  %v7296 = vpop.f32.mrf.mxu0
  %7297 = vdwg.mxu0
  %v7298 = vlaneseq
  %v7299 = vshrl.u32 %v7298, 7
  %v7300 = vsub.s32 0, %v7299
  %v7301 = vrot.slane %v7216, %v7300
  %v7302 = vadd.f32 %v7284, %v7301
  %v7303 = vadd.f32 %v7287, %v7301
  %v7304 = vadd.f32 %v7292, %v7301
  %v7305 = vadd.f32 %v7295, %v7301
  %v7310 = vunpack.c.l.b16 %v7218
  %v7311 = vunpack.c.l.b16 %v7219
  %v7312 = vunpack.c.l.b16 %v7220
  %v7313 = vunpack.c.l.b16 %v7221
  %v7314 = vpack.c.b16 %v7311, %v7310
  %v7315 = vpack.c.b16 %v7313, %v7312
  %7318 = vmatprep.subr.bf16.mxu0 0
  %7319 = vmatpush1.bf16.msra.mxu0 0
  %7320 = vmatprep.subr.bf16.mxu0 0
  %7321 = vmatpush1.bf16.msra.mxu0 0
  %7322 = vmatprep.subr.bf16.mxu0 0
  %7323 = vmatpush1.bf16.msra.mxu0 0
  %7324 = vmatprep.subr.bf16.mxu0 0
  %7325 = vmatpush1.bf16.msra.mxu0 0
  %7326 = vmatprep.subr.bf16.mxu0 0
  %7327 = vmatpush1.bf16.msra.mxu0 0
  %7328 = vmatprep.subr.bf16.mxu0 0
  %7329 = vmatpush1.bf16.msra.mxu0 0
  %7330 = vmatprep.subr.bf16.mxu0 0
  %7331 = vmatpush1.bf16.msra.mxu0 %v7315
  %7332 = vmatprep.subr.bf16.mxu0 0
  %7333 = vmatpush1.bf16.msra.mxu0 %v7314
  %7334 = vmatprep.subr.bf16.mxu0 0
  %7335 = vmatpush2.bf16.msra.mxu0 0
  %7336 = vmatprep.subr.bf16.mxu0 0
  %7337 = vmatpush2.bf16.msra.mxu0 0
  %7338 = vmatprep.subr.bf16.mxu0 0
  %7339 = vmatpush2.bf16.msra.mxu0 0
  %7340 = vmatprep.subr.bf16.mxu0 0
  %7341 = vmatpush2.bf16.msra.mxu0 0
  %7342 = vmatprep.subr.bf16.mxu0 0
  %7343 = vmatpush2.bf16.msra.mxu0 0
  %7344 = vmatprep.subr.bf16.mxu0 0
  %7345 = vmatpush2.bf16.msra.mxu0 0
  %7346 = vmatprep.subr.bf16.mxu0 0
  %7347 = vmatpush2.bf16.msra.mxu0 0
  %7348 = vmatprep.subr.bf16.mxu0 0
  %7349 = vmatpush2.bf16.msra.mxu0 0
  %7350 = vmatprep.mubr.bf16.mxu0 0
  %7351 = vmatmul.mubr.bf16.gmra.mxu0 %v4392
  %v7352 = vpop.f32.mrf.mxu0
  %v7353 = vadd.f32 0.0, %v7352
  %v7354 = vpop.f32.mrf.mxu0
  %v7355 = vpop.f32.mrf.mxu0
  %v7356 = vadd.f32 0.0, %v7355
  %v7357 = vpop.f32.mrf.mxu0
  %7358 = vdwg.mxu0
  %v7359 = vlaneseq
  %v7360 = vshrl.u32 %v7359, 7
  %v7361 = vsub.s32 0, %v7360
  %v7362 = vrot.slane %v7222, %v7361
  %v7363 = vadd.f32 %v7353, %v7362
  %v7364 = vadd.f32 %v7356, %v7362
  %v7365 = vpack.c.bf16 %v7303, %v7302
  %v7366 = vpack.c.bf16 %v7305, %v7304
  %v7367 = vpack.c.bf16 %v7363, %v7363
  %v7368 = vpack.c.bf16 %v7364, %v7364
  %v7370 = vsel %vm352, %v7365, 0
  %v7373 = vsel %vm352, %v7367, 0
  %7375 = vmatprep.subr.bf16.mxu0 0
  %7376 = vmatpush1.bf16.xpose.msra.mxu0 0
  %7377 = vmatprep.subr.bf16.mxu0 0
  %7378 = vmatpush1.bf16.xpose.msra.mxu0 0
  %7379 = vmatprep.subr.bf16.mxu0 0
  %7380 = vmatpush1.bf16.xpose.msra.mxu0 0
  %7381 = vmatprep.subr.bf16.mxu0 0
  %7382 = vmatpush1.bf16.xpose.msra.mxu0 0
  %7383 = vmatprep.subr.bf16.mxu0 0
  %7384 = vmatpush1.bf16.xpose.msra.mxu0 0
  %7385 = vmatprep.subr.bf16.mxu0 0
  %7386 = vmatpush1.bf16.xpose.msra.mxu0 0
  %7387 = vmatprep.subr.bf16.mxu0 0
  %7388 = vmatpush1.bf16.xpose.msra.mxu0 0
  %7389 = vmatprep.subr.bf16.mxu0 0
  %7390 = vmatpush1.bf16.xpose.msra.mxu0 %v7373
  %7391 = vmatprep.subr.bf16.mxu0 0
  %7392 = vmatpush2.bf16.xpose.msra.mxu0 0
  %7393 = vmatprep.subr.bf16.mxu0 0
  %7394 = vmatpush2.bf16.xpose.msra.mxu0 0
  %7395 = vmatprep.subr.bf16.mxu0 0
  %7396 = vmatpush2.bf16.xpose.msra.mxu0 0
  %7397 = vmatprep.subr.bf16.mxu0 0
  %7398 = vmatpush2.bf16.xpose.msra.mxu0 0
  %7399 = vmatprep.subr.bf16.mxu0 0
  %7400 = vmatpush2.bf16.xpose.msra.mxu0 0
  %7401 = vmatprep.subr.bf16.mxu0 0
  %7402 = vmatpush2.bf16.xpose.msra.mxu0 0
  %7403 = vmatprep.subr.bf16.mxu0 0
  %7404 = vmatpush2.bf16.xpose.msra.mxu0 0
  %7405 = vmatprep.subr.bf16.mxu0 0
  %7406 = vmatpush2.bf16.xpose.msra.mxu0 0
  %7407 = vmatprep.mubr.bf16.mxu0 0
  %7408 = vmatmul.mubr.bf16.gmra.mxu0 %v7370
  %v7409 = vpop.f32.mrf.mxu0
  %v7410 = vadd.f32 0.0, %v7409
  %v7411 = vpop.f32.mrf.mxu0
  %v7412 = vpop.f32.mrf.mxu0
  %v7413 = vadd.f32 0.0, %v7412
  %v7414 = vpop.f32.mrf.mxu0
  %7415 = vdwg.mxu0
  %v7417 = vsel %vm352, %v7366, 0
  %v7420 = vsel %vm352, %v7368, 0
  %7422 = vmatprep.subr.bf16.mxu0 0
  %7423 = vmatpush1.bf16.xpose.msra.mxu0 0
  %7424 = vmatprep.subr.bf16.mxu0 0
  %7425 = vmatpush1.bf16.xpose.msra.mxu0 0
  %7426 = vmatprep.subr.bf16.mxu0 0
  %7427 = vmatpush1.bf16.xpose.msra.mxu0 0
  %7428 = vmatprep.subr.bf16.mxu0 0
  %7429 = vmatpush1.bf16.xpose.msra.mxu0 0
  %7430 = vmatprep.subr.bf16.mxu0 0
  %7431 = vmatpush1.bf16.xpose.msra.mxu0 0
  %7432 = vmatprep.subr.bf16.mxu0 0
  %7433 = vmatpush1.bf16.xpose.msra.mxu0 0
  %7434 = vmatprep.subr.bf16.mxu0 0
  %7435 = vmatpush1.bf16.xpose.msra.mxu0 0
  %7436 = vmatprep.subr.bf16.mxu0 0
  %7437 = vmatpush1.bf16.xpose.msra.mxu0 %v7420
  %7438 = vmatprep.subr.bf16.mxu0 0
  %7439 = vmatpush2.bf16.xpose.msra.mxu0 0
  %7440 = vmatprep.subr.bf16.mxu0 0
  %7441 = vmatpush2.bf16.xpose.msra.mxu0 0
  %7442 = vmatprep.subr.bf16.mxu0 0
  %7443 = vmatpush2.bf16.xpose.msra.mxu0 0
  %7444 = vmatprep.subr.bf16.mxu0 0
  %7445 = vmatpush2.bf16.xpose.msra.mxu0 0
  %7446 = vmatprep.subr.bf16.mxu0 0
  %7447 = vmatpush2.bf16.xpose.msra.mxu0 0
  %7448 = vmatprep.subr.bf16.mxu0 0
  %7449 = vmatpush2.bf16.xpose.msra.mxu0 0
  %7450 = vmatprep.subr.bf16.mxu0 0
  %7451 = vmatpush2.bf16.xpose.msra.mxu0 0
  %7452 = vmatprep.subr.bf16.mxu0 0
  %7453 = vmatpush2.bf16.xpose.msra.mxu0 0
  %7454 = vmatprep.mubr.bf16.mxu0 0
  %7455 = vmatmul.mubr.bf16.gmra.mxu0 %v7417
  %v7456 = vpop.f32.mrf.mxu0
  %v7457 = vadd.f32 0.0, %v7456
  %v7458 = vpop.f32.mrf.mxu0
  %v7459 = vpop.f32.mrf.mxu0
  %v7460 = vadd.f32 0.0, %v7459
  %v7461 = vpop.f32.mrf.mxu0
  %7462 = vdwg.mxu0
  %v7463 = vmul.f32 %v7410, 0.35355338
  %v7464 = vmul.f32 %v7413, 0.35355338
  %v7465 = vmul.f32 %v7457, 0.35355338
  %v7466 = vmul.f32 %v7460, 0.35355338
  %v7467 = vsel %vm352, %v7463, -inf
  %7468 = vmax.xlane.f32.xlu0 %v7467
  %v7469 = vpop.xlane.xlu0 %7468
  %v7470 = vsel %vm352, %v7464, -inf
  %7471 = vmax.xlane.f32.xlu0 %v7470
  %v7472 = vpop.xlane.xlu0 %7471
  %v7473 = vsel %vm352, %v7465, -inf
  %7474 = vmax.xlane.f32.xlu0 %v7473
  %v7475 = vpop.xlane.xlu0 %7474
  %v7476 = vsel %vm352, %v7466, -inf
  %7477 = vmax.xlane.f32.xlu0 %v7476
  %v7478 = vpop.xlane.xlu0 %7477
  %v7479 = vsub.f32 %v7463, %v7469
  %v7480 = vsub.f32 %v7464, %v7472
  %v7481 = vsub.f32 %v7465, %v7475
  %v7482 = vsub.f32 %v7466, %v7478
  %v7483 = vmul.f32 %v7479, 1.442695
  %v7484 = vpow.pop %v7483
  %v7485 = vmul.f32 %v7480, 1.442695
  %v7486 = vpow.pop %v7485
  %v7487 = vmul.f32 %v7481, 1.442695
  %v7488 = vpow.pop %v7487
  %v7489 = vmul.f32 %v7482, 1.442695
  %v7490 = vpow.pop %v7489
  %v7491 = vsel %vm352, %v7484, 0.0
  %7492 = vadd.xlane.f32.xlu0 %v7491
  %v7493 = vpop.xlane.xlu0 %7492
  %v7494 = vsel %vm352, %v7486, 0.0
  %7495 = vadd.xlane.f32.xlu0 %v7494
  %v7496 = vpop.xlane.xlu0 %7495
  %v7497 = vsel %vm352, %v7488, 0.0
  %7498 = vadd.xlane.f32.xlu0 %v7497
  %v7499 = vpop.xlane.xlu0 %7498
  %v7500 = vsel %vm352, %v7490, 0.0
  %7501 = vadd.xlane.f32.xlu0 %v7500
  %v7502 = vpop.xlane.xlu0 %7501
  %v7503 = vrcp.pop %v7493
  %v7504 = vrcp.pop %v7496
  %v7505 = vrcp.pop %v7499
  %v7506 = vrcp.pop %v7502
  %v7507 = vmul.f32 %v7484, %v7503
  %v7508 = vmul.f32 %v7486, %v7504
  %v7509 = vmul.f32 %v7488, %v7505
  %v7510 = vmul.f32 %v7490, %v7506
  %v7511 = vpack.c.bf16 %v7508, %v7507
  %v7512 = vpack.c.bf16 %v7510, %v7509
  %7514 = vrot.lane.b32.xlu0 %v7367, 96
  %v7515 = vpop.permute.xlu0 %7514
  %v7517 = vsel %vm352, %v7511, 0
  %v7520 = vsel %vm479, %v7515, 0
  %7522 = vmatprep.subr.bf16.mxu0 0
  %7523 = vmatpush1.bf16.msra.mxu0 0
  %7524 = vmatprep.subr.bf16.mxu0 0
  %7525 = vmatpush1.bf16.msra.mxu0 0
  %7526 = vmatprep.subr.bf16.mxu0 0
  %7527 = vmatpush1.bf16.msra.mxu0 0
  %7528 = vmatprep.subr.bf16.mxu0 0
  %7529 = vmatpush1.bf16.msra.mxu0 0
  %7530 = vmatprep.subr.bf16.mxu0 0
  %7531 = vmatpush1.bf16.msra.mxu0 0
  %7532 = vmatprep.subr.bf16.mxu0 0
  %7533 = vmatpush1.bf16.msra.mxu0 0
  %7534 = vmatprep.subr.bf16.mxu0 0
  %7535 = vmatpush1.bf16.msra.mxu0 0
  %7536 = vmatprep.subr.bf16.mxu0 0
  %7537 = vmatpush1.bf16.msra.mxu0 %v7520
  %7538 = vmatprep.subr.bf16.mxu0 0
  %7539 = vmatpush2.bf16.msra.mxu0 0
  %7540 = vmatprep.subr.bf16.mxu0 0
  %7541 = vmatpush2.bf16.msra.mxu0 0
  %7542 = vmatprep.subr.bf16.mxu0 0
  %7543 = vmatpush2.bf16.msra.mxu0 0
  %7544 = vmatprep.subr.bf16.mxu0 0
  %7545 = vmatpush2.bf16.msra.mxu0 0
  %7546 = vmatprep.subr.bf16.mxu0 0
  %7547 = vmatpush2.bf16.msra.mxu0 0
  %7548 = vmatprep.subr.bf16.mxu0 0
  %7549 = vmatpush2.bf16.msra.mxu0 0
  %7550 = vmatprep.subr.bf16.mxu0 0
  %7551 = vmatpush2.bf16.msra.mxu0 0
  %7552 = vmatprep.subr.bf16.mxu0 0
  %7553 = vmatpush2.bf16.msra.mxu0 0
  %7554 = vmatprep.mubr.bf16.mxu0 0
  %7555 = vmatmul.mubr.bf16.gmra.mxu0 %v7517
  %v7556 = vpop.f32.mrf.mxu0
  %v7557 = vadd.f32 0.0, %v7556
  %v7558 = vpop.f32.mrf.mxu0
  %v7559 = vpop.f32.mrf.mxu0
  %v7560 = vadd.f32 0.0, %v7559
  %v7561 = vpop.f32.mrf.mxu0
  %7562 = vdwg.mxu0
  %7564 = vrot.lane.b32.xlu0 %v7368, 96
  %v7565 = vpop.permute.xlu0 %7564
  %v7567 = vsel %vm352, %v7512, 0
  %v7570 = vsel %vm479, %v7565, 0
  %7572 = vmatprep.subr.bf16.mxu0 0
  %7573 = vmatpush1.bf16.msra.mxu0 0
  %7574 = vmatprep.subr.bf16.mxu0 0
  %7575 = vmatpush1.bf16.msra.mxu0 0
  %7576 = vmatprep.subr.bf16.mxu0 0
  %7577 = vmatpush1.bf16.msra.mxu0 0
  %7578 = vmatprep.subr.bf16.mxu0 0
  %7579 = vmatpush1.bf16.msra.mxu0 0
  %7580 = vmatprep.subr.bf16.mxu0 0
  %7581 = vmatpush1.bf16.msra.mxu0 0
  %7582 = vmatprep.subr.bf16.mxu0 0
  %7583 = vmatpush1.bf16.msra.mxu0 0
  %7584 = vmatprep.subr.bf16.mxu0 0
  %7585 = vmatpush1.bf16.msra.mxu0 0
  %7586 = vmatprep.subr.bf16.mxu0 0
  %7587 = vmatpush1.bf16.msra.mxu0 %v7570
  %7588 = vmatprep.subr.bf16.mxu0 0
  %7589 = vmatpush2.bf16.msra.mxu0 0
  %7590 = vmatprep.subr.bf16.mxu0 0
  %7591 = vmatpush2.bf16.msra.mxu0 0
  %7592 = vmatprep.subr.bf16.mxu0 0
  %7593 = vmatpush2.bf16.msra.mxu0 0
  %7594 = vmatprep.subr.bf16.mxu0 0
  %7595 = vmatpush2.bf16.msra.mxu0 0
  %7596 = vmatprep.subr.bf16.mxu0 0
  %7597 = vmatpush2.bf16.msra.mxu0 0
  %7598 = vmatprep.subr.bf16.mxu0 0
  %7599 = vmatpush2.bf16.msra.mxu0 0
  %7600 = vmatprep.subr.bf16.mxu0 0
  %7601 = vmatpush2.bf16.msra.mxu0 0
  %7602 = vmatprep.subr.bf16.mxu0 0
  %7603 = vmatpush2.bf16.msra.mxu0 0
  %7604 = vmatprep.mubr.bf16.mxu0 0
  %7605 = vmatmul.mubr.bf16.gmra.mxu0 %v7567
  %v7606 = vpop.f32.mrf.mxu0
  %v7607 = vadd.f32 0.0, %v7606
  %v7608 = vpop.f32.mrf.mxu0
  %v7609 = vpop.f32.mrf.mxu0
  %v7610 = vadd.f32 0.0, %v7609
  %v7611 = vpop.f32.mrf.mxu0
  %7612 = vdwg.mxu0
  %7613 = vst.msk [vmem:[#allocation2] sm:$0xff] %vm352, %v7557
  %7614 = vst.msk [vmem:[#allocation2 + $0x8] sm:$0xff] %vm352, %v7560
  %7615 = vst.msk [vmem:[#allocation2 + $0x10] sm:$0xff] %vm352, %v7607
  %7616 = vst.msk [vmem:[#allocation2 + $0x18] sm:$0xff] %vm352, %v7610
  %7618 = vrot.lane.b32.xlu0 %v7365, 120
  %v7619 = vpop.permute.xlu0 %7618
  %7620 = vrot.lane.b32.xlu0 %v7367, 120
  %v7621 = vpop.permute.xlu0 %7620
  %v7623 = vsel %vm352, %v7619, 0
  %v7626 = vsel %vm352, %v7621, 0
  %7628 = vmatprep.subr.bf16.mxu0 0
  %7629 = vmatpush1.bf16.xpose.msra.mxu0 0
  %7630 = vmatprep.subr.bf16.mxu0 0
  %7631 = vmatpush1.bf16.xpose.msra.mxu0 0
  %7632 = vmatprep.subr.bf16.mxu0 0
  %7633 = vmatpush1.bf16.xpose.msra.mxu0 0
  %7634 = vmatprep.subr.bf16.mxu0 0
  %7635 = vmatpush1.bf16.xpose.msra.mxu0 0
  %7636 = vmatprep.subr.bf16.mxu0 0
  %7637 = vmatpush1.bf16.xpose.msra.mxu0 0
  %7638 = vmatprep.subr.bf16.mxu0 0
  %7639 = vmatpush1.bf16.xpose.msra.mxu0 0
  %7640 = vmatprep.subr.bf16.mxu0 0
  %7641 = vmatpush1.bf16.xpose.msra.mxu0 0
  %7642 = vmatprep.subr.bf16.mxu0 0
  %7643 = vmatpush1.bf16.xpose.msra.mxu0 %v7626
  %7644 = vmatprep.subr.bf16.mxu0 0
  %7645 = vmatpush2.bf16.xpose.msra.mxu0 0
  %7646 = vmatprep.subr.bf16.mxu0 0
  %7647 = vmatpush2.bf16.xpose.msra.mxu0 0
  %7648 = vmatprep.subr.bf16.mxu0 0
  %7649 = vmatpush2.bf16.xpose.msra.mxu0 0
  %7650 = vmatprep.subr.bf16.mxu0 0
  %7651 = vmatpush2.bf16.xpose.msra.mxu0 0
  %7652 = vmatprep.subr.bf16.mxu0 0
  %7653 = vmatpush2.bf16.xpose.msra.mxu0 0
  %7654 = vmatprep.subr.bf16.mxu0 0
  %7655 = vmatpush2.bf16.xpose.msra.mxu0 0
  %7656 = vmatprep.subr.bf16.mxu0 0
  %7657 = vmatpush2.bf16.xpose.msra.mxu0 0
  %7658 = vmatprep.subr.bf16.mxu0 0
  %7659 = vmatpush2.bf16.xpose.msra.mxu0 0
  %7660 = vmatprep.mubr.bf16.mxu0 0
  %7661 = vmatmul.mubr.bf16.gmra.mxu0 %v7623
  %v7662 = vpop.f32.mrf.mxu0
  %v7663 = vadd.f32 0.0, %v7662
  %v7664 = vpop.f32.mrf.mxu0
  %v7665 = vpop.f32.mrf.mxu0
  %v7666 = vadd.f32 0.0, %v7665
  %v7667 = vpop.f32.mrf.mxu0
  %7668 = vdwg.mxu0
  %7670 = vrot.lane.b32.xlu0 %v7366, 120
  %v7671 = vpop.permute.xlu0 %7670
  %7672 = vrot.lane.b32.xlu0 %v7368, 120
  %v7673 = vpop.permute.xlu0 %7672
  %v7675 = vsel %vm352, %v7671, 0
  %v7678 = vsel %vm352, %v7673, 0
  %7680 = vmatprep.subr.bf16.mxu0 0
  %7681 = vmatpush1.bf16.xpose.msra.mxu0 0
  %7682 = vmatprep.subr.bf16.mxu0 0
  %7683 = vmatpush1.bf16.xpose.msra.mxu0 0
  %7684 = vmatprep.subr.bf16.mxu0 0
  %7685 = vmatpush1.bf16.xpose.msra.mxu0 0
  %7686 = vmatprep.subr.bf16.mxu0 0
  %7687 = vmatpush1.bf16.xpose.msra.mxu0 0
  %7688 = vmatprep.subr.bf16.mxu0 0
  %7689 = vmatpush1.bf16.xpose.msra.mxu0 0
  %7690 = vmatprep.subr.bf16.mxu0 0
  %7691 = vmatpush1.bf16.xpose.msra.mxu0 0
  %7692 = vmatprep.subr.bf16.mxu0 0
  %7693 = vmatpush1.bf16.xpose.msra.mxu0 0
  %7694 = vmatprep.subr.bf16.mxu0 0
  %7695 = vmatpush1.bf16.xpose.msra.mxu0 %v7678
  %7696 = vmatprep.subr.bf16.mxu0 0
  %7697 = vmatpush2.bf16.xpose.msra.mxu0 0
  %7698 = vmatprep.subr.bf16.mxu0 0
  %7699 = vmatpush2.bf16.xpose.msra.mxu0 0
  %7700 = vmatprep.subr.bf16.mxu0 0
  %7701 = vmatpush2.bf16.xpose.msra.mxu0 0
  %7702 = vmatprep.subr.bf16.mxu0 0
  %7703 = vmatpush2.bf16.xpose.msra.mxu0 0
  %7704 = vmatprep.subr.bf16.mxu0 0
  %7705 = vmatpush2.bf16.xpose.msra.mxu0 0
  %7706 = vmatprep.subr.bf16.mxu0 0
  %7707 = vmatpush2.bf16.xpose.msra.mxu0 0
  %7708 = vmatprep.subr.bf16.mxu0 0
  %7709 = vmatpush2.bf16.xpose.msra.mxu0 0
  %7710 = vmatprep.subr.bf16.mxu0 0
  %7711 = vmatpush2.bf16.xpose.msra.mxu0 0
  %7712 = vmatprep.mubr.bf16.mxu0 0
  %7713 = vmatmul.mubr.bf16.gmra.mxu0 %v7675
  %v7714 = vpop.f32.mrf.mxu0
  %v7715 = vadd.f32 0.0, %v7714
  %v7716 = vpop.f32.mrf.mxu0
  %v7717 = vpop.f32.mrf.mxu0
  %v7718 = vadd.f32 0.0, %v7717
  %v7719 = vpop.f32.mrf.mxu0
  %7720 = vdwg.mxu0
  %v7721 = vmul.f32 %v7663, 0.35355338
  %v7722 = vmul.f32 %v7666, 0.35355338
  %v7723 = vmul.f32 %v7715, 0.35355338
  %v7724 = vmul.f32 %v7718, 0.35355338
  %v7725 = vsel %vm352, %v7721, -inf
  %7726 = vmax.xlane.f32.xlu0 %v7725
  %v7727 = vpop.xlane.xlu0 %7726
  %v7728 = vsel %vm352, %v7722, -inf
  %7729 = vmax.xlane.f32.xlu0 %v7728
  %v7730 = vpop.xlane.xlu0 %7729
  %v7731 = vsel %vm352, %v7723, -inf
  %7732 = vmax.xlane.f32.xlu0 %v7731
  %v7733 = vpop.xlane.xlu0 %7732
  %v7734 = vsel %vm352, %v7724, -inf
  %7735 = vmax.xlane.f32.xlu0 %v7734
  %v7736 = vpop.xlane.xlu0 %7735
  %v7737 = vsub.f32 %v7721, %v7727
  %v7738 = vsub.f32 %v7722, %v7730
  %v7739 = vsub.f32 %v7723, %v7733
  %v7740 = vsub.f32 %v7724, %v7736
  %v7741 = vmul.f32 %v7737, 1.442695
  %v7742 = vpow.pop %v7741
  %v7743 = vmul.f32 %v7738, 1.442695
  %v7744 = vpow.pop %v7743
  %v7745 = vmul.f32 %v7739, 1.442695
  %v7746 = vpow.pop %v7745
  %v7747 = vmul.f32 %v7740, 1.442695
  %v7748 = vpow.pop %v7747
  %v7749 = vsel %vm352, %v7742, 0.0
  %7750 = vadd.xlane.f32.xlu0 %v7749
  %v7751 = vpop.xlane.xlu0 %7750
  %v7752 = vsel %vm352, %v7744, 0.0
  %7753 = vadd.xlane.f32.xlu0 %v7752
  %v7754 = vpop.xlane.xlu0 %7753
  %v7755 = vsel %vm352, %v7746, 0.0
  %7756 = vadd.xlane.f32.xlu0 %v7755
  %v7757 = vpop.xlane.xlu0 %7756
  %v7758 = vsel %vm352, %v7748, 0.0
  %7759 = vadd.xlane.f32.xlu0 %v7758
  %v7760 = vpop.xlane.xlu0 %7759
  %v7761 = vrcp.pop %v7751
  %v7762 = vrcp.pop %v7754
  %v7763 = vrcp.pop %v7757
  %v7764 = vrcp.pop %v7760
  %v7765 = vmul.f32 %v7742, %v7761
  %v7766 = vmul.f32 %v7744, %v7762
  %v7767 = vmul.f32 %v7746, %v7763
  %v7768 = vmul.f32 %v7748, %v7764
  %v7769 = vpack.c.bf16 %v7766, %v7765
  %v7770 = vpack.c.bf16 %v7768, %v7767
  %7771 = vrot.lane.b32.xlu0 %v7367, 88
  %v7772 = vpop.permute.xlu0 %7771
  %v7774 = vsel %vm352, %v7769, 0
  %v7777 = vsel %vm479, %v7772, 0
  %7779 = vmatprep.subr.bf16.mxu0 0
  %7780 = vmatpush1.bf16.msra.mxu0 0
  %7781 = vmatprep.subr.bf16.mxu0 0
  %7782 = vmatpush1.bf16.msra.mxu0 0
  %7783 = vmatprep.subr.bf16.mxu0 0
  %7784 = vmatpush1.bf16.msra.mxu0 0
  %7785 = vmatprep.subr.bf16.mxu0 0
  %7786 = vmatpush1.bf16.msra.mxu0 0
  %7787 = vmatprep.subr.bf16.mxu0 0
  %7788 = vmatpush1.bf16.msra.mxu0 0
  %7789 = vmatprep.subr.bf16.mxu0 0
  %7790 = vmatpush1.bf16.msra.mxu0 0
  %7791 = vmatprep.subr.bf16.mxu0 0
  %7792 = vmatpush1.bf16.msra.mxu0 0
  %7793 = vmatprep.subr.bf16.mxu0 0
  %7794 = vmatpush1.bf16.msra.mxu0 %v7777
  %7795 = vmatprep.subr.bf16.mxu0 0
  %7796 = vmatpush2.bf16.msra.mxu0 0
  %7797 = vmatprep.subr.bf16.mxu0 0
  %7798 = vmatpush2.bf16.msra.mxu0 0
  %7799 = vmatprep.subr.bf16.mxu0 0
  %7800 = vmatpush2.bf16.msra.mxu0 0
  %7801 = vmatprep.subr.bf16.mxu0 0
  %7802 = vmatpush2.bf16.msra.mxu0 0
  %7803 = vmatprep.subr.bf16.mxu0 0
  %7804 = vmatpush2.bf16.msra.mxu0 0
  %7805 = vmatprep.subr.bf16.mxu0 0
  %7806 = vmatpush2.bf16.msra.mxu0 0
  %7807 = vmatprep.subr.bf16.mxu0 0
  %7808 = vmatpush2.bf16.msra.mxu0 0
  %7809 = vmatprep.subr.bf16.mxu0 0
  %7810 = vmatpush2.bf16.msra.mxu0 0
  %7811 = vmatprep.mubr.bf16.mxu0 0
  %7812 = vmatmul.mubr.bf16.gmra.mxu0 %v7774
  %v7813 = vpop.f32.mrf.mxu0
  %v7814 = vadd.f32 0.0, %v7813
  %v7815 = vpop.f32.mrf.mxu0
  %v7816 = vpop.f32.mrf.mxu0
  %v7817 = vadd.f32 0.0, %v7816
  %v7818 = vpop.f32.mrf.mxu0
  %7819 = vdwg.mxu0
  %7820 = vrot.lane.b32.xlu0 %v7368, 88
  %v7821 = vpop.permute.xlu0 %7820
  %v7823 = vsel %vm352, %v7770, 0
  %v7826 = vsel %vm479, %v7821, 0
  %7828 = vmatprep.subr.bf16.mxu0 0
  %7829 = vmatpush1.bf16.msra.mxu0 0
  %7830 = vmatprep.subr.bf16.mxu0 0
  %7831 = vmatpush1.bf16.msra.mxu0 0
  %7832 = vmatprep.subr.bf16.mxu0 0
  %7833 = vmatpush1.bf16.msra.mxu0 0
  %7834 = vmatprep.subr.bf16.mxu0 0
  %7835 = vmatpush1.bf16.msra.mxu0 0
  %7836 = vmatprep.subr.bf16.mxu0 0
  %7837 = vmatpush1.bf16.msra.mxu0 0
  %7838 = vmatprep.subr.bf16.mxu0 0
  %7839 = vmatpush1.bf16.msra.mxu0 0
  %7840 = vmatprep.subr.bf16.mxu0 0
  %7841 = vmatpush1.bf16.msra.mxu0 0
  %7842 = vmatprep.subr.bf16.mxu0 0
  %7843 = vmatpush1.bf16.msra.mxu0 %v7826
  %7844 = vmatprep.subr.bf16.mxu0 0
  %7845 = vmatpush2.bf16.msra.mxu0 0
  %7846 = vmatprep.subr.bf16.mxu0 0
  %7847 = vmatpush2.bf16.msra.mxu0 0
  %7848 = vmatprep.subr.bf16.mxu0 0
  %7849 = vmatpush2.bf16.msra.mxu0 0
  %7850 = vmatprep.subr.bf16.mxu0 0
  %7851 = vmatpush2.bf16.msra.mxu0 0
  %7852 = vmatprep.subr.bf16.mxu0 0
  %7853 = vmatpush2.bf16.msra.mxu0 0
  %7854 = vmatprep.subr.bf16.mxu0 0
  %7855 = vmatpush2.bf16.msra.mxu0 0
  %7856 = vmatprep.subr.bf16.mxu0 0
  %7857 = vmatpush2.bf16.msra.mxu0 0
  %7858 = vmatprep.subr.bf16.mxu0 0
  %7859 = vmatpush2.bf16.msra.mxu0 0
  %7860 = vmatprep.mubr.bf16.mxu0 0
  %7861 = vmatmul.mubr.bf16.gmra.mxu0 %v7823
  %v7862 = vpop.f32.mrf.mxu0
  %v7863 = vadd.f32 0.0, %v7862
  %v7864 = vpop.f32.mrf.mxu0
  %v7865 = vpop.f32.mrf.mxu0
  %v7866 = vadd.f32 0.0, %v7865
  %v7867 = vpop.f32.mrf.mxu0
  %7868 = vdwg.mxu0
  %7873 = vrot.lane.b32.xlu0 %v7814, 8
  %v7874 = vpop.permute.xlu0 %7873
  %7875 = vrot.lane.b32.xlu0 %v7817, 8
  %v7876 = vpop.permute.xlu0 %7875
  %7877 = vrot.lane.b32.xlu0 %v7863, 8
  %v7878 = vpop.permute.xlu0 %7877
  %7879 = vrot.lane.b32.xlu0 %v7866, 8
  %v7880 = vpop.permute.xlu0 %7879
  %7885 = vst.msk [vmem:[#allocation2] sm:$0xff] %vm803, %v7874
  %7886 = vst.msk [vmem:[#allocation2 + $0x8] sm:$0xff] %vm803, %v7876
  %7887 = vst.msk [vmem:[#allocation2 + $0x10] sm:$0xff] %vm803, %v7878
  %7888 = vst.msk [vmem:[#allocation2 + $0x18] sm:$0xff] %vm803, %v7880
  %7889 = vrot.lane.b32.xlu0 %v7365, 112
  %v7890 = vpop.permute.xlu0 %7889
  %7891 = vrot.lane.b32.xlu0 %v7367, 112
  %v7892 = vpop.permute.xlu0 %7891
  %v7894 = vsel %vm352, %v7890, 0
  %v7897 = vsel %vm352, %v7892, 0
  %7899 = vmatprep.subr.bf16.mxu0 0
  %7900 = vmatpush1.bf16.xpose.msra.mxu0 0
  %7901 = vmatprep.subr.bf16.mxu0 0
  %7902 = vmatpush1.bf16.xpose.msra.mxu0 0
  %7903 = vmatprep.subr.bf16.mxu0 0
  %7904 = vmatpush1.bf16.xpose.msra.mxu0 0
  %7905 = vmatprep.subr.bf16.mxu0 0
  %7906 = vmatpush1.bf16.xpose.msra.mxu0 0
  %7907 = vmatprep.subr.bf16.mxu0 0
  %7908 = vmatpush1.bf16.xpose.msra.mxu0 0
  %7909 = vmatprep.subr.bf16.mxu0 0
  %7910 = vmatpush1.bf16.xpose.msra.mxu0 0
  %7911 = vmatprep.subr.bf16.mxu0 0
  %7912 = vmatpush1.bf16.xpose.msra.mxu0 0
  %7913 = vmatprep.subr.bf16.mxu0 0
  %7914 = vmatpush1.bf16.xpose.msra.mxu0 %v7897
  %7915 = vmatprep.subr.bf16.mxu0 0
  %7916 = vmatpush2.bf16.xpose.msra.mxu0 0
  %7917 = vmatprep.subr.bf16.mxu0 0
  %7918 = vmatpush2.bf16.xpose.msra.mxu0 0
  %7919 = vmatprep.subr.bf16.mxu0 0
  %7920 = vmatpush2.bf16.xpose.msra.mxu0 0
  %7921 = vmatprep.subr.bf16.mxu0 0
  %7922 = vmatpush2.bf16.xpose.msra.mxu0 0
  %7923 = vmatprep.subr.bf16.mxu0 0
  %7924 = vmatpush2.bf16.xpose.msra.mxu0 0
  %7925 = vmatprep.subr.bf16.mxu0 0
  %7926 = vmatpush2.bf16.xpose.msra.mxu0 0
  %7927 = vmatprep.subr.bf16.mxu0 0
  %7928 = vmatpush2.bf16.xpose.msra.mxu0 0
  %7929 = vmatprep.subr.bf16.mxu0 0
  %7930 = vmatpush2.bf16.xpose.msra.mxu0 0
  %7931 = vmatprep.mubr.bf16.mxu0 0
  %7932 = vmatmul.mubr.bf16.gmra.mxu0 %v7894
  %v7933 = vpop.f32.mrf.mxu0
  %v7934 = vadd.f32 0.0, %v7933
  %v7935 = vpop.f32.mrf.mxu0
  %v7936 = vpop.f32.mrf.mxu0
  %v7937 = vadd.f32 0.0, %v7936
  %v7938 = vpop.f32.mrf.mxu0
  %7939 = vdwg.mxu0
  %7940 = vrot.lane.b32.xlu0 %v7366, 112
  %v7941 = vpop.permute.xlu0 %7940
  %7942 = vrot.lane.b32.xlu0 %v7368, 112
  %v7943 = vpop.permute.xlu0 %7942
  %v7945 = vsel %vm352, %v7941, 0
  %v7948 = vsel %vm352, %v7943, 0
  %7950 = vmatprep.subr.bf16.mxu0 0
  %7951 = vmatpush1.bf16.xpose.msra.mxu0 0
  %7952 = vmatprep.subr.bf16.mxu0 0
  %7953 = vmatpush1.bf16.xpose.msra.mxu0 0
  %7954 = vmatprep.subr.bf16.mxu0 0
  %7955 = vmatpush1.bf16.xpose.msra.mxu0 0
  %7956 = vmatprep.subr.bf16.mxu0 0
  %7957 = vmatpush1.bf16.xpose.msra.mxu0 0
  %7958 = vmatprep.subr.bf16.mxu0 0
  %7959 = vmatpush1.bf16.xpose.msra.mxu0 0
  %7960 = vmatprep.subr.bf16.mxu0 0
  %7961 = vmatpush1.bf16.xpose.msra.mxu0 0
  %7962 = vmatprep.subr.bf16.mxu0 0
  %7963 = vmatpush1.bf16.xpose.msra.mxu0 0
  %7964 = vmatprep.subr.bf16.mxu0 0
  %7965 = vmatpush1.bf16.xpose.msra.mxu0 %v7948
  %7966 = vmatprep.subr.bf16.mxu0 0
  %7967 = vmatpush2.bf16.xpose.msra.mxu0 0
  %7968 = vmatprep.subr.bf16.mxu0 0
  %7969 = vmatpush2.bf16.xpose.msra.mxu0 0
  %7970 = vmatprep.subr.bf16.mxu0 0
  %7971 = vmatpush2.bf16.xpose.msra.mxu0 0
  %7972 = vmatprep.subr.bf16.mxu0 0
  %7973 = vmatpush2.bf16.xpose.msra.mxu0 0
  %7974 = vmatprep.subr.bf16.mxu0 0
  %7975 = vmatpush2.bf16.xpose.msra.mxu0 0
  %7976 = vmatprep.subr.bf16.mxu0 0
  %7977 = vmatpush2.bf16.xpose.msra.mxu0 0
  %7978 = vmatprep.subr.bf16.mxu0 0
  %7979 = vmatpush2.bf16.xpose.msra.mxu0 0
  %7980 = vmatprep.subr.bf16.mxu0 0
  %7981 = vmatpush2.bf16.xpose.msra.mxu0 0
  %7982 = vmatprep.mubr.bf16.mxu0 0
  %7983 = vmatmul.mubr.bf16.gmra.mxu0 %v7945
  %v7984 = vpop.f32.mrf.mxu0
  %v7985 = vadd.f32 0.0, %v7984
  %v7986 = vpop.f32.mrf.mxu0
  %v7987 = vpop.f32.mrf.mxu0
  %v7988 = vadd.f32 0.0, %v7987
  %v7989 = vpop.f32.mrf.mxu0
  %7990 = vdwg.mxu0
  %v7991 = vmul.f32 %v7934, 0.35355338
  %v7992 = vmul.f32 %v7937, 0.35355338
  %v7993 = vmul.f32 %v7985, 0.35355338
  %v7994 = vmul.f32 %v7988, 0.35355338
  %v7995 = vsel %vm352, %v7991, -inf
  %7996 = vmax.xlane.f32.xlu0 %v7995
  %v7997 = vpop.xlane.xlu0 %7996
  %v7998 = vsel %vm352, %v7992, -inf
  %7999 = vmax.xlane.f32.xlu0 %v7998
  %v8000 = vpop.xlane.xlu0 %7999
  %v8001 = vsel %vm352, %v7993, -inf
  %8002 = vmax.xlane.f32.xlu0 %v8001
  %v8003 = vpop.xlane.xlu0 %8002
  %v8004 = vsel %vm352, %v7994, -inf
  %8005 = vmax.xlane.f32.xlu0 %v8004
  %v8006 = vpop.xlane.xlu0 %8005
  %v8007 = vsub.f32 %v7991, %v7997
  %v8008 = vsub.f32 %v7992, %v8000
  %v8009 = vsub.f32 %v7993, %v8003
  %v8010 = vsub.f32 %v7994, %v8006
  %v8011 = vmul.f32 %v8007, 1.442695
  %v8012 = vpow.pop %v8011
  %v8013 = vmul.f32 %v8008, 1.442695
  %v8014 = vpow.pop %v8013
  %v8015 = vmul.f32 %v8009, 1.442695
  %v8016 = vpow.pop %v8015
  %v8017 = vmul.f32 %v8010, 1.442695
  %v8018 = vpow.pop %v8017
  %v8019 = vsel %vm352, %v8012, 0.0
  %8020 = vadd.xlane.f32.xlu0 %v8019
  %v8021 = vpop.xlane.xlu0 %8020
  %v8022 = vsel %vm352, %v8014, 0.0
  %8023 = vadd.xlane.f32.xlu0 %v8022
  %v8024 = vpop.xlane.xlu0 %8023
  %v8025 = vsel %vm352, %v8016, 0.0
  %8026 = vadd.xlane.f32.xlu0 %v8025
  %v8027 = vpop.xlane.xlu0 %8026
  %v8028 = vsel %vm352, %v8018, 0.0
  %8029 = vadd.xlane.f32.xlu0 %v8028
  %v8030 = vpop.xlane.xlu0 %8029
  %v8031 = vrcp.pop %v8021
  %v8032 = vrcp.pop %v8024
  %v8033 = vrcp.pop %v8027
  %v8034 = vrcp.pop %v8030
  %v8035 = vmul.f32 %v8012, %v8031
  %v8036 = vmul.f32 %v8014, %v8032
  %v8037 = vmul.f32 %v8016, %v8033
  %v8038 = vmul.f32 %v8018, %v8034
  %v8039 = vpack.c.bf16 %v8036, %v8035
  %v8040 = vpack.c.bf16 %v8038, %v8037
  %8041 = vrot.lane.b32.xlu0 %v7367, 80
  %v8042 = vpop.permute.xlu0 %8041
  %v8044 = vsel %vm352, %v8039, 0
  %v8047 = vsel %vm479, %v8042, 0
  %8049 = vmatprep.subr.bf16.mxu0 0
  %8050 = vmatpush1.bf16.msra.mxu0 0
  %8051 = vmatprep.subr.bf16.mxu0 0
  %8052 = vmatpush1.bf16.msra.mxu0 0
  %8053 = vmatprep.subr.bf16.mxu0 0
  %8054 = vmatpush1.bf16.msra.mxu0 0
  %8055 = vmatprep.subr.bf16.mxu0 0
  %8056 = vmatpush1.bf16.msra.mxu0 0
  %8057 = vmatprep.subr.bf16.mxu0 0
  %8058 = vmatpush1.bf16.msra.mxu0 0
  %8059 = vmatprep.subr.bf16.mxu0 0
  %8060 = vmatpush1.bf16.msra.mxu0 0
  %8061 = vmatprep.subr.bf16.mxu0 0
  %8062 = vmatpush1.bf16.msra.mxu0 0
  %8063 = vmatprep.subr.bf16.mxu0 0
  %8064 = vmatpush1.bf16.msra.mxu0 %v8047
  %8065 = vmatprep.subr.bf16.mxu0 0
  %8066 = vmatpush2.bf16.msra.mxu0 0
  %8067 = vmatprep.subr.bf16.mxu0 0
  %8068 = vmatpush2.bf16.msra.mxu0 0
  %8069 = vmatprep.subr.bf16.mxu0 0
  %8070 = vmatpush2.bf16.msra.mxu0 0
  %8071 = vmatprep.subr.bf16.mxu0 0
  %8072 = vmatpush2.bf16.msra.mxu0 0
  %8073 = vmatprep.subr.bf16.mxu0 0
  %8074 = vmatpush2.bf16.msra.mxu0 0
  %8075 = vmatprep.subr.bf16.mxu0 0
  %8076 = vmatpush2.bf16.msra.mxu0 0
  %8077 = vmatprep.subr.bf16.mxu0 0
  %8078 = vmatpush2.bf16.msra.mxu0 0
  %8079 = vmatprep.subr.bf16.mxu0 0
  %8080 = vmatpush2.bf16.msra.mxu0 0
  %8081 = vmatprep.mubr.bf16.mxu0 0
  %8082 = vmatmul.mubr.bf16.gmra.mxu0 %v8044
  %v8083 = vpop.f32.mrf.mxu0
  %v8084 = vadd.f32 0.0, %v8083
  %v8085 = vpop.f32.mrf.mxu0
  %v8086 = vpop.f32.mrf.mxu0
  %v8087 = vadd.f32 0.0, %v8086
  %v8088 = vpop.f32.mrf.mxu0
  %8089 = vdwg.mxu0
  %8090 = vrot.lane.b32.xlu0 %v7368, 80
  %v8091 = vpop.permute.xlu0 %8090
  %v8093 = vsel %vm352, %v8040, 0
  %v8096 = vsel %vm479, %v8091, 0
  %8098 = vmatprep.subr.bf16.mxu0 0
  %8099 = vmatpush1.bf16.msra.mxu0 0
  %8100 = vmatprep.subr.bf16.mxu0 0
  %8101 = vmatpush1.bf16.msra.mxu0 0
  %8102 = vmatprep.subr.bf16.mxu0 0
  %8103 = vmatpush1.bf16.msra.mxu0 0
  %8104 = vmatprep.subr.bf16.mxu0 0
  %8105 = vmatpush1.bf16.msra.mxu0 0
  %8106 = vmatprep.subr.bf16.mxu0 0
  %8107 = vmatpush1.bf16.msra.mxu0 0
  %8108 = vmatprep.subr.bf16.mxu0 0
  %8109 = vmatpush1.bf16.msra.mxu0 0
  %8110 = vmatprep.subr.bf16.mxu0 0
  %8111 = vmatpush1.bf16.msra.mxu0 0
  %8112 = vmatprep.subr.bf16.mxu0 0
  %8113 = vmatpush1.bf16.msra.mxu0 %v8096
  %8114 = vmatprep.subr.bf16.mxu0 0
  %8115 = vmatpush2.bf16.msra.mxu0 0
  %8116 = vmatprep.subr.bf16.mxu0 0
  %8117 = vmatpush2.bf16.msra.mxu0 0
  %8118 = vmatprep.subr.bf16.mxu0 0
  %8119 = vmatpush2.bf16.msra.mxu0 0
  %8120 = vmatprep.subr.bf16.mxu0 0
  %8121 = vmatpush2.bf16.msra.mxu0 0
  %8122 = vmatprep.subr.bf16.mxu0 0
  %8123 = vmatpush2.bf16.msra.mxu0 0
  %8124 = vmatprep.subr.bf16.mxu0 0
  %8125 = vmatpush2.bf16.msra.mxu0 0
  %8126 = vmatprep.subr.bf16.mxu0 0
  %8127 = vmatpush2.bf16.msra.mxu0 0
  %8128 = vmatprep.subr.bf16.mxu0 0
  %8129 = vmatpush2.bf16.msra.mxu0 0
  %8130 = vmatprep.mubr.bf16.mxu0 0
  %8131 = vmatmul.mubr.bf16.gmra.mxu0 %v8093
  %v8132 = vpop.f32.mrf.mxu0
  %v8133 = vadd.f32 0.0, %v8132
  %v8134 = vpop.f32.mrf.mxu0
  %v8135 = vpop.f32.mrf.mxu0
  %v8136 = vadd.f32 0.0, %v8135
  %v8137 = vpop.f32.mrf.mxu0
  %8138 = vdwg.mxu0
  %8143 = vrot.lane.b32.xlu0 %v8084, 16
  %v8144 = vpop.permute.xlu0 %8143
  %8145 = vrot.lane.b32.xlu0 %v8087, 16
  %v8146 = vpop.permute.xlu0 %8145
  %8147 = vrot.lane.b32.xlu0 %v8133, 16
  %v8148 = vpop.permute.xlu0 %8147
  %8149 = vrot.lane.b32.xlu0 %v8136, 16
  %v8150 = vpop.permute.xlu0 %8149
  %8155 = vst.msk [vmem:[#allocation2] sm:$0xff] %vm1036, %v8144
  %8156 = vst.msk [vmem:[#allocation2 + $0x8] sm:$0xff] %vm1036, %v8146
  %8157 = vst.msk [vmem:[#allocation2 + $0x10] sm:$0xff] %vm1036, %v8148
  %8158 = vst.msk [vmem:[#allocation2 + $0x18] sm:$0xff] %vm1036, %v8150
  %8159 = vrot.lane.b32.xlu0 %v7365, 104
  %v8160 = vpop.permute.xlu0 %8159
  %8161 = vrot.lane.b32.xlu0 %v7367, 104
  %v8162 = vpop.permute.xlu0 %8161
  %v8164 = vsel %vm352, %v8160, 0
  %v8167 = vsel %vm352, %v8162, 0
  %8169 = vmatprep.subr.bf16.mxu0 0
  %8170 = vmatpush1.bf16.xpose.msra.mxu0 0
  %8171 = vmatprep.subr.bf16.mxu0 0
  %8172 = vmatpush1.bf16.xpose.msra.mxu0 0
  %8173 = vmatprep.subr.bf16.mxu0 0
  %8174 = vmatpush1.bf16.xpose.msra.mxu0 0
  %8175 = vmatprep.subr.bf16.mxu0 0
  %8176 = vmatpush1.bf16.xpose.msra.mxu0 0
  %8177 = vmatprep.subr.bf16.mxu0 0
  %8178 = vmatpush1.bf16.xpose.msra.mxu0 0
  %8179 = vmatprep.subr.bf16.mxu0 0
  %8180 = vmatpush1.bf16.xpose.msra.mxu0 0
  %8181 = vmatprep.subr.bf16.mxu0 0
  %8182 = vmatpush1.bf16.xpose.msra.mxu0 0
  %8183 = vmatprep.subr.bf16.mxu0 0
  %8184 = vmatpush1.bf16.xpose.msra.mxu0 %v8167
  %8185 = vmatprep.subr.bf16.mxu0 0
  %8186 = vmatpush2.bf16.xpose.msra.mxu0 0
  %8187 = vmatprep.subr.bf16.mxu0 0
  %8188 = vmatpush2.bf16.xpose.msra.mxu0 0
  %8189 = vmatprep.subr.bf16.mxu0 0
  %8190 = vmatpush2.bf16.xpose.msra.mxu0 0
  %8191 = vmatprep.subr.bf16.mxu0 0
  %8192 = vmatpush2.bf16.xpose.msra.mxu0 0
  %8193 = vmatprep.subr.bf16.mxu0 0
  %8194 = vmatpush2.bf16.xpose.msra.mxu0 0
  %8195 = vmatprep.subr.bf16.mxu0 0
  %8196 = vmatpush2.bf16.xpose.msra.mxu0 0
  %8197 = vmatprep.subr.bf16.mxu0 0
  %8198 = vmatpush2.bf16.xpose.msra.mxu0 0
  %8199 = vmatprep.subr.bf16.mxu0 0
  %8200 = vmatpush2.bf16.xpose.msra.mxu0 0
  %8201 = vmatprep.mubr.bf16.mxu0 0
  %8202 = vmatmul.mubr.bf16.gmra.mxu0 %v8164
  %v8203 = vpop.f32.mrf.mxu0
  %v8204 = vadd.f32 0.0, %v8203
  %v8205 = vpop.f32.mrf.mxu0
  %v8206 = vpop.f32.mrf.mxu0
  %v8207 = vadd.f32 0.0, %v8206
  %v8208 = vpop.f32.mrf.mxu0
  %8209 = vdwg.mxu0
  %8210 = vrot.lane.b32.xlu0 %v7366, 104
  %v8211 = vpop.permute.xlu0 %8210
  %8212 = vrot.lane.b32.xlu0 %v7368, 104
  %v8213 = vpop.permute.xlu0 %8212
  %v8215 = vsel %vm352, %v8211, 0
  %v8218 = vsel %vm352, %v8213, 0
  %8220 = vmatprep.subr.bf16.mxu0 0
  %8221 = vmatpush1.bf16.xpose.msra.mxu0 0
  %8222 = vmatprep.subr.bf16.mxu0 0
  %8223 = vmatpush1.bf16.xpose.msra.mxu0 0
  %8224 = vmatprep.subr.bf16.mxu0 0
  %8225 = vmatpush1.bf16.xpose.msra.mxu0 0
  %8226 = vmatprep.subr.bf16.mxu0 0
  %8227 = vmatpush1.bf16.xpose.msra.mxu0 0
  %8228 = vmatprep.subr.bf16.mxu0 0
  %8229 = vmatpush1.bf16.xpose.msra.mxu0 0
  %8230 = vmatprep.subr.bf16.mxu0 0
  %8231 = vmatpush1.bf16.xpose.msra.mxu0 0
  %8232 = vmatprep.subr.bf16.mxu0 0
  %8233 = vmatpush1.bf16.xpose.msra.mxu0 0
  %8234 = vmatprep.subr.bf16.mxu0 0
  %8235 = vmatpush1.bf16.xpose.msra.mxu0 %v8218
  %8236 = vmatprep.subr.bf16.mxu0 0
  %8237 = vmatpush2.bf16.xpose.msra.mxu0 0
  %8238 = vmatprep.subr.bf16.mxu0 0
  %8239 = vmatpush2.bf16.xpose.msra.mxu0 0
  %8240 = vmatprep.subr.bf16.mxu0 0
  %8241 = vmatpush2.bf16.xpose.msra.mxu0 0
  %8242 = vmatprep.subr.bf16.mxu0 0
  %8243 = vmatpush2.bf16.xpose.msra.mxu0 0
  %8244 = vmatprep.subr.bf16.mxu0 0
  %8245 = vmatpush2.bf16.xpose.msra.mxu0 0
  %8246 = vmatprep.subr.bf16.mxu0 0
  %8247 = vmatpush2.bf16.xpose.msra.mxu0 0
  %8248 = vmatprep.subr.bf16.mxu0 0
  %8249 = vmatpush2.bf16.xpose.msra.mxu0 0
  %8250 = vmatprep.subr.bf16.mxu0 0
  %8251 = vmatpush2.bf16.xpose.msra.mxu0 0
  %8252 = vmatprep.mubr.bf16.mxu0 0
  %8253 = vmatmul.mubr.bf16.gmra.mxu0 %v8215
  %v8254 = vpop.f32.mrf.mxu0
  %v8255 = vadd.f32 0.0, %v8254
  %v8256 = vpop.f32.mrf.mxu0
  %v8257 = vpop.f32.mrf.mxu0
  %v8258 = vadd.f32 0.0, %v8257
  %v8259 = vpop.f32.mrf.mxu0
  %8260 = vdwg.mxu0
  %v8261 = vmul.f32 %v8204, 0.35355338
  %v8262 = vmul.f32 %v8207, 0.35355338
  %v8263 = vmul.f32 %v8255, 0.35355338
  %v8264 = vmul.f32 %v8258, 0.35355338
  %v8265 = vsel %vm352, %v8261, -inf
  %8266 = vmax.xlane.f32.xlu0 %v8265
  %v8267 = vpop.xlane.xlu0 %8266
  %v8268 = vsel %vm352, %v8262, -inf
  %8269 = vmax.xlane.f32.xlu0 %v8268
  %v8270 = vpop.xlane.xlu0 %8269
  %v8271 = vsel %vm352, %v8263, -inf
  %8272 = vmax.xlane.f32.xlu0 %v8271
  %v8273 = vpop.xlane.xlu0 %8272
  %v8274 = vsel %vm352, %v8264, -inf
  %8275 = vmax.xlane.f32.xlu0 %v8274
  %v8276 = vpop.xlane.xlu0 %8275
  %v8277 = vsub.f32 %v8261, %v8267
  %v8278 = vsub.f32 %v8262, %v8270
  %v8279 = vsub.f32 %v8263, %v8273
  %v8280 = vsub.f32 %v8264, %v8276
  %v8281 = vmul.f32 %v8277, 1.442695
  %v8282 = vpow.pop %v8281
  %v8283 = vmul.f32 %v8278, 1.442695
  %v8284 = vpow.pop %v8283
  %v8285 = vmul.f32 %v8279, 1.442695
  %v8286 = vpow.pop %v8285
  %v8287 = vmul.f32 %v8280, 1.442695
  %v8288 = vpow.pop %v8287
  %v8289 = vsel %vm352, %v8282, 0.0
  %8290 = vadd.xlane.f32.xlu0 %v8289
  %v8291 = vpop.xlane.xlu0 %8290
  %v8292 = vsel %vm352, %v8284, 0.0
  %8293 = vadd.xlane.f32.xlu0 %v8292
  %v8294 = vpop.xlane.xlu0 %8293
  %v8295 = vsel %vm352, %v8286, 0.0
  %8296 = vadd.xlane.f32.xlu0 %v8295
  %v8297 = vpop.xlane.xlu0 %8296
  %v8298 = vsel %vm352, %v8288, 0.0
  %8299 = vadd.xlane.f32.xlu0 %v8298
  %v8300 = vpop.xlane.xlu0 %8299
  %v8301 = vrcp.pop %v8291
  %v8302 = vrcp.pop %v8294
  %v8303 = vrcp.pop %v8297
  %v8304 = vrcp.pop %v8300
  %v8305 = vmul.f32 %v8282, %v8301
  %v8306 = vmul.f32 %v8284, %v8302
  %v8307 = vmul.f32 %v8286, %v8303
  %v8308 = vmul.f32 %v8288, %v8304
  %v8309 = vpack.c.bf16 %v8306, %v8305
  %v8310 = vpack.c.bf16 %v8308, %v8307
  %8311 = vrot.lane.b32.xlu0 %v7367, 72
  %v8312 = vpop.permute.xlu0 %8311
  %v8314 = vsel %vm352, %v8309, 0
  %v8317 = vsel %vm479, %v8312, 0
  %8319 = vmatprep.subr.bf16.mxu0 0
  %8320 = vmatpush1.bf16.msra.mxu0 0
  %8321 = vmatprep.subr.bf16.mxu0 0
  %8322 = vmatpush1.bf16.msra.mxu0 0
  %8323 = vmatprep.subr.bf16.mxu0 0
  %8324 = vmatpush1.bf16.msra.mxu0 0
  %8325 = vmatprep.subr.bf16.mxu0 0
  %8326 = vmatpush1.bf16.msra.mxu0 0
  %8327 = vmatprep.subr.bf16.mxu0 0
  %8328 = vmatpush1.bf16.msra.mxu0 0
  %8329 = vmatprep.subr.bf16.mxu0 0
  %8330 = vmatpush1.bf16.msra.mxu0 0
  %8331 = vmatprep.subr.bf16.mxu0 0
  %8332 = vmatpush1.bf16.msra.mxu0 0
  %8333 = vmatprep.subr.bf16.mxu0 0
  %8334 = vmatpush1.bf16.msra.mxu0 %v8317
  %8335 = vmatprep.subr.bf16.mxu0 0
  %8336 = vmatpush2.bf16.msra.mxu0 0
  %8337 = vmatprep.subr.bf16.mxu0 0
  %8338 = vmatpush2.bf16.msra.mxu0 0
  %8339 = vmatprep.subr.bf16.mxu0 0
  %8340 = vmatpush2.bf16.msra.mxu0 0
  %8341 = vmatprep.subr.bf16.mxu0 0
  %8342 = vmatpush2.bf16.msra.mxu0 0
  %8343 = vmatprep.subr.bf16.mxu0 0
  %8344 = vmatpush2.bf16.msra.mxu0 0
  %8345 = vmatprep.subr.bf16.mxu0 0
  %8346 = vmatpush2.bf16.msra.mxu0 0
  %8347 = vmatprep.subr.bf16.mxu0 0
  %8348 = vmatpush2.bf16.msra.mxu0 0
  %8349 = vmatprep.subr.bf16.mxu0 0
  %8350 = vmatpush2.bf16.msra.mxu0 0
  %8351 = vmatprep.mubr.bf16.mxu0 0
  %8352 = vmatmul.mubr.bf16.gmra.mxu0 %v8314
  %v8353 = vpop.f32.mrf.mxu0
  %v8354 = vadd.f32 0.0, %v8353
  %v8355 = vpop.f32.mrf.mxu0
  %v8356 = vpop.f32.mrf.mxu0
  %v8357 = vadd.f32 0.0, %v8356
  %v8358 = vpop.f32.mrf.mxu0
  %8359 = vdwg.mxu0
  %8360 = vrot.lane.b32.xlu0 %v7368, 72
  %v8361 = vpop.permute.xlu0 %8360
  %v8363 = vsel %vm352, %v8310, 0
  %v8366 = vsel %vm479, %v8361, 0
  %8368 = vmatprep.subr.bf16.mxu0 0
  %8369 = vmatpush1.bf16.msra.mxu0 0
  %8370 = vmatprep.subr.bf16.mxu0 0
  %8371 = vmatpush1.bf16.msra.mxu0 0
  %8372 = vmatprep.subr.bf16.mxu0 0
  %8373 = vmatpush1.bf16.msra.mxu0 0
  %8374 = vmatprep.subr.bf16.mxu0 0
  %8375 = vmatpush1.bf16.msra.mxu0 0
  %8376 = vmatprep.subr.bf16.mxu0 0
  %8377 = vmatpush1.bf16.msra.mxu0 0
  %8378 = vmatprep.subr.bf16.mxu0 0
  %8379 = vmatpush1.bf16.msra.mxu0 0
  %8380 = vmatprep.subr.bf16.mxu0 0
  %8381 = vmatpush1.bf16.msra.mxu0 0
  %8382 = vmatprep.subr.bf16.mxu0 0
  %8383 = vmatpush1.bf16.msra.mxu0 %v8366
  %8384 = vmatprep.subr.bf16.mxu0 0
  %8385 = vmatpush2.bf16.msra.mxu0 0
  %8386 = vmatprep.subr.bf16.mxu0 0
  %8387 = vmatpush2.bf16.msra.mxu0 0
  %8388 = vmatprep.subr.bf16.mxu0 0
  %8389 = vmatpush2.bf16.msra.mxu0 0
  %8390 = vmatprep.subr.bf16.mxu0 0
  %8391 = vmatpush2.bf16.msra.mxu0 0
  %8392 = vmatprep.subr.bf16.mxu0 0
  %8393 = vmatpush2.bf16.msra.mxu0 0
  %8394 = vmatprep.subr.bf16.mxu0 0
  %8395 = vmatpush2.bf16.msra.mxu0 0
  %8396 = vmatprep.subr.bf16.mxu0 0
  %8397 = vmatpush2.bf16.msra.mxu0 0
  %8398 = vmatprep.subr.bf16.mxu0 0
  %8399 = vmatpush2.bf16.msra.mxu0 0
  %8400 = vmatprep.mubr.bf16.mxu0 0
  %8401 = vmatmul.mubr.bf16.gmra.mxu0 %v8363
  %v8402 = vpop.f32.mrf.mxu0
  %v8403 = vadd.f32 0.0, %v8402
  %v8404 = vpop.f32.mrf.mxu0
  %v8405 = vpop.f32.mrf.mxu0
  %v8406 = vadd.f32 0.0, %v8405
  %v8407 = vpop.f32.mrf.mxu0
  %8408 = vdwg.mxu0
  %8413 = vrot.lane.b32.xlu0 %v8354, 24
  %v8414 = vpop.permute.xlu0 %8413
  %8415 = vrot.lane.b32.xlu0 %v8357, 24
  %v8416 = vpop.permute.xlu0 %8415
  %8417 = vrot.lane.b32.xlu0 %v8403, 24
  %v8418 = vpop.permute.xlu0 %8417
  %8419 = vrot.lane.b32.xlu0 %v8406, 24
  %v8420 = vpop.permute.xlu0 %8419
  %8425 = vst.msk [vmem:[#allocation2] sm:$0xff] %vm1269, %v8414
  %8426 = vst.msk [vmem:[#allocation2 + $0x8] sm:$0xff] %vm1269, %v8416
  %8427 = vst.msk [vmem:[#allocation2 + $0x10] sm:$0xff] %vm1269, %v8418
  %8428 = vst.msk [vmem:[#allocation2 + $0x18] sm:$0xff] %vm1269, %v8420
  %v8429 = vld [vmem:[#allocation2] sm:$0xff]
  %v8430 = vld [vmem:[#allocation2 + $0x8] sm:$0xff]
  %v8431 = vld [vmem:[#allocation2 + $0x10] sm:$0xff]
  %v8432 = vld [vmem:[#allocation2 + $0x18] sm:$0xff]
  %v8433 = vpack.c.bf16 %v8430, %v8429
  %v8434 = vpack.c.bf16 %v8432, %v8431
  %v8439 = vunpack.c.l.b16 %v7224
  %v8440 = vunpack.c.l.b16 %v7225
  %v8441 = vunpack.c.l.b16 %v7226
  %v8442 = vunpack.c.l.b16 %v7227
  %v8443 = vpack.c.b16 %v8440, %v8439
  %v8444 = vpack.c.b16 %v8442, %v8441
  %v8448 = vsel %vm296, %v8433, 0
  %v8451 = vsel %vm296, %v8434, 0
  %8453 = vmatprep.subr.bf16.mxu0 0
  %8454 = vmatpush1.bf16.msra.mxu0 0
  %8455 = vmatprep.subr.bf16.mxu0 0
  %8456 = vmatpush1.bf16.msra.mxu0 0
  %8457 = vmatprep.subr.bf16.mxu0 0
  %8458 = vmatpush1.bf16.msra.mxu0 0
  %8459 = vmatprep.subr.bf16.mxu0 0
  %8460 = vmatpush1.bf16.msra.mxu0 0
  %8461 = vmatprep.subr.bf16.mxu0 0
  %8462 = vmatpush1.bf16.msra.mxu0 0
  %8463 = vmatprep.subr.bf16.mxu0 0
  %8464 = vmatpush1.bf16.msra.mxu0 0
  %8465 = vmatprep.subr.bf16.mxu0 0
  %8466 = vmatpush1.bf16.msra.mxu0 %v8444
  %8467 = vmatprep.subr.bf16.mxu0 0
  %8468 = vmatpush1.bf16.msra.mxu0 %v8443
  %8469 = vmatprep.subr.bf16.mxu0 0
  %8470 = vmatpush2.bf16.msra.mxu0 0
  %8471 = vmatprep.subr.bf16.mxu0 0
  %8472 = vmatpush2.bf16.msra.mxu0 0
  %8473 = vmatprep.subr.bf16.mxu0 0
  %8474 = vmatpush2.bf16.msra.mxu0 0
  %8475 = vmatprep.subr.bf16.mxu0 0
  %8476 = vmatpush2.bf16.msra.mxu0 0
  %8477 = vmatprep.subr.bf16.mxu0 0
  %8478 = vmatpush2.bf16.msra.mxu0 0
  %8479 = vmatprep.subr.bf16.mxu0 0
  %8480 = vmatpush2.bf16.msra.mxu0 0
  %8481 = vmatprep.subr.bf16.mxu0 0
  %8482 = vmatpush2.bf16.msra.mxu0 0
  %8483 = vmatprep.subr.bf16.mxu0 0
  %8484 = vmatpush2.bf16.msra.mxu0 0
  %8485 = vmatprep.mubr.bf16.mxu0 0
  %8486 = vmatmul.mubr.bf16.gmra.mxu0 %v8448
  %v8487 = vpop.f32.mrf.mxu0
  %v8488 = vadd.f32 0.0, %v8487
  %v8489 = vpop.f32.mrf.mxu0
  %v8490 = vpop.f32.mrf.mxu0
  %v8491 = vadd.f32 0.0, %v8490
  %v8492 = vpop.f32.mrf.mxu0
  %8493 = vmatprep.mubr.bf16.mxu0 0
  %8494 = vmatmul.mubr.bf16.gmra.mxu0 %v8451
  %v8495 = vpop.f32.mrf.mxu0
  %v8496 = vadd.f32 0.0, %v8495
  %v8497 = vpop.f32.mrf.mxu0
  %v8498 = vpop.f32.mrf.mxu0
  %v8499 = vadd.f32 0.0, %v8498
  %v8500 = vpop.f32.mrf.mxu0
  %8501 = vdwg.mxu0
  %v8502 = vlaneseq
  %v8503 = vshrl.u32 %v8502, 7
  %v8504 = vsub.s32 0, %v8503
  %v8505 = vrot.slane %v7228, %v8504
  %v8506 = vadd.f32 %v8488, %v8505
  %v8507 = vadd.f32 %v8491, %v8505
  %v8508 = vadd.f32 %v8496, %v8505
  %v8509 = vadd.f32 %v8499, %v8505
  %v8510 = vadd.f32 %v7207, %v8506
  %v8511 = vadd.f32 %v7208, %v8507
  %v8512 = vadd.f32 %v7209, %v8508
  %v8513 = vadd.f32 %v7210, %v8509
  %v8514 = vld [vmem:[%s9 + $0x2b] sm:$0x1]
  %v8515 = vld [vmem:[%s9 + $0x2c] sm:$0x1]
  %v8516 = vsel %vm296, %v8510, 0.0
  %8517 = vadd.xlane.f32.xlu0 %v8516
  %v8518 = vpop.xlane.xlu0 %8517
  %v8519 = vsel %vm296, %v8511, 0.0
  %8520 = vadd.xlane.f32.xlu0 %v8519
  %v8521 = vpop.xlane.xlu0 %8520
  %v8522 = vsel %vm296, %v8512, 0.0
  %8523 = vadd.xlane.f32.xlu0 %v8522
  %v8524 = vpop.xlane.xlu0 %8523
  %v8525 = vsel %vm296, %v8513, 0.0
  %8526 = vadd.xlane.f32.xlu0 %v8525
  %v8527 = vpop.xlane.xlu0 %8526
  %v8528 = vmul.f32 %v8518, %v1347
  %v8529 = vmul.f32 %v8521, %v1347
  %v8530 = vmul.f32 %v8524, %v1347
  %v8531 = vmul.f32 %v8527, %v1347
  %v8532 = vsub.f32 %v8510, %v8528
  %v8533 = vsub.f32 %v8511, %v8529
  %v8534 = vsub.f32 %v8512, %v8530
  %v8535 = vsub.f32 %v8513, %v8531
  %v8536 = vmul.f32 %v8532, %v8532
  %v8537 = vmul.f32 %v8533, %v8533
  %v8538 = vmul.f32 %v8534, %v8534
  %v8539 = vmul.f32 %v8535, %v8535
  %v8540 = vsel %vm296, %v8536, 0.0
  %8541 = vadd.xlane.f32.xlu0 %v8540
  %v8542 = vpop.xlane.xlu0 %8541
  %v8543 = vsel %vm296, %v8537, 0.0
  %8544 = vadd.xlane.f32.xlu0 %v8543
  %v8545 = vpop.xlane.xlu0 %8544
  %v8546 = vsel %vm296, %v8538, 0.0
  %8547 = vadd.xlane.f32.xlu0 %v8546
  %v8548 = vpop.xlane.xlu0 %8547
  %v8549 = vsel %vm296, %v8539, 0.0
  %8550 = vadd.xlane.f32.xlu0 %v8549
  %v8551 = vpop.xlane.xlu0 %8550
  %v8552 = vmul.f32 %v8542, %v1347
  %v8553 = vmul.f32 %v8545, %v1347
  %v8554 = vmul.f32 %v8548, %v1347
  %v8555 = vmul.f32 %v8551, %v1347
  %v8556 = vadd.f32 %v8552, 1e-05
  %v8557 = vadd.f32 %v8553, 1e-05
  %v8558 = vadd.f32 %v8554, 1e-05
  %v8559 = vadd.f32 %v8555, 1e-05
  %v8560 = vrsqrt.pop %v8556
  %v8561 = vrsqrt.pop %v8557
  %v8562 = vrsqrt.pop %v8558
  %v8563 = vrsqrt.pop %v8559
  %v8564 = vmul.f32 %v8532, %v8560
  %v8565 = vmul.f32 %v8533, %v8561
  %v8566 = vmul.f32 %v8534, %v8562
  %v8567 = vmul.f32 %v8535, %v8563
  %v8568 = vlaneseq
  %v8569 = vshrl.u32 %v8568, 7
  %v8570 = vsub.s32 0, %v8569
  %v8571 = vrot.slane %v8514, %v8570
  %v8572 = vmul.f32 %v8564, %v8571
  %v8573 = vmul.f32 %v8565, %v8571
  %v8574 = vmul.f32 %v8566, %v8571
  %v8575 = vmul.f32 %v8567, %v8571
  %v8576 = vlaneseq
  %v8577 = vshrl.u32 %v8576, 7
  %v8578 = vsub.s32 0, %v8577
  %v8579 = vrot.slane %v8515, %v8578
  %v8580 = vadd.f32 %v8572, %v8579
  %v8581 = vadd.f32 %v8573, %v8579
  %v8582 = vadd.f32 %v8574, %v8579
  %v8583 = vadd.f32 %v8575, %v8579
  %s8584 = scalar_lea.vmem %s4, 48
  %v8585 = vld [vmem:[%s8584] sm:$0xf]
  %v8586 = vld [vmem:[%s8584 + $0x4] sm:$0xf]
  %v8587 = vld [vmem:[%s8584 + $0x8] sm:$0xf]
  %v8588 = vld [vmem:[%s8584 + $0xc] sm:$0xf]
  %v8589 = vld [vmem:[%s9 + $0x27] sm:$0x1]
  %v8590 = vpack.c.bf16 %v8581, %v8580
  %v8591 = vpack.c.bf16 %v8583, %v8582
  %v8596 = vunpack.c.l.b16 %v8585
  %v8597 = vunpack.c.l.b16 %v8586
  %v8598 = vunpack.c.l.b16 %v8587
  %v8599 = vunpack.c.l.b16 %v8588
  %v8600 = vpack.c.b16 %v8597, %v8596
  %v8601 = vpack.c.b16 %v8599, %v8598
  %v8605 = vsel %vm296, %v8590, 0
  %v8608 = vsel %vm296, %v8591, 0
  %8610 = vmatprep.subr.bf16.mxu0 0
  %8611 = vmatpush1.bf16.msra.mxu0 0
  %8612 = vmatprep.subr.bf16.mxu0 0
  %8613 = vmatpush1.bf16.msra.mxu0 0
  %8614 = vmatprep.subr.bf16.mxu0 0
  %8615 = vmatpush1.bf16.msra.mxu0 0
  %8616 = vmatprep.subr.bf16.mxu0 0
  %8617 = vmatpush1.bf16.msra.mxu0 0
  %8618 = vmatprep.subr.bf16.mxu0 0
  %8619 = vmatpush1.bf16.msra.mxu0 0
  %8620 = vmatprep.subr.bf16.mxu0 0
  %8621 = vmatpush1.bf16.msra.mxu0 0
  %8622 = vmatprep.subr.bf16.mxu0 0
  %8623 = vmatpush1.bf16.msra.mxu0 %v8601
  %8624 = vmatprep.subr.bf16.mxu0 0
  %8625 = vmatpush1.bf16.msra.mxu0 %v8600
  %8626 = vmatprep.subr.bf16.mxu0 0
  %8627 = vmatpush2.bf16.msra.mxu0 0
  %8628 = vmatprep.subr.bf16.mxu0 0
  %8629 = vmatpush2.bf16.msra.mxu0 0
  %8630 = vmatprep.subr.bf16.mxu0 0
  %8631 = vmatpush2.bf16.msra.mxu0 0
  %8632 = vmatprep.subr.bf16.mxu0 0
  %8633 = vmatpush2.bf16.msra.mxu0 0
  %8634 = vmatprep.subr.bf16.mxu0 0
  %8635 = vmatpush2.bf16.msra.mxu0 0
  %8636 = vmatprep.subr.bf16.mxu0 0
  %8637 = vmatpush2.bf16.msra.mxu0 0
  %8638 = vmatprep.subr.bf16.mxu0 0
  %8639 = vmatpush2.bf16.msra.mxu0 0
  %8640 = vmatprep.subr.bf16.mxu0 0
  %8641 = vmatpush2.bf16.msra.mxu0 0
  %8642 = vmatprep.mubr.bf16.mxu0 0
  %8643 = vmatmul.mubr.bf16.gmra.mxu0 %v8605
  %v8644 = vpop.f32.mrf.mxu0
  %v8645 = vadd.f32 0.0, %v8644
  %v8646 = vpop.f32.mrf.mxu0
  %v8647 = vpop.f32.mrf.mxu0
  %v8648 = vadd.f32 0.0, %v8647
  %v8649 = vpop.f32.mrf.mxu0
  %8650 = vmatprep.mubr.bf16.mxu0 0
  %8651 = vmatmul.mubr.bf16.gmra.mxu0 %v8608
  %v8652 = vpop.f32.mrf.mxu0
  %v8653 = vadd.f32 0.0, %v8652
  %v8654 = vpop.f32.mrf.mxu0
  %v8655 = vpop.f32.mrf.mxu0
  %v8656 = vadd.f32 0.0, %v8655
  %v8657 = vpop.f32.mrf.mxu0
  %8658 = vdwg.mxu0
  %v8659 = vlaneseq
  %v8660 = vshrl.u32 %v8659, 7
  %v8661 = vsub.s32 0, %v8660
  %v8662 = vrot.slane %v8589, %v8661
  %v8663 = vadd.f32 %v8645, %v8662
  %v8664 = vadd.f32 %v8648, %v8662
  %v8665 = vadd.f32 %v8653, %v8662
  %v8666 = vadd.f32 %v8656, %v8662
  %v8667 = vmax.f32 %v8663, 0.0
  %v8668 = vmax.f32 %v8664, 0.0
  %v8669 = vmax.f32 %v8665, 0.0
  %v8670 = vmax.f32 %v8666, 0.0
  %s8671 = scalar_lea.vmem %s7, 32
  %v8672 = vld [vmem:[%s8671] sm:$0xf]
  %v8673 = vld [vmem:[%s8671 + $0x4] sm:$0xf]
  %v8674 = vld [vmem:[%s8671 + $0x8] sm:$0xf]
  %v8675 = vld [vmem:[%s8671 + $0xc] sm:$0xf]
  %v8676 = vld [vmem:[%s8671 + $0x10] sm:$0xf]
  %v8677 = vld [vmem:[%s8671 + $0x14] sm:$0xf]
  %v8678 = vld [vmem:[%s8671 + $0x18] sm:$0xf]
  %v8679 = vld [vmem:[%s8671 + $0x1c] sm:$0xf]
  %v8680 = vld [vmem:[%s9 + $0x28] sm:$0x1]
  %v8681 = vpack.c.bf16 %v8668, %v8667
  %v8682 = vpack.c.bf16 %v8670, %v8669
  %v8691 = vunpack.c.l.b16 %v8672
  %v8692 = vunpack.c.l.b16 %v8673
  %v8693 = vunpack.c.l.b16 %v8674
  %v8694 = vunpack.c.l.b16 %v8675
  %v8695 = vunpack.c.l.b16 %v8676
  %v8696 = vunpack.c.l.b16 %v8677
  %v8697 = vunpack.c.l.b16 %v8678
  %v8698 = vunpack.c.l.b16 %v8679
  %v8699 = vpack.c.b16 %v8692, %v8691
  %v8700 = vpack.c.b16 %v8694, %v8693
  %v8701 = vpack.c.b16 %v8696, %v8695
  %v8702 = vpack.c.b16 %v8698, %v8697
  %v8708 = vsel %vm1484, %v8681, 0
  %v8711 = vsel %vm1484, %v8682, 0
  %8713 = vmatprep.subr.bf16.mxu0 0
  %8714 = vmatpush1.bf16.msra.mxu0 0
  %8715 = vmatprep.subr.bf16.mxu0 0
  %8716 = vmatpush1.bf16.msra.mxu0 0
  %8717 = vmatprep.subr.bf16.mxu0 0
  %8718 = vmatpush1.bf16.msra.mxu0 0
  %8719 = vmatprep.subr.bf16.mxu0 0
  %8720 = vmatpush1.bf16.msra.mxu0 0
  %8721 = vmatprep.subr.bf16.mxu0 0
  %8722 = vmatpush1.bf16.msra.mxu0 %v8702
  %8723 = vmatprep.subr.bf16.mxu0 0
  %8724 = vmatpush1.bf16.msra.mxu0 %v8701
  %8725 = vmatprep.subr.bf16.mxu0 0
  %8726 = vmatpush1.bf16.msra.mxu0 %v8700
  %8727 = vmatprep.subr.bf16.mxu0 0
  %8728 = vmatpush1.bf16.msra.mxu0 %v8699
  %8729 = vmatprep.subr.bf16.mxu0 0
  %8730 = vmatpush2.bf16.msra.mxu0 0
  %8731 = vmatprep.subr.bf16.mxu0 0
  %8732 = vmatpush2.bf16.msra.mxu0 0
  %8733 = vmatprep.subr.bf16.mxu0 0
  %8734 = vmatpush2.bf16.msra.mxu0 0
  %8735 = vmatprep.subr.bf16.mxu0 0
  %8736 = vmatpush2.bf16.msra.mxu0 0
  %8737 = vmatprep.subr.bf16.mxu0 0
  %8738 = vmatpush2.bf16.msra.mxu0 0
  %8739 = vmatprep.subr.bf16.mxu0 0
  %8740 = vmatpush2.bf16.msra.mxu0 0
  %8741 = vmatprep.subr.bf16.mxu0 0
  %8742 = vmatpush2.bf16.msra.mxu0 0
  %8743 = vmatprep.subr.bf16.mxu0 0
  %8744 = vmatpush2.bf16.msra.mxu0 0
  %8745 = vmatprep.mubr.bf16.mxu0 0
  %8746 = vmatmul.mubr.bf16.gmra.mxu0 %v8708
  %v8747 = vpop.f32.mrf.mxu0
  %v8748 = vpop.f32.mrf.mxu0
  %v8749 = vpop.f32.mrf.mxu0
  %v8750 = vadd.f32 0.0, %v8749
  %v8751 = vpop.f32.mrf.mxu0
  %8752 = vmatprep.mubr.bf16.mxu0 0
  %8753 = vmatmul.mubr.bf16.gmra.mxu0 %v8711
  %v8754 = vpop.f32.mrf.mxu0
  %v8755 = vpop.f32.mrf.mxu0
  %v8756 = vpop.f32.mrf.mxu0
  %v8757 = vadd.f32 0.0, %v8756
  %v8758 = vpop.f32.mrf.mxu0
  %8759 = vdwg.mxu0
  %v8760 = vlaneseq
  %v8761 = vshrl.u32 %v8760, 7
  %v8762 = vsub.s32 0, %v8761
  %v8763 = vrot.slane %v8680, %v8762
  %v8764 = vadd.f32 %v8750, %v8763
  %v8765 = vadd.f32 %v8757, %v8763
  %v8766 = vadd.f32 %v8581, %v8764
  %v8767 = vadd.f32 %v8583, %v8765
  %v8768 = vld [vmem:[%s9 + $0x2d] sm:$0x1]
  %v8769 = vld [vmem:[%s9 + $0x2e] sm:$0x1]
  %v8770 = vsel %vm296, %v8766, 0.0
  %8771 = vadd.xlane.f32.xlu0 %v8770
  %v8772 = vpop.xlane.xlu0 %8771
  %v8773 = vsel %vm296, %v8767, 0.0
  %8774 = vadd.xlane.f32.xlu0 %v8773
  %v8775 = vpop.xlane.xlu0 %8774
  %v8776 = vmul.f32 %v8772, %v1347
  %v8777 = vmul.f32 %v8775, %v1347
  %v8778 = vsub.f32 %v8766, %v8776
  %v8779 = vsub.f32 %v8767, %v8777
  %v8780 = vmul.f32 %v8778, %v8778
  %v8781 = vmul.f32 %v8779, %v8779
  %v8782 = vsel %vm296, %v8780, 0.0
  %8783 = vadd.xlane.f32.xlu0 %v8782
  %v8784 = vpop.xlane.xlu0 %8783
  %v8785 = vsel %vm296, %v8781, 0.0
  %8786 = vadd.xlane.f32.xlu0 %v8785
  %v8787 = vpop.xlane.xlu0 %8786
  %v8788 = vmul.f32 %v8784, %v1347
  %v8789 = vmul.f32 %v8787, %v1347
  %v8790 = vadd.f32 %v8788, 1e-05
  %v8791 = vadd.f32 %v8789, 1e-05
  %v8792 = vrsqrt.pop %v8790
  %v8793 = vrsqrt.pop %v8791
  %v8794 = vmul.f32 %v8778, %v8792
  %v8795 = vmul.f32 %v8779, %v8793
  %v8796 = vlaneseq
  %v8797 = vshrl.u32 %v8796, 7
  %v8798 = vsub.s32 0, %v8797
  %v8799 = vrot.slane %v8768, %v8798
  %v8800 = vmul.f32 %v8794, %v8799
  %v8801 = vmul.f32 %v8795, %v8799
  %v8802 = vlaneseq
  %v8803 = vshrl.u32 %v8802, 7
  %v8804 = vsub.s32 0, %v8803
  %v8805 = vrot.slane %v8769, %v8804
  %v8806 = vadd.f32 %v8800, %v8805
  %v8807 = vadd.f32 %v8801, %v8805
  %s8808 = scalar_lea.vmem %s4, 64
  %v8809 = vld [vmem:[%s8808] sm:$0xf]
  %v8810 = vld [vmem:[%s8808 + $0x4] sm:$0xf]
  %v8811 = vld [vmem:[%s8808 + $0x8] sm:$0xf]
  %v8812 = vld [vmem:[%s8808 + $0xc] sm:$0xf]
  %v8813 = vld [vmem:[%s9 + $0x3] sm:$0x1]
  %v8814 = vpack.c.bf16 %v8807, %v8806
  %v8819 = vunpack.c.l.b16 %v8809
  %v8820 = vunpack.c.l.b16 %v8810
  %v8821 = vunpack.c.l.b16 %v8811
  %v8822 = vunpack.c.l.b16 %v8812
  %v8823 = vpack.c.b16 %v8820, %v8819
  %v8824 = vpack.c.b16 %v8822, %v8821
  %v8828 = vsel %vm296, %v8814, 0
  %8830 = vmatprep.subr.bf16.mxu0 0
  %8831 = vmatpush1.bf16.msra.mxu0 0
  %8832 = vmatprep.subr.bf16.mxu0 0
  %8833 = vmatpush1.bf16.msra.mxu0 0
  %8834 = vmatprep.subr.bf16.mxu0 0
  %8835 = vmatpush1.bf16.msra.mxu0 0
  %8836 = vmatprep.subr.bf16.mxu0 0
  %8837 = vmatpush1.bf16.msra.mxu0 0
  %8838 = vmatprep.subr.bf16.mxu0 0
  %8839 = vmatpush1.bf16.msra.mxu0 0
  %8840 = vmatprep.subr.bf16.mxu0 0
  %8841 = vmatpush1.bf16.msra.mxu0 0
  %8842 = vmatprep.subr.bf16.mxu0 0
  %8843 = vmatpush1.bf16.msra.mxu0 %v8824
  %8844 = vmatprep.subr.bf16.mxu0 0
  %8845 = vmatpush1.bf16.msra.mxu0 %v8823
  %8846 = vmatprep.subr.bf16.mxu0 0
  %8847 = vmatpush2.bf16.msra.mxu0 0
  %8848 = vmatprep.subr.bf16.mxu0 0
  %8849 = vmatpush2.bf16.msra.mxu0 0
  %8850 = vmatprep.subr.bf16.mxu0 0
  %8851 = vmatpush2.bf16.msra.mxu0 0
  %8852 = vmatprep.subr.bf16.mxu0 0
  %8853 = vmatpush2.bf16.msra.mxu0 0
  %8854 = vmatprep.subr.bf16.mxu0 0
  %8855 = vmatpush2.bf16.msra.mxu0 0
  %8856 = vmatprep.subr.bf16.mxu0 0
  %8857 = vmatpush2.bf16.msra.mxu0 0
  %8858 = vmatprep.subr.bf16.mxu0 0
  %8859 = vmatpush2.bf16.msra.mxu0 0
  %8860 = vmatprep.subr.bf16.mxu0 0
  %8861 = vmatpush2.bf16.msra.mxu0 0
  %8862 = vmatprep.mubr.bf16.mxu0 0
  %8863 = vmatmul.mubr.bf16.gmra.mxu0 %v8828
  %v8864 = vpop.f32.mrf.mxu0
  %v8865 = vadd.f32 0.0, %v8864
  %v8866 = vpop.f32.mrf.mxu0
  %v8867 = vpop.f32.mrf.mxu0
  %v8868 = vadd.f32 0.0, %v8867
  %v8869 = vpop.f32.mrf.mxu0
  %8870 = vdwg.mxu0
  %v8871 = vlaneseq
  %v8872 = vshrl.u32 %v8871, 7
  %v8873 = vsub.s32 0, %v8872
  %v8874 = vrot.slane %v8813, %v8873
  %v8875 = vadd.f32 %v8865, %v8874
  %v8876 = vadd.f32 %v8868, %v8874
  %v8877 = vmax.f32 %v8875, 0.0
  %v8878 = vmax.f32 %v8876, 0.0
  %s8879 = scalar_lea.vmem %s7, 64
  %v8880 = vld [vmem:[%s8879] sm:$0xf]
  %v8881 = vld [vmem:[%s8879 + $0x4] sm:$0xf]
  %v8882 = vld [vmem:[%s8879 + $0x8] sm:$0xf]
  %v8883 = vld [vmem:[%s8879 + $0xc] sm:$0xf]
  %v8884 = vld [vmem:[%s8879 + $0x10] sm:$0xf]
  %v8885 = vld [vmem:[%s8879 + $0x14] sm:$0xf]
  %v8886 = vld [vmem:[%s8879 + $0x18] sm:$0xf]
  %v8887 = vld [vmem:[%s8879 + $0x1c] sm:$0xf]
  %v8888 = vld [vmem:[%s9 + $0x4] sm:$0x1]
  %v8889 = vpack.c.bf16 %v8878, %v8877
  %v8898 = vunpack.c.l.b16 %v8880
  %v8899 = vunpack.c.l.b16 %v8881
  %v8900 = vunpack.c.l.b16 %v8882
  %v8901 = vunpack.c.l.b16 %v8883
  %v8902 = vunpack.c.l.b16 %v8884
  %v8903 = vunpack.c.l.b16 %v8885
  %v8904 = vunpack.c.l.b16 %v8886
  %v8905 = vunpack.c.l.b16 %v8887
  %v8906 = vpack.c.b16 %v8899, %v8898
  %v8907 = vpack.c.b16 %v8901, %v8900
  %v8908 = vpack.c.b16 %v8903, %v8902
  %v8909 = vpack.c.b16 %v8905, %v8904
  %v8915 = vsel %vm1484, %v8889, 0
  %8917 = vmatprep.subr.bf16.mxu0 0
  %8918 = vmatpush1.bf16.msra.mxu0 0
  %8919 = vmatprep.subr.bf16.mxu0 0
  %8920 = vmatpush1.bf16.msra.mxu0 0
  %8921 = vmatprep.subr.bf16.mxu0 0
  %8922 = vmatpush1.bf16.msra.mxu0 0
  %8923 = vmatprep.subr.bf16.mxu0 0
  %8924 = vmatpush1.bf16.msra.mxu0 0
  %8925 = vmatprep.subr.bf16.mxu0 0
  %8926 = vmatpush1.bf16.msra.mxu0 %v8909
  %8927 = vmatprep.subr.bf16.mxu0 0
  %8928 = vmatpush1.bf16.msra.mxu0 %v8908
  %8929 = vmatprep.subr.bf16.mxu0 0
  %8930 = vmatpush1.bf16.msra.mxu0 %v8907
  %8931 = vmatprep.subr.bf16.mxu0 0
  %8932 = vmatpush1.bf16.msra.mxu0 %v8906
  %8933 = vmatprep.subr.bf16.mxu0 0
  %8934 = vmatpush2.bf16.msra.mxu0 0
  %8935 = vmatprep.subr.bf16.mxu0 0
  %8936 = vmatpush2.bf16.msra.mxu0 0
  %8937 = vmatprep.subr.bf16.mxu0 0
  %8938 = vmatpush2.bf16.msra.mxu0 0
  %8939 = vmatprep.subr.bf16.mxu0 0
  %8940 = vmatpush2.bf16.msra.mxu0 0
  %8941 = vmatprep.subr.bf16.mxu0 0
  %8942 = vmatpush2.bf16.msra.mxu0 0
  %8943 = vmatprep.subr.bf16.mxu0 0
  %8944 = vmatpush2.bf16.msra.mxu0 0
  %8945 = vmatprep.subr.bf16.mxu0 0
  %8946 = vmatpush2.bf16.msra.mxu0 0
  %8947 = vmatprep.subr.bf16.mxu0 0
  %8948 = vmatpush2.bf16.msra.mxu0 0
  %8949 = vmatprep.mubr.bf16.mxu0 0
  %8950 = vmatmul.mubr.bf16.gmra.mxu0 %v8915
  %v8951 = vpop.f32.mrf.mxu0
  %v8952 = vadd.f32 0.0, %v8951
  %v8953 = vpop.f32.mrf.mxu0
  %v8954 = vpop.f32.mrf.mxu0
  %v8955 = vadd.f32 0.0, %v8954
  %v8956 = vpop.f32.mrf.mxu0
  %8957 = vdwg.mxu0
  %v8958 = vlaneseq
  %v8959 = vshrl.u32 %v8958, 7
  %v8960 = vsub.s32 0, %v8959
  %v8961 = vrot.slane %v8888, %v8960
  %v8962 = vadd.f32 %v8952, %v8961
  %v8963 = vadd.f32 %v8955, %v8961
  %v8964 = vlaneseq
  %v8965 = vshrl.u32 %v8964, 7
  %v8966 = vsub.s32 0, %v8965
  %v8967 = vrot.slane %v165, %v8966
  %v8968 = vlaneseq
  %v8969 = vshrl.u32 %v8968, 7
  %v8970 = vsub.s32 0, %v8969
  %v8971 = vrot.slane %v197, %v8970
  %v8972 = vmul.f32 %v8962, %v8967
  %v8973 = vmul.f32 %v8963, %v8971
  %v8974 = vlaneseq
  %v8975 = vshrl.u32 %v8974, 7
  %v8976 = vsub.s32 0, %v8975
  %v8977 = vrot.slane %v101, %v8976
  %v8978 = vlaneseq
  %v8979 = vshrl.u32 %v8978, 7
  %v8980 = vsub.s32 0, %v8979
  %v8981 = vrot.slane %v133, %v8980
  %v8982 = vadd.f32 %v8972, %v8977
  %v8983 = vadd.f32 %v8973, %v8981
  %vm8984 = vcmask 31744
  %8985 = vst.msk [vmem:[%s10] sm:$0xff] %vm8984, %v8982
  %8986 = vst.msk [vmem:[%s10 + $0x8] sm:$0xff] %vm8984, %v8983
  // Predicated region
  $region42: #{forward.1} parent=0 // pred_check
    _
  $region43: #{forward.1} parent=0 // pred_check_branch
    %8988 = sbr.rel (0) target = $region45
  $region44: #{forward.1} parent=0 // pred_region
    _
  $region45: #{forward.1} parent=0 // pred_fallthru
    _
  // Predicated region
  $region46: #{forward.1} parent=0 // pred_check
    _
  $region47: #{forward.1} parent=0 // pred_check_branch
    %8990 = sbr.rel (0) target = $region49
  $region48: #{forward.1} parent=0 // pred_region
    _
  $region49: #{forward.1} parent=0 // pred_fallthru
    _

</llo_original>
